<compile_context>
chip_gen: v5e
topology: v5e:2x2
jax: 0.10.0
libtpu: 0.0.40
codegen_flags: <defaults>
</compile_context>

<pallas_src>
import jax
import jax.numpy as jnp
from jax.experimental import pallas as pl
from jax.experimental.pallas import tpu as pltpu  # noqa: F401  (TPU backend)

# ---------------------------- configuration ----------------------------------
DIM = 32
NUM_TOKENS = 64
MAX_SEQ_LEN = 32
HEADS = 2
DEPTH = 2
DIM_HEAD = 16
INNER = HEADS * DIM_HEAD          # 32
FF_INNER = 4 * DIM                # 128
LN_EPS = 1e-5
QK_NORM_SCALE = 10.0              # x_transformers default scale when qk_norm=True

BATCH = 2
AUDIO_SEQ = 8
TEXT_LEN = 9
DEC_LEN = TEXT_LEN - 1            # AutoregressiveWrapper: 8 input / 8 target


# --------------------------- in-kernel helpers --------------------------------
def _ln(x, g, b):
    """LayerNorm over the last dim. x (M, D) f32, g/b (1, D) f32."""
    mu = jnp.mean(x, axis=-1, keepdims=True)
    xc = x - mu
    var = jnp.mean(xc * xc, axis=-1, keepdims=True)
    return xc * jax.lax.rsqrt(var + LN_EPS) * g + b


def _mm(x, w):
    """f32 activations x bf16 weights on the MXU, f32 accumulation."""
    return jnp.dot(x.astype(jnp.bfloat16), w.astype(jnp.bfloat16),
                   preferred_element_type=jnp.float32)


def _mha(q, k, v, *, b, n, m, scale, mask=None, qk_l2norm=False, shared_kv=False):
    """Multi-head attention fully in-register.

    q: (b*n, HEADS*DIM_HEAD); k, v: (b*m, HEADS*DIM_HEAD), or (b*m, DIM_HEAD)
    when K/V are shared across heads.  Returns (b*n, HEADS*DIM_HEAD).
    """
    outs = []
    for h in range(HEADS):
        qh = q[:, h * DIM_HEAD:(h + 1) * DIM_HEAD].reshape(b, n, DIM_HEAD)
        if shared_kv:
            kh = k.reshape(b, m, DIM_HEAD)
            vh = v.reshape(b, m, DIM_HEAD)
        else:
            kh = k[:, h * DIM_HEAD:(h + 1) * DIM_HEAD].reshape(b, m, DIM_HEAD)
            vh = v[:, h * DIM_HEAD:(h + 1) * DIM_HEAD].reshape(b, m, DIM_HEAD)
        if qk_l2norm:
            qh = qh * jax.lax.rsqrt(jnp.sum(qh * qh, -1, keepdims=True) + 1e-12)
            kh = kh * jax.lax.rsqrt(jnp.sum(kh * kh, -1, keepdims=True) + 1e-12)
        s = jnp.einsum("bnd,bmd->bnm",
                       qh.astype(jnp.bfloat16), kh.astype(jnp.bfloat16),
                       preferred_element_type=jnp.float32) * scale
        if mask is not None:
            s = jnp.where(mask[None, :, :], s, -1e30)
        s = s - jnp.max(s, axis=-1, keepdims=True)
        p = jnp.exp(s)
        p = p / jnp.sum(p, axis=-1, keepdims=True)
        oh = jnp.einsum("bnm,bmd->bnd",
                        p.astype(jnp.bfloat16), vh.astype(jnp.bfloat16),
                        preferred_element_type=jnp.float32)
        outs.append(oh.reshape(b * n, DIM_HEAD))
    return jnp.concatenate(outs, axis=-1)


# ------------------------------ encoder kernel --------------------------------
def _encoder_kernel(audio_ref, a2t_ref, rpl_qkv_ref, rpl_out_ref,
                    ca_norms_ref, ca_qff_ref, ca_kv_ref, ca_out_ref, ca_ffw2_ref,
                    xc_misc_ref, xc_dense_ref, out_norms_ref, ctx_ref):
    b, s = BATCH, AUDIO_SEQ

    # audio_to_text: per-timestep linear lift (1 -> dim) + LayerNorm.
    a2t = a2t_ref[...]                                   # rows: [w, b, ln_g, ln_b]
    x = audio_ref[...] * a2t[0:1, :] + a2t[1:2, :]       # (b*s, DIM)
    x = _ln(x, a2t[2:3, :], a2t[3:4, :])
    skip = x

    # causal mask built once, reused by all rpl layers / heads.
    ii = jax.lax.broadcasted_iota(jnp.int32, (s, s), 0)
    jj = jax.lax.broadcasted_iota(jnp.int32, (s, s), 1)
    causal = jj <= ii

    # 3 x causal qk-norm attention layers (x_transformers Attention).
    for l in range(3):
        qkv = _mm(x, rpl_qkv_ref[l])                     # (b*s, 3*INNER)
        q = qkv[:, :INNER]
        k = qkv[:, INNER:2 * INNER]
        v = qkv[:, 2 * INNER:]
        o = _mha(q, k, v, b=b, n=s, m=s, scale=QK_NORM_SCALE,
                 mask=causal, qk_l2norm=True)
        x = _mm(o, rpl_out_ref[l])

    # XCAttention: CrossAttention(x, x) with parallel SwiGLU FF, then gate.
    cn = ca_norms_ref[...]                               # [x_g, x_b, ctx_g, ctx_b]
    xn = _ln(x, cn[0:1, :], cn[1:2, :])                  # norm(x)
    ctxn = _ln(x, cn[2:3, :], cn[3:4, :])                # context_norm(x)

    qff = _mm(xn, ca_qff_ref[...])                       # fused to_q | ff_w1
    q = qff[:, :INNER]
    ff = qff[:, INNER:]
    kv = _mm(ctxn, ca_kv_ref[...])                       # (b*s, 2*DIM_HEAD)
    k = kv[:, :DIM_HEAD]
    v = kv[:, DIM_HEAD:]
    o = _mha(q, k, v, b=b, n=s, m=s, scale=DIM_HEAD ** -0.5, shared_kv=True)
    ca_out = _mm(o, ca_out_ref[...])
    a_part = ff[:, :FF_INNER]
    gate = ff[:, FF_INNER:]
    ca_out = ca_out + _mm(jax.nn.silu(gate) * a_part, ca_ffw2_ref[...])

    xcm = xc_misc_ref[...]                               # [xc_norm_g, xc_norm_b, dense_b]
    y = _ln(ca_out, xcm[0:1, :], xcm[1:2, :])
    y = jnp.tanh(y) + x                                  # XCAttention skip
    y = _mm(y, xc_dense_ref[...]) + xcm[2:3, :]
    x = jnp.tanh(y)

    # encoder block LN + skip, then AudioFlamingo final LN (fused).
    on = out_norms_ref[...]                              # [blk_g, blk_b, af_g, af_b]
    x = _ln(x, on[0:1, :], on[1:2, :]) + skip
    x = _ln(x, on[2:3, :], on[3:4, :])

    ctx_ref[...] = x.reshape(b, s, DIM)


# ------------------------------ decoder kernel --------------------------------
def _decoder_kernel(ids_ref, tok_emb_ref, pos_emb_ref, emb_norm_ref, ctx_ref,
                    lnorms_ref, sa_qkv_ref, sa_o_ref,
                    ca_q_ref, ca_kv_ref, ca_o_ref,
                    ff_w1_ref, ff_b1_ref, ff_w2_ref, ff_b2_ref,
                    final_norm_ref, logits_w_ref, loss_ref):
    b, n, m = BATCH, DEC_LEN, AUDIO_SEQ
    bn = b * n

    ids = ids_ref[...]                                   # (b*n, 2) int32 [inp|target]
    vocab_iota = jax.lax.broadcasted_iota(jnp.int32, (bn, NUM_TOKENS), 1)
    inp_oh = (vocab_iota == ids[:, 0:1]).astype(jnp.float32)
    tgt_oh = (vocab_iota == ids[:, 1:2]).astype(jnp.float32)

    # token embedding gather via one-hot matmul (exact, stays on the MXU).
    x = jnp.dot(inp_oh, tok_emb_ref[...], preferred_element_type=jnp.float32)
    pos = pos_emb_ref[...][:n, :]
    x = (x.reshape(b, n, DIM) + pos[None, :, :]).reshape(bn, DIM)

    en = emb_norm_ref[...]
    x = _ln(x, en[0:1, :], en[1:2, :])                   # post_emb_norm

    ii = jax.lax.broadcasted_iota(jnp.int32, (n, n), 0)
    jj = jax.lax.broadcasted_iota(jnp.int32, (n, n), 1)
    causal = jj <= ii

    ctx = ctx_ref[...].reshape(b * m, DIM)               # encoded audio context

    for l in range(DEPTH):
        lnp = lnorms_ref[l]                              # (6, DIM)

        # causal self-attention (fused LN + QKV + attn + out-proj + residual)
        xn = _ln(x, lnp[0:1, :], lnp[1:2, :])
        qkv = _mm(xn, sa_qkv_ref[l])
        q = qkv[:, :INNER]
        k = qkv[:, INNER:2 * INNER]
        v = qkv[:, 2 * INNER:]
        o = _mha(q, k, v, b=b, n=n, m=n, scale=DIM_HEAD ** -0.5, mask=causal)
        x = x + _mm(o, sa_o_ref[l])

        # cross-attention to the encoded audio context
        xn = _ln(x, lnp[2:3, :], lnp[3:4, :])
        q = _mm(xn, ca_q_ref[l])
        kv = _mm(ctx, ca_kv_ref[l])
        k = kv[:, :INNER]
        v = kv[:, INNER:]
        o = _mha(q, k, v, b=b, n=n, m=m, scale=DIM_HEAD ** -0.5)
        x = x + _mm(o, ca_o_ref[l])

        # feed-forward (GELU)
        xn = _ln(x, lnp[4:5, :], lnp[5:6, :])
        h = _mm(xn, ff_w1_ref[l]) + ff_b1_ref[...][l:l + 1, :]
        h = jax.nn.gelu(h)
        x = x + _mm(h, ff_w2_ref[l]) + ff_b2_ref[...][l:l + 1, :]

    # final LN + logits + cross-entropy (all fused; only the scalar loss leaves).
    fn = final_norm_ref[...]
    logits = _mm(_ln(x, fn[0:1, :], fn[1:2, :]), logits_w_ref[...])   # (b*n, V)

    mx = jnp.max(logits, axis=-1, keepdims=True)
    z = logits - mx
    lse = jnp.log(jnp.sum(jnp.exp(z), axis=-1, keepdims=True)) + mx
    tgt_logit = jnp.sum(logits * tgt_oh, axis=-1, keepdims=True)
    nll = lse - tgt_logit                                # (b*n, 1)
    loss_val = jnp.sum(nll) * (1.0 / bn)
    loss_ref[...] = jnp.full(loss_ref.shape, loss_val, dtype=jnp.float32)


# ------------------------------ kernel wrappers --------------------------------
def encoder_forward(enc, audio):
    audio_col = audio.reshape(-1, 1).astype(jnp.float32)            # (b*s, 1)
    return pl.pallas_call(
        _encoder_kernel,
        out_shape=jax.ShapeDtypeStruct((BATCH, AUDIO_SEQ, DIM), jnp.float32),
    )(audio_col, enc["a2t"], enc["rpl_qkv"], enc["rpl_out"],
      enc["ca_norms"], enc["ca_q_ff1"], enc["ca_kv"], enc["ca_out"],
      enc["ca_ff_w2"], enc["xc_misc"], enc["xc_dense_w"], enc["out_norms"])


def decoder_forward(dec, text, context):
    inp = text[:, :-1].reshape(-1, 1)
    tgt = text[:, 1:].reshape(-1, 1)
    ids = jnp.concatenate([inp, tgt], axis=-1).astype(jnp.int32)    # (b*n, 2)
    loss = pl.pallas_call(
        _decoder_kernel,
        out_shape=jax.ShapeDtypeStruct((1, 128), jnp.float32),
    )(ids, dec["tok_emb"], dec["pos_emb"], dec["emb_norm"], context,
      dec["lnorms"], dec["sa_qkv"], dec["sa_o"],
      dec["ca_q"], dec["ca_kv"], dec["ca_o"],
      dec["ff_w1"], dec["ff_b1"], dec["ff_w2"], dec["ff_b2"],
      dec["final_norm"], dec["to_logits"])
    return loss[0, 0]


def audio_flamingo_forward(params, text, audio):
    context = encoder_forward(params["encoder"], audio)   # one encoder block + AF norm
    return decoder_forward(params["decoder"], text, context)


# ------------------------------- parameter init --------------------------------
def init_params(key):
    keys = iter(jax.random.split(key, 64))

    def w(shape, scale=0.02):
        # Projection weights stored bf16 (MXU-native operands, f32 accumulation).
        return (scale * jax.random.normal(next(keys), shape)).astype(jnp.bfloat16)

    def wf(shape, scale=0.02):
        return (scale * jax.random.normal(next(keys), shape)).astype(jnp.float32)

    ones = lambda s: jnp.ones(s, jnp.float32)
    zeros = lambda s: jnp.zeros(s, jnp.float32)

    encoder = dict(
        # rows: [lift_w, lift_b, ln_g, ln_b]
        a2t=jnp.stack([wf((DIM,)), zeros((DIM,)), ones((DIM,)), zeros((DIM,))]),
        rpl_qkv=w((3, DIM, 3 * INNER)),
        rpl_out=w((3, INNER, DIM)),
        # rows: [x_norm_g, x_norm_b, ctx_norm_g, ctx_norm_b]
        ca_norms=jnp.stack([ones((DIM,)), zeros((DIM,)), ones((DIM,)), zeros((DIM,))]),
        ca_q_ff1=w((DIM, INNER + 2 * FF_INNER)),          # fused to_q | ff_w1
        ca_kv=w((DIM, 2 * DIM_HEAD)),
        ca_out=w((INNER, DIM)),
        ca_ff_w2=w((FF_INNER, DIM)),
        # rows: [xc_norm_g, xc_norm_b, dense_b]
        xc_misc=jnp.stack([ones((DIM,)), zeros((DIM,)), zeros((DIM,))]),
        xc_dense_w=w((DIM, DIM)),
        # rows: [blk_norm_g, blk_norm_b, af_norm_g, af_norm_b]
        out_norms=jnp.stack([ones((DIM,)), zeros((DIM,)), ones((DIM,)), zeros((DIM,))]),
    )

    per_layer_ln = [ones((DIM,)), zeros((DIM,)),     # self-attn LN
                    ones((DIM,)), zeros((DIM,)),     # cross-attn LN
                    ones((DIM,)), zeros((DIM,))]     # FF LN
    lnorms = jnp.stack([jnp.stack(per_layer_ln) for _ in range(DEPTH)])

    decoder = dict(
        tok_emb=wf((NUM_TOKENS, DIM)),
        pos_emb=wf((MAX_SEQ_LEN, DIM)),
        emb_norm=jnp.stack([ones((DIM,)), zeros((DIM,))]),
        lnorms=lnorms,                                    # (DEPTH, 6, DIM)
        sa_qkv=w((DEPTH, DIM, 3 * INNER)),
        sa_o=w((DEPTH, INNER, DIM)),
        ca_q=w((DEPTH, DIM, INNER)),
        ca_kv=w((DEPTH, DIM, 2 * INNER)),
        ca_o=w((DEPTH, INNER, DIM)),
        ff_w1=w((DEPTH, DIM, FF_INNER)),
        ff_b1=zeros((DEPTH, FF_INNER)),
        ff_w2=w((DEPTH, FF_INNER, DIM)),
        ff_b2=zeros((DEPTH, DIM)),
        final_norm=jnp.stack([ones((DIM,)), zeros((DIM,))]),
        to_logits=w((DIM, NUM_TOKENS)),
    )
    return dict(encoder=encoder, decoder=decoder)


# ----------------------------------- main --------------------------------------
if __name__ == "__main__":
    key = jax.random.PRNGKey(0)
    k_param, k_text, k_audio = jax.random.split(key, 3)

    params = init_params(k_param)
    text = jax.random.randint(k_text, (BATCH, TEXT_LEN), 0, NUM_TOKENS, dtype=jnp.int32)
    audio = jax.random.normal(k_audio, (BATCH, AUDIO_SEQ), dtype=jnp.float32)

    forward = jax.jit(audio_flamingo_forward)
    loss = forward(params, text, audio)
    jax.block_until_ready(loss)

    assert loss.shape == () and jnp.isfinite(loss)
    print("KERNEL_OK")
</pallas_src>

<mosaic_0001>
module attributes {stable_mosaic.version = 11 : i64} {
  func.func @_encoder_kernel(%arg0: memref<16x1xf32, #tpu.memory_space<vmem>>, %arg1: memref<4x32xf32, #tpu.memory_space<vmem>>, %arg2: memref<3x32x96xbf16, #tpu.memory_space<vmem>>, %arg3: memref<3x32x32xbf16, #tpu.memory_space<vmem>>, %arg4: memref<4x32xf32, #tpu.memory_space<vmem>>, %arg5: memref<32x288xbf16, #tpu.memory_space<vmem>>, %arg6: memref<32x32xbf16, #tpu.memory_space<vmem>>, %arg7: memref<32x32xbf16, #tpu.memory_space<vmem>>, %arg8: memref<128x32xbf16, #tpu.memory_space<vmem>>, %arg9: memref<3x32xf32, #tpu.memory_space<vmem>>, %arg10: memref<32x32xbf16, #tpu.memory_space<vmem>>, %arg11: memref<4x32xf32, #tpu.memory_space<vmem>>, %arg12: memref<2x8x32xf32, #tpu.memory_space<vmem>>) attributes {dimension_semantics = [], scalar_prefetch = 0 : i64, scratch_operands = 0 : i64, tpu.core_type = #tpu.core_type<tc>} {
    %c0 = arith.constant 0 : index
    %c0_0 = arith.constant 0 : index
    %0 = vector.load %arg1[%c0, %c0_0] : memref<4x32xf32, #tpu.memory_space<vmem>>, vector<4x32xf32>
    %c0_1 = arith.constant 0 : index
    %c0_2 = arith.constant 0 : index
    %1 = vector.load %arg0[%c0_1, %c0_2] : memref<16x1xf32, #tpu.memory_space<vmem>>, vector<16x1xf32>
    %2 = vector.extract_strided_slice %0 {offsets = [0, 0], sizes = [1, 32], strides = [1, 1]} : vector<4x32xf32> to vector<1x32xf32>
    %3 = vector.broadcast %1 : vector<16x1xf32> to vector<16x32xf32>
    %4 = vector.broadcast %2 : vector<1x32xf32> to vector<16x32xf32>
    %5 = arith.mulf %3, %4 : vector<16x32xf32>
    %6 = vector.extract_strided_slice %0 {offsets = [1, 0], sizes = [1, 32], strides = [1, 1]} : vector<4x32xf32> to vector<1x32xf32>
    %7 = vector.broadcast %6 : vector<1x32xf32> to vector<16x32xf32>
    %8 = arith.addf %5, %7 : vector<16x32xf32>
    %9 = vector.extract_strided_slice %0 {offsets = [2, 0], sizes = [1, 32], strides = [1, 1]} : vector<4x32xf32> to vector<1x32xf32>
    %10 = vector.extract_strided_slice %0 {offsets = [3, 0], sizes = [1, 32], strides = [1, 1]} : vector<4x32xf32> to vector<1x32xf32>
    %cst = arith.constant dense<0.000000e+00> : vector<16xf32>
    %11 = vector.multi_reduction <add>, %8, %cst [1] : vector<16x32xf32> to vector<16xf32>
    %12 = vector.shape_cast %11 : vector<16xf32> to vector<16x1xf32>
    %cst_3 = arith.constant 3.200000e+01 : f32
    %13 = vector.broadcast %cst_3 : f32 to vector<16x1xf32>
    %14 = arith.divf %12, %13 : vector<16x1xf32>
    %15 = vector.broadcast %14 : vector<16x1xf32> to vector<16x32xf32>
    %16 = arith.subf %8, %15 : vector<16x32xf32>
    %17 = arith.mulf %16, %16 : vector<16x32xf32>
    %cst_4 = arith.constant dense<0.000000e+00> : vector<16xf32>
    %18 = vector.multi_reduction <add>, %17, %cst_4 [1] : vector<16x32xf32> to vector<16xf32>
    %19 = vector.shape_cast %18 : vector<16xf32> to vector<16x1xf32>
    %cst_5 = arith.constant 3.200000e+01 : f32
    %20 = vector.broadcast %cst_5 : f32 to vector<16x1xf32>
    %21 = arith.divf %19, %20 : vector<16x1xf32>
    %cst_6 = arith.constant 9.99999974E-6 : f32
    %22 = vector.broadcast %cst_6 : f32 to vector<16x1xf32>
    %23 = arith.addf %21, %22 : vector<16x1xf32>
    %24 = math.rsqrt %23 : vector<16x1xf32>
    %25 = vector.broadcast %24 : vector<16x1xf32> to vector<16x32xf32>
    %26 = arith.mulf %16, %25 : vector<16x32xf32>
    %27 = vector.broadcast %9 : vector<1x32xf32> to vector<16x32xf32>
    %28 = arith.mulf %26, %27 : vector<16x32xf32>
    %29 = vector.broadcast %10 : vector<1x32xf32> to vector<16x32xf32>
    %30 = arith.addf %28, %29 : vector<16x32xf32>
    %31 = tpu.iota {dimensions = array<i32: 0>} : vector<8x8xi32>
    %32 = tpu.iota {dimensions = array<i32: 1>} : vector<8x8xi32>
    %33 = arith.cmpi sle, %32, %31 : vector<8x8xi32>
    %c0_7 = arith.constant 0 : index
    %c0_8 = arith.constant 0 : index
    %c0_9 = arith.constant 0 : index
    %34 = vector.load %arg2[%c0_7, %c0_8, %c0_9] : memref<3x32x96xbf16, #tpu.memory_space<vmem>>, vector<1x32x96xbf16>
    %35 = vector.shape_cast %34 : vector<1x32x96xbf16> to vector<32x96xbf16>
    %36 = arith.truncf %30 : vector<16x32xf32> to vector<16x32xbf16>
    %cst_10 = arith.constant dense<0.000000e+00> : vector<16x96xf32>
    %37 = tpu.matmul %36, %35, %cst_10 {dimension_numbers = #tpu.dot_dimension_numbers<[1], [0], [0], [1], [0, 0, 1, 1], [], []>} : vector<16x32xbf16>, vector<32x96xbf16>, vector<16x96xf32> -> vector<16x96xf32>
    %38 = vector.extract_strided_slice %37 {offsets = [0, 0], sizes = [16, 32], strides = [1, 1]} : vector<16x96xf32> to vector<16x32xf32>
    %39 = vector.extract_strided_slice %37 {offsets = [0, 32], sizes = [16, 32], strides = [1, 1]} : vector<16x96xf32> to vector<16x32xf32>
    %40 = vector.extract_strided_slice %37 {offsets = [0, 64], sizes = [16, 32], strides = [1, 1]} : vector<16x96xf32> to vector<16x32xf32>
    %41 = vector.extract_strided_slice %38 {offsets = [0, 0], sizes = [16, 16], strides = [1, 1]} : vector<16x32xf32> to vector<16x16xf32>
    %42 = vector.shape_cast %41 : vector<16x16xf32> to vector<2x8x16xf32>
    %43 = vector.extract_strided_slice %39 {offsets = [0, 0], sizes = [16, 16], strides = [1, 1]} : vector<16x32xf32> to vector<16x16xf32>
    %44 = vector.shape_cast %43 : vector<16x16xf32> to vector<2x8x16xf32>
    %45 = vector.extract_strided_slice %40 {offsets = [0, 0], sizes = [16, 16], strides = [1, 1]} : vector<16x32xf32> to vector<16x16xf32>
    %46 = vector.shape_cast %45 : vector<16x16xf32> to vector<2x8x16xf32>
    %47 = arith.mulf %42, %42 : vector<2x8x16xf32>
    %cst_11 = arith.constant dense<0.000000e+00> : vector<2x8xf32>
    %48 = vector.multi_reduction <add>, %47, %cst_11 [2] : vector<2x8x16xf32> to vector<2x8xf32>
    %49 = vector.shape_cast %48 : vector<2x8xf32> to vector<2x8x1xf32>
    %cst_12 = arith.constant 9.99999996E-13 : f32
    %50 = vector.broadcast %cst_12 : f32 to vector<2x8x1xf32>
    %51 = arith.addf %49, %50 : vector<2x8x1xf32>
    %52 = math.rsqrt %51 : vector<2x8x1xf32>
    %53 = vector.broadcast %52 : vector<2x8x1xf32> to vector<2x8x16xf32>
    %54 = arith.mulf %42, %53 : vector<2x8x16xf32>
    %55 = arith.mulf %44, %44 : vector<2x8x16xf32>
    %cst_13 = arith.constant dense<0.000000e+00> : vector<2x8xf32>
    %56 = vector.multi_reduction <add>, %55, %cst_13 [2] : vector<2x8x16xf32> to vector<2x8xf32>
    %57 = vector.shape_cast %56 : vector<2x8xf32> to vector<2x8x1xf32>
    %cst_14 = arith.constant 9.99999996E-13 : f32
    %58 = vector.broadcast %cst_14 : f32 to vector<2x8x1xf32>
    %59 = arith.addf %57, %58 : vector<2x8x1xf32>
    %60 = math.rsqrt %59 : vector<2x8x1xf32>
    %61 = vector.broadcast %60 : vector<2x8x1xf32> to vector<2x8x16xf32>
    %62 = arith.mulf %44, %61 : vector<2x8x16xf32>
    %63 = arith.truncf %54 : vector<2x8x16xf32> to vector<2x8x16xbf16>
    %64 = arith.truncf %62 : vector<2x8x16xf32> to vector<2x8x16xbf16>
    "tpu.trace_start"() <{level = 10 : i32, message = "bnd,bmd->bnm"}> : () -> ()
    %cst_15 = arith.constant dense<0.000000e+00> : vector<2x8x8xf32>
    %65 = tpu.matmul %63, %64, %cst_15 {dimension_numbers = #tpu.dot_dimension_numbers<[2], [2], [1], [1], [0, 0, 0, 1, 1, 1], [0], [0]>} : vector<2x8x16xbf16>, vector<2x8x16xbf16>, vector<2x8x8xf32> -> vector<2x8x8xf32>
    "tpu.trace_stop"() : () -> ()
    %cst_16 = arith.constant 1.000000e+01 : f32
    %66 = vector.broadcast %cst_16 : f32 to vector<2x8x8xf32>
    %67 = arith.mulf %65, %66 : vector<2x8x8xf32>
    %68 = vector.shape_cast %33 : vector<8x8xi1> to vector<1x8x8xi1>
    %cst_17 = arith.constant -1.000000e+30 : f32
    %69 = vector.shape_cast %68 : vector<1x8x8xi1> to vector<1x8x8xi1>
    %70 = vector.broadcast %69 : vector<1x8x8xi1> to vector<2x8x8xi1>
    %71 = vector.broadcast %cst_17 : f32 to vector<2x8x8xf32>
    %72 = arith.select %70, %67, %71 : vector<2x8x8xi1>, vector<2x8x8xf32>
    %cst_18 = arith.constant dense<0xFF800000> : vector<2x8xf32>
    %73 = vector.multi_reduction <maximumf>, %72, %cst_18 [2] : vector<2x8x8xf32> to vector<2x8xf32>
    %74 = vector.shape_cast %73 : vector<2x8xf32> to vector<2x8x1xf32>
    %75 = vector.broadcast %74 : vector<2x8x1xf32> to vector<2x8x8xf32>
    %76 = arith.subf %72, %75 : vector<2x8x8xf32>
    %77 = math.exp %76 : vector<2x8x8xf32>
    %cst_19 = arith.constant dense<0.000000e+00> : vector<2x8xf32>
    %78 = vector.multi_reduction <add>, %77, %cst_19 [2] : vector<2x8x8xf32> to vector<2x8xf32>
    %79 = vector.shape_cast %78 : vector<2x8xf32> to vector<2x8x1xf32>
    %80 = vector.broadcast %79 : vector<2x8x1xf32> to vector<2x8x8xf32>
    %81 = arith.divf %77, %80 : vector<2x8x8xf32>
    %82 = arith.truncf %81 : vector<2x8x8xf32> to vector<2x8x8xbf16>
    %83 = arith.truncf %46 : vector<2x8x16xf32> to vector<2x8x16xbf16>
    "tpu.trace_start"() <{level = 10 : i32, message = "bnm,bmd->bnd"}> : () -> ()
    %cst_20 = arith.constant dense<0.000000e+00> : vector<2x8x16xf32>
    %84 = tpu.matmul %82, %83, %cst_20 {dimension_numbers = #tpu.dot_dimension_numbers<[2], [1], [1], [2], [0, 0, 0, 1, 1, 2], [0], [0]>} : vector<2x8x8xbf16>, vector<2x8x16xbf16>, vector<2x8x16xf32> -> vector<2x8x16xf32>
    "tpu.trace_stop"() : () -> ()
    %85 = vector.shape_cast %84 : vector<2x8x16xf32> to vector<16x16xf32>
    %86 = vector.extract_strided_slice %38 {offsets = [0, 16], sizes = [16, 16], strides = [1, 1]} : vector<16x32xf32> to vector<16x16xf32>
    %87 = vector.shape_cast %86 : vector<16x16xf32> to vector<2x8x16xf32>
    %88 = vector.extract_strided_slice %39 {offsets = [0, 16], sizes = [16, 16], strides = [1, 1]} : vector<16x32xf32> to vector<16x16xf32>
    %89 = vector.shape_cast %88 : vector<16x16xf32> to vector<2x8x16xf32>
    %90 = vector.extract_strided_slice %40 {offsets = [0, 16], sizes = [16, 16], strides = [1, 1]} : vector<16x32xf32> to vector<16x16xf32>
    %91 = vector.shape_cast %90 : vector<16x16xf32> to vector<2x8x16xf32>
    %92 = arith.mulf %87, %87 : vector<2x8x16xf32>
    %cst_21 = arith.constant dense<0.000000e+00> : vector<2x8xf32>
    %93 = vector.multi_reduction <add>, %92, %cst_21 [2] : vector<2x8x16xf32> to vector<2x8xf32>
    %94 = vector.shape_cast %93 : vector<2x8xf32> to vector<2x8x1xf32>
    %cst_22 = arith.constant 9.99999996E-13 : f32
    %95 = vector.broadcast %cst_22 : f32 to vector<2x8x1xf32>
    %96 = arith.addf %94, %95 : vector<2x8x1xf32>
    %97 = math.rsqrt %96 : vector<2x8x1xf32>
    %98 = vector.broadcast %97 : vector<2x8x1xf32> to vector<2x8x16xf32>
    %99 = arith.mulf %87, %98 : vector<2x8x16xf32>
    %100 = arith.mulf %89, %89 : vector<2x8x16xf32>
    %cst_23 = arith.constant dense<0.000000e+00> : vector<2x8xf32>
    %101 = vector.multi_reduction <add>, %100, %cst_23 [2] : vector<2x8x16xf32> to vector<2x8xf32>
    %102 = vector.shape_cast %101 : vector<2x8xf32> to vector<2x8x1xf32>
    %cst_24 = arith.constant 9.99999996E-13 : f32
    %103 = vector.broadcast %cst_24 : f32 to vector<2x8x1xf32>
    %104 = arith.addf %102, %103 : vector<2x8x1xf32>
    %105 = math.rsqrt %104 : vector<2x8x1xf32>
    %106 = vector.broadcast %105 : vector<2x8x1xf32> to vector<2x8x16xf32>
    %107 = arith.mulf %89, %106 : vector<2x8x16xf32>
    %108 = arith.truncf %99 : vector<2x8x16xf32> to vector<2x8x16xbf16>
    %109 = arith.truncf %107 : vector<2x8x16xf32> to vector<2x8x16xbf16>
    "tpu.trace_start"() <{level = 10 : i32, message = "bnd,bmd->bnm"}> : () -> ()
    %cst_25 = arith.constant dense<0.000000e+00> : vector<2x8x8xf32>
    %110 = tpu.matmul %108, %109, %cst_25 {dimension_numbers = #tpu.dot_dimension_numbers<[2], [2], [1], [1], [0, 0, 0, 1, 1, 1], [0], [0]>} : vector<2x8x16xbf16>, vector<2x8x16xbf16>, vector<2x8x8xf32> -> vector<2x8x8xf32>
    "tpu.trace_stop"() : () -> ()
    %cst_26 = arith.constant 1.000000e+01 : f32
    %111 = vector.broadcast %cst_26 : f32 to vector<2x8x8xf32>
    %112 = arith.mulf %110, %111 : vector<2x8x8xf32>
    %113 = vector.shape_cast %33 : vector<8x8xi1> to vector<1x8x8xi1>
    %cst_27 = arith.constant -1.000000e+30 : f32
    %114 = vector.shape_cast %113 : vector<1x8x8xi1> to vector<1x8x8xi1>
    %115 = vector.broadcast %114 : vector<1x8x8xi1> to vector<2x8x8xi1>
    %116 = vector.broadcast %cst_27 : f32 to vector<2x8x8xf32>
    %117 = arith.select %115, %112, %116 : vector<2x8x8xi1>, vector<2x8x8xf32>
    %cst_28 = arith.constant dense<0xFF800000> : vector<2x8xf32>
    %118 = vector.multi_reduction <maximumf>, %117, %cst_28 [2] : vector<2x8x8xf32> to vector<2x8xf32>
    %119 = vector.shape_cast %118 : vector<2x8xf32> to vector<2x8x1xf32>
    %120 = vector.broadcast %119 : vector<2x8x1xf32> to vector<2x8x8xf32>
    %121 = arith.subf %117, %120 : vector<2x8x8xf32>
    %122 = math.exp %121 : vector<2x8x8xf32>
    %cst_29 = arith.constant dense<0.000000e+00> : vector<2x8xf32>
    %123 = vector.multi_reduction <add>, %122, %cst_29 [2] : vector<2x8x8xf32> to vector<2x8xf32>
    %124 = vector.shape_cast %123 : vector<2x8xf32> to vector<2x8x1xf32>
    %125 = vector.broadcast %124 : vector<2x8x1xf32> to vector<2x8x8xf32>
    %126 = arith.divf %122, %125 : vector<2x8x8xf32>
    %127 = arith.truncf %126 : vector<2x8x8xf32> to vector<2x8x8xbf16>
    %128 = arith.truncf %91 : vector<2x8x16xf32> to vector<2x8x16xbf16>
    "tpu.trace_start"() <{level = 10 : i32, message = "bnm,bmd->bnd"}> : () -> ()
    %cst_30 = arith.constant dense<0.000000e+00> : vector<2x8x16xf32>
    %129 = tpu.matmul %127, %128, %cst_30 {dimension_numbers = #tpu.dot_dimension_numbers<[2], [1], [1], [2], [0, 0, 0, 1, 1, 2], [0], [0]>} : vector<2x8x8xbf16>, vector<2x8x16xbf16>, vector<2x8x16xf32> -> vector<2x8x16xf32>
    "tpu.trace_stop"() : () -> ()
    %130 = vector.shape_cast %129 : vector<2x8x16xf32> to vector<16x16xf32>
    %131 = tpu.concatenate %85, %130 in 1 : vector<16x16xf32>, vector<16x16xf32> -> vector<16x32xf32>
    %c0_31 = arith.constant 0 : index
    %c0_32 = arith.constant 0 : index
    %c0_33 = arith.constant 0 : index
    %132 = vector.load %arg3[%c0_31, %c0_32, %c0_33] : memref<3x32x32xbf16, #tpu.memory_space<vmem>>, vector<1x32x32xbf16>
    %133 = vector.shape_cast %132 : vector<1x32x32xbf16> to vector<32x32xbf16>
    %134 = arith.truncf %131 : vector<16x32xf32> to vector<16x32xbf16>
    %cst_34 = arith.constant dense<0.000000e+00> : vector<16x32xf32>
    %135 = tpu.matmul %134, %133, %cst_34 {dimension_numbers = #tpu.dot_dimension_numbers<[1], [0], [0], [1], [0, 0, 1, 1], [], []>} : vector<16x32xbf16>, vector<32x32xbf16>, vector<16x32xf32> -> vector<16x32xf32>
    %c1 = arith.constant 1 : index
    %c0_35 = arith.constant 0 : index
    %c0_36 = arith.constant 0 : index
    %136 = vector.load %arg2[%c1, %c0_35, %c0_36] : memref<3x32x96xbf16, #tpu.memory_space<vmem>>, vector<1x32x96xbf16>
    %137 = vector.shape_cast %136 : vector<1x32x96xbf16> to vector<32x96xbf16>
    %138 = arith.truncf %135 : vector<16x32xf32> to vector<16x32xbf16>
    %cst_37 = arith.constant dense<0.000000e+00> : vector<16x96xf32>
    %139 = tpu.matmul %138, %137, %cst_37 {dimension_numbers = #tpu.dot_dimension_numbers<[1], [0], [0], [1], [0, 0, 1, 1], [], []>} : vector<16x32xbf16>, vector<32x96xbf16>, vector<16x96xf32> -> vector<16x96xf32>
    %140 = vector.extract_strided_slice %139 {offsets = [0, 0], sizes = [16, 32], strides = [1, 1]} : vector<16x96xf32> to vector<16x32xf32>
    %141 = vector.extract_strided_slice %139 {offsets = [0, 32], sizes = [16, 32], strides = [1, 1]} : vector<16x96xf32> to vector<16x32xf32>
    %142 = vector.extract_strided_slice %139 {offsets = [0, 64], sizes = [16, 32], strides = [1, 1]} : vector<16x96xf32> to vector<16x32xf32>
    %143 = vector.extract_strided_slice %140 {offsets = [0, 0], sizes = [16, 16], strides = [1, 1]} : vector<16x32xf32> to vector<16x16xf32>
    %144 = vector.shape_cast %143 : vector<16x16xf32> to vector<2x8x16xf32>
    %145 = vector.extract_strided_slice %141 {offsets = [0, 0], sizes = [16, 16], strides = [1, 1]} : vector<16x32xf32> to vector<16x16xf32>
    %146 = vector.shape_cast %145 : vector<16x16xf32> to vector<2x8x16xf32>
    %147 = vector.extract_strided_slice %142 {offsets = [0, 0], sizes = [16, 16], strides = [1, 1]} : vector<16x32xf32> to vector<16x16xf32>
    %148 = vector.shape_cast %147 : vector<16x16xf32> to vector<2x8x16xf32>
    %149 = arith.mulf %144, %144 : vector<2x8x16xf32>
    %cst_38 = arith.constant dense<0.000000e+00> : vector<2x8xf32>
    %150 = vector.multi_reduction <add>, %149, %cst_38 [2] : vector<2x8x16xf32> to vector<2x8xf32>
    %151 = vector.shape_cast %150 : vector<2x8xf32> to vector<2x8x1xf32>
    %cst_39 = arith.constant 9.99999996E-13 : f32
    %152 = vector.broadcast %cst_39 : f32 to vector<2x8x1xf32>
    %153 = arith.addf %151, %152 : vector<2x8x1xf32>
    %154 = math.rsqrt %153 : vector<2x8x1xf32>
    %155 = vector.broadcast %154 : vector<2x8x1xf32> to vector<2x8x16xf32>
    %156 = arith.mulf %144, %155 : vector<2x8x16xf32>
    %157 = arith.mulf %146, %146 : vector<2x8x16xf32>
    %cst_40 = arith.constant dense<0.000000e+00> : vector<2x8xf32>
    %158 = vector.multi_reduction <add>, %157, %cst_40 [2] : vector<2x8x16xf32> to vector<2x8xf32>
    %159 = vector.shape_cast %158 : vector<2x8xf32> to vector<2x8x1xf32>
    %cst_41 = arith.constant 9.99999996E-13 : f32
    %160 = vector.broadcast %cst_41 : f32 to vector<2x8x1xf32>
    %161 = arith.addf %159, %160 : vector<2x8x1xf32>
    %162 = math.rsqrt %161 : vector<2x8x1xf32>
    %163 = vector.broadcast %162 : vector<2x8x1xf32> to vector<2x8x16xf32>
    %164 = arith.mulf %146, %163 : vector<2x8x16xf32>
    %165 = arith.truncf %156 : vector<2x8x16xf32> to vector<2x8x16xbf16>
    %166 = arith.truncf %164 : vector<2x8x16xf32> to vector<2x8x16xbf16>
    "tpu.trace_start"() <{level = 10 : i32, message = "bnd,bmd->bnm"}> : () -> ()
    %cst_42 = arith.constant dense<0.000000e+00> : vector<2x8x8xf32>
    %167 = tpu.matmul %165, %166, %cst_42 {dimension_numbers = #tpu.dot_dimension_numbers<[2], [2], [1], [1], [0, 0, 0, 1, 1, 1], [0], [0]>} : vector<2x8x16xbf16>, vector<2x8x16xbf16>, vector<2x8x8xf32> -> vector<2x8x8xf32>
    "tpu.trace_stop"() : () -> ()
    %cst_43 = arith.constant 1.000000e+01 : f32
    %168 = vector.broadcast %cst_43 : f32 to vector<2x8x8xf32>
    %169 = arith.mulf %167, %168 : vector<2x8x8xf32>
    %170 = vector.shape_cast %33 : vector<8x8xi1> to vector<1x8x8xi1>
    %cst_44 = arith.constant -1.000000e+30 : f32
    %171 = vector.shape_cast %170 : vector<1x8x8xi1> to vector<1x8x8xi1>
    %172 = vector.broadcast %171 : vector<1x8x8xi1> to vector<2x8x8xi1>
    %173 = vector.broadcast %cst_44 : f32 to vector<2x8x8xf32>
    %174 = arith.select %172, %169, %173 : vector<2x8x8xi1>, vector<2x8x8xf32>
    %cst_45 = arith.constant dense<0xFF800000> : vector<2x8xf32>
    %175 = vector.multi_reduction <maximumf>, %174, %cst_45 [2] : vector<2x8x8xf32> to vector<2x8xf32>
    %176 = vector.shape_cast %175 : vector<2x8xf32> to vector<2x8x1xf32>
    %177 = vector.broadcast %176 : vector<2x8x1xf32> to vector<2x8x8xf32>
    %178 = arith.subf %174, %177 : vector<2x8x8xf32>
    %179 = math.exp %178 : vector<2x8x8xf32>
    %cst_46 = arith.constant dense<0.000000e+00> : vector<2x8xf32>
    %180 = vector.multi_reduction <add>, %179, %cst_46 [2] : vector<2x8x8xf32> to vector<2x8xf32>
    %181 = vector.shape_cast %180 : vector<2x8xf32> to vector<2x8x1xf32>
    %182 = vector.broadcast %181 : vector<2x8x1xf32> to vector<2x8x8xf32>
    %183 = arith.divf %179, %182 : vector<2x8x8xf32>
    %184 = arith.truncf %183 : vector<2x8x8xf32> to vector<2x8x8xbf16>
    %185 = arith.truncf %148 : vector<2x8x16xf32> to vector<2x8x16xbf16>
    "tpu.trace_start"() <{level = 10 : i32, message = "bnm,bmd->bnd"}> : () -> ()
    %cst_47 = arith.constant dense<0.000000e+00> : vector<2x8x16xf32>
    %186 = tpu.matmul %184, %185, %cst_47 {dimension_numbers = #tpu.dot_dimension_numbers<[2], [1], [1], [2], [0, 0, 0, 1, 1, 2], [0], [0]>} : vector<2x8x8xbf16>, vector<2x8x16xbf16>, vector<2x8x16xf32> -> vector<2x8x16xf32>
    "tpu.trace_stop"() : () -> ()
    %187 = vector.shape_cast %186 : vector<2x8x16xf32> to vector<16x16xf32>
    %188 = vector.extract_strided_slice %140 {offsets = [0, 16], sizes = [16, 16], strides = [1, 1]} : vector<16x32xf32> to vector<16x16xf32>
    %189 = vector.shape_cast %188 : vector<16x16xf32> to vector<2x8x16xf32>
    %190 = vector.extract_strided_slice %141 {offsets = [0, 16], sizes = [16, 16], strides = [1, 1]} : vector<16x32xf32> to vector<16x16xf32>
    %191 = vector.shape_cast %190 : vector<16x16xf32> to vector<2x8x16xf32>
    %192 = vector.extract_strided_slice %142 {offsets = [0, 16], sizes = [16, 16], strides = [1, 1]} : vector<16x32xf32> to vector<16x16xf32>
    %193 = vector.shape_cast %192 : vector<16x16xf32> to vector<2x8x16xf32>
    %194 = arith.mulf %189, %189 : vector<2x8x16xf32>
    %cst_48 = arith.constant dense<0.000000e+00> : vector<2x8xf32>
    %195 = vector.multi_reduction <add>, %194, %cst_48 [2] : vector<2x8x16xf32> to vector<2x8xf32>
    %196 = vector.shape_cast %195 : vector<2x8xf32> to vector<2x8x1xf32>
    %cst_49 = arith.constant 9.99999996E-13 : f32
    %197 = vector.broadcast %cst_49 : f32 to vector<2x8x1xf32>
    %198 = arith.addf %196, %197 : vector<2x8x1xf32>
    %199 = math.rsqrt %198 : vector<2x8x1xf32>
    %200 = vector.broadcast %199 : vector<2x8x1xf32> to vector<2x8x16xf32>
    %201 = arith.mulf %189, %200 : vector<2x8x16xf32>
    %202 = arith.mulf %191, %191 : vector<2x8x16xf32>
    %cst_50 = arith.constant dense<0.000000e+00> : vector<2x8xf32>
    %203 = vector.multi_reduction <add>, %202, %cst_50 [2] : vector<2x8x16xf32> to vector<2x8xf32>
    %204 = vector.shape_cast %203 : vector<2x8xf32> to vector<2x8x1xf32>
    %cst_51 = arith.constant 9.99999996E-13 : f32
    %205 = vector.broadcast %cst_51 : f32 to vector<2x8x1xf32>
    %206 = arith.addf %204, %205 : vector<2x8x1xf32>
    %207 = math.rsqrt %206 : vector<2x8x1xf32>
    %208 = vector.broadcast %207 : vector<2x8x1xf32> to vector<2x8x16xf32>
    %209 = arith.mulf %191, %208 : vector<2x8x16xf32>
    %210 = arith.truncf %201 : vector<2x8x16xf32> to vector<2x8x16xbf16>
    %211 = arith.truncf %209 : vector<2x8x16xf32> to vector<2x8x16xbf16>
    "tpu.trace_start"() <{level = 10 : i32, message = "bnd,bmd->bnm"}> : () -> ()
    %cst_52 = arith.constant dense<0.000000e+00> : vector<2x8x8xf32>
    %212 = tpu.matmul %210, %211, %cst_52 {dimension_numbers = #tpu.dot_dimension_numbers<[2], [2], [1], [1], [0, 0, 0, 1, 1, 1], [0], [0]>} : vector<2x8x16xbf16>, vector<2x8x16xbf16>, vector<2x8x8xf32> -> vector<2x8x8xf32>
    "tpu.trace_stop"() : () -> ()
    %cst_53 = arith.constant 1.000000e+01 : f32
    %213 = vector.broadcast %cst_53 : f32 to vector<2x8x8xf32>
    %214 = arith.mulf %212, %213 : vector<2x8x8xf32>
    %215 = vector.shape_cast %33 : vector<8x8xi1> to vector<1x8x8xi1>
    %cst_54 = arith.constant -1.000000e+30 : f32
    %216 = vector.shape_cast %215 : vector<1x8x8xi1> to vector<1x8x8xi1>
    %217 = vector.broadcast %216 : vector<1x8x8xi1> to vector<2x8x8xi1>
    %218 = vector.broadcast %cst_54 : f32 to vector<2x8x8xf32>
    %219 = arith.select %217, %214, %218 : vector<2x8x8xi1>, vector<2x8x8xf32>
    %cst_55 = arith.constant dense<0xFF800000> : vector<2x8xf32>
    %220 = vector.multi_reduction <maximumf>, %219, %cst_55 [2] : vector<2x8x8xf32> to vector<2x8xf32>
    %221 = vector.shape_cast %220 : vector<2x8xf32> to vector<2x8x1xf32>
    %222 = vector.broadcast %221 : vector<2x8x1xf32> to vector<2x8x8xf32>
    %223 = arith.subf %219, %222 : vector<2x8x8xf32>
    %224 = math.exp %223 : vector<2x8x8xf32>
    %cst_56 = arith.constant dense<0.000000e+00> : vector<2x8xf32>
    %225 = vector.multi_reduction <add>, %224, %cst_56 [2] : vector<2x8x8xf32> to vector<2x8xf32>
    %226 = vector.shape_cast %225 : vector<2x8xf32> to vector<2x8x1xf32>
    %227 = vector.broadcast %226 : vector<2x8x1xf32> to vector<2x8x8xf32>
    %228 = arith.divf %224, %227 : vector<2x8x8xf32>
    %229 = arith.truncf %228 : vector<2x8x8xf32> to vector<2x8x8xbf16>
    %230 = arith.truncf %193 : vector<2x8x16xf32> to vector<2x8x16xbf16>
    "tpu.trace_start"() <{level = 10 : i32, message = "bnm,bmd->bnd"}> : () -> ()
    %cst_57 = arith.constant dense<0.000000e+00> : vector<2x8x16xf32>
    %231 = tpu.matmul %229, %230, %cst_57 {dimension_numbers = #tpu.dot_dimension_numbers<[2], [1], [1], [2], [0, 0, 0, 1, 1, 2], [0], [0]>} : vector<2x8x8xbf16>, vector<2x8x16xbf16>, vector<2x8x16xf32> -> vector<2x8x16xf32>
    "tpu.trace_stop"() : () -> ()
    %232 = vector.shape_cast %231 : vector<2x8x16xf32> to vector<16x16xf32>
    %233 = tpu.concatenate %187, %232 in 1 : vector<16x16xf32>, vector<16x16xf32> -> vector<16x32xf32>
    %c1_58 = arith.constant 1 : index
    %c0_59 = arith.constant 0 : index
    %c0_60 = arith.constant 0 : index
    %234 = vector.load %arg3[%c1_58, %c0_59, %c0_60] : memref<3x32x32xbf16, #tpu.memory_space<vmem>>, vector<1x32x32xbf16>
    %235 = vector.shape_cast %234 : vector<1x32x32xbf16> to vector<32x32xbf16>
    %236 = arith.truncf %233 : vector<16x32xf32> to vector<16x32xbf16>
    %cst_61 = arith.constant dense<0.000000e+00> : vector<16x32xf32>
    %237 = tpu.matmul %236, %235, %cst_61 {dimension_numbers = #tpu.dot_dimension_numbers<[1], [0], [0], [1], [0, 0, 1, 1], [], []>} : vector<16x32xbf16>, vector<32x32xbf16>, vector<16x32xf32> -> vector<16x32xf32>
    %c2 = arith.constant 2 : index
    %c0_62 = arith.constant 0 : index
    %c0_63 = arith.constant 0 : index
    %238 = vector.load %arg2[%c2, %c0_62, %c0_63] : memref<3x32x96xbf16, #tpu.memory_space<vmem>>, vector<1x32x96xbf16>
    %239 = vector.shape_cast %238 : vector<1x32x96xbf16> to vector<32x96xbf16>
    %240 = arith.truncf %237 : vector<16x32xf32> to vector<16x32xbf16>
    %cst_64 = arith.constant dense<0.000000e+00> : vector<16x96xf32>
    %241 = tpu.matmul %240, %239, %cst_64 {dimension_numbers = #tpu.dot_dimension_numbers<[1], [0], [0], [1], [0, 0, 1, 1], [], []>} : vector<16x32xbf16>, vector<32x96xbf16>, vector<16x96xf32> -> vector<16x96xf32>
    %242 = vector.extract_strided_slice %241 {offsets = [0, 0], sizes = [16, 32], strides = [1, 1]} : vector<16x96xf32> to vector<16x32xf32>
    %243 = vector.extract_strided_slice %241 {offsets = [0, 32], sizes = [16, 32], strides = [1, 1]} : vector<16x96xf32> to vector<16x32xf32>
    %244 = vector.extract_strided_slice %241 {offsets = [0, 64], sizes = [16, 32], strides = [1, 1]} : vector<16x96xf32> to vector<16x32xf32>
    %245 = vector.extract_strided_slice %242 {offsets = [0, 0], sizes = [16, 16], strides = [1, 1]} : vector<16x32xf32> to vector<16x16xf32>
    %246 = vector.shape_cast %245 : vector<16x16xf32> to vector<2x8x16xf32>
    %247 = vector.extract_strided_slice %243 {offsets = [0, 0], sizes = [16, 16], strides = [1, 1]} : vector<16x32xf32> to vector<16x16xf32>
    %248 = vector.shape_cast %247 : vector<16x16xf32> to vector<2x8x16xf32>
    %249 = vector.extract_strided_slice %244 {offsets = [0, 0], sizes = [16, 16], strides = [1, 1]} : vector<16x32xf32> to vector<16x16xf32>
    %250 = vector.shape_cast %249 : vector<16x16xf32> to vector<2x8x16xf32>
    %251 = arith.mulf %246, %246 : vector<2x8x16xf32>
    %cst_65 = arith.constant dense<0.000000e+00> : vector<2x8xf32>
    %252 = vector.multi_reduction <add>, %251, %cst_65 [2] : vector<2x8x16xf32> to vector<2x8xf32>
    %253 = vector.shape_cast %252 : vector<2x8xf32> to vector<2x8x1xf32>
    %cst_66 = arith.constant 9.99999996E-13 : f32
    %254 = vector.broadcast %cst_66 : f32 to vector<2x8x1xf32>
    %255 = arith.addf %253, %254 : vector<2x8x1xf32>
    %256 = math.rsqrt %255 : vector<2x8x1xf32>
    %257 = vector.broadcast %256 : vector<2x8x1xf32> to vector<2x8x16xf32>
    %258 = arith.mulf %246, %257 : vector<2x8x16xf32>
    %259 = arith.mulf %248, %248 : vector<2x8x16xf32>
    %cst_67 = arith.constant dense<0.000000e+00> : vector<2x8xf32>
    %260 = vector.multi_reduction <add>, %259, %cst_67 [2] : vector<2x8x16xf32> to vector<2x8xf32>
    %261 = vector.shape_cast %260 : vector<2x8xf32> to vector<2x8x1xf32>
    %cst_68 = arith.constant 9.99999996E-13 : f32
    %262 = vector.broadcast %cst_68 : f32 to vector<2x8x1xf32>
    %263 = arith.addf %261, %262 : vector<2x8x1xf32>
    %264 = math.rsqrt %263 : vector<2x8x1xf32>
    %265 = vector.broadcast %264 : vector<2x8x1xf32> to vector<2x8x16xf32>
    %266 = arith.mulf %248, %265 : vector<2x8x16xf32>
    %267 = arith.truncf %258 : vector<2x8x16xf32> to vector<2x8x16xbf16>
    %268 = arith.truncf %266 : vector<2x8x16xf32> to vector<2x8x16xbf16>
    "tpu.trace_start"() <{level = 10 : i32, message = "bnd,bmd->bnm"}> : () -> ()
    %cst_69 = arith.constant dense<0.000000e+00> : vector<2x8x8xf32>
    %269 = tpu.matmul %267, %268, %cst_69 {dimension_numbers = #tpu.dot_dimension_numbers<[2], [2], [1], [1], [0, 0, 0, 1, 1, 1], [0], [0]>} : vector<2x8x16xbf16>, vector<2x8x16xbf16>, vector<2x8x8xf32> -> vector<2x8x8xf32>
    "tpu.trace_stop"() : () -> ()
    %cst_70 = arith.constant 1.000000e+01 : f32
    %270 = vector.broadcast %cst_70 : f32 to vector<2x8x8xf32>
    %271 = arith.mulf %269, %270 : vector<2x8x8xf32>
    %272 = vector.shape_cast %33 : vector<8x8xi1> to vector<1x8x8xi1>
    %cst_71 = arith.constant -1.000000e+30 : f32
    %273 = vector.shape_cast %272 : vector<1x8x8xi1> to vector<1x8x8xi1>
    %274 = vector.broadcast %273 : vector<1x8x8xi1> to vector<2x8x8xi1>
    %275 = vector.broadcast %cst_71 : f32 to vector<2x8x8xf32>
    %276 = arith.select %274, %271, %275 : vector<2x8x8xi1>, vector<2x8x8xf32>
    %cst_72 = arith.constant dense<0xFF800000> : vector<2x8xf32>
    %277 = vector.multi_reduction <maximumf>, %276, %cst_72 [2] : vector<2x8x8xf32> to vector<2x8xf32>
    %278 = vector.shape_cast %277 : vector<2x8xf32> to vector<2x8x1xf32>
    %279 = vector.broadcast %278 : vector<2x8x1xf32> to vector<2x8x8xf32>
    %280 = arith.subf %276, %279 : vector<2x8x8xf32>
    %281 = math.exp %280 : vector<2x8x8xf32>
    %cst_73 = arith.constant dense<0.000000e+00> : vector<2x8xf32>
    %282 = vector.multi_reduction <add>, %281, %cst_73 [2] : vector<2x8x8xf32> to vector<2x8xf32>
    %283 = vector.shape_cast %282 : vector<2x8xf32> to vector<2x8x1xf32>
    %284 = vector.broadcast %283 : vector<2x8x1xf32> to vector<2x8x8xf32>
    %285 = arith.divf %281, %284 : vector<2x8x8xf32>
    %286 = arith.truncf %285 : vector<2x8x8xf32> to vector<2x8x8xbf16>
    %287 = arith.truncf %250 : vector<2x8x16xf32> to vector<2x8x16xbf16>
    "tpu.trace_start"() <{level = 10 : i32, message = "bnm,bmd->bnd"}> : () -> ()
    %cst_74 = arith.constant dense<0.000000e+00> : vector<2x8x16xf32>
    %288 = tpu.matmul %286, %287, %cst_74 {dimension_numbers = #tpu.dot_dimension_numbers<[2], [1], [1], [2], [0, 0, 0, 1, 1, 2], [0], [0]>} : vector<2x8x8xbf16>, vector<2x8x16xbf16>, vector<2x8x16xf32> -> vector<2x8x16xf32>
    "tpu.trace_stop"() : () -> ()
    %289 = vector.shape_cast %288 : vector<2x8x16xf32> to vector<16x16xf32>
    %290 = vector.extract_strided_slice %242 {offsets = [0, 16], sizes = [16, 16], strides = [1, 1]} : vector<16x32xf32> to vector<16x16xf32>
    %291 = vector.shape_cast %290 : vector<16x16xf32> to vector<2x8x16xf32>
    %292 = vector.extract_strided_slice %243 {offsets = [0, 16], sizes = [16, 16], strides = [1, 1]} : vector<16x32xf32> to vector<16x16xf32>
    %293 = vector.shape_cast %292 : vector<16x16xf32> to vector<2x8x16xf32>
    %294 = vector.extract_strided_slice %244 {offsets = [0, 16], sizes = [16, 16], strides = [1, 1]} : vector<16x32xf32> to vector<16x16xf32>
    %295 = vector.shape_cast %294 : vector<16x16xf32> to vector<2x8x16xf32>
    %296 = arith.mulf %291, %291 : vector<2x8x16xf32>
    %cst_75 = arith.constant dense<0.000000e+00> : vector<2x8xf32>
    %297 = vector.multi_reduction <add>, %296, %cst_75 [2] : vector<2x8x16xf32> to vector<2x8xf32>
    %298 = vector.shape_cast %297 : vector<2x8xf32> to vector<2x8x1xf32>
    %cst_76 = arith.constant 9.99999996E-13 : f32
    %299 = vector.broadcast %cst_76 : f32 to vector<2x8x1xf32>
    %300 = arith.addf %298, %299 : vector<2x8x1xf32>
    %301 = math.rsqrt %300 : vector<2x8x1xf32>
    %302 = vector.broadcast %301 : vector<2x8x1xf32> to vector<2x8x16xf32>
    %303 = arith.mulf %291, %302 : vector<2x8x16xf32>
    %304 = arith.mulf %293, %293 : vector<2x8x16xf32>
    %cst_77 = arith.constant dense<0.000000e+00> : vector<2x8xf32>
    %305 = vector.multi_reduction <add>, %304, %cst_77 [2] : vector<2x8x16xf32> to vector<2x8xf32>
    %306 = vector.shape_cast %305 : vector<2x8xf32> to vector<2x8x1xf32>
    %cst_78 = arith.constant 9.99999996E-13 : f32
    %307 = vector.broadcast %cst_78 : f32 to vector<2x8x1xf32>
    %308 = arith.addf %306, %307 : vector<2x8x1xf32>
    %309 = math.rsqrt %308 : vector<2x8x1xf32>
    %310 = vector.broadcast %309 : vector<2x8x1xf32> to vector<2x8x16xf32>
    %311 = arith.mulf %293, %310 : vector<2x8x16xf32>
    %312 = arith.truncf %303 : vector<2x8x16xf32> to vector<2x8x16xbf16>
    %313 = arith.truncf %311 : vector<2x8x16xf32> to vector<2x8x16xbf16>
    "tpu.trace_start"() <{level = 10 : i32, message = "bnd,bmd->bnm"}> : () -> ()
    %cst_79 = arith.constant dense<0.000000e+00> : vector<2x8x8xf32>
    %314 = tpu.matmul %312, %313, %cst_79 {dimension_numbers = #tpu.dot_dimension_numbers<[2], [2], [1], [1], [0, 0, 0, 1, 1, 1], [0], [0]>} : vector<2x8x16xbf16>, vector<2x8x16xbf16>, vector<2x8x8xf32> -> vector<2x8x8xf32>
    "tpu.trace_stop"() : () -> ()
    %cst_80 = arith.constant 1.000000e+01 : f32
    %315 = vector.broadcast %cst_80 : f32 to vector<2x8x8xf32>
    %316 = arith.mulf %314, %315 : vector<2x8x8xf32>
    %317 = vector.shape_cast %33 : vector<8x8xi1> to vector<1x8x8xi1>
    %cst_81 = arith.constant -1.000000e+30 : f32
    %318 = vector.shape_cast %317 : vector<1x8x8xi1> to vector<1x8x8xi1>
    %319 = vector.broadcast %318 : vector<1x8x8xi1> to vector<2x8x8xi1>
    %320 = vector.broadcast %cst_81 : f32 to vector<2x8x8xf32>
    %321 = arith.select %319, %316, %320 : vector<2x8x8xi1>, vector<2x8x8xf32>
    %cst_82 = arith.constant dense<0xFF800000> : vector<2x8xf32>
    %322 = vector.multi_reduction <maximumf>, %321, %cst_82 [2] : vector<2x8x8xf32> to vector<2x8xf32>
    %323 = vector.shape_cast %322 : vector<2x8xf32> to vector<2x8x1xf32>
    %324 = vector.broadcast %323 : vector<2x8x1xf32> to vector<2x8x8xf32>
    %325 = arith.subf %321, %324 : vector<2x8x8xf32>
    %326 = math.exp %325 : vector<2x8x8xf32>
    %cst_83 = arith.constant dense<0.000000e+00> : vector<2x8xf32>
    %327 = vector.multi_reduction <add>, %326, %cst_83 [2] : vector<2x8x8xf32> to vector<2x8xf32>
    %328 = vector.shape_cast %327 : vector<2x8xf32> to vector<2x8x1xf32>
    %329 = vector.broadcast %328 : vector<2x8x1xf32> to vector<2x8x8xf32>
    %330 = arith.divf %326, %329 : vector<2x8x8xf32>
    %331 = arith.truncf %330 : vector<2x8x8xf32> to vector<2x8x8xbf16>
    %332 = arith.truncf %295 : vector<2x8x16xf32> to vector<2x8x16xbf16>
    "tpu.trace_start"() <{level = 10 : i32, message = "bnm,bmd->bnd"}> : () -> ()
    %cst_84 = arith.constant dense<0.000000e+00> : vector<2x8x16xf32>
    %333 = tpu.matmul %331, %332, %cst_84 {dimension_numbers = #tpu.dot_dimension_numbers<[2], [1], [1], [2], [0, 0, 0, 1, 1, 2], [0], [0]>} : vector<2x8x8xbf16>, vector<2x8x16xbf16>, vector<2x8x16xf32> -> vector<2x8x16xf32>
    "tpu.trace_stop"() : () -> ()
    %334 = vector.shape_cast %333 : vector<2x8x16xf32> to vector<16x16xf32>
    %335 = tpu.concatenate %289, %334 in 1 : vector<16x16xf32>, vector<16x16xf32> -> vector<16x32xf32>
    %c2_85 = arith.constant 2 : index
    %c0_86 = arith.constant 0 : index
    %c0_87 = arith.constant 0 : index
    %336 = vector.load %arg3[%c2_85, %c0_86, %c0_87] : memref<3x32x32xbf16, #tpu.memory_space<vmem>>, vector<1x32x32xbf16>
    %337 = vector.shape_cast %336 : vector<1x32x32xbf16> to vector<32x32xbf16>
    %338 = arith.truncf %335 : vector<16x32xf32> to vector<16x32xbf16>
    %cst_88 = arith.constant dense<0.000000e+00> : vector<16x32xf32>
    %339 = tpu.matmul %338, %337, %cst_88 {dimension_numbers = #tpu.dot_dimension_numbers<[1], [0], [0], [1], [0, 0, 1, 1], [], []>} : vector<16x32xbf16>, vector<32x32xbf16>, vector<16x32xf32> -> vector<16x32xf32>
    %c0_89 = arith.constant 0 : index
    %c0_90 = arith.constant 0 : index
    %340 = vector.load %arg4[%c0_89, %c0_90] : memref<4x32xf32, #tpu.memory_space<vmem>>, vector<4x32xf32>
    %341 = vector.extract_strided_slice %340 {offsets = [0, 0], sizes = [1, 32], strides = [1, 1]} : vector<4x32xf32> to vector<1x32xf32>
    %342 = vector.extract_strided_slice %340 {offsets = [1, 0], sizes = [1, 32], strides = [1, 1]} : vector<4x32xf32> to vector<1x32xf32>
    %cst_91 = arith.constant dense<0.000000e+00> : vector<16xf32>
    %343 = vector.multi_reduction <add>, %339, %cst_91 [1] : vector<16x32xf32> to vector<16xf32>
    %344 = vector.shape_cast %343 : vector<16xf32> to vector<16x1xf32>
    %cst_92 = arith.constant 3.200000e+01 : f32
    %345 = vector.broadcast %cst_92 : f32 to vector<16x1xf32>
    %346 = arith.divf %344, %345 : vector<16x1xf32>
    %347 = vector.broadcast %346 : vector<16x1xf32> to vector<16x32xf32>
    %348 = arith.subf %339, %347 : vector<16x32xf32>
    %349 = arith.mulf %348, %348 : vector<16x32xf32>
    %cst_93 = arith.constant dense<0.000000e+00> : vector<16xf32>
    %350 = vector.multi_reduction <add>, %349, %cst_93 [1] : vector<16x32xf32> to vector<16xf32>
    %351 = vector.shape_cast %350 : vector<16xf32> to vector<16x1xf32>
    %cst_94 = arith.constant 3.200000e+01 : f32
    %352 = vector.broadcast %cst_94 : f32 to vector<16x1xf32>
    %353 = arith.divf %351, %352 : vector<16x1xf32>
    %cst_95 = arith.constant 9.99999974E-6 : f32
    %354 = vector.broadcast %cst_95 : f32 to vector<16x1xf32>
    %355 = arith.addf %353, %354 : vector<16x1xf32>
    %356 = math.rsqrt %355 : vector<16x1xf32>
    %357 = vector.broadcast %356 : vector<16x1xf32> to vector<16x32xf32>
    %358 = arith.mulf %348, %357 : vector<16x32xf32>
    %359 = vector.broadcast %341 : vector<1x32xf32> to vector<16x32xf32>
    %360 = arith.mulf %358, %359 : vector<16x32xf32>
    %361 = vector.broadcast %342 : vector<1x32xf32> to vector<16x32xf32>
    %362 = arith.addf %360, %361 : vector<16x32xf32>
    %363 = vector.extract_strided_slice %340 {offsets = [2, 0], sizes = [1, 32], strides = [1, 1]} : vector<4x32xf32> to vector<1x32xf32>
    %364 = vector.extract_strided_slice %340 {offsets = [3, 0], sizes = [1, 32], strides = [1, 1]} : vector<4x32xf32> to vector<1x32xf32>
    %cst_96 = arith.constant dense<0.000000e+00> : vector<16xf32>
    %365 = vector.multi_reduction <add>, %339, %cst_96 [1] : vector<16x32xf32> to vector<16xf32>
    %366 = vector.shape_cast %365 : vector<16xf32> to vector<16x1xf32>
    %cst_97 = arith.constant 3.200000e+01 : f32
    %367 = vector.broadcast %cst_97 : f32 to vector<16x1xf32>
    %368 = arith.divf %366, %367 : vector<16x1xf32>
    %369 = vector.broadcast %368 : vector<16x1xf32> to vector<16x32xf32>
    %370 = arith.subf %339, %369 : vector<16x32xf32>
    %371 = arith.mulf %370, %370 : vector<16x32xf32>
    %cst_98 = arith.constant dense<0.000000e+00> : vector<16xf32>
    %372 = vector.multi_reduction <add>, %371, %cst_98 [1] : vector<16x32xf32> to vector<16xf32>
    %373 = vector.shape_cast %372 : vector<16xf32> to vector<16x1xf32>
    %cst_99 = arith.constant 3.200000e+01 : f32
    %374 = vector.broadcast %cst_99 : f32 to vector<16x1xf32>
    %375 = arith.divf %373, %374 : vector<16x1xf32>
    %cst_100 = arith.constant 9.99999974E-6 : f32
    %376 = vector.broadcast %cst_100 : f32 to vector<16x1xf32>
    %377 = arith.addf %375, %376 : vector<16x1xf32>
    %378 = math.rsqrt %377 : vector<16x1xf32>
    %379 = vector.broadcast %378 : vector<16x1xf32> to vector<16x32xf32>
    %380 = arith.mulf %370, %379 : vector<16x32xf32>
    %381 = vector.broadcast %363 : vector<1x32xf32> to vector<16x32xf32>
    %382 = arith.mulf %380, %381 : vector<16x32xf32>
    %383 = vector.broadcast %364 : vector<1x32xf32> to vector<16x32xf32>
    %384 = arith.addf %382, %383 : vector<16x32xf32>
    %c0_101 = arith.constant 0 : index
    %c0_102 = arith.constant 0 : index
    %385 = vector.load %arg5[%c0_101, %c0_102] : memref<32x288xbf16, #tpu.memory_space<vmem>>, vector<32x288xbf16>
    %386 = arith.truncf %362 : vector<16x32xf32> to vector<16x32xbf16>
    %cst_103 = arith.constant dense<0.000000e+00> : vector<16x288xf32>
    %387 = tpu.matmul %386, %385, %cst_103 {dimension_numbers = #tpu.dot_dimension_numbers<[1], [0], [0], [1], [0, 0, 1, 1], [], []>} : vector<16x32xbf16>, vector<32x288xbf16>, vector<16x288xf32> -> vector<16x288xf32>
    %388 = vector.extract_strided_slice %387 {offsets = [0, 0], sizes = [16, 32], strides = [1, 1]} : vector<16x288xf32> to vector<16x32xf32>
    %389 = vector.extract_strided_slice %387 {offsets = [0, 32], sizes = [16, 256], strides = [1, 1]} : vector<16x288xf32> to vector<16x256xf32>
    %c0_104 = arith.constant 0 : index
    %c0_105 = arith.constant 0 : index
    %390 = vector.load %arg6[%c0_104, %c0_105] : memref<32x32xbf16, #tpu.memory_space<vmem>>, vector<32x32xbf16>
    %391 = arith.truncf %384 : vector<16x32xf32> to vector<16x32xbf16>
    %cst_106 = arith.constant dense<0.000000e+00> : vector<16x32xf32>
    %392 = tpu.matmul %391, %390, %cst_106 {dimension_numbers = #tpu.dot_dimension_numbers<[1], [0], [0], [1], [0, 0, 1, 1], [], []>} : vector<16x32xbf16>, vector<32x32xbf16>, vector<16x32xf32> -> vector<16x32xf32>
    %393 = vector.extract_strided_slice %392 {offsets = [0, 0], sizes = [16, 16], strides = [1, 1]} : vector<16x32xf32> to vector<16x16xf32>
    %394 = vector.extract_strided_slice %392 {offsets = [0, 16], sizes = [16, 16], strides = [1, 1]} : vector<16x32xf32> to vector<16x16xf32>
    %395 = vector.extract_strided_slice %388 {offsets = [0, 0], sizes = [16, 16], strides = [1, 1]} : vector<16x32xf32> to vector<16x16xf32>
    %396 = vector.shape_cast %395 : vector<16x16xf32> to vector<2x8x16xf32>
    %397 = vector.shape_cast %393 : vector<16x16xf32> to vector<2x8x16xf32>
    %398 = vector.shape_cast %394 : vector<16x16xf32> to vector<2x8x16xf32>
    %399 = arith.truncf %396 : vector<2x8x16xf32> to vector<2x8x16xbf16>
    %400 = arith.truncf %397 : vector<2x8x16xf32> to vector<2x8x16xbf16>
    "tpu.trace_start"() <{level = 10 : i32, message = "bnd,bmd->bnm"}> : () -> ()
    %cst_107 = arith.constant dense<0.000000e+00> : vector<2x8x8xf32>
    %401 = tpu.matmul %399, %400, %cst_107 {dimension_numbers = #tpu.dot_dimension_numbers<[2], [2], [1], [1], [0, 0, 0, 1, 1, 1], [0], [0]>} : vector<2x8x16xbf16>, vector<2x8x16xbf16>, vector<2x8x8xf32> -> vector<2x8x8xf32>
    "tpu.trace_stop"() : () -> ()
    %cst_108 = arith.constant 2.500000e-01 : f32
    %402 = vector.broadcast %cst_108 : f32 to vector<2x8x8xf32>
    %403 = arith.mulf %401, %402 : vector<2x8x8xf32>
    %cst_109 = arith.constant dense<0xFF800000> : vector<2x8xf32>
    %404 = vector.multi_reduction <maximumf>, %403, %cst_109 [2] : vector<2x8x8xf32> to vector<2x8xf32>
    %405 = vector.shape_cast %404 : vector<2x8xf32> to vector<2x8x1xf32>
    %406 = vector.broadcast %405 : vector<2x8x1xf32> to vector<2x8x8xf32>
    %407 = arith.subf %403, %406 : vector<2x8x8xf32>
    %408 = math.exp %407 : vector<2x8x8xf32>
    %cst_110 = arith.constant dense<0.000000e+00> : vector<2x8xf32>
    %409 = vector.multi_reduction <add>, %408, %cst_110 [2] : vector<2x8x8xf32> to vector<2x8xf32>
    %410 = vector.shape_cast %409 : vector<2x8xf32> to vector<2x8x1xf32>
    %411 = vector.broadcast %410 : vector<2x8x1xf32> to vector<2x8x8xf32>
    %412 = arith.divf %408, %411 : vector<2x8x8xf32>
    %413 = arith.truncf %412 : vector<2x8x8xf32> to vector<2x8x8xbf16>
    %414 = arith.truncf %398 : vector<2x8x16xf32> to vector<2x8x16xbf16>
    "tpu.trace_start"() <{level = 10 : i32, message = "bnm,bmd->bnd"}> : () -> ()
    %cst_111 = arith.constant dense<0.000000e+00> : vector<2x8x16xf32>
    %415 = tpu.matmul %413, %414, %cst_111 {dimension_numbers = #tpu.dot_dimension_numbers<[2], [1], [1], [2], [0, 0, 0, 1, 1, 2], [0], [0]>} : vector<2x8x8xbf16>, vector<2x8x16xbf16>, vector<2x8x16xf32> -> vector<2x8x16xf32>
    "tpu.trace_stop"() : () -> ()
    %416 = vector.shape_cast %415 : vector<2x8x16xf32> to vector<16x16xf32>
    %417 = vector.extract_strided_slice %388 {offsets = [0, 16], sizes = [16, 16], strides = [1, 1]} : vector<16x32xf32> to vector<16x16xf32>
    %418 = vector.shape_cast %417 : vector<16x16xf32> to vector<2x8x16xf32>
    %419 = vector.shape_cast %393 : vector<16x16xf32> to vector<2x8x16xf32>
    %420 = vector.shape_cast %394 : vector<16x16xf32> to vector<2x8x16xf32>
    %421 = arith.truncf %418 : vector<2x8x16xf32> to vector<2x8x16xbf16>
    %422 = arith.truncf %419 : vector<2x8x16xf32> to vector<2x8x16xbf16>
    "tpu.trace_start"() <{level = 10 : i32, message = "bnd,bmd->bnm"}> : () -> ()
    %cst_112 = arith.constant dense<0.000000e+00> : vector<2x8x8xf32>
    %423 = tpu.matmul %421, %422, %cst_112 {dimension_numbers = #tpu.dot_dimension_numbers<[2], [2], [1], [1], [0, 0, 0, 1, 1, 1], [0], [0]>} : vector<2x8x16xbf16>, vector<2x8x16xbf16>, vector<2x8x8xf32> -> vector<2x8x8xf32>
    "tpu.trace_stop"() : () -> ()
    %cst_113 = arith.constant 2.500000e-01 : f32
    %424 = vector.broadcast %cst_113 : f32 to vector<2x8x8xf32>
    %425 = arith.mulf %423, %424 : vector<2x8x8xf32>
    %cst_114 = arith.constant dense<0xFF800000> : vector<2x8xf32>
    %426 = vector.multi_reduction <maximumf>, %425, %cst_114 [2] : vector<2x8x8xf32> to vector<2x8xf32>
    %427 = vector.shape_cast %426 : vector<2x8xf32> to vector<2x8x1xf32>
    %428 = vector.broadcast %427 : vector<2x8x1xf32> to vector<2x8x8xf32>
    %429 = arith.subf %425, %428 : vector<2x8x8xf32>
    %430 = math.exp %429 : vector<2x8x8xf32>
    %cst_115 = arith.constant dense<0.000000e+00> : vector<2x8xf32>
    %431 = vector.multi_reduction <add>, %430, %cst_115 [2] : vector<2x8x8xf32> to vector<2x8xf32>
    %432 = vector.shape_cast %431 : vector<2x8xf32> to vector<2x8x1xf32>
    %433 = vector.broadcast %432 : vector<2x8x1xf32> to vector<2x8x8xf32>
    %434 = arith.divf %430, %433 : vector<2x8x8xf32>
    %435 = arith.truncf %434 : vector<2x8x8xf32> to vector<2x8x8xbf16>
    %436 = arith.truncf %420 : vector<2x8x16xf32> to vector<2x8x16xbf16>
    "tpu.trace_start"() <{level = 10 : i32, message = "bnm,bmd->bnd"}> : () -> ()
    %cst_116 = arith.constant dense<0.000000e+00> : vector<2x8x16xf32>
    %437 = tpu.matmul %435, %436, %cst_116 {dimension_numbers = #tpu.dot_dimension_numbers<[2], [1], [1], [2], [0, 0, 0, 1, 1, 2], [0], [0]>} : vector<2x8x8xbf16>, vector<2x8x16xbf16>, vector<2x8x16xf32> -> vector<2x8x16xf32>
    "tpu.trace_stop"() : () -> ()
    %438 = vector.shape_cast %437 : vector<2x8x16xf32> to vector<16x16xf32>
    %439 = tpu.concatenate %416, %438 in 1 : vector<16x16xf32>, vector<16x16xf32> -> vector<16x32xf32>
    %c0_117 = arith.constant 0 : index
    %c0_118 = arith.constant 0 : index
    %440 = vector.load %arg7[%c0_117, %c0_118] : memref<32x32xbf16, #tpu.memory_space<vmem>>, vector<32x32xbf16>
    %441 = arith.truncf %439 : vector<16x32xf32> to vector<16x32xbf16>
    %cst_119 = arith.constant dense<0.000000e+00> : vector<16x32xf32>
    %442 = tpu.matmul %441, %440, %cst_119 {dimension_numbers = #tpu.dot_dimension_numbers<[1], [0], [0], [1], [0, 0, 1, 1], [], []>} : vector<16x32xbf16>, vector<32x32xbf16>, vector<16x32xf32> -> vector<16x32xf32>
    %443 = vector.extract_strided_slice %389 {offsets = [0, 0], sizes = [16, 128], strides = [1, 1]} : vector<16x256xf32> to vector<16x128xf32>
    %444 = vector.extract_strided_slice %389 {offsets = [0, 128], sizes = [16, 128], strides = [1, 1]} : vector<16x256xf32> to vector<16x128xf32>
    %445 = arith.negf %444 : vector<16x128xf32>
    %446 = math.exp %445 : vector<16x128xf32>
    %cst_120 = arith.constant 1.000000e+00 : f32
    %447 = vector.broadcast %cst_120 : f32 to vector<16x128xf32>
    %448 = arith.addf %447, %446 : vector<16x128xf32>
    %449 = arith.divf %447, %448 : vector<16x128xf32>
    %450 = arith.mulf %444, %449 : vector<16x128xf32>
    %451 = arith.mulf %450, %443 : vector<16x128xf32>
    %c0_121 = arith.constant 0 : index
    %c0_122 = arith.constant 0 : index
    %452 = vector.load %arg8[%c0_121, %c0_122] : memref<128x32xbf16, #tpu.memory_space<vmem>>, vector<128x32xbf16>
    %453 = arith.truncf %451 : vector<16x128xf32> to vector<16x128xbf16>
    %cst_123 = arith.constant dense<0.000000e+00> : vector<16x32xf32>
    %454 = tpu.matmul %453, %452, %cst_123 {dimension_numbers = #tpu.dot_dimension_numbers<[1], [0], [0], [1], [0, 0, 1, 1], [], []>} : vector<16x128xbf16>, vector<128x32xbf16>, vector<16x32xf32> -> vector<16x32xf32>
    %455 = arith.addf %442, %454 : vector<16x32xf32>
    %c0_124 = arith.constant 0 : index
    %c0_125 = arith.constant 0 : index
    %456 = vector.load %arg9[%c0_124, %c0_125] : memref<3x32xf32, #tpu.memory_space<vmem>>, vector<3x32xf32>
    %457 = vector.extract_strided_slice %456 {offsets = [0, 0], sizes = [1, 32], strides = [1, 1]} : vector<3x32xf32> to vector<1x32xf32>
    %458 = vector.extract_strided_slice %456 {offsets = [1, 0], sizes = [1, 32], strides = [1, 1]} : vector<3x32xf32> to vector<1x32xf32>
    %cst_126 = arith.constant dense<0.000000e+00> : vector<16xf32>
    %459 = vector.multi_reduction <add>, %455, %cst_126 [1] : vector<16x32xf32> to vector<16xf32>
    %460 = vector.shape_cast %459 : vector<16xf32> to vector<16x1xf32>
    %cst_127 = arith.constant 3.200000e+01 : f32
    %461 = vector.broadcast %cst_127 : f32 to vector<16x1xf32>
    %462 = arith.divf %460, %461 : vector<16x1xf32>
    %463 = vector.broadcast %462 : vector<16x1xf32> to vector<16x32xf32>
    %464 = arith.subf %455, %463 : vector<16x32xf32>
    %465 = arith.mulf %464, %464 : vector<16x32xf32>
    %cst_128 = arith.constant dense<0.000000e+00> : vector<16xf32>
    %466 = vector.multi_reduction <add>, %465, %cst_128 [1] : vector<16x32xf32> to vector<16xf32>
    %467 = vector.shape_cast %466 : vector<16xf32> to vector<16x1xf32>
    %cst_129 = arith.constant 3.200000e+01 : f32
    %468 = vector.broadcast %cst_129 : f32 to vector<16x1xf32>
    %469 = arith.divf %467, %468 : vector<16x1xf32>
    %cst_130 = arith.constant 9.99999974E-6 : f32
    %470 = vector.broadcast %cst_130 : f32 to vector<16x1xf32>
    %471 = arith.addf %469, %470 : vector<16x1xf32>
    %472 = math.rsqrt %471 : vector<16x1xf32>
    %473 = vector.broadcast %472 : vector<16x1xf32> to vector<16x32xf32>
    %474 = arith.mulf %464, %473 : vector<16x32xf32>
    %475 = vector.broadcast %457 : vector<1x32xf32> to vector<16x32xf32>
    %476 = arith.mulf %474, %475 : vector<16x32xf32>
    %477 = vector.broadcast %458 : vector<1x32xf32> to vector<16x32xf32>
    %478 = arith.addf %476, %477 : vector<16x32xf32>
    %479 = math.tanh %478 : vector<16x32xf32>
    %480 = arith.addf %479, %339 : vector<16x32xf32>
    %c0_131 = arith.constant 0 : index
    %c0_132 = arith.constant 0 : index
    %481 = vector.load %arg10[%c0_131, %c0_132] : memref<32x32xbf16, #tpu.memory_space<vmem>>, vector<32x32xbf16>
    %482 = arith.truncf %480 : vector<16x32xf32> to vector<16x32xbf16>
    %cst_133 = arith.constant dense<0.000000e+00> : vector<16x32xf32>
    %483 = tpu.matmul %482, %481, %cst_133 {dimension_numbers = #tpu.dot_dimension_numbers<[1], [0], [0], [1], [0, 0, 1, 1], [], []>} : vector<16x32xbf16>, vector<32x32xbf16>, vector<16x32xf32> -> vector<16x32xf32>
    %484 = vector.extract_strided_slice %456 {offsets = [2, 0], sizes = [1, 32], strides = [1, 1]} : vector<3x32xf32> to vector<1x32xf32>
    %485 = vector.broadcast %484 : vector<1x32xf32> to vector<16x32xf32>
    %486 = arith.addf %483, %485 : vector<16x32xf32>
    %487 = math.tanh %486 : vector<16x32xf32>
    %c0_134 = arith.constant 0 : index
    %c0_135 = arith.constant 0 : index
    %488 = vector.load %arg11[%c0_134, %c0_135] : memref<4x32xf32, #tpu.memory_space<vmem>>, vector<4x32xf32>
    %489 = vector.extract_strided_slice %488 {offsets = [0, 0], sizes = [1, 32], strides = [1, 1]} : vector<4x32xf32> to vector<1x32xf32>
    %490 = vector.extract_strided_slice %488 {offsets = [1, 0], sizes = [1, 32], strides = [1, 1]} : vector<4x32xf32> to vector<1x32xf32>
    %cst_136 = arith.constant dense<0.000000e+00> : vector<16xf32>
    %491 = vector.multi_reduction <add>, %487, %cst_136 [1] : vector<16x32xf32> to vector<16xf32>
    %492 = vector.shape_cast %491 : vector<16xf32> to vector<16x1xf32>
    %cst_137 = arith.constant 3.200000e+01 : f32
    %493 = vector.broadcast %cst_137 : f32 to vector<16x1xf32>
    %494 = arith.divf %492, %493 : vector<16x1xf32>
    %495 = vector.broadcast %494 : vector<16x1xf32> to vector<16x32xf32>
    %496 = arith.subf %487, %495 : vector<16x32xf32>
    %497 = arith.mulf %496, %496 : vector<16x32xf32>
    %cst_138 = arith.constant dense<0.000000e+00> : vector<16xf32>
    %498 = vector.multi_reduction <add>, %497, %cst_138 [1] : vector<16x32xf32> to vector<16xf32>
    %499 = vector.shape_cast %498 : vector<16xf32> to vector<16x1xf32>
    %cst_139 = arith.constant 3.200000e+01 : f32
    %500 = vector.broadcast %cst_139 : f32 to vector<16x1xf32>
    %501 = arith.divf %499, %500 : vector<16x1xf32>
    %cst_140 = arith.constant 9.99999974E-6 : f32
    %502 = vector.broadcast %cst_140 : f32 to vector<16x1xf32>
    %503 = arith.addf %501, %502 : vector<16x1xf32>
    %504 = math.rsqrt %503 : vector<16x1xf32>
    %505 = vector.broadcast %504 : vector<16x1xf32> to vector<16x32xf32>
    %506 = arith.mulf %496, %505 : vector<16x32xf32>
    %507 = vector.broadcast %489 : vector<1x32xf32> to vector<16x32xf32>
    %508 = arith.mulf %506, %507 : vector<16x32xf32>
    %509 = vector.broadcast %490 : vector<1x32xf32> to vector<16x32xf32>
    %510 = arith.addf %508, %509 : vector<16x32xf32>
    %511 = arith.addf %510, %30 : vector<16x32xf32>
    %512 = vector.extract_strided_slice %488 {offsets = [2, 0], sizes = [1, 32], strides = [1, 1]} : vector<4x32xf32> to vector<1x32xf32>
    %513 = vector.extract_strided_slice %488 {offsets = [3, 0], sizes = [1, 32], strides = [1, 1]} : vector<4x32xf32> to vector<1x32xf32>
    %cst_141 = arith.constant dense<0.000000e+00> : vector<16xf32>
    %514 = vector.multi_reduction <add>, %511, %cst_141 [1] : vector<16x32xf32> to vector<16xf32>
    %515 = vector.shape_cast %514 : vector<16xf32> to vector<16x1xf32>
    %cst_142 = arith.constant 3.200000e+01 : f32
    %516 = vector.broadcast %cst_142 : f32 to vector<16x1xf32>
    %517 = arith.divf %515, %516 : vector<16x1xf32>
    %518 = vector.broadcast %517 : vector<16x1xf32> to vector<16x32xf32>
    %519 = arith.subf %511, %518 : vector<16x32xf32>
    %520 = arith.mulf %519, %519 : vector<16x32xf32>
    %cst_143 = arith.constant dense<0.000000e+00> : vector<16xf32>
    %521 = vector.multi_reduction <add>, %520, %cst_143 [1] : vector<16x32xf32> to vector<16xf32>
    %522 = vector.shape_cast %521 : vector<16xf32> to vector<16x1xf32>
    %cst_144 = arith.constant 3.200000e+01 : f32
    %523 = vector.broadcast %cst_144 : f32 to vector<16x1xf32>
    %524 = arith.divf %522, %523 : vector<16x1xf32>
    %cst_145 = arith.constant 9.99999974E-6 : f32
    %525 = vector.broadcast %cst_145 : f32 to vector<16x1xf32>
    %526 = arith.addf %524, %525 : vector<16x1xf32>
    %527 = math.rsqrt %526 : vector<16x1xf32>
    %528 = vector.broadcast %527 : vector<16x1xf32> to vector<16x32xf32>
    %529 = arith.mulf %519, %528 : vector<16x32xf32>
    %530 = vector.broadcast %512 : vector<1x32xf32> to vector<16x32xf32>
    %531 = arith.mulf %529, %530 : vector<16x32xf32>
    %532 = vector.broadcast %513 : vector<1x32xf32> to vector<16x32xf32>
    %533 = arith.addf %531, %532 : vector<16x32xf32>
    %534 = vector.shape_cast %533 : vector<16x32xf32> to vector<2x8x32xf32>
    %c0_146 = arith.constant 0 : index
    %c0_147 = arith.constant 0 : index
    %c0_148 = arith.constant 0 : index
    %535 = vector.load %arg12[%c0_146, %c0_147, %c0_148] : memref<2x8x32xf32, #tpu.memory_space<vmem>>, vector<2x8x32xf32>
    tpu.vector_store %arg12[%c0_146, %c0_147, %c0_148], %534 {strides = array<i32>} : memref<2x8x32xf32, #tpu.memory_space<vmem>>, vector<2x8x32xf32>,
    return
  }
}

module attributes {stable_mosaic.version = 11 : i64} {
  func.func @_decoder_kernel(%arg0: memref<16x2xi32, #tpu.memory_space<vmem>>, %arg1: memref<64x32xf32, #tpu.memory_space<vmem>>, %arg2: memref<32x32xf32, #tpu.memory_space<vmem>>, %arg3: memref<2x32xf32, #tpu.memory_space<vmem>>, %arg4: memref<2x8x32xf32, #tpu.memory_space<vmem>>, %arg5: memref<2x6x32xf32, #tpu.memory_space<vmem>>, %arg6: memref<2x32x96xbf16, #tpu.memory_space<vmem>>, %arg7: memref<2x32x32xbf16, #tpu.memory_space<vmem>>, %arg8: memref<2x32x32xbf16, #tpu.memory_space<vmem>>, %arg9: memref<2x32x64xbf16, #tpu.memory_space<vmem>>, %arg10: memref<2x32x32xbf16, #tpu.memory_space<vmem>>, %arg11: memref<2x32x128xbf16, #tpu.memory_space<vmem>>, %arg12: memref<2x128xf32, #tpu.memory_space<vmem>>, %arg13: memref<2x128x32xbf16, #tpu.memory_space<vmem>>, %arg14: memref<2x32xf32, #tpu.memory_space<vmem>>, %arg15: memref<2x32xf32, #tpu.memory_space<vmem>>, %arg16: memref<32x64xbf16, #tpu.memory_space<vmem>>, %arg17: memref<1x128xf32, #tpu.memory_space<vmem>>) attributes {dimension_semantics = [], scalar_prefetch = 0 : i64, scratch_operands = 0 : i64, tpu.core_type = #tpu.core_type<tc>} {
    %c0 = arith.constant 0 : index
    %c0_0 = arith.constant 0 : index
    %0 = vector.load %arg0[%c0, %c0_0] : memref<16x2xi32, #tpu.memory_space<vmem>>, vector<16x2xi32>
    %1 = tpu.iota {dimensions = array<i32: 1>} : vector<16x64xi32>
    %2 = vector.extract_strided_slice %0 {offsets = [0, 0], sizes = [16, 1], strides = [1, 1]} : vector<16x2xi32> to vector<16x1xi32>
    %3 = vector.broadcast %2 : vector<16x1xi32> to vector<16x64xi32>
    %4 = arith.cmpi eq, %1, %3 : vector<16x64xi32>
    %5 = arith.extui %4 : vector<16x64xi1> to vector<16x64xi32>
    %6 = arith.sitofp %5 : vector<16x64xi32> to vector<16x64xf32>
    %7 = vector.extract_strided_slice %0 {offsets = [0, 1], sizes = [16, 1], strides = [1, 1]} : vector<16x2xi32> to vector<16x1xi32>
    %8 = vector.broadcast %7 : vector<16x1xi32> to vector<16x64xi32>
    %9 = arith.cmpi eq, %1, %8 : vector<16x64xi32>
    %10 = arith.extui %9 : vector<16x64xi1> to vector<16x64xi32>
    %11 = arith.sitofp %10 : vector<16x64xi32> to vector<16x64xf32>
    %c0_1 = arith.constant 0 : index
    %c0_2 = arith.constant 0 : index
    %12 = vector.load %arg1[%c0_1, %c0_2] : memref<64x32xf32, #tpu.memory_space<vmem>>, vector<64x32xf32>
    %cst = arith.constant dense<0.000000e+00> : vector<16x32xf32>
    %13 = tpu.matmul %6, %12, %cst {dimension_numbers = #tpu.dot_dimension_numbers<[1], [0], [0], [1], [0, 0, 1, 1], [], []>} : vector<16x64xf32>, vector<64x32xf32>, vector<16x32xf32> -> vector<16x32xf32>
    %c0_3 = arith.constant 0 : index
    %c0_4 = arith.constant 0 : index
    %14 = vector.load %arg2[%c0_3, %c0_4] : memref<32x32xf32, #tpu.memory_space<vmem>>, vector<32x32xf32>
    %15 = vector.extract_strided_slice %14 {offsets = [0, 0], sizes = [8, 32], strides = [1, 1]} : vector<32x32xf32> to vector<8x32xf32>
    %16 = vector.shape_cast %13 : vector<16x32xf32> to vector<2x8x32xf32>
    %17 = vector.shape_cast %15 : vector<8x32xf32> to vector<1x8x32xf32>
    %18 = vector.broadcast %17 : vector<1x8x32xf32> to vector<2x8x32xf32>
    %19 = arith.addf %16, %18 : vector<2x8x32xf32>
    %20 = vector.shape_cast %19 : vector<2x8x32xf32> to vector<16x32xf32>
    %c0_5 = arith.constant 0 : index
    %c0_6 = arith.constant 0 : index
    %21 = vector.load %arg3[%c0_5, %c0_6] : memref<2x32xf32, #tpu.memory_space<vmem>>, vector<2x32xf32>
    %22 = vector.extract_strided_slice %21 {offsets = [0, 0], sizes = [1, 32], strides = [1, 1]} : vector<2x32xf32> to vector<1x32xf32>
    %23 = vector.extract_strided_slice %21 {offsets = [1, 0], sizes = [1, 32], strides = [1, 1]} : vector<2x32xf32> to vector<1x32xf32>
    %cst_7 = arith.constant dense<0.000000e+00> : vector<16xf32>
    %24 = vector.multi_reduction <add>, %20, %cst_7 [1] : vector<16x32xf32> to vector<16xf32>
    %25 = vector.shape_cast %24 : vector<16xf32> to vector<16x1xf32>
    %cst_8 = arith.constant 3.200000e+01 : f32
    %26 = vector.broadcast %cst_8 : f32 to vector<16x1xf32>
    %27 = arith.divf %25, %26 : vector<16x1xf32>
    %28 = vector.broadcast %27 : vector<16x1xf32> to vector<16x32xf32>
    %29 = arith.subf %20, %28 : vector<16x32xf32>
    %30 = arith.mulf %29, %29 : vector<16x32xf32>
    %cst_9 = arith.constant dense<0.000000e+00> : vector<16xf32>
    %31 = vector.multi_reduction <add>, %30, %cst_9 [1] : vector<16x32xf32> to vector<16xf32>
    %32 = vector.shape_cast %31 : vector<16xf32> to vector<16x1xf32>
    %cst_10 = arith.constant 3.200000e+01 : f32
    %33 = vector.broadcast %cst_10 : f32 to vector<16x1xf32>
    %34 = arith.divf %32, %33 : vector<16x1xf32>
    %cst_11 = arith.constant 9.99999974E-6 : f32
    %35 = vector.broadcast %cst_11 : f32 to vector<16x1xf32>
    %36 = arith.addf %34, %35 : vector<16x1xf32>
    %37 = math.rsqrt %36 : vector<16x1xf32>
    %38 = vector.broadcast %37 : vector<16x1xf32> to vector<16x32xf32>
    %39 = arith.mulf %29, %38 : vector<16x32xf32>
    %40 = vector.broadcast %22 : vector<1x32xf32> to vector<16x32xf32>
    %41 = arith.mulf %39, %40 : vector<16x32xf32>
    %42 = vector.broadcast %23 : vector<1x32xf32> to vector<16x32xf32>
    %43 = arith.addf %41, %42 : vector<16x32xf32>
    %44 = tpu.iota {dimensions = array<i32: 0>} : vector<8x8xi32>
    %45 = tpu.iota {dimensions = array<i32: 1>} : vector<8x8xi32>
    %46 = arith.cmpi sle, %45, %44 : vector<8x8xi32>
    %c0_12 = arith.constant 0 : index
    %c0_13 = arith.constant 0 : index
    %c0_14 = arith.constant 0 : index
    %47 = vector.load %arg4[%c0_12, %c0_13, %c0_14] : memref<2x8x32xf32, #tpu.memory_space<vmem>>, vector<2x8x32xf32>
    %48 = vector.shape_cast %47 : vector<2x8x32xf32> to vector<16x32xf32>
    %c0_15 = arith.constant 0 : index
    %c0_16 = arith.constant 0 : index
    %c0_17 = arith.constant 0 : index
    %49 = vector.load %arg5[%c0_15, %c0_16, %c0_17] : memref<2x6x32xf32, #tpu.memory_space<vmem>>, vector<1x6x32xf32>
    %50 = vector.shape_cast %49 : vector<1x6x32xf32> to vector<6x32xf32>
    %51 = vector.extract_strided_slice %50 {offsets = [0, 0], sizes = [1, 32], strides = [1, 1]} : vector<6x32xf32> to vector<1x32xf32>
    %52 = vector.extract_strided_slice %50 {offsets = [1, 0], sizes = [1, 32], strides = [1, 1]} : vector<6x32xf32> to vector<1x32xf32>
    %cst_18 = arith.constant dense<0.000000e+00> : vector<16xf32>
    %53 = vector.multi_reduction <add>, %43, %cst_18 [1] : vector<16x32xf32> to vector<16xf32>
    %54 = vector.shape_cast %53 : vector<16xf32> to vector<16x1xf32>
    %cst_19 = arith.constant 3.200000e+01 : f32
    %55 = vector.broadcast %cst_19 : f32 to vector<16x1xf32>
    %56 = arith.divf %54, %55 : vector<16x1xf32>
    %57 = vector.broadcast %56 : vector<16x1xf32> to vector<16x32xf32>
    %58 = arith.subf %43, %57 : vector<16x32xf32>
    %59 = arith.mulf %58, %58 : vector<16x32xf32>
    %cst_20 = arith.constant dense<0.000000e+00> : vector<16xf32>
    %60 = vector.multi_reduction <add>, %59, %cst_20 [1] : vector<16x32xf32> to vector<16xf32>
    %61 = vector.shape_cast %60 : vector<16xf32> to vector<16x1xf32>
    %cst_21 = arith.constant 3.200000e+01 : f32
    %62 = vector.broadcast %cst_21 : f32 to vector<16x1xf32>
    %63 = arith.divf %61, %62 : vector<16x1xf32>
    %cst_22 = arith.constant 9.99999974E-6 : f32
    %64 = vector.broadcast %cst_22 : f32 to vector<16x1xf32>
    %65 = arith.addf %63, %64 : vector<16x1xf32>
    %66 = math.rsqrt %65 : vector<16x1xf32>
    %67 = vector.broadcast %66 : vector<16x1xf32> to vector<16x32xf32>
    %68 = arith.mulf %58, %67 : vector<16x32xf32>
    %69 = vector.broadcast %51 : vector<1x32xf32> to vector<16x32xf32>
    %70 = arith.mulf %68, %69 : vector<16x32xf32>
    %71 = vector.broadcast %52 : vector<1x32xf32> to vector<16x32xf32>
    %72 = arith.addf %70, %71 : vector<16x32xf32>
    %c0_23 = arith.constant 0 : index
    %c0_24 = arith.constant 0 : index
    %c0_25 = arith.constant 0 : index
    %73 = vector.load %arg6[%c0_23, %c0_24, %c0_25] : memref<2x32x96xbf16, #tpu.memory_space<vmem>>, vector<1x32x96xbf16>
    %74 = vector.shape_cast %73 : vector<1x32x96xbf16> to vector<32x96xbf16>
    %75 = arith.truncf %72 : vector<16x32xf32> to vector<16x32xbf16>
    %cst_26 = arith.constant dense<0.000000e+00> : vector<16x96xf32>
    %76 = tpu.matmul %75, %74, %cst_26 {dimension_numbers = #tpu.dot_dimension_numbers<[1], [0], [0], [1], [0, 0, 1, 1], [], []>} : vector<16x32xbf16>, vector<32x96xbf16>, vector<16x96xf32> -> vector<16x96xf32>
    %77 = vector.extract_strided_slice %76 {offsets = [0, 0], sizes = [16, 32], strides = [1, 1]} : vector<16x96xf32> to vector<16x32xf32>
    %78 = vector.extract_strided_slice %76 {offsets = [0, 32], sizes = [16, 32], strides = [1, 1]} : vector<16x96xf32> to vector<16x32xf32>
    %79 = vector.extract_strided_slice %76 {offsets = [0, 64], sizes = [16, 32], strides = [1, 1]} : vector<16x96xf32> to vector<16x32xf32>
    %80 = vector.extract_strided_slice %77 {offsets = [0, 0], sizes = [16, 16], strides = [1, 1]} : vector<16x32xf32> to vector<16x16xf32>
    %81 = vector.shape_cast %80 : vector<16x16xf32> to vector<2x8x16xf32>
    %82 = vector.extract_strided_slice %78 {offsets = [0, 0], sizes = [16, 16], strides = [1, 1]} : vector<16x32xf32> to vector<16x16xf32>
    %83 = vector.shape_cast %82 : vector<16x16xf32> to vector<2x8x16xf32>
    %84 = vector.extract_strided_slice %79 {offsets = [0, 0], sizes = [16, 16], strides = [1, 1]} : vector<16x32xf32> to vector<16x16xf32>
    %85 = vector.shape_cast %84 : vector<16x16xf32> to vector<2x8x16xf32>
    %86 = arith.truncf %81 : vector<2x8x16xf32> to vector<2x8x16xbf16>
    %87 = arith.truncf %83 : vector<2x8x16xf32> to vector<2x8x16xbf16>
    "tpu.trace_start"() <{level = 10 : i32, message = "bnd,bmd->bnm"}> : () -> ()
    %cst_27 = arith.constant dense<0.000000e+00> : vector<2x8x8xf32>
    %88 = tpu.matmul %86, %87, %cst_27 {dimension_numbers = #tpu.dot_dimension_numbers<[2], [2], [1], [1], [0, 0, 0, 1, 1, 1], [0], [0]>} : vector<2x8x16xbf16>, vector<2x8x16xbf16>, vector<2x8x8xf32> -> vector<2x8x8xf32>
    "tpu.trace_stop"() : () -> ()
    %cst_28 = arith.constant 2.500000e-01 : f32
    %89 = vector.broadcast %cst_28 : f32 to vector<2x8x8xf32>
    %90 = arith.mulf %88, %89 : vector<2x8x8xf32>
    %91 = vector.shape_cast %46 : vector<8x8xi1> to vector<1x8x8xi1>
    %cst_29 = arith.constant -1.000000e+30 : f32
    %92 = vector.shape_cast %91 : vector<1x8x8xi1> to vector<1x8x8xi1>
    %93 = vector.broadcast %92 : vector<1x8x8xi1> to vector<2x8x8xi1>
    %94 = vector.broadcast %cst_29 : f32 to vector<2x8x8xf32>
    %95 = arith.select %93, %90, %94 : vector<2x8x8xi1>, vector<2x8x8xf32>
    %cst_30 = arith.constant dense<0xFF800000> : vector<2x8xf32>
    %96 = vector.multi_reduction <maximumf>, %95, %cst_30 [2] : vector<2x8x8xf32> to vector<2x8xf32>
    %97 = vector.shape_cast %96 : vector<2x8xf32> to vector<2x8x1xf32>
    %98 = vector.broadcast %97 : vector<2x8x1xf32> to vector<2x8x8xf32>
    %99 = arith.subf %95, %98 : vector<2x8x8xf32>
    %100 = math.exp %99 : vector<2x8x8xf32>
    %cst_31 = arith.constant dense<0.000000e+00> : vector<2x8xf32>
    %101 = vector.multi_reduction <add>, %100, %cst_31 [2] : vector<2x8x8xf32> to vector<2x8xf32>
    %102 = vector.shape_cast %101 : vector<2x8xf32> to vector<2x8x1xf32>
    %103 = vector.broadcast %102 : vector<2x8x1xf32> to vector<2x8x8xf32>
    %104 = arith.divf %100, %103 : vector<2x8x8xf32>
    %105 = arith.truncf %104 : vector<2x8x8xf32> to vector<2x8x8xbf16>
    %106 = arith.truncf %85 : vector<2x8x16xf32> to vector<2x8x16xbf16>
    "tpu.trace_start"() <{level = 10 : i32, message = "bnm,bmd->bnd"}> : () -> ()
    %cst_32 = arith.constant dense<0.000000e+00> : vector<2x8x16xf32>
    %107 = tpu.matmul %105, %106, %cst_32 {dimension_numbers = #tpu.dot_dimension_numbers<[2], [1], [1], [2], [0, 0, 0, 1, 1, 2], [0], [0]>} : vector<2x8x8xbf16>, vector<2x8x16xbf16>, vector<2x8x16xf32> -> vector<2x8x16xf32>
    "tpu.trace_stop"() : () -> ()
    %108 = vector.shape_cast %107 : vector<2x8x16xf32> to vector<16x16xf32>
    %109 = vector.extract_strided_slice %77 {offsets = [0, 16], sizes = [16, 16], strides = [1, 1]} : vector<16x32xf32> to vector<16x16xf32>
    %110 = vector.shape_cast %109 : vector<16x16xf32> to vector<2x8x16xf32>
    %111 = vector.extract_strided_slice %78 {offsets = [0, 16], sizes = [16, 16], strides = [1, 1]} : vector<16x32xf32> to vector<16x16xf32>
    %112 = vector.shape_cast %111 : vector<16x16xf32> to vector<2x8x16xf32>
    %113 = vector.extract_strided_slice %79 {offsets = [0, 16], sizes = [16, 16], strides = [1, 1]} : vector<16x32xf32> to vector<16x16xf32>
    %114 = vector.shape_cast %113 : vector<16x16xf32> to vector<2x8x16xf32>
    %115 = arith.truncf %110 : vector<2x8x16xf32> to vector<2x8x16xbf16>
    %116 = arith.truncf %112 : vector<2x8x16xf32> to vector<2x8x16xbf16>
    "tpu.trace_start"() <{level = 10 : i32, message = "bnd,bmd->bnm"}> : () -> ()
    %cst_33 = arith.constant dense<0.000000e+00> : vector<2x8x8xf32>
    %117 = tpu.matmul %115, %116, %cst_33 {dimension_numbers = #tpu.dot_dimension_numbers<[2], [2], [1], [1], [0, 0, 0, 1, 1, 1], [0], [0]>} : vector<2x8x16xbf16>, vector<2x8x16xbf16>, vector<2x8x8xf32> -> vector<2x8x8xf32>
    "tpu.trace_stop"() : () -> ()
    %cst_34 = arith.constant 2.500000e-01 : f32
    %118 = vector.broadcast %cst_34 : f32 to vector<2x8x8xf32>
    %119 = arith.mulf %117, %118 : vector<2x8x8xf32>
    %120 = vector.shape_cast %46 : vector<8x8xi1> to vector<1x8x8xi1>
    %cst_35 = arith.constant -1.000000e+30 : f32
    %121 = vector.shape_cast %120 : vector<1x8x8xi1> to vector<1x8x8xi1>
    %122 = vector.broadcast %121 : vector<1x8x8xi1> to vector<2x8x8xi1>
    %123 = vector.broadcast %cst_35 : f32 to vector<2x8x8xf32>
    %124 = arith.select %122, %119, %123 : vector<2x8x8xi1>, vector<2x8x8xf32>
    %cst_36 = arith.constant dense<0xFF800000> : vector<2x8xf32>
    %125 = vector.multi_reduction <maximumf>, %124, %cst_36 [2] : vector<2x8x8xf32> to vector<2x8xf32>
    %126 = vector.shape_cast %125 : vector<2x8xf32> to vector<2x8x1xf32>
    %127 = vector.broadcast %126 : vector<2x8x1xf32> to vector<2x8x8xf32>
    %128 = arith.subf %124, %127 : vector<2x8x8xf32>
    %129 = math.exp %128 : vector<2x8x8xf32>
    %cst_37 = arith.constant dense<0.000000e+00> : vector<2x8xf32>
    %130 = vector.multi_reduction <add>, %129, %cst_37 [2] : vector<2x8x8xf32> to vector<2x8xf32>
    %131 = vector.shape_cast %130 : vector<2x8xf32> to vector<2x8x1xf32>
    %132 = vector.broadcast %131 : vector<2x8x1xf32> to vector<2x8x8xf32>
    %133 = arith.divf %129, %132 : vector<2x8x8xf32>
    %134 = arith.truncf %133 : vector<2x8x8xf32> to vector<2x8x8xbf16>
    %135 = arith.truncf %114 : vector<2x8x16xf32> to vector<2x8x16xbf16>
    "tpu.trace_start"() <{level = 10 : i32, message = "bnm,bmd->bnd"}> : () -> ()
    %cst_38 = arith.constant dense<0.000000e+00> : vector<2x8x16xf32>
    %136 = tpu.matmul %134, %135, %cst_38 {dimension_numbers = #tpu.dot_dimension_numbers<[2], [1], [1], [2], [0, 0, 0, 1, 1, 2], [0], [0]>} : vector<2x8x8xbf16>, vector<2x8x16xbf16>, vector<2x8x16xf32> -> vector<2x8x16xf32>
    "tpu.trace_stop"() : () -> ()
    %137 = vector.shape_cast %136 : vector<2x8x16xf32> to vector<16x16xf32>
    %138 = tpu.concatenate %108, %137 in 1 : vector<16x16xf32>, vector<16x16xf32> -> vector<16x32xf32>
    %c0_39 = arith.constant 0 : index
    %c0_40 = arith.constant 0 : index
    %c0_41 = arith.constant 0 : index
    %139 = vector.load %arg7[%c0_39, %c0_40, %c0_41] : memref<2x32x32xbf16, #tpu.memory_space<vmem>>, vector<1x32x32xbf16>
    %140 = vector.shape_cast %139 : vector<1x32x32xbf16> to vector<32x32xbf16>
    %141 = arith.truncf %138 : vector<16x32xf32> to vector<16x32xbf16>
    %cst_42 = arith.constant dense<0.000000e+00> : vector<16x32xf32>
    %142 = tpu.matmul %141, %140, %cst_42 {dimension_numbers = #tpu.dot_dimension_numbers<[1], [0], [0], [1], [0, 0, 1, 1], [], []>} : vector<16x32xbf16>, vector<32x32xbf16>, vector<16x32xf32> -> vector<16x32xf32>
    %143 = arith.addf %43, %142 : vector<16x32xf32>
    %144 = vector.extract_strided_slice %50 {offsets = [2, 0], sizes = [1, 32], strides = [1, 1]} : vector<6x32xf32> to vector<1x32xf32>
    %145 = vector.extract_strided_slice %50 {offsets = [3, 0], sizes = [1, 32], strides = [1, 1]} : vector<6x32xf32> to vector<1x32xf32>
    %cst_43 = arith.constant dense<0.000000e+00> : vector<16xf32>
    %146 = vector.multi_reduction <add>, %143, %cst_43 [1] : vector<16x32xf32> to vector<16xf32>
    %147 = vector.shape_cast %146 : vector<16xf32> to vector<16x1xf32>
    %cst_44 = arith.constant 3.200000e+01 : f32
    %148 = vector.broadcast %cst_44 : f32 to vector<16x1xf32>
    %149 = arith.divf %147, %148 : vector<16x1xf32>
    %150 = vector.broadcast %149 : vector<16x1xf32> to vector<16x32xf32>
    %151 = arith.subf %143, %150 : vector<16x32xf32>
    %152 = arith.mulf %151, %151 : vector<16x32xf32>
    %cst_45 = arith.constant dense<0.000000e+00> : vector<16xf32>
    %153 = vector.multi_reduction <add>, %152, %cst_45 [1] : vector<16x32xf32> to vector<16xf32>
    %154 = vector.shape_cast %153 : vector<16xf32> to vector<16x1xf32>
    %cst_46 = arith.constant 3.200000e+01 : f32
    %155 = vector.broadcast %cst_46 : f32 to vector<16x1xf32>
    %156 = arith.divf %154, %155 : vector<16x1xf32>
    %cst_47 = arith.constant 9.99999974E-6 : f32
    %157 = vector.broadcast %cst_47 : f32 to vector<16x1xf32>
    %158 = arith.addf %156, %157 : vector<16x1xf32>
    %159 = math.rsqrt %158 : vector<16x1xf32>
    %160 = vector.broadcast %159 : vector<16x1xf32> to vector<16x32xf32>
    %161 = arith.mulf %151, %160 : vector<16x32xf32>
    %162 = vector.broadcast %144 : vector<1x32xf32> to vector<16x32xf32>
    %163 = arith.mulf %161, %162 : vector<16x32xf32>
    %164 = vector.broadcast %145 : vector<1x32xf32> to vector<16x32xf32>
    %165 = arith.addf %163, %164 : vector<16x32xf32>
    %c0_48 = arith.constant 0 : index
    %c0_49 = arith.constant 0 : index
    %c0_50 = arith.constant 0 : index
    %166 = vector.load %arg8[%c0_48, %c0_49, %c0_50] : memref<2x32x32xbf16, #tpu.memory_space<vmem>>, vector<1x32x32xbf16>
    %167 = vector.shape_cast %166 : vector<1x32x32xbf16> to vector<32x32xbf16>
    %168 = arith.truncf %165 : vector<16x32xf32> to vector<16x32xbf16>
    %cst_51 = arith.constant dense<0.000000e+00> : vector<16x32xf32>
    %169 = tpu.matmul %168, %167, %cst_51 {dimension_numbers = #tpu.dot_dimension_numbers<[1], [0], [0], [1], [0, 0, 1, 1], [], []>} : vector<16x32xbf16>, vector<32x32xbf16>, vector<16x32xf32> -> vector<16x32xf32>
    %c0_52 = arith.constant 0 : index
    %c0_53 = arith.constant 0 : index
    %c0_54 = arith.constant 0 : index
    %170 = vector.load %arg9[%c0_52, %c0_53, %c0_54] : memref<2x32x64xbf16, #tpu.memory_space<vmem>>, vector<1x32x64xbf16>
    %171 = vector.shape_cast %170 : vector<1x32x64xbf16> to vector<32x64xbf16>
    %172 = arith.truncf %48 : vector<16x32xf32> to vector<16x32xbf16>
    %cst_55 = arith.constant dense<0.000000e+00> : vector<16x64xf32>
    %173 = tpu.matmul %172, %171, %cst_55 {dimension_numbers = #tpu.dot_dimension_numbers<[1], [0], [0], [1], [0, 0, 1, 1], [], []>} : vector<16x32xbf16>, vector<32x64xbf16>, vector<16x64xf32> -> vector<16x64xf32>
    %174 = vector.extract_strided_slice %173 {offsets = [0, 0], sizes = [16, 32], strides = [1, 1]} : vector<16x64xf32> to vector<16x32xf32>
    %175 = vector.extract_strided_slice %173 {offsets = [0, 32], sizes = [16, 32], strides = [1, 1]} : vector<16x64xf32> to vector<16x32xf32>
    %176 = vector.extract_strided_slice %169 {offsets = [0, 0], sizes = [16, 16], strides = [1, 1]} : vector<16x32xf32> to vector<16x16xf32>
    %177 = vector.shape_cast %176 : vector<16x16xf32> to vector<2x8x16xf32>
    %178 = vector.extract_strided_slice %174 {offsets = [0, 0], sizes = [16, 16], strides = [1, 1]} : vector<16x32xf32> to vector<16x16xf32>
    %179 = vector.shape_cast %178 : vector<16x16xf32> to vector<2x8x16xf32>
    %180 = vector.extract_strided_slice %175 {offsets = [0, 0], sizes = [16, 16], strides = [1, 1]} : vector<16x32xf32> to vector<16x16xf32>
    %181 = vector.shape_cast %180 : vector<16x16xf32> to vector<2x8x16xf32>
    %182 = arith.truncf %177 : vector<2x8x16xf32> to vector<2x8x16xbf16>
    %183 = arith.truncf %179 : vector<2x8x16xf32> to vector<2x8x16xbf16>
    "tpu.trace_start"() <{level = 10 : i32, message = "bnd,bmd->bnm"}> : () -> ()
    %cst_56 = arith.constant dense<0.000000e+00> : vector<2x8x8xf32>
    %184 = tpu.matmul %182, %183, %cst_56 {dimension_numbers = #tpu.dot_dimension_numbers<[2], [2], [1], [1], [0, 0, 0, 1, 1, 1], [0], [0]>} : vector<2x8x16xbf16>, vector<2x8x16xbf16>, vector<2x8x8xf32> -> vector<2x8x8xf32>
    "tpu.trace_stop"() : () -> ()
    %cst_57 = arith.constant 2.500000e-01 : f32
    %185 = vector.broadcast %cst_57 : f32 to vector<2x8x8xf32>
    %186 = arith.mulf %184, %185 : vector<2x8x8xf32>
    %cst_58 = arith.constant dense<0xFF800000> : vector<2x8xf32>
    %187 = vector.multi_reduction <maximumf>, %186, %cst_58 [2] : vector<2x8x8xf32> to vector<2x8xf32>
    %188 = vector.shape_cast %187 : vector<2x8xf32> to vector<2x8x1xf32>
    %189 = vector.broadcast %188 : vector<2x8x1xf32> to vector<2x8x8xf32>
    %190 = arith.subf %186, %189 : vector<2x8x8xf32>
    %191 = math.exp %190 : vector<2x8x8xf32>
    %cst_59 = arith.constant dense<0.000000e+00> : vector<2x8xf32>
    %192 = vector.multi_reduction <add>, %191, %cst_59 [2] : vector<2x8x8xf32> to vector<2x8xf32>
    %193 = vector.shape_cast %192 : vector<2x8xf32> to vector<2x8x1xf32>
    %194 = vector.broadcast %193 : vector<2x8x1xf32> to vector<2x8x8xf32>
    %195 = arith.divf %191, %194 : vector<2x8x8xf32>
    %196 = arith.truncf %195 : vector<2x8x8xf32> to vector<2x8x8xbf16>
    %197 = arith.truncf %181 : vector<2x8x16xf32> to vector<2x8x16xbf16>
    "tpu.trace_start"() <{level = 10 : i32, message = "bnm,bmd->bnd"}> : () -> ()
    %cst_60 = arith.constant dense<0.000000e+00> : vector<2x8x16xf32>
    %198 = tpu.matmul %196, %197, %cst_60 {dimension_numbers = #tpu.dot_dimension_numbers<[2], [1], [1], [2], [0, 0, 0, 1, 1, 2], [0], [0]>} : vector<2x8x8xbf16>, vector<2x8x16xbf16>, vector<2x8x16xf32> -> vector<2x8x16xf32>
    "tpu.trace_stop"() : () -> ()
    %199 = vector.shape_cast %198 : vector<2x8x16xf32> to vector<16x16xf32>
    %200 = vector.extract_strided_slice %169 {offsets = [0, 16], sizes = [16, 16], strides = [1, 1]} : vector<16x32xf32> to vector<16x16xf32>
    %201 = vector.shape_cast %200 : vector<16x16xf32> to vector<2x8x16xf32>
    %202 = vector.extract_strided_slice %174 {offsets = [0, 16], sizes = [16, 16], strides = [1, 1]} : vector<16x32xf32> to vector<16x16xf32>
    %203 = vector.shape_cast %202 : vector<16x16xf32> to vector<2x8x16xf32>
    %204 = vector.extract_strided_slice %175 {offsets = [0, 16], sizes = [16, 16], strides = [1, 1]} : vector<16x32xf32> to vector<16x16xf32>
    %205 = vector.shape_cast %204 : vector<16x16xf32> to vector<2x8x16xf32>
    %206 = arith.truncf %201 : vector<2x8x16xf32> to vector<2x8x16xbf16>
    %207 = arith.truncf %203 : vector<2x8x16xf32> to vector<2x8x16xbf16>
    "tpu.trace_start"() <{level = 10 : i32, message = "bnd,bmd->bnm"}> : () -> ()
    %cst_61 = arith.constant dense<0.000000e+00> : vector<2x8x8xf32>
    %208 = tpu.matmul %206, %207, %cst_61 {dimension_numbers = #tpu.dot_dimension_numbers<[2], [2], [1], [1], [0, 0, 0, 1, 1, 1], [0], [0]>} : vector<2x8x16xbf16>, vector<2x8x16xbf16>, vector<2x8x8xf32> -> vector<2x8x8xf32>
    "tpu.trace_stop"() : () -> ()
    %cst_62 = arith.constant 2.500000e-01 : f32
    %209 = vector.broadcast %cst_62 : f32 to vector<2x8x8xf32>
    %210 = arith.mulf %208, %209 : vector<2x8x8xf32>
    %cst_63 = arith.constant dense<0xFF800000> : vector<2x8xf32>
    %211 = vector.multi_reduction <maximumf>, %210, %cst_63 [2] : vector<2x8x8xf32> to vector<2x8xf32>
    %212 = vector.shape_cast %211 : vector<2x8xf32> to vector<2x8x1xf32>
    %213 = vector.broadcast %212 : vector<2x8x1xf32> to vector<2x8x8xf32>
    %214 = arith.subf %210, %213 : vector<2x8x8xf32>
    %215 = math.exp %214 : vector<2x8x8xf32>
    %cst_64 = arith.constant dense<0.000000e+00> : vector<2x8xf32>
    %216 = vector.multi_reduction <add>, %215, %cst_64 [2] : vector<2x8x8xf32> to vector<2x8xf32>
    %217 = vector.shape_cast %216 : vector<2x8xf32> to vector<2x8x1xf32>
    %218 = vector.broadcast %217 : vector<2x8x1xf32> to vector<2x8x8xf32>
    %219 = arith.divf %215, %218 : vector<2x8x8xf32>
    %220 = arith.truncf %219 : vector<2x8x8xf32> to vector<2x8x8xbf16>
    %221 = arith.truncf %205 : vector<2x8x16xf32> to vector<2x8x16xbf16>
    "tpu.trace_start"() <{level = 10 : i32, message = "bnm,bmd->bnd"}> : () -> ()
    %cst_65 = arith.constant dense<0.000000e+00> : vector<2x8x16xf32>
    %222 = tpu.matmul %220, %221, %cst_65 {dimension_numbers = #tpu.dot_dimension_numbers<[2], [1], [1], [2], [0, 0, 0, 1, 1, 2], [0], [0]>} : vector<2x8x8xbf16>, vector<2x8x16xbf16>, vector<2x8x16xf32> -> vector<2x8x16xf32>
    "tpu.trace_stop"() : () -> ()
    %223 = vector.shape_cast %222 : vector<2x8x16xf32> to vector<16x16xf32>
    %224 = tpu.concatenate %199, %223 in 1 : vector<16x16xf32>, vector<16x16xf32> -> vector<16x32xf32>
    %c0_66 = arith.constant 0 : index
    %c0_67 = arith.constant 0 : index
    %c0_68 = arith.constant 0 : index
    %225 = vector.load %arg10[%c0_66, %c0_67, %c0_68] : memref<2x32x32xbf16, #tpu.memory_space<vmem>>, vector<1x32x32xbf16>
    %226 = vector.shape_cast %225 : vector<1x32x32xbf16> to vector<32x32xbf16>
    %227 = arith.truncf %224 : vector<16x32xf32> to vector<16x32xbf16>
    %cst_69 = arith.constant dense<0.000000e+00> : vector<16x32xf32>
    %228 = tpu.matmul %227, %226, %cst_69 {dimension_numbers = #tpu.dot_dimension_numbers<[1], [0], [0], [1], [0, 0, 1, 1], [], []>} : vector<16x32xbf16>, vector<32x32xbf16>, vector<16x32xf32> -> vector<16x32xf32>
    %229 = arith.addf %143, %228 : vector<16x32xf32>
    %230 = vector.extract_strided_slice %50 {offsets = [4, 0], sizes = [1, 32], strides = [1, 1]} : vector<6x32xf32> to vector<1x32xf32>
    %231 = vector.extract_strided_slice %50 {offsets = [5, 0], sizes = [1, 32], strides = [1, 1]} : vector<6x32xf32> to vector<1x32xf32>
    %cst_70 = arith.constant dense<0.000000e+00> : vector<16xf32>
    %232 = vector.multi_reduction <add>, %229, %cst_70 [1] : vector<16x32xf32> to vector<16xf32>
    %233 = vector.shape_cast %232 : vector<16xf32> to vector<16x1xf32>
    %cst_71 = arith.constant 3.200000e+01 : f32
    %234 = vector.broadcast %cst_71 : f32 to vector<16x1xf32>
    %235 = arith.divf %233, %234 : vector<16x1xf32>
    %236 = vector.broadcast %235 : vector<16x1xf32> to vector<16x32xf32>
    %237 = arith.subf %229, %236 : vector<16x32xf32>
    %238 = arith.mulf %237, %237 : vector<16x32xf32>
    %cst_72 = arith.constant dense<0.000000e+00> : vector<16xf32>
    %239 = vector.multi_reduction <add>, %238, %cst_72 [1] : vector<16x32xf32> to vector<16xf32>
    %240 = vector.shape_cast %239 : vector<16xf32> to vector<16x1xf32>
    %cst_73 = arith.constant 3.200000e+01 : f32
    %241 = vector.broadcast %cst_73 : f32 to vector<16x1xf32>
    %242 = arith.divf %240, %241 : vector<16x1xf32>
    %cst_74 = arith.constant 9.99999974E-6 : f32
    %243 = vector.broadcast %cst_74 : f32 to vector<16x1xf32>
    %244 = arith.addf %242, %243 : vector<16x1xf32>
    %245 = math.rsqrt %244 : vector<16x1xf32>
    %246 = vector.broadcast %245 : vector<16x1xf32> to vector<16x32xf32>
    %247 = arith.mulf %237, %246 : vector<16x32xf32>
    %248 = vector.broadcast %230 : vector<1x32xf32> to vector<16x32xf32>
    %249 = arith.mulf %247, %248 : vector<16x32xf32>
    %250 = vector.broadcast %231 : vector<1x32xf32> to vector<16x32xf32>
    %251 = arith.addf %249, %250 : vector<16x32xf32>
    %c0_75 = arith.constant 0 : index
    %c0_76 = arith.constant 0 : index
    %c0_77 = arith.constant 0 : index
    %252 = vector.load %arg11[%c0_75, %c0_76, %c0_77] : memref<2x32x128xbf16, #tpu.memory_space<vmem>>, vector<1x32x128xbf16>
    %253 = vector.shape_cast %252 : vector<1x32x128xbf16> to vector<32x128xbf16>
    %254 = arith.truncf %251 : vector<16x32xf32> to vector<16x32xbf16>
    %cst_78 = arith.constant dense<0.000000e+00> : vector<16x128xf32>
    %255 = tpu.matmul %254, %253, %cst_78 {dimension_numbers = #tpu.dot_dimension_numbers<[1], [0], [0], [1], [0, 0, 1, 1], [], []>} : vector<16x32xbf16>, vector<32x128xbf16>, vector<16x128xf32> -> vector<16x128xf32>
    %c0_79 = arith.constant 0 : index
    %c0_80 = arith.constant 0 : index
    %256 = vector.load %arg12[%c0_79, %c0_80] : memref<2x128xf32, #tpu.memory_space<vmem>>, vector<2x128xf32>
    %257 = vector.extract_strided_slice %256 {offsets = [0, 0], sizes = [1, 128], strides = [1, 1]} : vector<2x128xf32> to vector<1x128xf32>
    %258 = vector.broadcast %257 : vector<1x128xf32> to vector<16x128xf32>
    %259 = arith.addf %255, %258 : vector<16x128xf32>
    %260 = arith.mulf %259, %259 : vector<16x128xf32>
    %261 = arith.mulf %259, %260 : vector<16x128xf32>
    %cst_81 = arith.constant 4.471500e-02 : f32
    %262 = vector.broadcast %cst_81 : f32 to vector<16x128xf32>
    %263 = arith.mulf %262, %261 : vector<16x128xf32>
    %264 = arith.addf %259, %263 : vector<16x128xf32>
    %cst_82 = arith.constant 0.797884583 : f32
    %265 = vector.broadcast %cst_82 : f32 to vector<16x128xf32>
    %266 = arith.mulf %265, %264 : vector<16x128xf32>
    %267 = math.tanh %266 : vector<16x128xf32>
    %cst_83 = arith.constant 1.000000e+00 : f32
    %268 = vector.broadcast %cst_83 : f32 to vector<16x128xf32>
    %269 = arith.addf %268, %267 : vector<16x128xf32>
    %cst_84 = arith.constant 5.000000e-01 : f32
    %270 = vector.broadcast %cst_84 : f32 to vector<16x128xf32>
    %271 = arith.mulf %270, %269 : vector<16x128xf32>
    %272 = arith.mulf %259, %271 : vector<16x128xf32>
    %c0_85 = arith.constant 0 : index
    %c0_86 = arith.constant 0 : index
    %c0_87 = arith.constant 0 : index
    %273 = vector.load %arg13[%c0_85, %c0_86, %c0_87] : memref<2x128x32xbf16, #tpu.memory_space<vmem>>, vector<1x128x32xbf16>
    %274 = vector.shape_cast %273 : vector<1x128x32xbf16> to vector<128x32xbf16>
    %275 = arith.truncf %272 : vector<16x128xf32> to vector<16x128xbf16>
    %cst_88 = arith.constant dense<0.000000e+00> : vector<16x32xf32>
    %276 = tpu.matmul %275, %274, %cst_88 {dimension_numbers = #tpu.dot_dimension_numbers<[1], [0], [0], [1], [0, 0, 1, 1], [], []>} : vector<16x128xbf16>, vector<128x32xbf16>, vector<16x32xf32> -> vector<16x32xf32>
    %277 = arith.addf %229, %276 : vector<16x32xf32>
    %c0_89 = arith.constant 0 : index
    %c0_90 = arith.constant 0 : index
    %278 = vector.load %arg14[%c0_89, %c0_90] : memref<2x32xf32, #tpu.memory_space<vmem>>, vector<2x32xf32>
    %279 = vector.extract_strided_slice %278 {offsets = [0, 0], sizes = [1, 32], strides = [1, 1]} : vector<2x32xf32> to vector<1x32xf32>
    %280 = vector.broadcast %279 : vector<1x32xf32> to vector<16x32xf32>
    %281 = arith.addf %277, %280 : vector<16x32xf32>
    %c1 = arith.constant 1 : index
    %c0_91 = arith.constant 0 : index
    %c0_92 = arith.constant 0 : index
    %282 = vector.load %arg5[%c1, %c0_91, %c0_92] : memref<2x6x32xf32, #tpu.memory_space<vmem>>, vector<1x6x32xf32>
    %283 = vector.shape_cast %282 : vector<1x6x32xf32> to vector<6x32xf32>
    %284 = vector.extract_strided_slice %283 {offsets = [0, 0], sizes = [1, 32], strides = [1, 1]} : vector<6x32xf32> to vector<1x32xf32>
    %285 = vector.extract_strided_slice %283 {offsets = [1, 0], sizes = [1, 32], strides = [1, 1]} : vector<6x32xf32> to vector<1x32xf32>
    %cst_93 = arith.constant dense<0.000000e+00> : vector<16xf32>
    %286 = vector.multi_reduction <add>, %281, %cst_93 [1] : vector<16x32xf32> to vector<16xf32>
    %287 = vector.shape_cast %286 : vector<16xf32> to vector<16x1xf32>
    %cst_94 = arith.constant 3.200000e+01 : f32
    %288 = vector.broadcast %cst_94 : f32 to vector<16x1xf32>
    %289 = arith.divf %287, %288 : vector<16x1xf32>
    %290 = vector.broadcast %289 : vector<16x1xf32> to vector<16x32xf32>
    %291 = arith.subf %281, %290 : vector<16x32xf32>
    %292 = arith.mulf %291, %291 : vector<16x32xf32>
    %cst_95 = arith.constant dense<0.000000e+00> : vector<16xf32>
    %293 = vector.multi_reduction <add>, %292, %cst_95 [1] : vector<16x32xf32> to vector<16xf32>
    %294 = vector.shape_cast %293 : vector<16xf32> to vector<16x1xf32>
    %cst_96 = arith.constant 3.200000e+01 : f32
    %295 = vector.broadcast %cst_96 : f32 to vector<16x1xf32>
    %296 = arith.divf %294, %295 : vector<16x1xf32>
    %cst_97 = arith.constant 9.99999974E-6 : f32
    %297 = vector.broadcast %cst_97 : f32 to vector<16x1xf32>
    %298 = arith.addf %296, %297 : vector<16x1xf32>
    %299 = math.rsqrt %298 : vector<16x1xf32>
    %300 = vector.broadcast %299 : vector<16x1xf32> to vector<16x32xf32>
    %301 = arith.mulf %291, %300 : vector<16x32xf32>
    %302 = vector.broadcast %284 : vector<1x32xf32> to vector<16x32xf32>
    %303 = arith.mulf %301, %302 : vector<16x32xf32>
    %304 = vector.broadcast %285 : vector<1x32xf32> to vector<16x32xf32>
    %305 = arith.addf %303, %304 : vector<16x32xf32>
    %c1_98 = arith.constant 1 : index
    %c0_99 = arith.constant 0 : index
    %c0_100 = arith.constant 0 : index
    %306 = vector.load %arg6[%c1_98, %c0_99, %c0_100] : memref<2x32x96xbf16, #tpu.memory_space<vmem>>, vector<1x32x96xbf16>
    %307 = vector.shape_cast %306 : vector<1x32x96xbf16> to vector<32x96xbf16>
    %308 = arith.truncf %305 : vector<16x32xf32> to vector<16x32xbf16>
    %cst_101 = arith.constant dense<0.000000e+00> : vector<16x96xf32>
    %309 = tpu.matmul %308, %307, %cst_101 {dimension_numbers = #tpu.dot_dimension_numbers<[1], [0], [0], [1], [0, 0, 1, 1], [], []>} : vector<16x32xbf16>, vector<32x96xbf16>, vector<16x96xf32> -> vector<16x96xf32>
    %310 = vector.extract_strided_slice %309 {offsets = [0, 0], sizes = [16, 32], strides = [1, 1]} : vector<16x96xf32> to vector<16x32xf32>
    %311 = vector.extract_strided_slice %309 {offsets = [0, 32], sizes = [16, 32], strides = [1, 1]} : vector<16x96xf32> to vector<16x32xf32>
    %312 = vector.extract_strided_slice %309 {offsets = [0, 64], sizes = [16, 32], strides = [1, 1]} : vector<16x96xf32> to vector<16x32xf32>
    %313 = vector.extract_strided_slice %310 {offsets = [0, 0], sizes = [16, 16], strides = [1, 1]} : vector<16x32xf32> to vector<16x16xf32>
    %314 = vector.shape_cast %313 : vector<16x16xf32> to vector<2x8x16xf32>
    %315 = vector.extract_strided_slice %311 {offsets = [0, 0], sizes = [16, 16], strides = [1, 1]} : vector<16x32xf32> to vector<16x16xf32>
    %316 = vector.shape_cast %315 : vector<16x16xf32> to vector<2x8x16xf32>
    %317 = vector.extract_strided_slice %312 {offsets = [0, 0], sizes = [16, 16], strides = [1, 1]} : vector<16x32xf32> to vector<16x16xf32>
    %318 = vector.shape_cast %317 : vector<16x16xf32> to vector<2x8x16xf32>
    %319 = arith.truncf %314 : vector<2x8x16xf32> to vector<2x8x16xbf16>
    %320 = arith.truncf %316 : vector<2x8x16xf32> to vector<2x8x16xbf16>
    "tpu.trace_start"() <{level = 10 : i32, message = "bnd,bmd->bnm"}> : () -> ()
    %cst_102 = arith.constant dense<0.000000e+00> : vector<2x8x8xf32>
    %321 = tpu.matmul %319, %320, %cst_102 {dimension_numbers = #tpu.dot_dimension_numbers<[2], [2], [1], [1], [0, 0, 0, 1, 1, 1], [0], [0]>} : vector<2x8x16xbf16>, vector<2x8x16xbf16>, vector<2x8x8xf32> -> vector<2x8x8xf32>
    "tpu.trace_stop"() : () -> ()
    %cst_103 = arith.constant 2.500000e-01 : f32
    %322 = vector.broadcast %cst_103 : f32 to vector<2x8x8xf32>
    %323 = arith.mulf %321, %322 : vector<2x8x8xf32>
    %324 = vector.shape_cast %46 : vector<8x8xi1> to vector<1x8x8xi1>
    %cst_104 = arith.constant -1.000000e+30 : f32
    %325 = vector.shape_cast %324 : vector<1x8x8xi1> to vector<1x8x8xi1>
    %326 = vector.broadcast %325 : vector<1x8x8xi1> to vector<2x8x8xi1>
    %327 = vector.broadcast %cst_104 : f32 to vector<2x8x8xf32>
    %328 = arith.select %326, %323, %327 : vector<2x8x8xi1>, vector<2x8x8xf32>
    %cst_105 = arith.constant dense<0xFF800000> : vector<2x8xf32>
    %329 = vector.multi_reduction <maximumf>, %328, %cst_105 [2] : vector<2x8x8xf32> to vector<2x8xf32>
    %330 = vector.shape_cast %329 : vector<2x8xf32> to vector<2x8x1xf32>
    %331 = vector.broadcast %330 : vector<2x8x1xf32> to vector<2x8x8xf32>
    %332 = arith.subf %328, %331 : vector<2x8x8xf32>
    %333 = math.exp %332 : vector<2x8x8xf32>
    %cst_106 = arith.constant dense<0.000000e+00> : vector<2x8xf32>
    %334 = vector.multi_reduction <add>, %333, %cst_106 [2] : vector<2x8x8xf32> to vector<2x8xf32>
    %335 = vector.shape_cast %334 : vector<2x8xf32> to vector<2x8x1xf32>
    %336 = vector.broadcast %335 : vector<2x8x1xf32> to vector<2x8x8xf32>
    %337 = arith.divf %333, %336 : vector<2x8x8xf32>
    %338 = arith.truncf %337 : vector<2x8x8xf32> to vector<2x8x8xbf16>
    %339 = arith.truncf %318 : vector<2x8x16xf32> to vector<2x8x16xbf16>
    "tpu.trace_start"() <{level = 10 : i32, message = "bnm,bmd->bnd"}> : () -> ()
    %cst_107 = arith.constant dense<0.000000e+00> : vector<2x8x16xf32>
    %340 = tpu.matmul %338, %339, %cst_107 {dimension_numbers = #tpu.dot_dimension_numbers<[2], [1], [1], [2], [0, 0, 0, 1, 1, 2], [0], [0]>} : vector<2x8x8xbf16>, vector<2x8x16xbf16>, vector<2x8x16xf32> -> vector<2x8x16xf32>
    "tpu.trace_stop"() : () -> ()
    %341 = vector.shape_cast %340 : vector<2x8x16xf32> to vector<16x16xf32>
    %342 = vector.extract_strided_slice %310 {offsets = [0, 16], sizes = [16, 16], strides = [1, 1]} : vector<16x32xf32> to vector<16x16xf32>
    %343 = vector.shape_cast %342 : vector<16x16xf32> to vector<2x8x16xf32>
    %344 = vector.extract_strided_slice %311 {offsets = [0, 16], sizes = [16, 16], strides = [1, 1]} : vector<16x32xf32> to vector<16x16xf32>
    %345 = vector.shape_cast %344 : vector<16x16xf32> to vector<2x8x16xf32>
    %346 = vector.extract_strided_slice %312 {offsets = [0, 16], sizes = [16, 16], strides = [1, 1]} : vector<16x32xf32> to vector<16x16xf32>
    %347 = vector.shape_cast %346 : vector<16x16xf32> to vector<2x8x16xf32>
    %348 = arith.truncf %343 : vector<2x8x16xf32> to vector<2x8x16xbf16>
    %349 = arith.truncf %345 : vector<2x8x16xf32> to vector<2x8x16xbf16>
    "tpu.trace_start"() <{level = 10 : i32, message = "bnd,bmd->bnm"}> : () -> ()
    %cst_108 = arith.constant dense<0.000000e+00> : vector<2x8x8xf32>
    %350 = tpu.matmul %348, %349, %cst_108 {dimension_numbers = #tpu.dot_dimension_numbers<[2], [2], [1], [1], [0, 0, 0, 1, 1, 1], [0], [0]>} : vector<2x8x16xbf16>, vector<2x8x16xbf16>, vector<2x8x8xf32> -> vector<2x8x8xf32>
    "tpu.trace_stop"() : () -> ()
    %cst_109 = arith.constant 2.500000e-01 : f32
    %351 = vector.broadcast %cst_109 : f32 to vector<2x8x8xf32>
    %352 = arith.mulf %350, %351 : vector<2x8x8xf32>
    %353 = vector.shape_cast %46 : vector<8x8xi1> to vector<1x8x8xi1>
    %cst_110 = arith.constant -1.000000e+30 : f32
    %354 = vector.shape_cast %353 : vector<1x8x8xi1> to vector<1x8x8xi1>
    %355 = vector.broadcast %354 : vector<1x8x8xi1> to vector<2x8x8xi1>
    %356 = vector.broadcast %cst_110 : f32 to vector<2x8x8xf32>
    %357 = arith.select %355, %352, %356 : vector<2x8x8xi1>, vector<2x8x8xf32>
    %cst_111 = arith.constant dense<0xFF800000> : vector<2x8xf32>
    %358 = vector.multi_reduction <maximumf>, %357, %cst_111 [2] : vector<2x8x8xf32> to vector<2x8xf32>
    %359 = vector.shape_cast %358 : vector<2x8xf32> to vector<2x8x1xf32>
    %360 = vector.broadcast %359 : vector<2x8x1xf32> to vector<2x8x8xf32>
    %361 = arith.subf %357, %360 : vector<2x8x8xf32>
    %362 = math.exp %361 : vector<2x8x8xf32>
    %cst_112 = arith.constant dense<0.000000e+00> : vector<2x8xf32>
    %363 = vector.multi_reduction <add>, %362, %cst_112 [2] : vector<2x8x8xf32> to vector<2x8xf32>
    %364 = vector.shape_cast %363 : vector<2x8xf32> to vector<2x8x1xf32>
    %365 = vector.broadcast %364 : vector<2x8x1xf32> to vector<2x8x8xf32>
    %366 = arith.divf %362, %365 : vector<2x8x8xf32>
    %367 = arith.truncf %366 : vector<2x8x8xf32> to vector<2x8x8xbf16>
    %368 = arith.truncf %347 : vector<2x8x16xf32> to vector<2x8x16xbf16>
    "tpu.trace_start"() <{level = 10 : i32, message = "bnm,bmd->bnd"}> : () -> ()
    %cst_113 = arith.constant dense<0.000000e+00> : vector<2x8x16xf32>
    %369 = tpu.matmul %367, %368, %cst_113 {dimension_numbers = #tpu.dot_dimension_numbers<[2], [1], [1], [2], [0, 0, 0, 1, 1, 2], [0], [0]>} : vector<2x8x8xbf16>, vector<2x8x16xbf16>, vector<2x8x16xf32> -> vector<2x8x16xf32>
    "tpu.trace_stop"() : () -> ()
    %370 = vector.shape_cast %369 : vector<2x8x16xf32> to vector<16x16xf32>
    %371 = tpu.concatenate %341, %370 in 1 : vector<16x16xf32>, vector<16x16xf32> -> vector<16x32xf32>
    %c1_114 = arith.constant 1 : index
    %c0_115 = arith.constant 0 : index
    %c0_116 = arith.constant 0 : index
    %372 = vector.load %arg7[%c1_114, %c0_115, %c0_116] : memref<2x32x32xbf16, #tpu.memory_space<vmem>>, vector<1x32x32xbf16>
    %373 = vector.shape_cast %372 : vector<1x32x32xbf16> to vector<32x32xbf16>
    %374 = arith.truncf %371 : vector<16x32xf32> to vector<16x32xbf16>
    %cst_117 = arith.constant dense<0.000000e+00> : vector<16x32xf32>
    %375 = tpu.matmul %374, %373, %cst_117 {dimension_numbers = #tpu.dot_dimension_numbers<[1], [0], [0], [1], [0, 0, 1, 1], [], []>} : vector<16x32xbf16>, vector<32x32xbf16>, vector<16x32xf32> -> vector<16x32xf32>
    %376 = arith.addf %281, %375 : vector<16x32xf32>
    %377 = vector.extract_strided_slice %283 {offsets = [2, 0], sizes = [1, 32], strides = [1, 1]} : vector<6x32xf32> to vector<1x32xf32>
    %378 = vector.extract_strided_slice %283 {offsets = [3, 0], sizes = [1, 32], strides = [1, 1]} : vector<6x32xf32> to vector<1x32xf32>
    %cst_118 = arith.constant dense<0.000000e+00> : vector<16xf32>
    %379 = vector.multi_reduction <add>, %376, %cst_118 [1] : vector<16x32xf32> to vector<16xf32>
    %380 = vector.shape_cast %379 : vector<16xf32> to vector<16x1xf32>
    %cst_119 = arith.constant 3.200000e+01 : f32
    %381 = vector.broadcast %cst_119 : f32 to vector<16x1xf32>
    %382 = arith.divf %380, %381 : vector<16x1xf32>
    %383 = vector.broadcast %382 : vector<16x1xf32> to vector<16x32xf32>
    %384 = arith.subf %376, %383 : vector<16x32xf32>
    %385 = arith.mulf %384, %384 : vector<16x32xf32>
    %cst_120 = arith.constant dense<0.000000e+00> : vector<16xf32>
    %386 = vector.multi_reduction <add>, %385, %cst_120 [1] : vector<16x32xf32> to vector<16xf32>
    %387 = vector.shape_cast %386 : vector<16xf32> to vector<16x1xf32>
    %cst_121 = arith.constant 3.200000e+01 : f32
    %388 = vector.broadcast %cst_121 : f32 to vector<16x1xf32>
    %389 = arith.divf %387, %388 : vector<16x1xf32>
    %cst_122 = arith.constant 9.99999974E-6 : f32
    %390 = vector.broadcast %cst_122 : f32 to vector<16x1xf32>
    %391 = arith.addf %389, %390 : vector<16x1xf32>
    %392 = math.rsqrt %391 : vector<16x1xf32>
    %393 = vector.broadcast %392 : vector<16x1xf32> to vector<16x32xf32>
    %394 = arith.mulf %384, %393 : vector<16x32xf32>
    %395 = vector.broadcast %377 : vector<1x32xf32> to vector<16x32xf32>
    %396 = arith.mulf %394, %395 : vector<16x32xf32>
    %397 = vector.broadcast %378 : vector<1x32xf32> to vector<16x32xf32>
    %398 = arith.addf %396, %397 : vector<16x32xf32>
    %c1_123 = arith.constant 1 : index
    %c0_124 = arith.constant 0 : index
    %c0_125 = arith.constant 0 : index
    %399 = vector.load %arg8[%c1_123, %c0_124, %c0_125] : memref<2x32x32xbf16, #tpu.memory_space<vmem>>, vector<1x32x32xbf16>
    %400 = vector.shape_cast %399 : vector<1x32x32xbf16> to vector<32x32xbf16>
    %401 = arith.truncf %398 : vector<16x32xf32> to vector<16x32xbf16>
    %cst_126 = arith.constant dense<0.000000e+00> : vector<16x32xf32>
    %402 = tpu.matmul %401, %400, %cst_126 {dimension_numbers = #tpu.dot_dimension_numbers<[1], [0], [0], [1], [0, 0, 1, 1], [], []>} : vector<16x32xbf16>, vector<32x32xbf16>, vector<16x32xf32> -> vector<16x32xf32>
    %c1_127 = arith.constant 1 : index
    %c0_128 = arith.constant 0 : index
    %c0_129 = arith.constant 0 : index
    %403 = vector.load %arg9[%c1_127, %c0_128, %c0_129] : memref<2x32x64xbf16, #tpu.memory_space<vmem>>, vector<1x32x64xbf16>
    %404 = vector.shape_cast %403 : vector<1x32x64xbf16> to vector<32x64xbf16>
    %405 = arith.truncf %48 : vector<16x32xf32> to vector<16x32xbf16>
    %cst_130 = arith.constant dense<0.000000e+00> : vector<16x64xf32>
    %406 = tpu.matmul %405, %404, %cst_130 {dimension_numbers = #tpu.dot_dimension_numbers<[1], [0], [0], [1], [0, 0, 1, 1], [], []>} : vector<16x32xbf16>, vector<32x64xbf16>, vector<16x64xf32> -> vector<16x64xf32>
    %407 = vector.extract_strided_slice %406 {offsets = [0, 0], sizes = [16, 32], strides = [1, 1]} : vector<16x64xf32> to vector<16x32xf32>
    %408 = vector.extract_strided_slice %406 {offsets = [0, 32], sizes = [16, 32], strides = [1, 1]} : vector<16x64xf32> to vector<16x32xf32>
    %409 = vector.extract_strided_slice %402 {offsets = [0, 0], sizes = [16, 16], strides = [1, 1]} : vector<16x32xf32> to vector<16x16xf32>
    %410 = vector.shape_cast %409 : vector<16x16xf32> to vector<2x8x16xf32>
    %411 = vector.extract_strided_slice %407 {offsets = [0, 0], sizes = [16, 16], strides = [1, 1]} : vector<16x32xf32> to vector<16x16xf32>
    %412 = vector.shape_cast %411 : vector<16x16xf32> to vector<2x8x16xf32>
    %413 = vector.extract_strided_slice %408 {offsets = [0, 0], sizes = [16, 16], strides = [1, 1]} : vector<16x32xf32> to vector<16x16xf32>
    %414 = vector.shape_cast %413 : vector<16x16xf32> to vector<2x8x16xf32>
    %415 = arith.truncf %410 : vector<2x8x16xf32> to vector<2x8x16xbf16>
    %416 = arith.truncf %412 : vector<2x8x16xf32> to vector<2x8x16xbf16>
    "tpu.trace_start"() <{level = 10 : i32, message = "bnd,bmd->bnm"}> : () -> ()
    %cst_131 = arith.constant dense<0.000000e+00> : vector<2x8x8xf32>
    %417 = tpu.matmul %415, %416, %cst_131 {dimension_numbers = #tpu.dot_dimension_numbers<[2], [2], [1], [1], [0, 0, 0, 1, 1, 1], [0], [0]>} : vector<2x8x16xbf16>, vector<2x8x16xbf16>, vector<2x8x8xf32> -> vector<2x8x8xf32>
    "tpu.trace_stop"() : () -> ()
    %cst_132 = arith.constant 2.500000e-01 : f32
    %418 = vector.broadcast %cst_132 : f32 to vector<2x8x8xf32>
    %419 = arith.mulf %417, %418 : vector<2x8x8xf32>
    %cst_133 = arith.constant dense<0xFF800000> : vector<2x8xf32>
    %420 = vector.multi_reduction <maximumf>, %419, %cst_133 [2] : vector<2x8x8xf32> to vector<2x8xf32>
    %421 = vector.shape_cast %420 : vector<2x8xf32> to vector<2x8x1xf32>
    %422 = vector.broadcast %421 : vector<2x8x1xf32> to vector<2x8x8xf32>
    %423 = arith.subf %419, %422 : vector<2x8x8xf32>
    %424 = math.exp %423 : vector<2x8x8xf32>
    %cst_134 = arith.constant dense<0.000000e+00> : vector<2x8xf32>
    %425 = vector.multi_reduction <add>, %424, %cst_134 [2] : vector<2x8x8xf32> to vector<2x8xf32>
    %426 = vector.shape_cast %425 : vector<2x8xf32> to vector<2x8x1xf32>
    %427 = vector.broadcast %426 : vector<2x8x1xf32> to vector<2x8x8xf32>
    %428 = arith.divf %424, %427 : vector<2x8x8xf32>
    %429 = arith.truncf %428 : vector<2x8x8xf32> to vector<2x8x8xbf16>
    %430 = arith.truncf %414 : vector<2x8x16xf32> to vector<2x8x16xbf16>
    "tpu.trace_start"() <{level = 10 : i32, message = "bnm,bmd->bnd"}> : () -> ()
    %cst_135 = arith.constant dense<0.000000e+00> : vector<2x8x16xf32>
    %431 = tpu.matmul %429, %430, %cst_135 {dimension_numbers = #tpu.dot_dimension_numbers<[2], [1], [1], [2], [0, 0, 0, 1, 1, 2], [0], [0]>} : vector<2x8x8xbf16>, vector<2x8x16xbf16>, vector<2x8x16xf32> -> vector<2x8x16xf32>
    "tpu.trace_stop"() : () -> ()
    %432 = vector.shape_cast %431 : vector<2x8x16xf32> to vector<16x16xf32>
    %433 = vector.extract_strided_slice %402 {offsets = [0, 16], sizes = [16, 16], strides = [1, 1]} : vector<16x32xf32> to vector<16x16xf32>
    %434 = vector.shape_cast %433 : vector<16x16xf32> to vector<2x8x16xf32>
    %435 = vector.extract_strided_slice %407 {offsets = [0, 16], sizes = [16, 16], strides = [1, 1]} : vector<16x32xf32> to vector<16x16xf32>
    %436 = vector.shape_cast %435 : vector<16x16xf32> to vector<2x8x16xf32>
    %437 = vector.extract_strided_slice %408 {offsets = [0, 16], sizes = [16, 16], strides = [1, 1]} : vector<16x32xf32> to vector<16x16xf32>
    %438 = vector.shape_cast %437 : vector<16x16xf32> to vector<2x8x16xf32>
    %439 = arith.truncf %434 : vector<2x8x16xf32> to vector<2x8x16xbf16>
    %440 = arith.truncf %436 : vector<2x8x16xf32> to vector<2x8x16xbf16>
    "tpu.trace_start"() <{level = 10 : i32, message = "bnd,bmd->bnm"}> : () -> ()
    %cst_136 = arith.constant dense<0.000000e+00> : vector<2x8x8xf32>
    %441 = tpu.matmul %439, %440, %cst_136 {dimension_numbers = #tpu.dot_dimension_numbers<[2], [2], [1], [1], [0, 0, 0, 1, 1, 1], [0], [0]>} : vector<2x8x16xbf16>, vector<2x8x16xbf16>, vector<2x8x8xf32> -> vector<2x8x8xf32>
    "tpu.trace_stop"() : () -> ()
    %cst_137 = arith.constant 2.500000e-01 : f32
    %442 = vector.broadcast %cst_137 : f32 to vector<2x8x8xf32>
    %443 = arith.mulf %441, %442 : vector<2x8x8xf32>
    %cst_138 = arith.constant dense<0xFF800000> : vector<2x8xf32>
    %444 = vector.multi_reduction <maximumf>, %443, %cst_138 [2] : vector<2x8x8xf32> to vector<2x8xf32>
    %445 = vector.shape_cast %444 : vector<2x8xf32> to vector<2x8x1xf32>
    %446 = vector.broadcast %445 : vector<2x8x1xf32> to vector<2x8x8xf32>
    %447 = arith.subf %443, %446 : vector<2x8x8xf32>
    %448 = math.exp %447 : vector<2x8x8xf32>
    %cst_139 = arith.constant dense<0.000000e+00> : vector<2x8xf32>
    %449 = vector.multi_reduction <add>, %448, %cst_139 [2] : vector<2x8x8xf32> to vector<2x8xf32>
    %450 = vector.shape_cast %449 : vector<2x8xf32> to vector<2x8x1xf32>
    %451 = vector.broadcast %450 : vector<2x8x1xf32> to vector<2x8x8xf32>
    %452 = arith.divf %448, %451 : vector<2x8x8xf32>
    %453 = arith.truncf %452 : vector<2x8x8xf32> to vector<2x8x8xbf16>
    %454 = arith.truncf %438 : vector<2x8x16xf32> to vector<2x8x16xbf16>
    "tpu.trace_start"() <{level = 10 : i32, message = "bnm,bmd->bnd"}> : () -> ()
    %cst_140 = arith.constant dense<0.000000e+00> : vector<2x8x16xf32>
    %455 = tpu.matmul %453, %454, %cst_140 {dimension_numbers = #tpu.dot_dimension_numbers<[2], [1], [1], [2], [0, 0, 0, 1, 1, 2], [0], [0]>} : vector<2x8x8xbf16>, vector<2x8x16xbf16>, vector<2x8x16xf32> -> vector<2x8x16xf32>
    "tpu.trace_stop"() : () -> ()
    %456 = vector.shape_cast %455 : vector<2x8x16xf32> to vector<16x16xf32>
    %457 = tpu.concatenate %432, %456 in 1 : vector<16x16xf32>, vector<16x16xf32> -> vector<16x32xf32>
    %c1_141 = arith.constant 1 : index
    %c0_142 = arith.constant 0 : index
    %c0_143 = arith.constant 0 : index
    %458 = vector.load %arg10[%c1_141, %c0_142, %c0_143] : memref<2x32x32xbf16, #tpu.memory_space<vmem>>, vector<1x32x32xbf16>
    %459 = vector.shape_cast %458 : vector<1x32x32xbf16> to vector<32x32xbf16>
    %460 = arith.truncf %457 : vector<16x32xf32> to vector<16x32xbf16>
    %cst_144 = arith.constant dense<0.000000e+00> : vector<16x32xf32>
    %461 = tpu.matmul %460, %459, %cst_144 {dimension_numbers = #tpu.dot_dimension_numbers<[1], [0], [0], [1], [0, 0, 1, 1], [], []>} : vector<16x32xbf16>, vector<32x32xbf16>, vector<16x32xf32> -> vector<16x32xf32>
    %462 = arith.addf %376, %461 : vector<16x32xf32>
    %463 = vector.extract_strided_slice %283 {offsets = [4, 0], sizes = [1, 32], strides = [1, 1]} : vector<6x32xf32> to vector<1x32xf32>
    %464 = vector.extract_strided_slice %283 {offsets = [5, 0], sizes = [1, 32], strides = [1, 1]} : vector<6x32xf32> to vector<1x32xf32>
    %cst_145 = arith.constant dense<0.000000e+00> : vector<16xf32>
    %465 = vector.multi_reduction <add>, %462, %cst_145 [1] : vector<16x32xf32> to vector<16xf32>
    %466 = vector.shape_cast %465 : vector<16xf32> to vector<16x1xf32>
    %cst_146 = arith.constant 3.200000e+01 : f32
    %467 = vector.broadcast %cst_146 : f32 to vector<16x1xf32>
    %468 = arith.divf %466, %467 : vector<16x1xf32>
    %469 = vector.broadcast %468 : vector<16x1xf32> to vector<16x32xf32>
    %470 = arith.subf %462, %469 : vector<16x32xf32>
    %471 = arith.mulf %470, %470 : vector<16x32xf32>
    %cst_147 = arith.constant dense<0.000000e+00> : vector<16xf32>
    %472 = vector.multi_reduction <add>, %471, %cst_147 [1] : vector<16x32xf32> to vector<16xf32>
    %473 = vector.shape_cast %472 : vector<16xf32> to vector<16x1xf32>
    %cst_148 = arith.constant 3.200000e+01 : f32
    %474 = vector.broadcast %cst_148 : f32 to vector<16x1xf32>
    %475 = arith.divf %473, %474 : vector<16x1xf32>
    %cst_149 = arith.constant 9.99999974E-6 : f32
    %476 = vector.broadcast %cst_149 : f32 to vector<16x1xf32>
    %477 = arith.addf %475, %476 : vector<16x1xf32>
    %478 = math.rsqrt %477 : vector<16x1xf32>
    %479 = vector.broadcast %478 : vector<16x1xf32> to vector<16x32xf32>
    %480 = arith.mulf %470, %479 : vector<16x32xf32>
    %481 = vector.broadcast %463 : vector<1x32xf32> to vector<16x32xf32>
    %482 = arith.mulf %480, %481 : vector<16x32xf32>
    %483 = vector.broadcast %464 : vector<1x32xf32> to vector<16x32xf32>
    %484 = arith.addf %482, %483 : vector<16x32xf32>
    %c1_150 = arith.constant 1 : index
    %c0_151 = arith.constant 0 : index
    %c0_152 = arith.constant 0 : index
    %485 = vector.load %arg11[%c1_150, %c0_151, %c0_152] : memref<2x32x128xbf16, #tpu.memory_space<vmem>>, vector<1x32x128xbf16>
    %486 = vector.shape_cast %485 : vector<1x32x128xbf16> to vector<32x128xbf16>
    %487 = arith.truncf %484 : vector<16x32xf32> to vector<16x32xbf16>
    %cst_153 = arith.constant dense<0.000000e+00> : vector<16x128xf32>
    %488 = tpu.matmul %487, %486, %cst_153 {dimension_numbers = #tpu.dot_dimension_numbers<[1], [0], [0], [1], [0, 0, 1, 1], [], []>} : vector<16x32xbf16>, vector<32x128xbf16>, vector<16x128xf32> -> vector<16x128xf32>
    %c0_154 = arith.constant 0 : index
    %c0_155 = arith.constant 0 : index
    %489 = vector.load %arg12[%c0_154, %c0_155] : memref<2x128xf32, #tpu.memory_space<vmem>>, vector<2x128xf32>
    %490 = vector.extract_strided_slice %489 {offsets = [1, 0], sizes = [1, 128], strides = [1, 1]} : vector<2x128xf32> to vector<1x128xf32>
    %491 = vector.broadcast %490 : vector<1x128xf32> to vector<16x128xf32>
    %492 = arith.addf %488, %491 : vector<16x128xf32>
    %493 = arith.mulf %492, %492 : vector<16x128xf32>
    %494 = arith.mulf %492, %493 : vector<16x128xf32>
    %cst_156 = arith.constant 4.471500e-02 : f32
    %495 = vector.broadcast %cst_156 : f32 to vector<16x128xf32>
    %496 = arith.mulf %495, %494 : vector<16x128xf32>
    %497 = arith.addf %492, %496 : vector<16x128xf32>
    %cst_157 = arith.constant 0.797884583 : f32
    %498 = vector.broadcast %cst_157 : f32 to vector<16x128xf32>
    %499 = arith.mulf %498, %497 : vector<16x128xf32>
    %500 = math.tanh %499 : vector<16x128xf32>
    %cst_158 = arith.constant 1.000000e+00 : f32
    %501 = vector.broadcast %cst_158 : f32 to vector<16x128xf32>
    %502 = arith.addf %501, %500 : vector<16x128xf32>
    %cst_159 = arith.constant 5.000000e-01 : f32
    %503 = vector.broadcast %cst_159 : f32 to vector<16x128xf32>
    %504 = arith.mulf %503, %502 : vector<16x128xf32>
    %505 = arith.mulf %492, %504 : vector<16x128xf32>
    %c1_160 = arith.constant 1 : index
    %c0_161 = arith.constant 0 : index
    %c0_162 = arith.constant 0 : index
    %506 = vector.load %arg13[%c1_160, %c0_161, %c0_162] : memref<2x128x32xbf16, #tpu.memory_space<vmem>>, vector<1x128x32xbf16>
    %507 = vector.shape_cast %506 : vector<1x128x32xbf16> to vector<128x32xbf16>
    %508 = arith.truncf %505 : vector<16x128xf32> to vector<16x128xbf16>
    %cst_163 = arith.constant dense<0.000000e+00> : vector<16x32xf32>
    %509 = tpu.matmul %508, %507, %cst_163 {dimension_numbers = #tpu.dot_dimension_numbers<[1], [0], [0], [1], [0, 0, 1, 1], [], []>} : vector<16x128xbf16>, vector<128x32xbf16>, vector<16x32xf32> -> vector<16x32xf32>
    %510 = arith.addf %462, %509 : vector<16x32xf32>
    %c0_164 = arith.constant 0 : index
    %c0_165 = arith.constant 0 : index
    %511 = vector.load %arg14[%c0_164, %c0_165] : memref<2x32xf32, #tpu.memory_space<vmem>>, vector<2x32xf32>
    %512 = vector.extract_strided_slice %511 {offsets = [1, 0], sizes = [1, 32], strides = [1, 1]} : vector<2x32xf32> to vector<1x32xf32>
    %513 = vector.broadcast %512 : vector<1x32xf32> to vector<16x32xf32>
    %514 = arith.addf %510, %513 : vector<16x32xf32>
    %c0_166 = arith.constant 0 : index
    %c0_167 = arith.constant 0 : index
    %515 = vector.load %arg15[%c0_166, %c0_167] : memref<2x32xf32, #tpu.memory_space<vmem>>, vector<2x32xf32>
    %516 = vector.extract_strided_slice %515 {offsets = [0, 0], sizes = [1, 32], strides = [1, 1]} : vector<2x32xf32> to vector<1x32xf32>
    %517 = vector.extract_strided_slice %515 {offsets = [1, 0], sizes = [1, 32], strides = [1, 1]} : vector<2x32xf32> to vector<1x32xf32>
    %cst_168 = arith.constant dense<0.000000e+00> : vector<16xf32>
    %518 = vector.multi_reduction <add>, %514, %cst_168 [1] : vector<16x32xf32> to vector<16xf32>
    %519 = vector.shape_cast %518 : vector<16xf32> to vector<16x1xf32>
    %cst_169 = arith.constant 3.200000e+01 : f32
    %520 = vector.broadcast %cst_169 : f32 to vector<16x1xf32>
    %521 = arith.divf %519, %520 : vector<16x1xf32>
    %522 = vector.broadcast %521 : vector<16x1xf32> to vector<16x32xf32>
    %523 = arith.subf %514, %522 : vector<16x32xf32>
    %524 = arith.mulf %523, %523 : vector<16x32xf32>
    %cst_170 = arith.constant dense<0.000000e+00> : vector<16xf32>
    %525 = vector.multi_reduction <add>, %524, %cst_170 [1] : vector<16x32xf32> to vector<16xf32>
    %526 = vector.shape_cast %525 : vector<16xf32> to vector<16x1xf32>
    %cst_171 = arith.constant 3.200000e+01 : f32
    %527 = vector.broadcast %cst_171 : f32 to vector<16x1xf32>
    %528 = arith.divf %526, %527 : vector<16x1xf32>
    %cst_172 = arith.constant 9.99999974E-6 : f32
    %529 = vector.broadcast %cst_172 : f32 to vector<16x1xf32>
    %530 = arith.addf %528, %529 : vector<16x1xf32>
    %531 = math.rsqrt %530 : vector<16x1xf32>
    %532 = vector.broadcast %531 : vector<16x1xf32> to vector<16x32xf32>
    %533 = arith.mulf %523, %532 : vector<16x32xf32>
    %534 = vector.broadcast %516 : vector<1x32xf32> to vector<16x32xf32>
    %535 = arith.mulf %533, %534 : vector<16x32xf32>
    %536 = vector.broadcast %517 : vector<1x32xf32> to vector<16x32xf32>
    %537 = arith.addf %535, %536 : vector<16x32xf32>
    %c0_173 = arith.constant 0 : index
    %c0_174 = arith.constant 0 : index
    %538 = vector.load %arg16[%c0_173, %c0_174] : memref<32x64xbf16, #tpu.memory_space<vmem>>, vector<32x64xbf16>
    %539 = arith.truncf %537 : vector<16x32xf32> to vector<16x32xbf16>
    %cst_175 = arith.constant dense<0.000000e+00> : vector<16x64xf32>
    %540 = tpu.matmul %539, %538, %cst_175 {dimension_numbers = #tpu.dot_dimension_numbers<[1], [0], [0], [1], [0, 0, 1, 1], [], []>} : vector<16x32xbf16>, vector<32x64xbf16>, vector<16x64xf32> -> vector<16x64xf32>
    %cst_176 = arith.constant dense<0xFF800000> : vector<16xf32>
    %541 = vector.multi_reduction <maximumf>, %540, %cst_176 [1] : vector<16x64xf32> to vector<16xf32>
    %542 = vector.shape_cast %541 : vector<16xf32> to vector<16x1xf32>
    %543 = vector.broadcast %542 : vector<16x1xf32> to vector<16x64xf32>
    %544 = arith.subf %540, %543 : vector<16x64xf32>
    %545 = math.exp %544 : vector<16x64xf32>
    %cst_177 = arith.constant dense<0.000000e+00> : vector<16xf32>
    %546 = vector.multi_reduction <add>, %545, %cst_177 [1] : vector<16x64xf32> to vector<16xf32>
    %547 = vector.shape_cast %546 : vector<16xf32> to vector<16x1xf32>
    %548 = math.log %547 : vector<16x1xf32>
    %549 = arith.addf %548, %542 : vector<16x1xf32>
    %550 = arith.mulf %540, %11 : vector<16x64xf32>
    %cst_178 = arith.constant dense<0.000000e+00> : vector<16xf32>
    %551 = vector.multi_reduction <add>, %550, %cst_178 [1] : vector<16x64xf32> to vector<16xf32>
    %552 = vector.shape_cast %551 : vector<16xf32> to vector<16x1xf32>
    %553 = arith.subf %549, %552 : vector<16x1xf32>
    %554 = vector.shape_cast %553 : vector<16x1xf32> to vector<1x16x1xf32>
    %cst_179 = arith.constant dense<0.000000e+00> : vector<1xf32>
    %555 = vector.multi_reduction <add>, %554, %cst_179 [1, 2] : vector<1x16x1xf32> to vector<1xf32>
    %556 = vector.shape_cast %555 : vector<1xf32> to vector<1x1x1xf32>
    %557 = vector.extract %556[0, 0, 0] : f32 from vector<1x1x1xf32>
    %cst_180 = arith.constant 6.250000e-02 : f32
    %558 = arith.mulf %557, %cst_180 : f32
    %559 = vector.broadcast %558 : f32 to vector<1x128xf32>
    %c0_181 = arith.constant 0 : index
    %c0_182 = arith.constant 0 : index
    %560 = vector.load %arg17[%c0_181, %c0_182] : memref<1x128xf32, #tpu.memory_space<vmem>>, vector<1x128xf32>
    tpu.vector_store %arg17[%c0_181, %c0_182], %559 {strides = array<i32>} : memref<1x128xf32, #tpu.memory_space<vmem>>, vector<1x128xf32>,
    return
  }
}

</mosaic_0001>

<llo_original>
// kernel: audio_flamingo_forward.2
$region0: #{audio_flamingo_forward.2}
  #allocation0 [shape = 'u32[]', space=smem, size = 0x4, offset = 0x4, fixed_abs, tag = 'smem constant byte address 0x4 - core index']
  #allocation1 [shape = 'u32[72,128]{1,0:T(1,128)}', space=vmem, size = 0x9000, scoped, tag = 'internal scratch']
  %s0 = inlined_call_operand.vmem [shape: f32[16,1], index: 0, kind: input, shape index: {}]
  %s1 = inlined_call_operand.vmem [shape: f32[4,32], index: 1, kind: input, shape index: {}]
  %s2 = inlined_call_operand.vmem [shape: bf16[3,32,96], index: 2, kind: input, shape index: {}]
  %s3 = inlined_call_operand.vmem [shape: bf16[3,32,32], index: 3, kind: input, shape index: {}]
  %s4 = inlined_call_operand.hbm [shape: f32[4,32], index: 4, kind: input, shape index: {}]
  %s5 = inlined_call_operand.vmem [shape: bf16[32,288], index: 5, kind: input, shape index: {}]
  %s6 = inlined_call_operand.vmem [shape: bf16[32,32], index: 6, kind: input, shape index: {}]
  %s7 = inlined_call_operand.hbm [shape: bf16[32,32], index: 7, kind: input, shape index: {}]
  %s8 = inlined_call_operand.vmem [shape: bf16[128,32], index: 8, kind: input, shape index: {}]
  %s9 = inlined_call_operand.vmem [shape: f32[3,32], index: 9, kind: input, shape index: {}]
  %s10 = inlined_call_operand.vmem [shape: bf16[32,32], index: 10, kind: input, shape index: {}]
  %s11 = inlined_call_operand.hbm [shape: f32[4,32], index: 11, kind: input, shape index: {}]
  %s12 = inlined_call_operand.vmem [shape: f32[2,8,32], index: 12, kind: output, shape index: {}]
  %s13 = sld [smem:[#allocation0]]
  $region70: #{audio_flamingo_forward.2} parent=0
    _
  %s15 = ssub.s32 1, %s13
  %s16 = scalar_select 0, %s15, %s13
  $region1: #{audio_flamingo_forward.2} parent=0
    #allocation2 [shape = 'u8[2048]{0}', space=vmem, size = 0x800, scoped, tag = 'input window, operand 4, single buffered']
    #allocation3 [shape = 's32[1]{0}', space=sflag, size = 0x4, scoped, tag = 'scoped memory for audio_flamingo_forward.2']
    #allocation4 [shape = 'u8[8192]{0}', space=vmem, size = 0x2000, scoped, tag = 'input window, operand 7, single buffered']
    #allocation5 [shape = 's32[1]{0}', space=sflag, size = 0x4, scoped, tag = 'scoped memory for audio_flamingo_forward.2']
    #allocation6 [shape = 'u8[2048]{0}', space=vmem, size = 0x800, scoped, tag = 'input window, operand 11, single buffered']
    %17 = vsyncpa [#allocation3], 0
    %18 = vsyncpa [#allocation5], 0
    // Predicated region
    $region2: #{audio_flamingo_forward.2} parent=1 // pred_check
      _
    $region3: #{audio_flamingo_forward.2} parent=1 // pred_check_branch
      %20 = sbr.rel (0) target = $region5
    $region4: #{audio_flamingo_forward.2} parent=1 // pred_region
      _
    $region5: #{audio_flamingo_forward.2} parent=1 // pred_fallthru
      _
    // Predicated region
    $region6: #{audio_flamingo_forward.2} parent=1 // pred_check
      _
    $region7: #{audio_flamingo_forward.2} parent=1 // pred_check_branch
      %22 = sbr.rel (0) target = $region9
    $region8: #{audio_flamingo_forward.2} parent=1 // pred_region
      _
    $region9: #{audio_flamingo_forward.2} parent=1 // pred_fallthru
      _
    // Predicated region
    $region10: #{audio_flamingo_forward.2} parent=1 // pred_check
      _
    $region11: #{audio_flamingo_forward.2} parent=1 // pred_check_branch
      %24 = sbr.rel (0) target = $region13
    $region12: #{audio_flamingo_forward.2} parent=1 // pred_region
      _
    $region13: #{audio_flamingo_forward.2} parent=1 // pred_fallthru
      _
    // Predicated region
    $region14: #{audio_flamingo_forward.2} parent=1 // pred_check
      _
    $region15: #{audio_flamingo_forward.2} parent=1 // pred_check_branch
      %26 = sbr.rel (0) target = $region17
    $region16: #{audio_flamingo_forward.2} parent=1 // pred_region
      _
    $region17: #{audio_flamingo_forward.2} parent=1 // pred_fallthru
      _
    // Predicated region
    $region18: #{audio_flamingo_forward.2} parent=1 // pred_check
      _
    $region19: #{audio_flamingo_forward.2} parent=1 // pred_check_branch
      %28 = sbr.rel (0) target = $region21
    $region20: #{audio_flamingo_forward.2} parent=1 // pred_region
      %30 = vsyncadd [#allocation3], 0
      %s32 = sshll.u32 %s4, 4
      %s33 = int_to_ptr.hbm [resolvable:$true] %s32
      %s34 = sshll.u32 [#allocation2], 4
      %s35 = int_to_ptr.vmem [resolvable:$true] %s34
      %37 = dma.hbm_to_vmem [thread:$0]  %s33, 64, %s35, [#allocation3]
    $region21: #{audio_flamingo_forward.2} parent=1 // pred_fallthru
      _
    // Predicated region
    $region22: #{audio_flamingo_forward.2} parent=1 // pred_check
      _
    $region23: #{audio_flamingo_forward.2} parent=1 // pred_check_branch
      %39 = sbr.rel (0) target = $region25
    $region24: #{audio_flamingo_forward.2} parent=1 // pred_region
      _
    $region25: #{audio_flamingo_forward.2} parent=1 // pred_fallthru
      _
    // Predicated region
    $region26: #{audio_flamingo_forward.2} parent=1 // pred_check
      _
    $region27: #{audio_flamingo_forward.2} parent=1 // pred_check_branch
      %41 = sbr.rel (0) target = $region29
    $region28: #{audio_flamingo_forward.2} parent=1 // pred_region
      _
    $region29: #{audio_flamingo_forward.2} parent=1 // pred_fallthru
      _
    // Predicated region
    $region30: #{audio_flamingo_forward.2} parent=1 // pred_check
      _
    $region31: #{audio_flamingo_forward.2} parent=1 // pred_check_branch
      %43 = sbr.rel (0) target = $region33
    $region32: #{audio_flamingo_forward.2} parent=1 // pred_region
      %45 = vsyncadd [#allocation5], 0
      %s46 = sshll.u32 %s7, 4
      %s47 = int_to_ptr.hbm [resolvable:$true] %s46
      %s48 = sshll.u32 [#allocation4], 4
      %s49 = int_to_ptr.vmem [resolvable:$true] %s48
      %54 = dma.hbm_to_vmem [thread:$0]  %s47, 256, %s49, [#allocation5], 64, 64, 4
    $region33: #{audio_flamingo_forward.2} parent=1 // pred_fallthru
      _
    // Predicated region
    $region34: #{audio_flamingo_forward.2} parent=1 // pred_check
      _
    $region35: #{audio_flamingo_forward.2} parent=1 // pred_check_branch
      %56 = sbr.rel (0) target = $region37
    $region36: #{audio_flamingo_forward.2} parent=1 // pred_region
      _
    $region37: #{audio_flamingo_forward.2} parent=1 // pred_fallthru
      _
    // Predicated region
    $region38: #{audio_flamingo_forward.2} parent=1 // pred_check
      _
    $region39: #{audio_flamingo_forward.2} parent=1 // pred_check_branch
      %58 = sbr.rel (0) target = $region41
    $region40: #{audio_flamingo_forward.2} parent=1 // pred_region
      _
    $region41: #{audio_flamingo_forward.2} parent=1 // pred_fallthru
      _
    // Predicated region
    $region42: #{audio_flamingo_forward.2} parent=1 // pred_check
      _
    $region43: #{audio_flamingo_forward.2} parent=1 // pred_check_branch
      %60 = sbr.rel (0) target = $region45
    $region44: #{audio_flamingo_forward.2} parent=1 // pred_region
      _
    $region45: #{audio_flamingo_forward.2} parent=1 // pred_fallthru
      _
    // Predicated region
    $region46: #{audio_flamingo_forward.2} parent=1 // pred_check
      _
    $region47: #{audio_flamingo_forward.2} parent=1 // pred_check_branch
      %62 = sbr.rel (0) target = $region49
    $region48: #{audio_flamingo_forward.2} parent=1 // pred_region
      %64 = vsyncadd [#allocation5], 0
      %s66 = sshll.u32 %s11, 4
      %s67 = int_to_ptr.hbm [resolvable:$true] %s66
      %s68 = sshll.u32 [#allocation6], 4
      %s69 = int_to_ptr.vmem [resolvable:$true] %s68
      %71 = dma.hbm_to_vmem [thread:$0]  %s67, 64, %s69, [#allocation5]
    $region49: #{audio_flamingo_forward.2} parent=1 // pred_fallthru
      _
    // Predicated region
    $region50: #{audio_flamingo_forward.2} parent=1 // pred_check
      _
    $region51: #{audio_flamingo_forward.2} parent=1 // pred_check_branch
      %73 = sbr.rel (0) target = $region53
    $region52: #{audio_flamingo_forward.2} parent=1 // pred_region
      %75 = dma.done [#allocation3], 64
    $region53: #{audio_flamingo_forward.2} parent=1 // pred_fallthru
      _
    // Predicated region
    $region54: #{audio_flamingo_forward.2} parent=1 // pred_check
      _
    $region55: #{audio_flamingo_forward.2} parent=1 // pred_check_branch
      %77 = sbr.rel (0) target = $region57
    $region56: #{audio_flamingo_forward.2} parent=1 // pred_region
      %79 = dma.done [#allocation5], 256
    $region57: #{audio_flamingo_forward.2} parent=1 // pred_fallthru
      _
    // Predicated region
    $region58: #{audio_flamingo_forward.2} parent=1 // pred_check
      _
    $region59: #{audio_flamingo_forward.2} parent=1 // pred_check_branch
      %81 = sbr.rel (0) target = $region61
    $region60: #{audio_flamingo_forward.2} parent=1 // pred_region
      %83 = dma.done [#allocation5], 64
    $region61: #{audio_flamingo_forward.2} parent=1 // pred_fallthru
      _
    %v85 = vld [vmem:[%s1] sm:$0xf]
    %v86 = vld [vmem:[%s0] sm:$0xff]
    %v87 = vld [vmem:[%s0 + $0x8] sm:$0xff]
    %89 = vset.pattern.permute.xlu0 0
    %90 = vperm.xlu0 %89, %v86
    %v91 = vpop.permute.xlu0 %90
    %94 = vset.pattern.permute.xlu0 0
    %95 = vperm.xlu0 %94, %v87
    %v96 = vpop.permute.xlu0 %95
    %v98 = vperm.slane %v85, 0
    %v99 = vmul.f32 %v91, %v98
    %v100 = vmul.f32 %v96, %v98
    %v101 = vperm.slane %v85, 1
    %v102 = vadd.f32 %v99, %v101
    %v103 = vadd.f32 %v100, %v101
    %vm104 = vcmask 261120
    %v105 = vsel %vm104, %v102, 0.0
    %106 = vadd.xlane.f32.xlu0 %v105
    %v107 = vpop.xlane.xlu0 %106
    %v108 = vsel %vm104, %v103, 0.0
    %109 = vadd.xlane.f32.xlu0 %v108
    %v110 = vpop.xlane.xlu0 %109
    %v111 = vrcp.pop 32.0
    %v112 = vmul.f32 32.0, %v111
    %v113 = vsub.f32 1.0, %v112
    %v114 = vmul.f32 %v111, %v113
    %v115 = vadd.f32 %v111, %v114
    %vm116 = vweird.f32 %v111
    %v117 = vsel %vm116, %v111, %v115
    %v118 = vmul.f32 %v107, %v117
    %v119 = vmul.f32 %v110, %v117
    %v120 = vsub.f32 %v102, %v118
    %v121 = vsub.f32 %v103, %v119
    %v122 = vmul.f32 %v120, %v120
    %v123 = vmul.f32 %v121, %v121
    %v124 = vsel %vm104, %v122, 0.0
    %125 = vadd.xlane.f32.xlu0 %v124
    %v126 = vpop.xlane.xlu0 %125
    %v127 = vsel %vm104, %v123, 0.0
    %128 = vadd.xlane.f32.xlu0 %v127
    %v129 = vpop.xlane.xlu0 %128
    %v130 = vmul.f32 %v126, %v117
    %v131 = vmul.f32 %v129, %v117
    %v132 = vadd.f32 %v130, 1e-05
    %v133 = vadd.f32 %v131, 1e-05
    %v134 = vrsqrt.pop %v132
    %v135 = vmul.f32 %v134, %v132
    %v136 = vmul.f32 %v135, %v134
    %v137 = vmul.f32 0.5, %v136
    %v138 = vsub.f32 1.5, %v137
    %v139 = vmul.f32 %v134, %v138
    %vm140 = vweird.f32 %v132
    %vm141 = vweird.f32 %v134
    %vm142 = vmor %vm140, %vm141
    %v143 = vsel %vm142, %v134, %v139
    %v144 = vrsqrt.pop %v133
    %v145 = vmul.f32 %v144, %v133
    %v146 = vmul.f32 %v145, %v144
    %v147 = vmul.f32 0.5, %v146
    %v148 = vsub.f32 1.5, %v147
    %v149 = vmul.f32 %v144, %v148
    %vm150 = vweird.f32 %v133
    %vm151 = vweird.f32 %v144
    %vm152 = vmor %vm150, %vm151
    %v153 = vsel %vm152, %v144, %v149
    %v154 = vmul.f32 %v120, %v143
    %v155 = vmul.f32 %v121, %v153
    %v156 = vperm.slane %v85, 2
    %v157 = vmul.f32 %v154, %v156
    %v158 = vmul.f32 %v155, %v156
    %v159 = vperm.slane %v85, 3
    %v160 = vadd.f32 %v157, %v159
    %v161 = vadd.f32 %v158, %v159
    %v162 = vlaneseq
    %v163 = vshrl.u32 %v162, 7
    %v164 = vlaneseq
    %v165 = vand.u32 %v164, 127
    %vm166 = vcmp.le.s32.totalorder %v165, %v163
    %v167 = vld [vmem:[%s2] sm:$0xf]
    %v168 = vld [vmem:[%s2 + $0x4] sm:$0xf]
    %v169 = vld [vmem:[%s2 + $0x8] sm:$0xf]
    %v170 = vld [vmem:[%s2 + $0xc] sm:$0xf]
    %v171 = vpack.c.bf16 %v161, %v160
    %v176 = vunpack.c.l.b16 %v167
    %v177 = vunpack.c.l.b16 %v168
    %v178 = vunpack.c.l.b16 %v169
    %v179 = vunpack.c.l.b16 %v170
    %v180 = vpack.c.b16 %v177, %v176
    %v181 = vpack.c.b16 %v179, %v178
    %v185 = vsel %vm104, %v171, 0
    %187 = vmatpush.bf16.msra.mxu0 0
    %188 = vmatpush.bf16.msra.mxu0 0
    %189 = vmatpush.bf16.msra.mxu0 0
    %190 = vmatpush.bf16.msra.mxu0 0
    %191 = vmatpush.bf16.msra.mxu0 0
    %192 = vmatpush.bf16.msra.mxu0 0
    %193 = vmatpush.bf16.msra.mxu0 %v181
    %194 = vmatpush.bf16.msra.mxu0 %v180
    %195 = vmatmul.bf16.gmra.mxu0 %v185
    %v196 = vpop.f32.mrf.mxu0
    %v197 = vadd.f32 0.0, %v196
    %v198 = vpop.f32.mrf.mxu0
    %v199 = vadd.f32 0.0, %v198
    %200 = vdwg.mxu0
    %v201 = vmul.f32 %v197, %v197
    %v202 = vmul.f32 %v199, %v199
    %vm203 = vcmask 130048
    %v204 = vsel %vm203, %v201, 0.0
    %205 = vadd.xlane.f32.xlu0 %v204
    %v206 = vpop.xlane.xlu0 %205
    %v207 = vsel %vm203, %v202, 0.0
    %208 = vadd.xlane.f32.xlu0 %v207
    %v209 = vpop.xlane.xlu0 %208
    %v210 = vadd.f32 %v206, 1e-12
    %v211 = vadd.f32 %v209, 1e-12
    %v212 = vrsqrt.pop %v210
    %v213 = vmul.f32 %v212, %v210
    %v214 = vmul.f32 %v213, %v212
    %v215 = vmul.f32 0.5, %v214
    %v216 = vsub.f32 1.5, %v215
    %v217 = vmul.f32 %v212, %v216
    %vm218 = vweird.f32 %v210
    %vm219 = vweird.f32 %v212
    %vm220 = vmor %vm218, %vm219
    %v221 = vsel %vm220, %v212, %v217
    %v222 = vrsqrt.pop %v211
    %v223 = vmul.f32 %v222, %v211
    %v224 = vmul.f32 %v223, %v222
    %v225 = vmul.f32 0.5, %v224
    %v226 = vsub.f32 1.5, %v225
    %v227 = vmul.f32 %v222, %v226
    %vm228 = vweird.f32 %v211
    %vm229 = vweird.f32 %v222
    %vm230 = vmor %vm228, %vm229
    %v231 = vsel %vm230, %v222, %v227
    %v232 = vmul.f32 %v197, %v221
    %v233 = vmul.f32 %v199, %v231
    %236 = vrot.lane.b32.xlu0 %v201, 96
    %v237 = vpop.permute.xlu0 %236
    %238 = vrot.lane.b32.xlu0 %v202, 96
    %v239 = vpop.permute.xlu0 %238
    %v242 = vsel %vm203, %v237, 0.0
    %243 = vadd.xlane.f32.xlu0 %v242
    %v244 = vpop.xlane.xlu0 %243
    %v245 = vsel %vm203, %v239, 0.0
    %246 = vadd.xlane.f32.xlu0 %v245
    %v247 = vpop.xlane.xlu0 %246
    %v248 = vadd.f32 %v244, 1e-12
    %v249 = vadd.f32 %v247, 1e-12
    %v250 = vrsqrt.pop %v248
    %v251 = vmul.f32 %v250, %v248
    %v252 = vmul.f32 %v251, %v250
    %v253 = vmul.f32 0.5, %v252
    %v254 = vsub.f32 1.5, %v253
    %v255 = vmul.f32 %v250, %v254
    %vm256 = vweird.f32 %v248
    %vm257 = vweird.f32 %v250
    %vm258 = vmor %vm256, %vm257
    %v259 = vsel %vm258, %v250, %v255
    %v260 = vrsqrt.pop %v249
    %v261 = vmul.f32 %v260, %v249
    %v262 = vmul.f32 %v261, %v260
    %v263 = vmul.f32 0.5, %v262
    %v264 = vsub.f32 1.5, %v263
    %v265 = vmul.f32 %v260, %v264
    %vm266 = vweird.f32 %v249
    %vm267 = vweird.f32 %v260
    %vm268 = vmor %vm266, %vm267
    %v269 = vsel %vm268, %v260, %v265
    %v270 = vmul.f32 %v197, %v259
    %v271 = vmul.f32 %v199, %v269
    %v272 = vpack.c.bf16 %v232, %v232
    %v273 = vpack.c.bf16 %v233, %v233
    %v274 = vpack.c.bf16 %v270, %v270
    %v275 = vpack.c.bf16 %v271, %v271
    %v277 = vunpack.c.l.b16 %v274
    %v278 = vpack.c.b16 %v277, %v277
    %279 = vrot.lane.b32.xlu0 %v278, 96
    %v280 = vpop.permute.xlu0 %279
    %v282 = vsel %vm203, %v272, 0
    %v285 = vsel %vm203, %v280, 0
    %287 = vmatpush.bf16.xpose.msra.mxu0 0
    %288 = vmatpush.bf16.xpose.msra.mxu0 0
    %289 = vmatpush.bf16.xpose.msra.mxu0 0
    %290 = vmatpush.bf16.xpose.msra.mxu0 0
    %291 = vmatpush.bf16.xpose.msra.mxu0 0
    %292 = vmatpush.bf16.xpose.msra.mxu0 0
    %293 = vmatpush.bf16.xpose.msra.mxu0 0
    %294 = vmatpush.bf16.xpose.msra.mxu0 %v285
    %295 = vmatmul.bf16.gmra.mxu0 %v282
    %v296 = vpop.f32.mrf.mxu0
    %v297 = vadd.f32 0.0, %v296
    %v298 = vpop.f32.mrf.mxu0
    %299 = vdwg.mxu0
    %v301 = vunpack.c.l.b16 %v275
    %v302 = vpack.c.b16 %v301, %v301
    %303 = vrot.lane.b32.xlu0 %v302, 96
    %v304 = vpop.permute.xlu0 %303
    %v306 = vsel %vm203, %v273, 0
    %v309 = vsel %vm203, %v304, 0
    %311 = vmatpush.bf16.xpose.msra.mxu0 0
    %312 = vmatpush.bf16.xpose.msra.mxu0 0
    %313 = vmatpush.bf16.xpose.msra.mxu0 0
    %314 = vmatpush.bf16.xpose.msra.mxu0 0
    %315 = vmatpush.bf16.xpose.msra.mxu0 0
    %316 = vmatpush.bf16.xpose.msra.mxu0 0
    %317 = vmatpush.bf16.xpose.msra.mxu0 0
    %318 = vmatpush.bf16.xpose.msra.mxu0 %v309
    %319 = vmatmul.bf16.gmra.mxu0 %v306
    %v320 = vpop.f32.mrf.mxu0
    %v321 = vadd.f32 0.0, %v320
    %v322 = vpop.f32.mrf.mxu0
    %323 = vdwg.mxu0
    %v324 = vmul.f32 %v297, 10.0
    %v325 = vmul.f32 %v321, 10.0
    %v326 = vsel %vm166, 1, 0
    %vm327 = vcmp.eq.s32.totalorder %v326, 1
    %v328 = vsel %vm327, %v324, -1e+30
    %v329 = vsel %vm327, %v325, -1e+30
    %vm330 = vcmask 64512
    %v331 = vsel %vm330, %v328, -inf
    %332 = vmax.xlane.f32.xlu0 %v331
    %v333 = vpop.xlane.xlu0 %332
    %v334 = vsel %vm330, %v329, -inf
    %335 = vmax.xlane.f32.xlu0 %v334
    %v336 = vpop.xlane.xlu0 %335
    %v337 = vsub.f32 %v328, %v333
    %v338 = vsub.f32 %v329, %v336
    %v339 = vmul.f32 %v337, 1.442695
    %v340 = vpow.pop %v339
    %v341 = vmul.f32 %v338, 1.442695
    %v342 = vpow.pop %v341
    %v343 = vsel %vm330, %v340, 0.0
    %344 = vadd.xlane.f32.xlu0 %v343
    %v345 = vpop.xlane.xlu0 %344
    %v346 = vsel %vm330, %v342, 0.0
    %347 = vadd.xlane.f32.xlu0 %v346
    %v348 = vpop.xlane.xlu0 %347
    %v349 = vrcp.pop %v345
    %v350 = vmul.f32 %v345, %v349
    %v351 = vsub.f32 1.0, %v350
    %v352 = vmul.f32 %v349, %v351
    %v353 = vadd.f32 %v349, %v352
    %vm354 = vweird.f32 %v345
    %vm355 = vweird.f32 %v349
    %vm356 = vmor %vm354, %vm355
    %v357 = vsel %vm356, %v349, %v353
    %v358 = vand.u32 2147483647, %v345
    %vm359 = vcmp.eq.f32.partialorder %v358, 8.507059e+37
    %v360 = vand.u32 %v345, 2147483648
    %v361 = vor.u32 1.1754944e-38, %v360
    %v362 = vsel %vm359, %v361, %v357
    %v363 = vmul.f32 %v340, %v362
    %v364 = vrcp.pop %v348
    %v365 = vmul.f32 %v348, %v364
    %v366 = vsub.f32 1.0, %v365
    %v367 = vmul.f32 %v364, %v366
    %v368 = vadd.f32 %v364, %v367
    %vm369 = vweird.f32 %v348
    %vm370 = vweird.f32 %v364
    %vm371 = vmor %vm369, %vm370
    %v372 = vsel %vm371, %v364, %v368
    %v373 = vand.u32 2147483647, %v348
    %vm374 = vcmp.eq.f32.partialorder %v373, 8.507059e+37
    %v375 = vand.u32 %v348, 2147483648
    %v376 = vor.u32 1.1754944e-38, %v375
    %v377 = vsel %vm374, %v376, %v372
    %v378 = vmul.f32 %v342, %v377
    %v379 = vpack.c.bf16 %v363, %v363
    %v380 = vpack.c.bf16 %v378, %v378
    %v381 = vpack.c.bf16 %v197, %v197
    %v382 = vpack.c.bf16 %v199, %v199
    %v384 = vunpack.c.l.b16 %v381
    %v385 = vpack.c.b16 %v384, %v384
    %386 = vrot.lane.b32.xlu0 %v385, 64
    %v387 = vpop.permute.xlu0 %386
    %v389 = vsel %vm330, %v379, 0
    %vm391 = vcmask 1043456
    %v393 = vsel %vm391, %v387, 0
    %395 = vmatpush.bf16.msra.mxu0 0
    %396 = vmatpush.bf16.msra.mxu0 0
    %397 = vmatpush.bf16.msra.mxu0 0
    %398 = vmatpush.bf16.msra.mxu0 0
    %399 = vmatpush.bf16.msra.mxu0 0
    %400 = vmatpush.bf16.msra.mxu0 0
    %401 = vmatpush.bf16.msra.mxu0 0
    %402 = vmatpush.bf16.msra.mxu0 %v393
    %403 = vmatmul.bf16.gmra.mxu0 %v389
    %v404 = vpop.f32.mrf.mxu0
    %v405 = vadd.f32 0.0, %v404
    %v406 = vpop.f32.mrf.mxu0
    %407 = vdwg.mxu0
    %v409 = vunpack.c.l.b16 %v382
    %v410 = vpack.c.b16 %v409, %v409
    %411 = vrot.lane.b32.xlu0 %v410, 64
    %v412 = vpop.permute.xlu0 %411
    %v414 = vsel %vm330, %v380, 0
    %v417 = vsel %vm391, %v412, 0
    %419 = vmatpush.bf16.msra.mxu0 0
    %420 = vmatpush.bf16.msra.mxu0 0
    %421 = vmatpush.bf16.msra.mxu0 0
    %422 = vmatpush.bf16.msra.mxu0 0
    %423 = vmatpush.bf16.msra.mxu0 0
    %424 = vmatpush.bf16.msra.mxu0 0
    %425 = vmatpush.bf16.msra.mxu0 0
    %426 = vmatpush.bf16.msra.mxu0 %v417
    %427 = vmatmul.bf16.gmra.mxu0 %v414
    %v428 = vpop.f32.mrf.mxu0
    %v429 = vadd.f32 0.0, %v428
    %v430 = vpop.f32.mrf.mxu0
    %431 = vdwg.mxu0
    %432 = vrot.lane.b32.xlu0 %v201, 112
    %v433 = vpop.permute.xlu0 %432
    %434 = vrot.lane.b32.xlu0 %v202, 112
    %v435 = vpop.permute.xlu0 %434
    %v438 = vsel %vm203, %v433, 0.0
    %439 = vadd.xlane.f32.xlu0 %v438
    %v440 = vpop.xlane.xlu0 %439
    %v441 = vsel %vm203, %v435, 0.0
    %442 = vadd.xlane.f32.xlu0 %v441
    %v443 = vpop.xlane.xlu0 %442
    %v444 = vadd.f32 %v440, 1e-12
    %v445 = vadd.f32 %v443, 1e-12
    %v446 = vrsqrt.pop %v444
    %v447 = vmul.f32 %v446, %v444
    %v448 = vmul.f32 %v447, %v446
    %v449 = vmul.f32 0.5, %v448
    %v450 = vsub.f32 1.5, %v449
    %v451 = vmul.f32 %v446, %v450
    %vm452 = vweird.f32 %v444
    %vm453 = vweird.f32 %v446
    %vm454 = vmor %vm452, %vm453
    %v455 = vsel %vm454, %v446, %v451
    %v456 = vrsqrt.pop %v445
    %v457 = vmul.f32 %v456, %v445
    %v458 = vmul.f32 %v457, %v456
    %v459 = vmul.f32 0.5, %v458
    %v460 = vsub.f32 1.5, %v459
    %v461 = vmul.f32 %v456, %v460
    %vm462 = vweird.f32 %v445
    %vm463 = vweird.f32 %v456
    %vm464 = vmor %vm462, %vm463
    %v465 = vsel %vm464, %v456, %v461
    %v466 = vmul.f32 %v197, %v455
    %v467 = vmul.f32 %v199, %v465
    %468 = vrot.lane.b32.xlu0 %v201, 80
    %v469 = vpop.permute.xlu0 %468
    %470 = vrot.lane.b32.xlu0 %v202, 80
    %v471 = vpop.permute.xlu0 %470
    %v474 = vsel %vm203, %v469, 0.0
    %475 = vadd.xlane.f32.xlu0 %v474
    %v476 = vpop.xlane.xlu0 %475
    %v477 = vsel %vm203, %v471, 0.0
    %478 = vadd.xlane.f32.xlu0 %v477
    %v479 = vpop.xlane.xlu0 %478
    %v480 = vadd.f32 %v476, 1e-12
    %v481 = vadd.f32 %v479, 1e-12
    %v482 = vrsqrt.pop %v480
    %v483 = vmul.f32 %v482, %v480
    %v484 = vmul.f32 %v483, %v482
    %v485 = vmul.f32 0.5, %v484
    %v486 = vsub.f32 1.5, %v485
    %v487 = vmul.f32 %v482, %v486
    %vm488 = vweird.f32 %v480
    %vm489 = vweird.f32 %v482
    %vm490 = vmor %vm488, %vm489
    %v491 = vsel %vm490, %v482, %v487
    %v492 = vrsqrt.pop %v481
    %v493 = vmul.f32 %v492, %v481
    %v494 = vmul.f32 %v493, %v492
    %v495 = vmul.f32 0.5, %v494
    %v496 = vsub.f32 1.5, %v495
    %v497 = vmul.f32 %v492, %v496
    %vm498 = vweird.f32 %v481
    %vm499 = vweird.f32 %v492
    %vm500 = vmor %vm498, %vm499
    %v501 = vsel %vm500, %v492, %v497
    %v502 = vmul.f32 %v197, %v491
    %v503 = vmul.f32 %v199, %v501
    %v504 = vpack.c.bf16 %v466, %v466
    %v505 = vpack.c.bf16 %v467, %v467
    %v506 = vpack.c.bf16 %v502, %v502
    %v507 = vpack.c.bf16 %v503, %v503
    %v509 = vunpack.c.l.b16 %v504
    %v510 = vpack.c.b16 %v509, %v509
    %511 = vrot.lane.b32.xlu0 %v510, 112
    %v512 = vpop.permute.xlu0 %511
    %v514 = vunpack.c.l.b16 %v506
    %v515 = vpack.c.b16 %v514, %v514
    %516 = vrot.lane.b32.xlu0 %v515, 80
    %v517 = vpop.permute.xlu0 %516
    %v519 = vsel %vm203, %v512, 0
    %v522 = vsel %vm203, %v517, 0
    %524 = vmatpush.bf16.xpose.msra.mxu0 0
    %525 = vmatpush.bf16.xpose.msra.mxu0 0
    %526 = vmatpush.bf16.xpose.msra.mxu0 0
    %527 = vmatpush.bf16.xpose.msra.mxu0 0
    %528 = vmatpush.bf16.xpose.msra.mxu0 0
    %529 = vmatpush.bf16.xpose.msra.mxu0 0
    %530 = vmatpush.bf16.xpose.msra.mxu0 0
    %531 = vmatpush.bf16.xpose.msra.mxu0 %v522
    %532 = vmatmul.bf16.gmra.mxu0 %v519
    %v533 = vpop.f32.mrf.mxu0
    %v534 = vadd.f32 0.0, %v533
    %v535 = vpop.f32.mrf.mxu0
    %536 = vdwg.mxu0
    %v538 = vunpack.c.l.b16 %v505
    %v539 = vpack.c.b16 %v538, %v538
    %540 = vrot.lane.b32.xlu0 %v539, 112
    %v541 = vpop.permute.xlu0 %540
    %v543 = vunpack.c.l.b16 %v507
    %v544 = vpack.c.b16 %v543, %v543
    %545 = vrot.lane.b32.xlu0 %v544, 80
    %v546 = vpop.permute.xlu0 %545
    %v548 = vsel %vm203, %v541, 0
    %v551 = vsel %vm203, %v546, 0
    %553 = vmatpush.bf16.xpose.msra.mxu0 0
    %554 = vmatpush.bf16.xpose.msra.mxu0 0
    %555 = vmatpush.bf16.xpose.msra.mxu0 0
    %556 = vmatpush.bf16.xpose.msra.mxu0 0
    %557 = vmatpush.bf16.xpose.msra.mxu0 0
    %558 = vmatpush.bf16.xpose.msra.mxu0 0
    %559 = vmatpush.bf16.xpose.msra.mxu0 0
    %560 = vmatpush.bf16.xpose.msra.mxu0 %v551
    %561 = vmatmul.bf16.gmra.mxu0 %v548
    %v562 = vpop.f32.mrf.mxu0
    %v563 = vadd.f32 0.0, %v562
    %v564 = vpop.f32.mrf.mxu0
    %565 = vdwg.mxu0
    %v566 = vmul.f32 %v534, 10.0
    %v567 = vmul.f32 %v563, 10.0
    %v568 = vsel %vm327, %v566, -1e+30
    %v569 = vsel %vm327, %v567, -1e+30
    %v570 = vsel %vm330, %v568, -inf
    %571 = vmax.xlane.f32.xlu0 %v570
    %v572 = vpop.xlane.xlu0 %571
    %v573 = vsel %vm330, %v569, -inf
    %574 = vmax.xlane.f32.xlu0 %v573
    %v575 = vpop.xlane.xlu0 %574
    %v576 = vsub.f32 %v568, %v572
    %v577 = vsub.f32 %v569, %v575
    %v578 = vmul.f32 %v576, 1.442695
    %v579 = vpow.pop %v578
    %v580 = vmul.f32 %v577, 1.442695
    %v581 = vpow.pop %v580
    %v582 = vsel %vm330, %v579, 0.0
    %583 = vadd.xlane.f32.xlu0 %v582
    %v584 = vpop.xlane.xlu0 %583
    %v585 = vsel %vm330, %v581, 0.0
    %586 = vadd.xlane.f32.xlu0 %v585
    %v587 = vpop.xlane.xlu0 %586
    %v588 = vrcp.pop %v584
    %v589 = vmul.f32 %v584, %v588
    %v590 = vsub.f32 1.0, %v589
    %v591 = vmul.f32 %v588, %v590
    %v592 = vadd.f32 %v588, %v591
    %vm593 = vweird.f32 %v584
    %vm594 = vweird.f32 %v588
    %vm595 = vmor %vm593, %vm594
    %v596 = vsel %vm595, %v588, %v592
    %v597 = vand.u32 2147483647, %v584
    %vm598 = vcmp.eq.f32.partialorder %v597, 8.507059e+37
    %v599 = vand.u32 %v584, 2147483648
    %v600 = vor.u32 1.1754944e-38, %v599
    %v601 = vsel %vm598, %v600, %v596
    %v602 = vmul.f32 %v579, %v601
    %v603 = vrcp.pop %v587
    %v604 = vmul.f32 %v587, %v603
    %v605 = vsub.f32 1.0, %v604
    %v606 = vmul.f32 %v603, %v605
    %v607 = vadd.f32 %v603, %v606
    %vm608 = vweird.f32 %v587
    %vm609 = vweird.f32 %v603
    %vm610 = vmor %vm608, %vm609
    %v611 = vsel %vm610, %v603, %v607
    %v612 = vand.u32 2147483647, %v587
    %vm613 = vcmp.eq.f32.partialorder %v612, 8.507059e+37
    %v614 = vand.u32 %v587, 2147483648
    %v615 = vor.u32 1.1754944e-38, %v614
    %v616 = vsel %vm613, %v615, %v611
    %v617 = vmul.f32 %v581, %v616
    %v618 = vpack.c.bf16 %v602, %v602
    %v619 = vpack.c.bf16 %v617, %v617
    %620 = vrot.lane.b32.xlu0 %v385, 48
    %v621 = vpop.permute.xlu0 %620
    %v623 = vsel %vm330, %v618, 0
    %v626 = vsel %vm391, %v621, 0
    %628 = vmatpush.bf16.msra.mxu0 0
    %629 = vmatpush.bf16.msra.mxu0 0
    %630 = vmatpush.bf16.msra.mxu0 0
    %631 = vmatpush.bf16.msra.mxu0 0
    %632 = vmatpush.bf16.msra.mxu0 0
    %633 = vmatpush.bf16.msra.mxu0 0
    %634 = vmatpush.bf16.msra.mxu0 0
    %635 = vmatpush.bf16.msra.mxu0 %v626
    %636 = vmatmul.bf16.gmra.mxu0 %v623
    %v637 = vpop.f32.mrf.mxu0
    %v638 = vadd.f32 0.0, %v637
    %v639 = vpop.f32.mrf.mxu0
    %640 = vdwg.mxu0
    %641 = vrot.lane.b32.xlu0 %v410, 48
    %v642 = vpop.permute.xlu0 %641
    %v644 = vsel %vm330, %v619, 0
    %v647 = vsel %vm391, %v642, 0
    %649 = vmatpush.bf16.msra.mxu0 0
    %650 = vmatpush.bf16.msra.mxu0 0
    %651 = vmatpush.bf16.msra.mxu0 0
    %652 = vmatpush.bf16.msra.mxu0 0
    %653 = vmatpush.bf16.msra.mxu0 0
    %654 = vmatpush.bf16.msra.mxu0 0
    %655 = vmatpush.bf16.msra.mxu0 0
    %656 = vmatpush.bf16.msra.mxu0 %v647
    %657 = vmatmul.bf16.gmra.mxu0 %v644
    %v658 = vpop.f32.mrf.mxu0
    %v659 = vadd.f32 0.0, %v658
    %v660 = vpop.f32.mrf.mxu0
    %661 = vdwg.mxu0
    %664 = vrot.lane.b32.xlu0 %v638, 16
    %v665 = vpop.permute.xlu0 %664
    %666 = vrot.lane.b32.xlu0 %v659, 16
    %v667 = vpop.permute.xlu0 %666
    %v670 = vsel %vm203, %v405, %v665
    %v671 = vsel %vm203, %v429, %v667
    %v672 = vld [vmem:[%s3] sm:$0xf]
    %v673 = vld [vmem:[%s3 + $0x4] sm:$0xf]
    %v674 = vld [vmem:[%s3 + $0x8] sm:$0xf]
    %v675 = vld [vmem:[%s3 + $0xc] sm:$0xf]
    %v676 = vpack.c.bf16 %v671, %v670
    %v681 = vunpack.c.l.b16 %v672
    %v682 = vunpack.c.l.b16 %v673
    %v683 = vunpack.c.l.b16 %v674
    %v684 = vunpack.c.l.b16 %v675
    %v685 = vpack.c.b16 %v682, %v681
    %v686 = vpack.c.b16 %v684, %v683
    %v690 = vsel %vm104, %v676, 0
    %692 = vmatpush.bf16.msra.mxu0 0
    %693 = vmatpush.bf16.msra.mxu0 0
    %694 = vmatpush.bf16.msra.mxu0 0
    %695 = vmatpush.bf16.msra.mxu0 0
    %696 = vmatpush.bf16.msra.mxu0 0
    %697 = vmatpush.bf16.msra.mxu0 0
    %698 = vmatpush.bf16.msra.mxu0 %v686
    %699 = vmatpush.bf16.msra.mxu0 %v685
    %700 = vmatmul.bf16.gmra.mxu0 %v690
    %v701 = vpop.f32.mrf.mxu0
    %v702 = vadd.f32 0.0, %v701
    %v703 = vpop.f32.mrf.mxu0
    %v704 = vadd.f32 0.0, %v703
    %705 = vdwg.mxu0
    %s706 = scalar_lea.vmem %s2, 16
    %v707 = vld [vmem:[%s706] sm:$0xf]
    %v708 = vld [vmem:[%s706 + $0x4] sm:$0xf]
    %v709 = vld [vmem:[%s706 + $0x8] sm:$0xf]
    %v710 = vld [vmem:[%s706 + $0xc] sm:$0xf]
    %v711 = vpack.c.bf16 %v704, %v702
    %v716 = vunpack.c.l.b16 %v707
    %v717 = vunpack.c.l.b16 %v708
    %v718 = vunpack.c.l.b16 %v709
    %v719 = vunpack.c.l.b16 %v710
    %v720 = vpack.c.b16 %v717, %v716
    %v721 = vpack.c.b16 %v719, %v718
    %v725 = vsel %vm104, %v711, 0
    %727 = vmatpush.bf16.msra.mxu0 0
    %728 = vmatpush.bf16.msra.mxu0 0
    %729 = vmatpush.bf16.msra.mxu0 0
    %730 = vmatpush.bf16.msra.mxu0 0
    %731 = vmatpush.bf16.msra.mxu0 0
    %732 = vmatpush.bf16.msra.mxu0 0
    %733 = vmatpush.bf16.msra.mxu0 %v721
    %734 = vmatpush.bf16.msra.mxu0 %v720
    %735 = vmatmul.bf16.gmra.mxu0 %v725
    %v736 = vpop.f32.mrf.mxu0
    %v737 = vadd.f32 0.0, %v736
    %v738 = vpop.f32.mrf.mxu0
    %v739 = vadd.f32 0.0, %v738
    %740 = vdwg.mxu0
    %v741 = vmul.f32 %v737, %v737
    %v742 = vmul.f32 %v739, %v739
    %v743 = vsel %vm203, %v741, 0.0
    %744 = vadd.xlane.f32.xlu0 %v743
    %v745 = vpop.xlane.xlu0 %744
    %v746 = vsel %vm203, %v742, 0.0
    %747 = vadd.xlane.f32.xlu0 %v746
    %v748 = vpop.xlane.xlu0 %747
    %v749 = vadd.f32 %v745, 1e-12
    %v750 = vadd.f32 %v748, 1e-12
    %v751 = vrsqrt.pop %v749
    %v752 = vmul.f32 %v751, %v749
    %v753 = vmul.f32 %v752, %v751
    %v754 = vmul.f32 0.5, %v753
    %v755 = vsub.f32 1.5, %v754
    %v756 = vmul.f32 %v751, %v755
    %vm757 = vweird.f32 %v749
    %vm758 = vweird.f32 %v751
    %vm759 = vmor %vm757, %vm758
    %v760 = vsel %vm759, %v751, %v756
    %v761 = vrsqrt.pop %v750
    %v762 = vmul.f32 %v761, %v750
    %v763 = vmul.f32 %v762, %v761
    %v764 = vmul.f32 0.5, %v763
    %v765 = vsub.f32 1.5, %v764
    %v766 = vmul.f32 %v761, %v765
    %vm767 = vweird.f32 %v750
    %vm768 = vweird.f32 %v761
    %vm769 = vmor %vm767, %vm768
    %v770 = vsel %vm769, %v761, %v766
    %v771 = vmul.f32 %v737, %v760
    %v772 = vmul.f32 %v739, %v770
    %775 = vrot.lane.b32.xlu0 %v741, 96
    %v776 = vpop.permute.xlu0 %775
    %777 = vrot.lane.b32.xlu0 %v742, 96
    %v778 = vpop.permute.xlu0 %777
    %v781 = vsel %vm203, %v776, 0.0
    %782 = vadd.xlane.f32.xlu0 %v781
    %v783 = vpop.xlane.xlu0 %782
    %v784 = vsel %vm203, %v778, 0.0
    %785 = vadd.xlane.f32.xlu0 %v784
    %v786 = vpop.xlane.xlu0 %785
    %v787 = vadd.f32 %v783, 1e-12
    %v788 = vadd.f32 %v786, 1e-12
    %v789 = vrsqrt.pop %v787
    %v790 = vmul.f32 %v789, %v787
    %v791 = vmul.f32 %v790, %v789
    %v792 = vmul.f32 0.5, %v791
    %v793 = vsub.f32 1.5, %v792
    %v794 = vmul.f32 %v789, %v793
    %vm795 = vweird.f32 %v787
    %vm796 = vweird.f32 %v789
    %vm797 = vmor %vm795, %vm796
    %v798 = vsel %vm797, %v789, %v794
    %v799 = vrsqrt.pop %v788
    %v800 = vmul.f32 %v799, %v788
    %v801 = vmul.f32 %v800, %v799
    %v802 = vmul.f32 0.5, %v801
    %v803 = vsub.f32 1.5, %v802
    %v804 = vmul.f32 %v799, %v803
    %vm805 = vweird.f32 %v788
    %vm806 = vweird.f32 %v799
    %vm807 = vmor %vm805, %vm806
    %v808 = vsel %vm807, %v799, %v804
    %v809 = vmul.f32 %v737, %v798
    %v810 = vmul.f32 %v739, %v808
    %v811 = vpack.c.bf16 %v771, %v771
    %v812 = vpack.c.bf16 %v772, %v772
    %v813 = vpack.c.bf16 %v809, %v809
    %v814 = vpack.c.bf16 %v810, %v810
    %v816 = vunpack.c.l.b16 %v813
    %v817 = vpack.c.b16 %v816, %v816
    %818 = vrot.lane.b32.xlu0 %v817, 96
    %v819 = vpop.permute.xlu0 %818
    %v821 = vsel %vm203, %v811, 0
    %v824 = vsel %vm203, %v819, 0
    %826 = vmatpush.bf16.xpose.msra.mxu0 0
    %827 = vmatpush.bf16.xpose.msra.mxu0 0
    %828 = vmatpush.bf16.xpose.msra.mxu0 0
    %829 = vmatpush.bf16.xpose.msra.mxu0 0
    %830 = vmatpush.bf16.xpose.msra.mxu0 0
    %831 = vmatpush.bf16.xpose.msra.mxu0 0
    %832 = vmatpush.bf16.xpose.msra.mxu0 0
    %833 = vmatpush.bf16.xpose.msra.mxu0 %v824
    %834 = vmatmul.bf16.gmra.mxu0 %v821
    %v835 = vpop.f32.mrf.mxu0
    %v836 = vadd.f32 0.0, %v835
    %v837 = vpop.f32.mrf.mxu0
    %838 = vdwg.mxu0
    %v840 = vunpack.c.l.b16 %v814
    %v841 = vpack.c.b16 %v840, %v840
    %842 = vrot.lane.b32.xlu0 %v841, 96
    %v843 = vpop.permute.xlu0 %842
    %v845 = vsel %vm203, %v812, 0
    %v848 = vsel %vm203, %v843, 0
    %850 = vmatpush.bf16.xpose.msra.mxu0 0
    %851 = vmatpush.bf16.xpose.msra.mxu0 0
    %852 = vmatpush.bf16.xpose.msra.mxu0 0
    %853 = vmatpush.bf16.xpose.msra.mxu0 0
    %854 = vmatpush.bf16.xpose.msra.mxu0 0
    %855 = vmatpush.bf16.xpose.msra.mxu0 0
    %856 = vmatpush.bf16.xpose.msra.mxu0 0
    %857 = vmatpush.bf16.xpose.msra.mxu0 %v848
    %858 = vmatmul.bf16.gmra.mxu0 %v845
    %v859 = vpop.f32.mrf.mxu0
    %v860 = vadd.f32 0.0, %v859
    %v861 = vpop.f32.mrf.mxu0
    %862 = vdwg.mxu0
    %v863 = vmul.f32 %v836, 10.0
    %v864 = vmul.f32 %v860, 10.0
    %v865 = vsel %vm327, %v863, -1e+30
    %v866 = vsel %vm327, %v864, -1e+30
    %v867 = vsel %vm330, %v865, -inf
    %868 = vmax.xlane.f32.xlu0 %v867
    %v869 = vpop.xlane.xlu0 %868
    %v870 = vsel %vm330, %v866, -inf
    %871 = vmax.xlane.f32.xlu0 %v870
    %v872 = vpop.xlane.xlu0 %871
    %v873 = vsub.f32 %v865, %v869
    %v874 = vsub.f32 %v866, %v872
    %v875 = vmul.f32 %v873, 1.442695
    %v876 = vpow.pop %v875
    %v877 = vmul.f32 %v874, 1.442695
    %v878 = vpow.pop %v877
    %v879 = vsel %vm330, %v876, 0.0
    %880 = vadd.xlane.f32.xlu0 %v879
    %v881 = vpop.xlane.xlu0 %880
    %v882 = vsel %vm330, %v878, 0.0
    %883 = vadd.xlane.f32.xlu0 %v882
    %v884 = vpop.xlane.xlu0 %883
    %v885 = vrcp.pop %v881
    %v886 = vmul.f32 %v881, %v885
    %v887 = vsub.f32 1.0, %v886
    %v888 = vmul.f32 %v885, %v887
    %v889 = vadd.f32 %v885, %v888
    %vm890 = vweird.f32 %v881
    %vm891 = vweird.f32 %v885
    %vm892 = vmor %vm890, %vm891
    %v893 = vsel %vm892, %v885, %v889
    %v894 = vand.u32 2147483647, %v881
    %vm895 = vcmp.eq.f32.partialorder %v894, 8.507059e+37
    %v896 = vand.u32 %v881, 2147483648
    %v897 = vor.u32 1.1754944e-38, %v896
    %v898 = vsel %vm895, %v897, %v893
    %v899 = vmul.f32 %v876, %v898
    %v900 = vrcp.pop %v884
    %v901 = vmul.f32 %v884, %v900
    %v902 = vsub.f32 1.0, %v901
    %v903 = vmul.f32 %v900, %v902
    %v904 = vadd.f32 %v900, %v903
    %vm905 = vweird.f32 %v884
    %vm906 = vweird.f32 %v900
    %vm907 = vmor %vm905, %vm906
    %v908 = vsel %vm907, %v900, %v904
    %v909 = vand.u32 2147483647, %v884
    %vm910 = vcmp.eq.f32.partialorder %v909, 8.507059e+37
    %v911 = vand.u32 %v884, 2147483648
    %v912 = vor.u32 1.1754944e-38, %v911
    %v913 = vsel %vm910, %v912, %v908
    %v914 = vmul.f32 %v878, %v913
    %v915 = vpack.c.bf16 %v899, %v899
    %v916 = vpack.c.bf16 %v914, %v914
    %v917 = vpack.c.bf16 %v737, %v737
    %v918 = vpack.c.bf16 %v739, %v739
    %v920 = vunpack.c.l.b16 %v917
    %v921 = vpack.c.b16 %v920, %v920
    %922 = vrot.lane.b32.xlu0 %v921, 64
    %v923 = vpop.permute.xlu0 %922
    %v925 = vsel %vm330, %v915, 0
    %v928 = vsel %vm391, %v923, 0
    %930 = vmatpush.bf16.msra.mxu0 0
    %931 = vmatpush.bf16.msra.mxu0 0
    %932 = vmatpush.bf16.msra.mxu0 0
    %933 = vmatpush.bf16.msra.mxu0 0
    %934 = vmatpush.bf16.msra.mxu0 0
    %935 = vmatpush.bf16.msra.mxu0 0
    %936 = vmatpush.bf16.msra.mxu0 0
    %937 = vmatpush.bf16.msra.mxu0 %v928
    %938 = vmatmul.bf16.gmra.mxu0 %v925
    %v939 = vpop.f32.mrf.mxu0
    %v940 = vadd.f32 0.0, %v939
    %v941 = vpop.f32.mrf.mxu0
    %942 = vdwg.mxu0
    %v944 = vunpack.c.l.b16 %v918
    %v945 = vpack.c.b16 %v944, %v944
    %946 = vrot.lane.b32.xlu0 %v945, 64
    %v947 = vpop.permute.xlu0 %946
    %v949 = vsel %vm330, %v916, 0
    %v952 = vsel %vm391, %v947, 0
    %954 = vmatpush.bf16.msra.mxu0 0
    %955 = vmatpush.bf16.msra.mxu0 0
    %956 = vmatpush.bf16.msra.mxu0 0
    %957 = vmatpush.bf16.msra.mxu0 0
    %958 = vmatpush.bf16.msra.mxu0 0
    %959 = vmatpush.bf16.msra.mxu0 0
    %960 = vmatpush.bf16.msra.mxu0 0
    %961 = vmatpush.bf16.msra.mxu0 %v952
    %962 = vmatmul.bf16.gmra.mxu0 %v949
    %v963 = vpop.f32.mrf.mxu0
    %v964 = vadd.f32 0.0, %v963
    %v965 = vpop.f32.mrf.mxu0
    %966 = vdwg.mxu0
    %967 = vrot.lane.b32.xlu0 %v741, 112
    %v968 = vpop.permute.xlu0 %967
    %969 = vrot.lane.b32.xlu0 %v742, 112
    %v970 = vpop.permute.xlu0 %969
    %v973 = vsel %vm203, %v968, 0.0
    %974 = vadd.xlane.f32.xlu0 %v973
    %v975 = vpop.xlane.xlu0 %974
    %v976 = vsel %vm203, %v970, 0.0
    %977 = vadd.xlane.f32.xlu0 %v976
    %v978 = vpop.xlane.xlu0 %977
    %v979 = vadd.f32 %v975, 1e-12
    %v980 = vadd.f32 %v978, 1e-12
    %v981 = vrsqrt.pop %v979
    %v982 = vmul.f32 %v981, %v979
    %v983 = vmul.f32 %v982, %v981
    %v984 = vmul.f32 0.5, %v983
    %v985 = vsub.f32 1.5, %v984
    %v986 = vmul.f32 %v981, %v985
    %vm987 = vweird.f32 %v979
    %vm988 = vweird.f32 %v981
    %vm989 = vmor %vm987, %vm988
    %v990 = vsel %vm989, %v981, %v986
    %v991 = vrsqrt.pop %v980
    %v992 = vmul.f32 %v991, %v980
    %v993 = vmul.f32 %v992, %v991
    %v994 = vmul.f32 0.5, %v993
    %v995 = vsub.f32 1.5, %v994
    %v996 = vmul.f32 %v991, %v995
    %vm997 = vweird.f32 %v980
    %vm998 = vweird.f32 %v991
    %vm999 = vmor %vm997, %vm998
    %v1000 = vsel %vm999, %v991, %v996
    %v1001 = vmul.f32 %v737, %v990
    %v1002 = vmul.f32 %v739, %v1000
    %1003 = vrot.lane.b32.xlu0 %v741, 80
    %v1004 = vpop.permute.xlu0 %1003
    %1005 = vrot.lane.b32.xlu0 %v742, 80
    %v1006 = vpop.permute.xlu0 %1005
    %v1009 = vsel %vm203, %v1004, 0.0
    %1010 = vadd.xlane.f32.xlu0 %v1009
    %v1011 = vpop.xlane.xlu0 %1010
    %v1012 = vsel %vm203, %v1006, 0.0
    %1013 = vadd.xlane.f32.xlu0 %v1012
    %v1014 = vpop.xlane.xlu0 %1013
    %v1015 = vadd.f32 %v1011, 1e-12
    %v1016 = vadd.f32 %v1014, 1e-12
    %v1017 = vrsqrt.pop %v1015
    %v1018 = vmul.f32 %v1017, %v1015
    %v1019 = vmul.f32 %v1018, %v1017
    %v1020 = vmul.f32 0.5, %v1019
    %v1021 = vsub.f32 1.5, %v1020
    %v1022 = vmul.f32 %v1017, %v1021
    %vm1023 = vweird.f32 %v1015
    %vm1024 = vweird.f32 %v1017
    %vm1025 = vmor %vm1023, %vm1024
    %v1026 = vsel %vm1025, %v1017, %v1022
    %v1027 = vrsqrt.pop %v1016
    %v1028 = vmul.f32 %v1027, %v1016
    %v1029 = vmul.f32 %v1028, %v1027
    %v1030 = vmul.f32 0.5, %v1029
    %v1031 = vsub.f32 1.5, %v1030
    %v1032 = vmul.f32 %v1027, %v1031
    %vm1033 = vweird.f32 %v1016
    %vm1034 = vweird.f32 %v1027
    %vm1035 = vmor %vm1033, %vm1034
    %v1036 = vsel %vm1035, %v1027, %v1032
    %v1037 = vmul.f32 %v737, %v1026
    %v1038 = vmul.f32 %v739, %v1036
    %v1039 = vpack.c.bf16 %v1001, %v1001
    %v1040 = vpack.c.bf16 %v1002, %v1002
    %v1041 = vpack.c.bf16 %v1037, %v1037
    %v1042 = vpack.c.bf16 %v1038, %v1038
    %v1044 = vunpack.c.l.b16 %v1039
    %v1045 = vpack.c.b16 %v1044, %v1044
    %1046 = vrot.lane.b32.xlu0 %v1045, 112
    %v1047 = vpop.permute.xlu0 %1046
    %v1049 = vunpack.c.l.b16 %v1041
    %v1050 = vpack.c.b16 %v1049, %v1049
    %1051 = vrot.lane.b32.xlu0 %v1050, 80
    %v1052 = vpop.permute.xlu0 %1051
    %v1054 = vsel %vm203, %v1047, 0
    %v1057 = vsel %vm203, %v1052, 0
    %1059 = vmatpush.bf16.xpose.msra.mxu0 0
    %1060 = vmatpush.bf16.xpose.msra.mxu0 0
    %1061 = vmatpush.bf16.xpose.msra.mxu0 0
    %1062 = vmatpush.bf16.xpose.msra.mxu0 0
    %1063 = vmatpush.bf16.xpose.msra.mxu0 0
    %1064 = vmatpush.bf16.xpose.msra.mxu0 0
    %1065 = vmatpush.bf16.xpose.msra.mxu0 0
    %1066 = vmatpush.bf16.xpose.msra.mxu0 %v1057
    %1067 = vmatmul.bf16.gmra.mxu0 %v1054
    %v1068 = vpop.f32.mrf.mxu0
    %v1069 = vadd.f32 0.0, %v1068
    %v1070 = vpop.f32.mrf.mxu0
    %1071 = vdwg.mxu0
    %v1073 = vunpack.c.l.b16 %v1040
    %v1074 = vpack.c.b16 %v1073, %v1073
    %1075 = vrot.lane.b32.xlu0 %v1074, 112
    %v1076 = vpop.permute.xlu0 %1075
    %v1078 = vunpack.c.l.b16 %v1042
    %v1079 = vpack.c.b16 %v1078, %v1078
    %1080 = vrot.lane.b32.xlu0 %v1079, 80
    %v1081 = vpop.permute.xlu0 %1080
    %v1083 = vsel %vm203, %v1076, 0
    %v1086 = vsel %vm203, %v1081, 0
    %1088 = vmatpush.bf16.xpose.msra.mxu0 0
    %1089 = vmatpush.bf16.xpose.msra.mxu0 0
    %1090 = vmatpush.bf16.xpose.msra.mxu0 0
    %1091 = vmatpush.bf16.xpose.msra.mxu0 0
    %1092 = vmatpush.bf16.xpose.msra.mxu0 0
    %1093 = vmatpush.bf16.xpose.msra.mxu0 0
    %1094 = vmatpush.bf16.xpose.msra.mxu0 0
    %1095 = vmatpush.bf16.xpose.msra.mxu0 %v1086
    %1096 = vmatmul.bf16.gmra.mxu0 %v1083
    %v1097 = vpop.f32.mrf.mxu0
    %v1098 = vadd.f32 0.0, %v1097
    %v1099 = vpop.f32.mrf.mxu0
    %1100 = vdwg.mxu0
    %v1101 = vmul.f32 %v1069, 10.0
    %v1102 = vmul.f32 %v1098, 10.0
    %v1103 = vsel %vm327, %v1101, -1e+30
    %v1104 = vsel %vm327, %v1102, -1e+30
    %v1105 = vsel %vm330, %v1103, -inf
    %1106 = vmax.xlane.f32.xlu0 %v1105
    %v1107 = vpop.xlane.xlu0 %1106
    %v1108 = vsel %vm330, %v1104, -inf
    %1109 = vmax.xlane.f32.xlu0 %v1108
    %v1110 = vpop.xlane.xlu0 %1109
    %v1111 = vsub.f32 %v1103, %v1107
    %v1112 = vsub.f32 %v1104, %v1110
    %v1113 = vmul.f32 %v1111, 1.442695
    %v1114 = vpow.pop %v1113
    %v1115 = vmul.f32 %v1112, 1.442695
    %v1116 = vpow.pop %v1115
    %v1117 = vsel %vm330, %v1114, 0.0
    %1118 = vadd.xlane.f32.xlu0 %v1117
    %v1119 = vpop.xlane.xlu0 %1118
    %v1120 = vsel %vm330, %v1116, 0.0
    %1121 = vadd.xlane.f32.xlu0 %v1120
    %v1122 = vpop.xlane.xlu0 %1121
    %v1123 = vrcp.pop %v1119
    %v1124 = vmul.f32 %v1119, %v1123
    %v1125 = vsub.f32 1.0, %v1124
    %v1126 = vmul.f32 %v1123, %v1125
    %v1127 = vadd.f32 %v1123, %v1126
    %vm1128 = vweird.f32 %v1119
    %vm1129 = vweird.f32 %v1123
    %vm1130 = vmor %vm1128, %vm1129
    %v1131 = vsel %vm1130, %v1123, %v1127
    %v1132 = vand.u32 2147483647, %v1119
    %vm1133 = vcmp.eq.f32.partialorder %v1132, 8.507059e+37
    %v1134 = vand.u32 %v1119, 2147483648
    %v1135 = vor.u32 1.1754944e-38, %v1134
    %v1136 = vsel %vm1133, %v1135, %v1131
    %v1137 = vmul.f32 %v1114, %v1136
    %v1138 = vrcp.pop %v1122
    %v1139 = vmul.f32 %v1122, %v1138
    %v1140 = vsub.f32 1.0, %v1139
    %v1141 = vmul.f32 %v1138, %v1140
    %v1142 = vadd.f32 %v1138, %v1141
    %vm1143 = vweird.f32 %v1122
    %vm1144 = vweird.f32 %v1138
    %vm1145 = vmor %vm1143, %vm1144
    %v1146 = vsel %vm1145, %v1138, %v1142
    %v1147 = vand.u32 2147483647, %v1122
    %vm1148 = vcmp.eq.f32.partialorder %v1147, 8.507059e+37
    %v1149 = vand.u32 %v1122, 2147483648
    %v1150 = vor.u32 1.1754944e-38, %v1149
    %v1151 = vsel %vm1148, %v1150, %v1146
    %v1152 = vmul.f32 %v1116, %v1151
    %v1153 = vpack.c.bf16 %v1137, %v1137
    %v1154 = vpack.c.bf16 %v1152, %v1152
    %1155 = vrot.lane.b32.xlu0 %v921, 48
    %v1156 = vpop.permute.xlu0 %1155
    %v1158 = vsel %vm330, %v1153, 0
    %v1161 = vsel %vm391, %v1156, 0
    %1163 = vmatpush.bf16.msra.mxu0 0
    %1164 = vmatpush.bf16.msra.mxu0 0
    %1165 = vmatpush.bf16.msra.mxu0 0
    %1166 = vmatpush.bf16.msra.mxu0 0
    %1167 = vmatpush.bf16.msra.mxu0 0
    %1168 = vmatpush.bf16.msra.mxu0 0
    %1169 = vmatpush.bf16.msra.mxu0 0
    %1170 = vmatpush.bf16.msra.mxu0 %v1161
    %1171 = vmatmul.bf16.gmra.mxu0 %v1158
    %v1172 = vpop.f32.mrf.mxu0
    %v1173 = vadd.f32 0.0, %v1172
    %v1174 = vpop.f32.mrf.mxu0
    %1175 = vdwg.mxu0
    %1176 = vrot.lane.b32.xlu0 %v945, 48
    %v1177 = vpop.permute.xlu0 %1176
    %v1179 = vsel %vm330, %v1154, 0
    %v1182 = vsel %vm391, %v1177, 0
    %1184 = vmatpush.bf16.msra.mxu0 0
    %1185 = vmatpush.bf16.msra.mxu0 0
    %1186 = vmatpush.bf16.msra.mxu0 0
    %1187 = vmatpush.bf16.msra.mxu0 0
    %1188 = vmatpush.bf16.msra.mxu0 0
    %1189 = vmatpush.bf16.msra.mxu0 0
    %1190 = vmatpush.bf16.msra.mxu0 0
    %1191 = vmatpush.bf16.msra.mxu0 %v1182
    %1192 = vmatmul.bf16.gmra.mxu0 %v1179
    %v1193 = vpop.f32.mrf.mxu0
    %v1194 = vadd.f32 0.0, %v1193
    %v1195 = vpop.f32.mrf.mxu0
    %1196 = vdwg.mxu0
    %1199 = vrot.lane.b32.xlu0 %v1173, 16
    %v1200 = vpop.permute.xlu0 %1199
    %1201 = vrot.lane.b32.xlu0 %v1194, 16
    %v1202 = vpop.permute.xlu0 %1201
    %v1205 = vsel %vm203, %v940, %v1200
    %v1206 = vsel %vm203, %v964, %v1202
    %s1207 = scalar_lea.vmem %s3, 16
    %v1208 = vld [vmem:[%s1207] sm:$0xf]
    %v1209 = vld [vmem:[%s1207 + $0x4] sm:$0xf]
    %v1210 = vld [vmem:[%s1207 + $0x8] sm:$0xf]
    %v1211 = vld [vmem:[%s1207 + $0xc] sm:$0xf]
    %v1212 = vpack.c.bf16 %v1206, %v1205
    %v1217 = vunpack.c.l.b16 %v1208
    %v1218 = vunpack.c.l.b16 %v1209
    %v1219 = vunpack.c.l.b16 %v1210
    %v1220 = vunpack.c.l.b16 %v1211
    %v1221 = vpack.c.b16 %v1218, %v1217
    %v1222 = vpack.c.b16 %v1220, %v1219
    %v1226 = vsel %vm104, %v1212, 0
    %1228 = vmatpush.bf16.msra.mxu0 0
    %1229 = vmatpush.bf16.msra.mxu0 0
    %1230 = vmatpush.bf16.msra.mxu0 0
    %1231 = vmatpush.bf16.msra.mxu0 0
    %1232 = vmatpush.bf16.msra.mxu0 0
    %1233 = vmatpush.bf16.msra.mxu0 0
    %1234 = vmatpush.bf16.msra.mxu0 %v1222
    %1235 = vmatpush.bf16.msra.mxu0 %v1221
    %1236 = vmatmul.bf16.gmra.mxu0 %v1226
    %v1237 = vpop.f32.mrf.mxu0
    %v1238 = vadd.f32 0.0, %v1237
    %v1239 = vpop.f32.mrf.mxu0
    %v1240 = vadd.f32 0.0, %v1239
    %1241 = vdwg.mxu0
    %s1242 = scalar_lea.vmem %s2, 32
    %v1243 = vld [vmem:[%s1242] sm:$0xf]
    %v1244 = vld [vmem:[%s1242 + $0x4] sm:$0xf]
    %v1245 = vld [vmem:[%s1242 + $0x8] sm:$0xf]
    %v1246 = vld [vmem:[%s1242 + $0xc] sm:$0xf]
    %v1247 = vpack.c.bf16 %v1240, %v1238
    %v1252 = vunpack.c.l.b16 %v1243
    %v1253 = vunpack.c.l.b16 %v1244
    %v1254 = vunpack.c.l.b16 %v1245
    %v1255 = vunpack.c.l.b16 %v1246
    %v1256 = vpack.c.b16 %v1253, %v1252
    %v1257 = vpack.c.b16 %v1255, %v1254
    %v1261 = vsel %vm104, %v1247, 0
    %1263 = vmatpush.bf16.msra.mxu0 0
    %1264 = vmatpush.bf16.msra.mxu0 0
    %1265 = vmatpush.bf16.msra.mxu0 0
    %1266 = vmatpush.bf16.msra.mxu0 0
    %1267 = vmatpush.bf16.msra.mxu0 0
    %1268 = vmatpush.bf16.msra.mxu0 0
    %1269 = vmatpush.bf16.msra.mxu0 %v1257
    %1270 = vmatpush.bf16.msra.mxu0 %v1256
    %1271 = vmatmul.bf16.gmra.mxu0 %v1261
    %v1272 = vpop.f32.mrf.mxu0
    %v1273 = vadd.f32 0.0, %v1272
    %v1274 = vpop.f32.mrf.mxu0
    %v1275 = vadd.f32 0.0, %v1274
    %1276 = vdwg.mxu0
    %v1277 = vmul.f32 %v1273, %v1273
    %v1278 = vmul.f32 %v1275, %v1275
    %v1279 = vsel %vm203, %v1277, 0.0
    %1280 = vadd.xlane.f32.xlu0 %v1279
    %v1281 = vpop.xlane.xlu0 %1280
    %v1282 = vsel %vm203, %v1278, 0.0
    %1283 = vadd.xlane.f32.xlu0 %v1282
    %v1284 = vpop.xlane.xlu0 %1283
    %v1285 = vadd.f32 %v1281, 1e-12
    %v1286 = vadd.f32 %v1284, 1e-12
    %v1287 = vrsqrt.pop %v1285
    %v1288 = vmul.f32 %v1287, %v1285
    %v1289 = vmul.f32 %v1288, %v1287
    %v1290 = vmul.f32 0.5, %v1289
    %v1291 = vsub.f32 1.5, %v1290
    %v1292 = vmul.f32 %v1287, %v1291
    %vm1293 = vweird.f32 %v1285
    %vm1294 = vweird.f32 %v1287
    %vm1295 = vmor %vm1293, %vm1294
    %v1296 = vsel %vm1295, %v1287, %v1292
    %v1297 = vrsqrt.pop %v1286
    %v1298 = vmul.f32 %v1297, %v1286
    %v1299 = vmul.f32 %v1298, %v1297
    %v1300 = vmul.f32 0.5, %v1299
    %v1301 = vsub.f32 1.5, %v1300
    %v1302 = vmul.f32 %v1297, %v1301
    %vm1303 = vweird.f32 %v1286
    %vm1304 = vweird.f32 %v1297
    %vm1305 = vmor %vm1303, %vm1304
    %v1306 = vsel %vm1305, %v1297, %v1302
    %v1307 = vmul.f32 %v1273, %v1296
    %v1308 = vmul.f32 %v1275, %v1306
    %1311 = vrot.lane.b32.xlu0 %v1277, 96
    %v1312 = vpop.permute.xlu0 %1311
    %1313 = vrot.lane.b32.xlu0 %v1278, 96
    %v1314 = vpop.permute.xlu0 %1313
    %v1317 = vsel %vm203, %v1312, 0.0
    %1318 = vadd.xlane.f32.xlu0 %v1317
    %v1319 = vpop.xlane.xlu0 %1318
    %v1320 = vsel %vm203, %v1314, 0.0
    %1321 = vadd.xlane.f32.xlu0 %v1320
    %v1322 = vpop.xlane.xlu0 %1321
    %v1323 = vadd.f32 %v1319, 1e-12
    %v1324 = vadd.f32 %v1322, 1e-12
    %v1325 = vrsqrt.pop %v1323
    %v1326 = vmul.f32 %v1325, %v1323
    %v1327 = vmul.f32 %v1326, %v1325
    %v1328 = vmul.f32 0.5, %v1327
    %v1329 = vsub.f32 1.5, %v1328
    %v1330 = vmul.f32 %v1325, %v1329
    %vm1331 = vweird.f32 %v1323
    %vm1332 = vweird.f32 %v1325
    %vm1333 = vmor %vm1331, %vm1332
    %v1334 = vsel %vm1333, %v1325, %v1330
    %v1335 = vrsqrt.pop %v1324
    %v1336 = vmul.f32 %v1335, %v1324
    %v1337 = vmul.f32 %v1336, %v1335
    %v1338 = vmul.f32 0.5, %v1337
    %v1339 = vsub.f32 1.5, %v1338
    %v1340 = vmul.f32 %v1335, %v1339
    %vm1341 = vweird.f32 %v1324
    %vm1342 = vweird.f32 %v1335
    %vm1343 = vmor %vm1341, %vm1342
    %v1344 = vsel %vm1343, %v1335, %v1340
    %v1345 = vmul.f32 %v1273, %v1334
    %v1346 = vmul.f32 %v1275, %v1344
    %v1347 = vpack.c.bf16 %v1307, %v1307
    %v1348 = vpack.c.bf16 %v1308, %v1308
    %v1349 = vpack.c.bf16 %v1345, %v1345
    %v1350 = vpack.c.bf16 %v1346, %v1346
    %v1352 = vunpack.c.l.b16 %v1349
    %v1353 = vpack.c.b16 %v1352, %v1352
    %1354 = vrot.lane.b32.xlu0 %v1353, 96
    %v1355 = vpop.permute.xlu0 %1354
    %v1357 = vsel %vm203, %v1347, 0
    %v1360 = vsel %vm203, %v1355, 0
    %1362 = vmatpush.bf16.xpose.msra.mxu0 0
    %1363 = vmatpush.bf16.xpose.msra.mxu0 0
    %1364 = vmatpush.bf16.xpose.msra.mxu0 0
    %1365 = vmatpush.bf16.xpose.msra.mxu0 0
    %1366 = vmatpush.bf16.xpose.msra.mxu0 0
    %1367 = vmatpush.bf16.xpose.msra.mxu0 0
    %1368 = vmatpush.bf16.xpose.msra.mxu0 0
    %1369 = vmatpush.bf16.xpose.msra.mxu0 %v1360
    %1370 = vmatmul.bf16.gmra.mxu0 %v1357
    %v1371 = vpop.f32.mrf.mxu0
    %v1372 = vadd.f32 0.0, %v1371
    %v1373 = vpop.f32.mrf.mxu0
    %1374 = vdwg.mxu0
    %v1376 = vunpack.c.l.b16 %v1350
    %v1377 = vpack.c.b16 %v1376, %v1376
    %1378 = vrot.lane.b32.xlu0 %v1377, 96
    %v1379 = vpop.permute.xlu0 %1378
    %v1381 = vsel %vm203, %v1348, 0
    %v1384 = vsel %vm203, %v1379, 0
    %1386 = vmatpush.bf16.xpose.msra.mxu0 0
    %1387 = vmatpush.bf16.xpose.msra.mxu0 0
    %1388 = vmatpush.bf16.xpose.msra.mxu0 0
    %1389 = vmatpush.bf16.xpose.msra.mxu0 0
    %1390 = vmatpush.bf16.xpose.msra.mxu0 0
    %1391 = vmatpush.bf16.xpose.msra.mxu0 0
    %1392 = vmatpush.bf16.xpose.msra.mxu0 0
    %1393 = vmatpush.bf16.xpose.msra.mxu0 %v1384
    %1394 = vmatmul.bf16.gmra.mxu0 %v1381
    %v1395 = vpop.f32.mrf.mxu0
    %v1396 = vadd.f32 0.0, %v1395
    %v1397 = vpop.f32.mrf.mxu0
    %1398 = vdwg.mxu0
    %v1399 = vmul.f32 %v1372, 10.0
    %v1400 = vmul.f32 %v1396, 10.0
    %v1401 = vsel %vm327, %v1399, -1e+30
    %v1402 = vsel %vm327, %v1400, -1e+30
    %v1403 = vsel %vm330, %v1401, -inf
    %1404 = vmax.xlane.f32.xlu0 %v1403
    %v1405 = vpop.xlane.xlu0 %1404
    %v1406 = vsel %vm330, %v1402, -inf
    %1407 = vmax.xlane.f32.xlu0 %v1406
    %v1408 = vpop.xlane.xlu0 %1407
    %v1409 = vsub.f32 %v1401, %v1405
    %v1410 = vsub.f32 %v1402, %v1408
    %v1411 = vmul.f32 %v1409, 1.442695
    %v1412 = vpow.pop %v1411
    %v1413 = vmul.f32 %v1410, 1.442695
    %v1414 = vpow.pop %v1413
    %v1415 = vsel %vm330, %v1412, 0.0
    %1416 = vadd.xlane.f32.xlu0 %v1415
    %v1417 = vpop.xlane.xlu0 %1416
    %v1418 = vsel %vm330, %v1414, 0.0
    %1419 = vadd.xlane.f32.xlu0 %v1418
    %v1420 = vpop.xlane.xlu0 %1419
    %v1421 = vrcp.pop %v1417
    %v1422 = vmul.f32 %v1417, %v1421
    %v1423 = vsub.f32 1.0, %v1422
    %v1424 = vmul.f32 %v1421, %v1423
    %v1425 = vadd.f32 %v1421, %v1424
    %vm1426 = vweird.f32 %v1417
    %vm1427 = vweird.f32 %v1421
    %vm1428 = vmor %vm1426, %vm1427
    %v1429 = vsel %vm1428, %v1421, %v1425
    %v1430 = vand.u32 2147483647, %v1417
    %vm1431 = vcmp.eq.f32.partialorder %v1430, 8.507059e+37
    %v1432 = vand.u32 %v1417, 2147483648
    %v1433 = vor.u32 1.1754944e-38, %v1432
    %v1434 = vsel %vm1431, %v1433, %v1429
    %v1435 = vmul.f32 %v1412, %v1434
    %v1436 = vrcp.pop %v1420
    %v1437 = vmul.f32 %v1420, %v1436
    %v1438 = vsub.f32 1.0, %v1437
    %v1439 = vmul.f32 %v1436, %v1438
    %v1440 = vadd.f32 %v1436, %v1439
    %vm1441 = vweird.f32 %v1420
    %vm1442 = vweird.f32 %v1436
    %vm1443 = vmor %vm1441, %vm1442
    %v1444 = vsel %vm1443, %v1436, %v1440
    %v1445 = vand.u32 2147483647, %v1420
    %vm1446 = vcmp.eq.f32.partialorder %v1445, 8.507059e+37
    %v1447 = vand.u32 %v1420, 2147483648
    %v1448 = vor.u32 1.1754944e-38, %v1447
    %v1449 = vsel %vm1446, %v1448, %v1444
    %v1450 = vmul.f32 %v1414, %v1449
    %v1451 = vpack.c.bf16 %v1435, %v1435
    %v1452 = vpack.c.bf16 %v1450, %v1450
    %v1453 = vpack.c.bf16 %v1273, %v1273
    %v1454 = vpack.c.bf16 %v1275, %v1275
    %v1456 = vunpack.c.l.b16 %v1453
    %v1457 = vpack.c.b16 %v1456, %v1456
    %1458 = vrot.lane.b32.xlu0 %v1457, 64
    %v1459 = vpop.permute.xlu0 %1458
    %v1461 = vsel %vm330, %v1451, 0
    %v1464 = vsel %vm391, %v1459, 0
    %1466 = vmatpush.bf16.msra.mxu0 0
    %1467 = vmatpush.bf16.msra.mxu0 0
    %1468 = vmatpush.bf16.msra.mxu0 0
    %1469 = vmatpush.bf16.msra.mxu0 0
    %1470 = vmatpush.bf16.msra.mxu0 0
    %1471 = vmatpush.bf16.msra.mxu0 0
    %1472 = vmatpush.bf16.msra.mxu0 0
    %1473 = vmatpush.bf16.msra.mxu0 %v1464
    %1474 = vmatmul.bf16.gmra.mxu0 %v1461
    %v1475 = vpop.f32.mrf.mxu0
    %v1476 = vadd.f32 0.0, %v1475
    %v1477 = vpop.f32.mrf.mxu0
    %1478 = vdwg.mxu0
    %v1480 = vunpack.c.l.b16 %v1454
    %v1481 = vpack.c.b16 %v1480, %v1480
    %1482 = vrot.lane.b32.xlu0 %v1481, 64
    %v1483 = vpop.permute.xlu0 %1482
    %v1485 = vsel %vm330, %v1452, 0
    %v1488 = vsel %vm391, %v1483, 0
    %1490 = vmatpush.bf16.msra.mxu0 0
    %1491 = vmatpush.bf16.msra.mxu0 0
    %1492 = vmatpush.bf16.msra.mxu0 0
    %1493 = vmatpush.bf16.msra.mxu0 0
    %1494 = vmatpush.bf16.msra.mxu0 0
    %1495 = vmatpush.bf16.msra.mxu0 0
    %1496 = vmatpush.bf16.msra.mxu0 0
    %1497 = vmatpush.bf16.msra.mxu0 %v1488
    %1498 = vmatmul.bf16.gmra.mxu0 %v1485
    %v1499 = vpop.f32.mrf.mxu0
    %v1500 = vadd.f32 0.0, %v1499
    %v1501 = vpop.f32.mrf.mxu0
    %1502 = vdwg.mxu0
    %1503 = vrot.lane.b32.xlu0 %v1277, 112
    %v1504 = vpop.permute.xlu0 %1503
    %1505 = vrot.lane.b32.xlu0 %v1278, 112
    %v1506 = vpop.permute.xlu0 %1505
    %v1509 = vsel %vm203, %v1504, 0.0
    %1510 = vadd.xlane.f32.xlu0 %v1509
    %v1511 = vpop.xlane.xlu0 %1510
    %v1512 = vsel %vm203, %v1506, 0.0
    %1513 = vadd.xlane.f32.xlu0 %v1512
    %v1514 = vpop.xlane.xlu0 %1513
    %v1515 = vadd.f32 %v1511, 1e-12
    %v1516 = vadd.f32 %v1514, 1e-12
    %v1517 = vrsqrt.pop %v1515
    %v1518 = vmul.f32 %v1517, %v1515
    %v1519 = vmul.f32 %v1518, %v1517
    %v1520 = vmul.f32 0.5, %v1519
    %v1521 = vsub.f32 1.5, %v1520
    %v1522 = vmul.f32 %v1517, %v1521
    %vm1523 = vweird.f32 %v1515
    %vm1524 = vweird.f32 %v1517
    %vm1525 = vmor %vm1523, %vm1524
    %v1526 = vsel %vm1525, %v1517, %v1522
    %v1527 = vrsqrt.pop %v1516
    %v1528 = vmul.f32 %v1527, %v1516
    %v1529 = vmul.f32 %v1528, %v1527
    %v1530 = vmul.f32 0.5, %v1529
    %v1531 = vsub.f32 1.5, %v1530
    %v1532 = vmul.f32 %v1527, %v1531
    %vm1533 = vweird.f32 %v1516
    %vm1534 = vweird.f32 %v1527
    %vm1535 = vmor %vm1533, %vm1534
    %v1536 = vsel %vm1535, %v1527, %v1532
    %v1537 = vmul.f32 %v1273, %v1526
    %v1538 = vmul.f32 %v1275, %v1536
    %1539 = vrot.lane.b32.xlu0 %v1277, 80
    %v1540 = vpop.permute.xlu0 %1539
    %1541 = vrot.lane.b32.xlu0 %v1278, 80
    %v1542 = vpop.permute.xlu0 %1541
    %v1545 = vsel %vm203, %v1540, 0.0
    %1546 = vadd.xlane.f32.xlu0 %v1545
    %v1547 = vpop.xlane.xlu0 %1546
    %v1548 = vsel %vm203, %v1542, 0.0
    %1549 = vadd.xlane.f32.xlu0 %v1548
    %v1550 = vpop.xlane.xlu0 %1549
    %v1551 = vadd.f32 %v1547, 1e-12
    %v1552 = vadd.f32 %v1550, 1e-12
    %v1553 = vrsqrt.pop %v1551
    %v1554 = vmul.f32 %v1553, %v1551
    %v1555 = vmul.f32 %v1554, %v1553
    %v1556 = vmul.f32 0.5, %v1555
    %v1557 = vsub.f32 1.5, %v1556
    %v1558 = vmul.f32 %v1553, %v1557
    %vm1559 = vweird.f32 %v1551
    %vm1560 = vweird.f32 %v1553
    %vm1561 = vmor %vm1559, %vm1560
    %v1562 = vsel %vm1561, %v1553, %v1558
    %v1563 = vrsqrt.pop %v1552
    %v1564 = vmul.f32 %v1563, %v1552
    %v1565 = vmul.f32 %v1564, %v1563
    %v1566 = vmul.f32 0.5, %v1565
    %v1567 = vsub.f32 1.5, %v1566
    %v1568 = vmul.f32 %v1563, %v1567
    %vm1569 = vweird.f32 %v1552
    %vm1570 = vweird.f32 %v1563
    %vm1571 = vmor %vm1569, %vm1570
    %v1572 = vsel %vm1571, %v1563, %v1568
    %v1573 = vmul.f32 %v1273, %v1562
    %v1574 = vmul.f32 %v1275, %v1572
    %v1575 = vpack.c.bf16 %v1537, %v1537
    %v1576 = vpack.c.bf16 %v1538, %v1538
    %v1577 = vpack.c.bf16 %v1573, %v1573
    %v1578 = vpack.c.bf16 %v1574, %v1574
    %v1580 = vunpack.c.l.b16 %v1575
    %v1581 = vpack.c.b16 %v1580, %v1580
    %1582 = vrot.lane.b32.xlu0 %v1581, 112
    %v1583 = vpop.permute.xlu0 %1582
    %v1585 = vunpack.c.l.b16 %v1577
    %v1586 = vpack.c.b16 %v1585, %v1585
    %1587 = vrot.lane.b32.xlu0 %v1586, 80
    %v1588 = vpop.permute.xlu0 %1587
    %v1590 = vsel %vm203, %v1583, 0
    %v1593 = vsel %vm203, %v1588, 0
    %1595 = vmatpush.bf16.xpose.msra.mxu0 0
    %1596 = vmatpush.bf16.xpose.msra.mxu0 0
    %1597 = vmatpush.bf16.xpose.msra.mxu0 0
    %1598 = vmatpush.bf16.xpose.msra.mxu0 0
    %1599 = vmatpush.bf16.xpose.msra.mxu0 0
    %1600 = vmatpush.bf16.xpose.msra.mxu0 0
    %1601 = vmatpush.bf16.xpose.msra.mxu0 0
    %1602 = vmatpush.bf16.xpose.msra.mxu0 %v1593
    %1603 = vmatmul.bf16.gmra.mxu0 %v1590
    %v1604 = vpop.f32.mrf.mxu0
    %v1605 = vadd.f32 0.0, %v1604
    %v1606 = vpop.f32.mrf.mxu0
    %1607 = vdwg.mxu0
    %v1609 = vunpack.c.l.b16 %v1576
    %v1610 = vpack.c.b16 %v1609, %v1609
    %1611 = vrot.lane.b32.xlu0 %v1610, 112
    %v1612 = vpop.permute.xlu0 %1611
    %v1614 = vunpack.c.l.b16 %v1578
    %v1615 = vpack.c.b16 %v1614, %v1614
    %1616 = vrot.lane.b32.xlu0 %v1615, 80
    %v1617 = vpop.permute.xlu0 %1616
    %v1619 = vsel %vm203, %v1612, 0
    %v1622 = vsel %vm203, %v1617, 0
    %1624 = vmatpush.bf16.xpose.msra.mxu0 0
    %1625 = vmatpush.bf16.xpose.msra.mxu0 0
    %1626 = vmatpush.bf16.xpose.msra.mxu0 0
    %1627 = vmatpush.bf16.xpose.msra.mxu0 0
    %1628 = vmatpush.bf16.xpose.msra.mxu0 0
    %1629 = vmatpush.bf16.xpose.msra.mxu0 0
    %1630 = vmatpush.bf16.xpose.msra.mxu0 0
    %1631 = vmatpush.bf16.xpose.msra.mxu0 %v1622
    %1632 = vmatmul.bf16.gmra.mxu0 %v1619
    %v1633 = vpop.f32.mrf.mxu0
    %v1634 = vadd.f32 0.0, %v1633
    %v1635 = vpop.f32.mrf.mxu0
    %1636 = vdwg.mxu0
    %v1637 = vmul.f32 %v1605, 10.0
    %v1638 = vmul.f32 %v1634, 10.0
    %v1639 = vsel %vm327, %v1637, -1e+30
    %v1640 = vsel %vm327, %v1638, -1e+30
    %v1641 = vsel %vm330, %v1639, -inf
    %1642 = vmax.xlane.f32.xlu0 %v1641
    %v1643 = vpop.xlane.xlu0 %1642
    %v1644 = vsel %vm330, %v1640, -inf
    %1645 = vmax.xlane.f32.xlu0 %v1644
    %v1646 = vpop.xlane.xlu0 %1645
    %v1647 = vsub.f32 %v1639, %v1643
    %v1648 = vsub.f32 %v1640, %v1646
    %v1649 = vmul.f32 %v1647, 1.442695
    %v1650 = vpow.pop %v1649
    %v1651 = vmul.f32 %v1648, 1.442695
    %v1652 = vpow.pop %v1651
    %v1653 = vsel %vm330, %v1650, 0.0
    %1654 = vadd.xlane.f32.xlu0 %v1653
    %v1655 = vpop.xlane.xlu0 %1654
    %v1656 = vsel %vm330, %v1652, 0.0
    %1657 = vadd.xlane.f32.xlu0 %v1656
    %v1658 = vpop.xlane.xlu0 %1657
    %v1659 = vrcp.pop %v1655
    %v1660 = vmul.f32 %v1655, %v1659
    %v1661 = vsub.f32 1.0, %v1660
    %v1662 = vmul.f32 %v1659, %v1661
    %v1663 = vadd.f32 %v1659, %v1662
    %vm1664 = vweird.f32 %v1655
    %vm1665 = vweird.f32 %v1659
    %vm1666 = vmor %vm1664, %vm1665
    %v1667 = vsel %vm1666, %v1659, %v1663
    %v1668 = vand.u32 2147483647, %v1655
    %vm1669 = vcmp.eq.f32.partialorder %v1668, 8.507059e+37
    %v1670 = vand.u32 %v1655, 2147483648
    %v1671 = vor.u32 1.1754944e-38, %v1670
    %v1672 = vsel %vm1669, %v1671, %v1667
    %v1673 = vmul.f32 %v1650, %v1672
    %v1674 = vrcp.pop %v1658
    %v1675 = vmul.f32 %v1658, %v1674
    %v1676 = vsub.f32 1.0, %v1675
    %v1677 = vmul.f32 %v1674, %v1676
    %v1678 = vadd.f32 %v1674, %v1677
    %vm1679 = vweird.f32 %v1658
    %vm1680 = vweird.f32 %v1674
    %vm1681 = vmor %vm1679, %vm1680
    %v1682 = vsel %vm1681, %v1674, %v1678
    %v1683 = vand.u32 2147483647, %v1658
    %vm1684 = vcmp.eq.f32.partialorder %v1683, 8.507059e+37
    %v1685 = vand.u32 %v1658, 2147483648
    %v1686 = vor.u32 1.1754944e-38, %v1685
    %v1687 = vsel %vm1684, %v1686, %v1682
    %v1688 = vmul.f32 %v1652, %v1687
    %v1689 = vpack.c.bf16 %v1673, %v1673
    %v1690 = vpack.c.bf16 %v1688, %v1688
    %1691 = vrot.lane.b32.xlu0 %v1457, 48
    %v1692 = vpop.permute.xlu0 %1691
    %v1694 = vsel %vm330, %v1689, 0
    %v1697 = vsel %vm391, %v1692, 0
    %1699 = vmatpush.bf16.msra.mxu0 0
    %1700 = vmatpush.bf16.msra.mxu0 0
    %1701 = vmatpush.bf16.msra.mxu0 0
    %1702 = vmatpush.bf16.msra.mxu0 0
    %1703 = vmatpush.bf16.msra.mxu0 0
    %1704 = vmatpush.bf16.msra.mxu0 0
    %1705 = vmatpush.bf16.msra.mxu0 0
    %1706 = vmatpush.bf16.msra.mxu0 %v1697
    %1707 = vmatmul.bf16.gmra.mxu0 %v1694
    %v1708 = vpop.f32.mrf.mxu0
    %v1709 = vadd.f32 0.0, %v1708
    %v1710 = vpop.f32.mrf.mxu0
    %1711 = vdwg.mxu0
    %1712 = vrot.lane.b32.xlu0 %v1481, 48
    %v1713 = vpop.permute.xlu0 %1712
    %v1715 = vsel %vm330, %v1690, 0
    %v1718 = vsel %vm391, %v1713, 0
    %1720 = vmatpush.bf16.msra.mxu0 0
    %1721 = vmatpush.bf16.msra.mxu0 0
    %1722 = vmatpush.bf16.msra.mxu0 0
    %1723 = vmatpush.bf16.msra.mxu0 0
    %1724 = vmatpush.bf16.msra.mxu0 0
    %1725 = vmatpush.bf16.msra.mxu0 0
    %1726 = vmatpush.bf16.msra.mxu0 0
    %1727 = vmatpush.bf16.msra.mxu0 %v1718
    %1728 = vmatmul.bf16.gmra.mxu0 %v1715
    %v1729 = vpop.f32.mrf.mxu0
    %v1730 = vadd.f32 0.0, %v1729
    %v1731 = vpop.f32.mrf.mxu0
    %1732 = vdwg.mxu0
    %1735 = vrot.lane.b32.xlu0 %v1709, 16
    %v1736 = vpop.permute.xlu0 %1735
    %1737 = vrot.lane.b32.xlu0 %v1730, 16
    %v1738 = vpop.permute.xlu0 %1737
    %v1741 = vsel %vm203, %v1476, %v1736
    %v1742 = vsel %vm203, %v1500, %v1738
    %s1743 = scalar_lea.vmem %s3, 32
    %v1744 = vld [vmem:[%s1743] sm:$0xf]
    %v1745 = vld [vmem:[%s1743 + $0x4] sm:$0xf]
    %v1746 = vld [vmem:[%s1743 + $0x8] sm:$0xf]
    %v1747 = vld [vmem:[%s1743 + $0xc] sm:$0xf]
    %v1748 = vpack.c.bf16 %v1742, %v1741
    %v1753 = vunpack.c.l.b16 %v1744
    %v1754 = vunpack.c.l.b16 %v1745
    %v1755 = vunpack.c.l.b16 %v1746
    %v1756 = vunpack.c.l.b16 %v1747
    %v1757 = vpack.c.b16 %v1754, %v1753
    %v1758 = vpack.c.b16 %v1756, %v1755
    %v1762 = vsel %vm104, %v1748, 0
    %1764 = vmatpush.bf16.msra.mxu0 0
    %1765 = vmatpush.bf16.msra.mxu0 0
    %1766 = vmatpush.bf16.msra.mxu0 0
    %1767 = vmatpush.bf16.msra.mxu0 0
    %1768 = vmatpush.bf16.msra.mxu0 0
    %1769 = vmatpush.bf16.msra.mxu0 0
    %1770 = vmatpush.bf16.msra.mxu0 %v1758
    %1771 = vmatpush.bf16.msra.mxu0 %v1757
    %1772 = vmatmul.bf16.gmra.mxu0 %v1762
    %v1773 = vpop.f32.mrf.mxu0
    %v1774 = vadd.f32 0.0, %v1773
    %v1775 = vpop.f32.mrf.mxu0
    %v1776 = vadd.f32 0.0, %v1775
    %1777 = vdwg.mxu0
    %v1778 = vld [vmem:[#allocation2] sm:$0xf]
    %v1779 = vsel %vm104, %v1774, 0.0
    %1780 = vadd.xlane.f32.xlu0 %v1779
    %v1781 = vpop.xlane.xlu0 %1780
    %v1782 = vsel %vm104, %v1776, 0.0
    %1783 = vadd.xlane.f32.xlu0 %v1782
    %v1784 = vpop.xlane.xlu0 %1783
    %v1785 = vmul.f32 %v1781, %v117
    %v1786 = vmul.f32 %v1784, %v117
    %v1787 = vsub.f32 %v1774, %v1785
    %v1788 = vsub.f32 %v1776, %v1786
    %v1789 = vmul.f32 %v1787, %v1787
    %v1790 = vmul.f32 %v1788, %v1788
    %v1791 = vsel %vm104, %v1789, 0.0
    %1792 = vadd.xlane.f32.xlu0 %v1791
    %v1793 = vpop.xlane.xlu0 %1792
    %v1794 = vsel %vm104, %v1790, 0.0
    %1795 = vadd.xlane.f32.xlu0 %v1794
    %v1796 = vpop.xlane.xlu0 %1795
    %v1797 = vmul.f32 %v1793, %v117
    %v1798 = vmul.f32 %v1796, %v117
    %v1799 = vadd.f32 %v1797, 1e-05
    %v1800 = vadd.f32 %v1798, 1e-05
    %v1801 = vrsqrt.pop %v1799
    %v1802 = vmul.f32 %v1801, %v1799
    %v1803 = vmul.f32 %v1802, %v1801
    %v1804 = vmul.f32 0.5, %v1803
    %v1805 = vsub.f32 1.5, %v1804
    %v1806 = vmul.f32 %v1801, %v1805
    %vm1807 = vweird.f32 %v1799
    %vm1808 = vweird.f32 %v1801
    %vm1809 = vmor %vm1807, %vm1808
    %v1810 = vsel %vm1809, %v1801, %v1806
    %v1811 = vrsqrt.pop %v1800
    %v1812 = vmul.f32 %v1811, %v1800
    %v1813 = vmul.f32 %v1812, %v1811
    %v1814 = vmul.f32 0.5, %v1813
    %v1815 = vsub.f32 1.5, %v1814
    %v1816 = vmul.f32 %v1811, %v1815
    %vm1817 = vweird.f32 %v1800
    %vm1818 = vweird.f32 %v1811
    %vm1819 = vmor %vm1817, %vm1818
    %v1820 = vsel %vm1819, %v1811, %v1816
    %v1821 = vmul.f32 %v1787, %v1810
    %v1822 = vmul.f32 %v1788, %v1820
    %v1823 = vperm.slane %v1778, 0
    %v1824 = vmul.f32 %v1821, %v1823
    %v1825 = vmul.f32 %v1822, %v1823
    %v1826 = vperm.slane %v1778, 1
    %v1827 = vadd.f32 %v1824, %v1826
    %v1828 = vadd.f32 %v1825, %v1826
    %v1829 = vperm.slane %v1778, 2
    %v1830 = vmul.f32 %v1821, %v1829
    %v1831 = vmul.f32 %v1822, %v1829
    %v1832 = vperm.slane %v1778, 3
    %v1833 = vadd.f32 %v1830, %v1832
    %v1834 = vadd.f32 %v1831, %v1832
    %v1835 = vld [vmem:[%s5] sm:$0xff]
    %v1836 = vld [vmem:[%s5 + $0x8] sm:$0xf]
    %v1837 = vld [vmem:[%s5 + $0xc] sm:$0xff]
    %v1838 = vld [vmem:[%s5 + $0x14] sm:$0xf]
    %v1839 = vld [vmem:[%s5 + $0x18] sm:$0xff]
    %v1840 = vld [vmem:[%s5 + $0x20] sm:$0xf]
    %v1841 = vld [vmem:[%s5 + $0x24] sm:$0xff]
    %v1842 = vld [vmem:[%s5 + $0x2c] sm:$0xf]
    %v1843 = vpack.c.bf16 %v1828, %v1827
    %v1852 = vunpack.c.l.b16 %v1835
    %v1853 = vunpack.c.h.b16 %v1835
    %v1854 = vunpack.c.l.b16 %v1836
    %v1855 = vunpack.c.l.b16 %v1837
    %v1856 = vunpack.c.h.b16 %v1837
    %v1857 = vunpack.c.l.b16 %v1838
    %v1858 = vunpack.c.l.b16 %v1839
    %v1859 = vunpack.c.h.b16 %v1839
    %v1860 = vunpack.c.l.b16 %v1840
    %v1861 = vunpack.c.l.b16 %v1841
    %v1862 = vunpack.c.h.b16 %v1841
    %v1863 = vunpack.c.l.b16 %v1842
    %v1864 = vpack.c.b16 %v1855, %v1852
    %v1865 = vpack.c.b16 %v1856, %v1853
    %v1866 = vpack.c.b16 %v1857, %v1854
    %v1867 = vpack.c.b16 %v1861, %v1858
    %v1868 = vpack.c.b16 %v1862, %v1859
    %v1869 = vpack.c.b16 %v1863, %v1860
    %v1877 = vsel %vm104, %v1843, 0
    %1879 = vmatpush.bf16.msra.mxu0 0
    %1880 = vmatpush.bf16.msra.mxu0 0
    %1881 = vmatpush.bf16.msra.mxu0 0
    %1882 = vmatpush.bf16.msra.mxu0 0
    %1883 = vmatpush.bf16.msra.mxu0 0
    %1884 = vmatpush.bf16.msra.mxu0 0
    %1885 = vmatpush.bf16.msra.mxu0 %v1867
    %1886 = vmatpush.bf16.msra.mxu0 %v1864
    %1887 = vmatmul.bf16.gmra.mxu0 %v1877
    %v1888 = vpop.f32.mrf.mxu0
    %v1889 = vadd.f32 0.0, %v1888
    %v1890 = vpop.f32.mrf.mxu0
    %v1891 = vadd.f32 0.0, %v1890
    %1892 = vdwg.mxu0
    %1893 = vmatpush.bf16.msra.mxu0 0
    %1894 = vmatpush.bf16.msra.mxu0 0
    %1895 = vmatpush.bf16.msra.mxu0 0
    %1896 = vmatpush.bf16.msra.mxu0 0
    %1897 = vmatpush.bf16.msra.mxu0 0
    %1898 = vmatpush.bf16.msra.mxu0 0
    %1899 = vmatpush.bf16.msra.mxu0 %v1868
    %1900 = vmatpush.bf16.msra.mxu0 %v1865
    %1901 = vmatmul.bf16.gmra.mxu0 %v1877
    %v1902 = vpop.f32.mrf.mxu0
    %v1903 = vadd.f32 0.0, %v1902
    %v1904 = vpop.f32.mrf.mxu0
    %v1905 = vadd.f32 0.0, %v1904
    %1906 = vdwg.mxu0
    %1907 = vmatpush.bf16.msra.mxu0 0
    %1908 = vmatpush.bf16.msra.mxu0 0
    %1909 = vmatpush.bf16.msra.mxu0 0
    %1910 = vmatpush.bf16.msra.mxu0 0
    %1911 = vmatpush.bf16.msra.mxu0 0
    %1912 = vmatpush.bf16.msra.mxu0 0
    %1913 = vmatpush.bf16.msra.mxu0 %v1869
    %1914 = vmatpush.bf16.msra.mxu0 %v1866
    %1915 = vmatmul.bf16.gmra.mxu0 %v1877
    %v1916 = vpop.f32.mrf.mxu0
    %v1917 = vadd.f32 0.0, %v1916
    %v1918 = vpop.f32.mrf.mxu0
    %v1919 = vadd.f32 0.0, %v1918
    %1920 = vdwg.mxu0
    %v1921 = vld [vmem:[%s6] sm:$0xf]
    %v1922 = vld [vmem:[%s6 + $0x4] sm:$0xf]
    %v1923 = vld [vmem:[%s6 + $0x8] sm:$0xf]
    %v1924 = vld [vmem:[%s6 + $0xc] sm:$0xf]
    %v1925 = vpack.c.bf16 %v1834, %v1833
    %v1930 = vunpack.c.l.b16 %v1921
    %v1931 = vunpack.c.l.b16 %v1922
    %v1932 = vunpack.c.l.b16 %v1923
    %v1933 = vunpack.c.l.b16 %v1924
    %v1934 = vpack.c.b16 %v1931, %v1930
    %v1935 = vpack.c.b16 %v1933, %v1932
    %v1939 = vsel %vm104, %v1925, 0
    %1941 = vmatpush.bf16.msra.mxu0 0
    %1942 = vmatpush.bf16.msra.mxu0 0
    %1943 = vmatpush.bf16.msra.mxu0 0
    %1944 = vmatpush.bf16.msra.mxu0 0
    %1945 = vmatpush.bf16.msra.mxu0 0
    %1946 = vmatpush.bf16.msra.mxu0 0
    %1947 = vmatpush.bf16.msra.mxu0 %v1935
    %1948 = vmatpush.bf16.msra.mxu0 %v1934
    %1949 = vmatmul.bf16.gmra.mxu0 %v1939
    %v1950 = vpop.f32.mrf.mxu0
    %v1951 = vadd.f32 0.0, %v1950
    %v1952 = vpop.f32.mrf.mxu0
    %v1953 = vadd.f32 0.0, %v1952
    %1954 = vdwg.mxu0
    %v1955 = vpack.c.bf16 %v1889, %v1889
    %v1956 = vpack.c.bf16 %v1891, %v1891
    %v1957 = vpack.c.bf16 %v1951, %v1951
    %v1958 = vpack.c.bf16 %v1953, %v1953
    %v1960 = vsel %vm203, %v1955, 0
    %v1963 = vsel %vm203, %v1957, 0
    %1965 = vmatpush.bf16.xpose.msra.mxu0 0
    %1966 = vmatpush.bf16.xpose.msra.mxu0 0
    %1967 = vmatpush.bf16.xpose.msra.mxu0 0
    %1968 = vmatpush.bf16.xpose.msra.mxu0 0
    %1969 = vmatpush.bf16.xpose.msra.mxu0 0
    %1970 = vmatpush.bf16.xpose.msra.mxu0 0
    %1971 = vmatpush.bf16.xpose.msra.mxu0 0
    %1972 = vmatpush.bf16.xpose.msra.mxu0 %v1963
    %1973 = vmatmul.bf16.gmra.mxu0 %v1960
    %v1974 = vpop.f32.mrf.mxu0
    %v1975 = vadd.f32 0.0, %v1974
    %v1976 = vpop.f32.mrf.mxu0
    %1977 = vdwg.mxu0
    %v1979 = vsel %vm203, %v1956, 0
    %v1982 = vsel %vm203, %v1958, 0
    %1984 = vmatpush.bf16.xpose.msra.mxu0 0
    %1985 = vmatpush.bf16.xpose.msra.mxu0 0
    %1986 = vmatpush.bf16.xpose.msra.mxu0 0
    %1987 = vmatpush.bf16.xpose.msra.mxu0 0
    %1988 = vmatpush.bf16.xpose.msra.mxu0 0
    %1989 = vmatpush.bf16.xpose.msra.mxu0 0
    %1990 = vmatpush.bf16.xpose.msra.mxu0 0
    %1991 = vmatpush.bf16.xpose.msra.mxu0 %v1982
    %1992 = vmatmul.bf16.gmra.mxu0 %v1979
    %v1993 = vpop.f32.mrf.mxu0
    %v1994 = vadd.f32 0.0, %v1993
    %v1995 = vpop.f32.mrf.mxu0
    %1996 = vdwg.mxu0
    %v1997 = vmul.f32 %v1975, 0.25
    %v1998 = vmul.f32 %v1994, 0.25
    %v1999 = vsel %vm330, %v1997, -inf
    %2000 = vmax.xlane.f32.xlu0 %v1999
    %v2001 = vpop.xlane.xlu0 %2000
    %v2002 = vsel %vm330, %v1998, -inf
    %2003 = vmax.xlane.f32.xlu0 %v2002
    %v2004 = vpop.xlane.xlu0 %2003
    %v2005 = vsub.f32 %v1997, %v2001
    %v2006 = vsub.f32 %v1998, %v2004
    %v2007 = vmul.f32 %v2005, 1.442695
    %v2008 = vpow.pop %v2007
    %v2009 = vmul.f32 %v2006, 1.442695
    %v2010 = vpow.pop %v2009
    %v2011 = vsel %vm330, %v2008, 0.0
    %2012 = vadd.xlane.f32.xlu0 %v2011
    %v2013 = vpop.xlane.xlu0 %2012
    %v2014 = vsel %vm330, %v2010, 0.0
    %2015 = vadd.xlane.f32.xlu0 %v2014
    %v2016 = vpop.xlane.xlu0 %2015
    %v2017 = vrcp.pop %v2013
    %v2018 = vmul.f32 %v2013, %v2017
    %v2019 = vsub.f32 1.0, %v2018
    %v2020 = vmul.f32 %v2017, %v2019
    %v2021 = vadd.f32 %v2017, %v2020
    %vm2022 = vweird.f32 %v2013
    %vm2023 = vweird.f32 %v2017
    %vm2024 = vmor %vm2022, %vm2023
    %v2025 = vsel %vm2024, %v2017, %v2021
    %v2026 = vand.u32 2147483647, %v2013
    %vm2027 = vcmp.eq.f32.partialorder %v2026, 8.507059e+37
    %v2028 = vand.u32 %v2013, 2147483648
    %v2029 = vor.u32 1.1754944e-38, %v2028
    %v2030 = vsel %vm2027, %v2029, %v2025
    %v2031 = vmul.f32 %v2008, %v2030
    %v2032 = vrcp.pop %v2016
    %v2033 = vmul.f32 %v2016, %v2032
    %v2034 = vsub.f32 1.0, %v2033
    %v2035 = vmul.f32 %v2032, %v2034
    %v2036 = vadd.f32 %v2032, %v2035
    %vm2037 = vweird.f32 %v2016
    %vm2038 = vweird.f32 %v2032
    %vm2039 = vmor %vm2037, %vm2038
    %v2040 = vsel %vm2039, %v2032, %v2036
    %v2041 = vand.u32 2147483647, %v2016
    %vm2042 = vcmp.eq.f32.partialorder %v2041, 8.507059e+37
    %v2043 = vand.u32 %v2016, 2147483648
    %v2044 = vor.u32 1.1754944e-38, %v2043
    %v2045 = vsel %vm2042, %v2044, %v2040
    %v2046 = vmul.f32 %v2010, %v2045
    %v2047 = vpack.c.bf16 %v2031, %v2031
    %v2048 = vpack.c.bf16 %v2046, %v2046
    %v2050 = vunpack.c.l.b16 %v1957
    %v2051 = vpack.c.b16 %v2050, %v2050
    %2052 = vrot.lane.b32.xlu0 %v2051, 112
    %v2053 = vpop.permute.xlu0 %2052
    %v2055 = vsel %vm330, %v2047, 0
    %v2058 = vsel %vm391, %v2053, 0
    %2060 = vmatpush.bf16.msra.mxu0 0
    %2061 = vmatpush.bf16.msra.mxu0 0
    %2062 = vmatpush.bf16.msra.mxu0 0
    %2063 = vmatpush.bf16.msra.mxu0 0
    %2064 = vmatpush.bf16.msra.mxu0 0
    %2065 = vmatpush.bf16.msra.mxu0 0
    %2066 = vmatpush.bf16.msra.mxu0 0
    %2067 = vmatpush.bf16.msra.mxu0 %v2058
    %2068 = vmatmul.bf16.gmra.mxu0 %v2055
    %v2069 = vpop.f32.mrf.mxu0
    %v2070 = vadd.f32 0.0, %v2069
    %v2071 = vpop.f32.mrf.mxu0
    %2072 = vdwg.mxu0
    %v2074 = vunpack.c.l.b16 %v1958
    %v2075 = vpack.c.b16 %v2074, %v2074
    %2076 = vrot.lane.b32.xlu0 %v2075, 112
    %v2077 = vpop.permute.xlu0 %2076
    %v2079 = vsel %vm330, %v2048, 0
    %v2082 = vsel %vm391, %v2077, 0
    %2084 = vmatpush.bf16.msra.mxu0 0
    %2085 = vmatpush.bf16.msra.mxu0 0
    %2086 = vmatpush.bf16.msra.mxu0 0
    %2087 = vmatpush.bf16.msra.mxu0 0
    %2088 = vmatpush.bf16.msra.mxu0 0
    %2089 = vmatpush.bf16.msra.mxu0 0
    %2090 = vmatpush.bf16.msra.mxu0 0
    %2091 = vmatpush.bf16.msra.mxu0 %v2082
    %2092 = vmatmul.bf16.gmra.mxu0 %v2079
    %v2093 = vpop.f32.mrf.mxu0
    %v2094 = vadd.f32 0.0, %v2093
    %v2095 = vpop.f32.mrf.mxu0
    %2096 = vdwg.mxu0
    %v2098 = vunpack.c.l.b16 %v1955
    %v2099 = vpack.c.b16 %v2098, %v2098
    %2100 = vrot.lane.b32.xlu0 %v2099, 112
    %v2101 = vpop.permute.xlu0 %2100
    %v2103 = vsel %vm203, %v2101, 0
    %2105 = vmatpush.bf16.xpose.msra.mxu0 0
    %2106 = vmatpush.bf16.xpose.msra.mxu0 0
    %2107 = vmatpush.bf16.xpose.msra.mxu0 0
    %2108 = vmatpush.bf16.xpose.msra.mxu0 0
    %2109 = vmatpush.bf16.xpose.msra.mxu0 0
    %2110 = vmatpush.bf16.xpose.msra.mxu0 0
    %2111 = vmatpush.bf16.xpose.msra.mxu0 0
    %2112 = vmatpush.bf16.xpose.msra.mxu0 %v1963
    %2113 = vmatmul.bf16.gmra.mxu0 %v2103
    %v2114 = vpop.f32.mrf.mxu0
    %v2115 = vadd.f32 0.0, %v2114
    %v2116 = vpop.f32.mrf.mxu0
    %2117 = vdwg.mxu0
    %v2119 = vunpack.c.l.b16 %v1956
    %v2120 = vpack.c.b16 %v2119, %v2119
    %2121 = vrot.lane.b32.xlu0 %v2120, 112
    %v2122 = vpop.permute.xlu0 %2121
    %v2124 = vsel %vm203, %v2122, 0
    %2126 = vmatpush.bf16.xpose.msra.mxu0 0
    %2127 = vmatpush.bf16.xpose.msra.mxu0 0
    %2128 = vmatpush.bf16.xpose.msra.mxu0 0
    %2129 = vmatpush.bf16.xpose.msra.mxu0 0
    %2130 = vmatpush.bf16.xpose.msra.mxu0 0
    %2131 = vmatpush.bf16.xpose.msra.mxu0 0
    %2132 = vmatpush.bf16.xpose.msra.mxu0 0
    %2133 = vmatpush.bf16.xpose.msra.mxu0 %v1982
    %2134 = vmatmul.bf16.gmra.mxu0 %v2124
    %v2135 = vpop.f32.mrf.mxu0
    %v2136 = vadd.f32 0.0, %v2135
    %v2137 = vpop.f32.mrf.mxu0
    %2138 = vdwg.mxu0
    %v2139 = vmul.f32 %v2115, 0.25
    %v2140 = vmul.f32 %v2136, 0.25
    %v2141 = vsel %vm330, %v2139, -inf
    %2142 = vmax.xlane.f32.xlu0 %v2141
    %v2143 = vpop.xlane.xlu0 %2142
    %v2144 = vsel %vm330, %v2140, -inf
    %2145 = vmax.xlane.f32.xlu0 %v2144
    %v2146 = vpop.xlane.xlu0 %2145
    %v2147 = vsub.f32 %v2139, %v2143
    %v2148 = vsub.f32 %v2140, %v2146
    %v2149 = vmul.f32 %v2147, 1.442695
    %v2150 = vpow.pop %v2149
    %v2151 = vmul.f32 %v2148, 1.442695
    %v2152 = vpow.pop %v2151
    %v2153 = vsel %vm330, %v2150, 0.0
    %2154 = vadd.xlane.f32.xlu0 %v2153
    %v2155 = vpop.xlane.xlu0 %2154
    %v2156 = vsel %vm330, %v2152, 0.0
    %2157 = vadd.xlane.f32.xlu0 %v2156
    %v2158 = vpop.xlane.xlu0 %2157
    %v2159 = vrcp.pop %v2155
    %v2160 = vmul.f32 %v2155, %v2159
    %v2161 = vsub.f32 1.0, %v2160
    %v2162 = vmul.f32 %v2159, %v2161
    %v2163 = vadd.f32 %v2159, %v2162
    %vm2164 = vweird.f32 %v2155
    %vm2165 = vweird.f32 %v2159
    %vm2166 = vmor %vm2164, %vm2165
    %v2167 = vsel %vm2166, %v2159, %v2163
    %v2168 = vand.u32 2147483647, %v2155
    %vm2169 = vcmp.eq.f32.partialorder %v2168, 8.507059e+37
    %v2170 = vand.u32 %v2155, 2147483648
    %v2171 = vor.u32 1.1754944e-38, %v2170
    %v2172 = vsel %vm2169, %v2171, %v2167
    %v2173 = vmul.f32 %v2150, %v2172
    %v2174 = vrcp.pop %v2158
    %v2175 = vmul.f32 %v2158, %v2174
    %v2176 = vsub.f32 1.0, %v2175
    %v2177 = vmul.f32 %v2174, %v2176
    %v2178 = vadd.f32 %v2174, %v2177
    %vm2179 = vweird.f32 %v2158
    %vm2180 = vweird.f32 %v2174
    %vm2181 = vmor %vm2179, %vm2180
    %v2182 = vsel %vm2181, %v2174, %v2178
    %v2183 = vand.u32 2147483647, %v2158
    %vm2184 = vcmp.eq.f32.partialorder %v2183, 8.507059e+37
    %v2185 = vand.u32 %v2158, 2147483648
    %v2186 = vor.u32 1.1754944e-38, %v2185
    %v2187 = vsel %vm2184, %v2186, %v2182
    %v2188 = vmul.f32 %v2152, %v2187
    %v2189 = vpack.c.bf16 %v2173, %v2173
    %v2190 = vpack.c.bf16 %v2188, %v2188
    %v2192 = vsel %vm330, %v2189, 0
    %2194 = vmatpush.bf16.msra.mxu0 0
    %2195 = vmatpush.bf16.msra.mxu0 0
    %2196 = vmatpush.bf16.msra.mxu0 0
    %2197 = vmatpush.bf16.msra.mxu0 0
    %2198 = vmatpush.bf16.msra.mxu0 0
    %2199 = vmatpush.bf16.msra.mxu0 0
    %2200 = vmatpush.bf16.msra.mxu0 0
    %2201 = vmatpush.bf16.msra.mxu0 %v2058
    %2202 = vmatmul.bf16.gmra.mxu0 %v2192
    %v2203 = vpop.f32.mrf.mxu0
    %v2204 = vadd.f32 0.0, %v2203
    %v2205 = vpop.f32.mrf.mxu0
    %2206 = vdwg.mxu0
    %v2208 = vsel %vm330, %v2190, 0
    %2210 = vmatpush.bf16.msra.mxu0 0
    %2211 = vmatpush.bf16.msra.mxu0 0
    %2212 = vmatpush.bf16.msra.mxu0 0
    %2213 = vmatpush.bf16.msra.mxu0 0
    %2214 = vmatpush.bf16.msra.mxu0 0
    %2215 = vmatpush.bf16.msra.mxu0 0
    %2216 = vmatpush.bf16.msra.mxu0 0
    %2217 = vmatpush.bf16.msra.mxu0 %v2082
    %2218 = vmatmul.bf16.gmra.mxu0 %v2208
    %v2219 = vpop.f32.mrf.mxu0
    %v2220 = vadd.f32 0.0, %v2219
    %v2221 = vpop.f32.mrf.mxu0
    %2222 = vdwg.mxu0
    %2225 = vrot.lane.b32.xlu0 %v2204, 16
    %v2226 = vpop.permute.xlu0 %2225
    %2227 = vrot.lane.b32.xlu0 %v2220, 16
    %v2228 = vpop.permute.xlu0 %2227
    %v2231 = vsel %vm203, %v2070, %v2226
    %v2232 = vsel %vm203, %v2094, %v2228
    %v2233 = vld [vmem:[#allocation4] sm:$0xf]
    %v2234 = vld [vmem:[#allocation4 + $0x4] sm:$0xf]
    %v2235 = vld [vmem:[#allocation4 + $0x8] sm:$0xf]
    %v2236 = vld [vmem:[#allocation4 + $0xc] sm:$0xf]
    %v2237 = vpack.c.bf16 %v2232, %v2231
    %v2238 = vxor.u32 %v1903, 2147483648
    %v2239 = vxor.u32 %v1917, 2147483648
    %v2240 = vxor.u32 %v1905, 2147483648
    %v2241 = vxor.u32 %v1919, 2147483648
    %v2242 = vmul.f32 %v2238, 1.442695
    %v2243 = vpow.pop %v2242
    %v2244 = vmul.f32 %v2239, 1.442695
    %v2245 = vpow.pop %v2244
    %v2246 = vmul.f32 %v2240, 1.442695
    %v2247 = vpow.pop %v2246
    %v2248 = vmul.f32 %v2241, 1.442695
    %v2249 = vpow.pop %v2248
    %v2250 = vadd.f32 %v2243, 1.0
    %v2251 = vadd.f32 %v2245, 1.0
    %v2252 = vadd.f32 %v2247, 1.0
    %v2253 = vadd.f32 %v2249, 1.0
    %v2254 = vrcp.pop %v2250
    %v2255 = vmul.f32 %v2250, %v2254
    %v2256 = vsub.f32 1.0, %v2255
    %v2257 = vmul.f32 %v2254, %v2256
    %v2258 = vadd.f32 %v2254, %v2257
    %vm2259 = vweird.f32 %v2250
    %vm2260 = vweird.f32 %v2254
    %vm2261 = vmor %vm2259, %vm2260
    %v2262 = vsel %vm2261, %v2254, %v2258
    %v2263 = vand.u32 2147483647, %v2250
    %vm2264 = vcmp.eq.f32.partialorder %v2263, 8.507059e+37
    %v2265 = vand.u32 %v2250, 2147483648
    %v2266 = vor.u32 1.1754944e-38, %v2265
    %v2267 = vsel %vm2264, %v2266, %v2262
    %v2268 = vmul.f32 1.0, %v2267
    %v2269 = vrcp.pop %v2251
    %v2270 = vmul.f32 %v2251, %v2269
    %v2271 = vsub.f32 1.0, %v2270
    %v2272 = vmul.f32 %v2269, %v2271
    %v2273 = vadd.f32 %v2269, %v2272
    %vm2274 = vweird.f32 %v2251
    %vm2275 = vweird.f32 %v2269
    %vm2276 = vmor %vm2274, %vm2275
    %v2277 = vsel %vm2276, %v2269, %v2273
    %v2278 = vand.u32 2147483647, %v2251
    %vm2279 = vcmp.eq.f32.partialorder %v2278, 8.507059e+37
    %v2280 = vand.u32 %v2251, 2147483648
    %v2281 = vor.u32 1.1754944e-38, %v2280
    %v2282 = vsel %vm2279, %v2281, %v2277
    %v2283 = vmul.f32 1.0, %v2282
    %v2284 = vrcp.pop %v2252
    %v2285 = vmul.f32 %v2252, %v2284
    %v2286 = vsub.f32 1.0, %v2285
    %v2287 = vmul.f32 %v2284, %v2286
    %v2288 = vadd.f32 %v2284, %v2287
    %vm2289 = vweird.f32 %v2252
    %vm2290 = vweird.f32 %v2284
    %vm2291 = vmor %vm2289, %vm2290
    %v2292 = vsel %vm2291, %v2284, %v2288
    %v2293 = vand.u32 2147483647, %v2252
    %vm2294 = vcmp.eq.f32.partialorder %v2293, 8.507059e+37
    %v2295 = vand.u32 %v2252, 2147483648
    %v2296 = vor.u32 1.1754944e-38, %v2295
    %v2297 = vsel %vm2294, %v2296, %v2292
    %v2298 = vmul.f32 1.0, %v2297
    %v2299 = vrcp.pop %v2253
    %v2300 = vmul.f32 %v2253, %v2299
    %v2301 = vsub.f32 1.0, %v2300
    %v2302 = vmul.f32 %v2299, %v2301
    %v2303 = vadd.f32 %v2299, %v2302
    %vm2304 = vweird.f32 %v2253
    %vm2305 = vweird.f32 %v2299
    %vm2306 = vmor %vm2304, %vm2305
    %v2307 = vsel %vm2306, %v2299, %v2303
    %v2308 = vand.u32 2147483647, %v2253
    %vm2309 = vcmp.eq.f32.partialorder %v2308, 8.507059e+37
    %v2310 = vand.u32 %v2253, 2147483648
    %v2311 = vor.u32 1.1754944e-38, %v2310
    %v2312 = vsel %vm2309, %v2311, %v2307
    %v2313 = vmul.f32 1.0, %v2312
    %v2314 = vmul.f32 %v1903, %v2268
    %v2315 = vmul.f32 %v1917, %v2283
    %v2316 = vmul.f32 %v1905, %v2298
    %v2317 = vmul.f32 %v1919, %v2313
    %v2318 = vmul.f32 %v2314, %v1889
    %v2319 = vmul.f32 %v2315, %v1903
    %v2320 = vmul.f32 %v2316, %v1891
    %v2321 = vmul.f32 %v2317, %v1905
    %v2322 = vld [vmem:[%s8] sm:$0xf]
    %v2323 = vld [vmem:[%s8 + $0x4] sm:$0xf]
    %v2324 = vld [vmem:[%s8 + $0x8] sm:$0xf]
    %v2325 = vld [vmem:[%s8 + $0xc] sm:$0xf]
    %v2326 = vld [vmem:[%s8 + $0x10] sm:$0xf]
    %v2327 = vld [vmem:[%s8 + $0x14] sm:$0xf]
    %v2328 = vld [vmem:[%s8 + $0x18] sm:$0xf]
    %v2329 = vld [vmem:[%s8 + $0x1c] sm:$0xf]
    %v2330 = vld [vmem:[%s8 + $0x20] sm:$0xf]
    %v2331 = vld [vmem:[%s8 + $0x24] sm:$0xf]
    %v2332 = vld [vmem:[%s8 + $0x28] sm:$0xf]
    %v2333 = vld [vmem:[%s8 + $0x2c] sm:$0xf]
    %v2334 = vld [vmem:[%s8 + $0x30] sm:$0xf]
    %v2335 = vld [vmem:[%s8 + $0x34] sm:$0xf]
    %v2336 = vld [vmem:[%s8 + $0x38] sm:$0xf]
    %v2337 = vld [vmem:[%s8 + $0x3c] sm:$0xf]
    %v2338 = vpack.c.bf16 %v2320, %v2318
    %v2339 = vpack.c.bf16 %v2321, %v2319
    %2342 = vrot.lane.b32.xlu0 %v2338, 96
    %v2343 = vpop.permute.xlu0 %2342
    %2344 = vrot.lane.b32.xlu0 %v2339, 96
    %v2345 = vpop.permute.xlu0 %2344
    %vm2346 = vcmask 785408
    %v2347 = vsel %vm2346, %v2343, %v2345
    %v2365 = vunpack.c.l.b16 %v2322
    %v2366 = vunpack.c.l.b16 %v2323
    %v2367 = vunpack.c.l.b16 %v2324
    %v2368 = vunpack.c.l.b16 %v2325
    %v2369 = vunpack.c.l.b16 %v2326
    %v2370 = vunpack.c.l.b16 %v2327
    %v2371 = vunpack.c.l.b16 %v2328
    %v2372 = vunpack.c.l.b16 %v2329
    %v2373 = vunpack.c.l.b16 %v2330
    %v2374 = vunpack.c.l.b16 %v2331
    %v2375 = vunpack.c.l.b16 %v2332
    %v2376 = vunpack.c.l.b16 %v2333
    %v2377 = vunpack.c.l.b16 %v2334
    %v2378 = vunpack.c.l.b16 %v2335
    %v2379 = vunpack.c.l.b16 %v2336
    %v2380 = vunpack.c.l.b16 %v2337
    %v2381 = vpack.c.b16 %v2366, %v2365
    %v2382 = vpack.c.b16 %v2368, %v2367
    %v2383 = vpack.c.b16 %v2370, %v2369
    %v2384 = vpack.c.b16 %v2372, %v2371
    %v2385 = vpack.c.b16 %v2374, %v2373
    %v2386 = vpack.c.b16 %v2376, %v2375
    %v2387 = vpack.c.b16 %v2378, %v2377
    %v2388 = vpack.c.b16 %v2380, %v2379
    %2397 = vmatpush.bf16.msra.mxu0 %v2388
    %2398 = vmatpush.bf16.msra.mxu0 %v2387
    %2399 = vmatpush.bf16.msra.mxu0 %v2386
    %2400 = vmatpush.bf16.msra.mxu0 %v2385
    %2401 = vmatpush.bf16.msra.mxu0 %v2384
    %2402 = vmatpush.bf16.msra.mxu0 %v2383
    %2403 = vmatpush.bf16.msra.mxu0 %v2382
    %2404 = vmatpush.bf16.msra.mxu0 %v2381
    %2405 = vmatmul.bf16.gmra.mxu0 %v2347
    %v2406 = vpop.f32.mrf.mxu0
    %v2407 = vadd.f32 0.0, %v2406
    %v2408 = vpop.f32.mrf.mxu0
    %v2409 = vadd.f32 0.0, %v2408
    %2410 = vdwg.mxu0
    %v2415 = vunpack.c.l.b16 %v2233
    %v2416 = vunpack.c.l.b16 %v2234
    %v2417 = vunpack.c.l.b16 %v2235
    %v2418 = vunpack.c.l.b16 %v2236
    %v2419 = vpack.c.b16 %v2416, %v2415
    %v2420 = vpack.c.b16 %v2418, %v2417
    %v2424 = vsel %vm104, %v2237, 0
    %2426 = vmatpush.bf16.msra.mxu0 0
    %2427 = vmatpush.bf16.msra.mxu0 0
    %2428 = vmatpush.bf16.msra.mxu0 0
    %2429 = vmatpush.bf16.msra.mxu0 0
    %2430 = vmatpush.bf16.msra.mxu0 0
    %2431 = vmatpush.bf16.msra.mxu0 0
    %2432 = vmatpush.bf16.msra.mxu0 %v2420
    %2433 = vmatpush.bf16.msra.mxu0 %v2419
    %2434 = vmatmul.bf16.gmra.mxu0 %v2424
    %v2435 = vpop.f32.mrf.mxu0
    %v2436 = vadd.f32 %v2407, %v2435
    %v2437 = vpop.f32.mrf.mxu0
    %v2438 = vadd.f32 %v2409, %v2437
    %2439 = vdwg.mxu0
    %v2440 = vld [vmem:[%s9] sm:$0x7]
    %v2441 = vsel %vm104, %v2436, 0.0
    %2442 = vadd.xlane.f32.xlu0 %v2441
    %v2443 = vpop.xlane.xlu0 %2442
    %v2444 = vsel %vm104, %v2438, 0.0
    %2445 = vadd.xlane.f32.xlu0 %v2444
    %v2446 = vpop.xlane.xlu0 %2445
    %v2447 = vmul.f32 %v2443, %v117
    %v2448 = vmul.f32 %v2446, %v117
    %v2449 = vsub.f32 %v2436, %v2447
    %v2450 = vsub.f32 %v2438, %v2448
    %v2451 = vmul.f32 %v2449, %v2449
    %v2452 = vmul.f32 %v2450, %v2450
    %v2453 = vsel %vm104, %v2451, 0.0
    %2454 = vadd.xlane.f32.xlu0 %v2453
    %v2455 = vpop.xlane.xlu0 %2454
    %v2456 = vsel %vm104, %v2452, 0.0
    %2457 = vadd.xlane.f32.xlu0 %v2456
    %v2458 = vpop.xlane.xlu0 %2457
    %v2459 = vmul.f32 %v2455, %v117
    %v2460 = vmul.f32 %v2458, %v117
    %v2461 = vadd.f32 %v2459, 1e-05
    %v2462 = vadd.f32 %v2460, 1e-05
    %v2463 = vrsqrt.pop %v2461
    %v2464 = vmul.f32 %v2463, %v2461
    %v2465 = vmul.f32 %v2464, %v2463
    %v2466 = vmul.f32 0.5, %v2465
    %v2467 = vsub.f32 1.5, %v2466
    %v2468 = vmul.f32 %v2463, %v2467
    %vm2469 = vweird.f32 %v2461
    %vm2470 = vweird.f32 %v2463
    %vm2471 = vmor %vm2469, %vm2470
    %v2472 = vsel %vm2471, %v2463, %v2468
    %v2473 = vrsqrt.pop %v2462
    %v2474 = vmul.f32 %v2473, %v2462
    %v2475 = vmul.f32 %v2474, %v2473
    %v2476 = vmul.f32 0.5, %v2475
    %v2477 = vsub.f32 1.5, %v2476
    %v2478 = vmul.f32 %v2473, %v2477
    %vm2479 = vweird.f32 %v2462
    %vm2480 = vweird.f32 %v2473
    %vm2481 = vmor %vm2479, %vm2480
    %v2482 = vsel %vm2481, %v2473, %v2478
    %v2483 = vmul.f32 %v2449, %v2472
    %v2484 = vmul.f32 %v2450, %v2482
    %v2485 = vperm.slane %v2440, 0
    %v2486 = vmul.f32 %v2483, %v2485
    %v2487 = vmul.f32 %v2484, %v2485
    %v2488 = vperm.slane %v2440, 1
    %v2489 = vadd.f32 %v2486, %v2488
    %v2490 = vadd.f32 %v2487, %v2488
    %v2491 = vtanh.pop %v2489
    %v2492 = vtanh.pop %v2490
    %v2493 = vadd.f32 %v2491, %v1774
    %v2494 = vadd.f32 %v2492, %v1776
    %v2495 = vld [vmem:[%s10] sm:$0xf]
    %v2496 = vld [vmem:[%s10 + $0x4] sm:$0xf]
    %v2497 = vld [vmem:[%s10 + $0x8] sm:$0xf]
    %v2498 = vld [vmem:[%s10 + $0xc] sm:$0xf]
    %v2499 = vpack.c.bf16 %v2494, %v2493
    %v2500 = vperm.slane %v2440, 2
    %v2505 = vunpack.c.l.b16 %v2495
    %v2506 = vunpack.c.l.b16 %v2496
    %v2507 = vunpack.c.l.b16 %v2497
    %v2508 = vunpack.c.l.b16 %v2498
    %v2509 = vpack.c.b16 %v2506, %v2505
    %v2510 = vpack.c.b16 %v2508, %v2507
    %v2514 = vsel %vm104, %v2499, 0
    %2516 = vmatpush.bf16.msra.mxu0 0
    %2517 = vmatpush.bf16.msra.mxu0 0
    %2518 = vmatpush.bf16.msra.mxu0 0
    %2519 = vmatpush.bf16.msra.mxu0 0
    %2520 = vmatpush.bf16.msra.mxu0 0
    %2521 = vmatpush.bf16.msra.mxu0 0
    %2522 = vmatpush.bf16.msra.mxu0 %v2510
    %2523 = vmatpush.bf16.msra.mxu0 %v2509
    %2524 = vmatmul.bf16.gmra.mxu0 %v2514
    %v2525 = vpop.f32.mrf.mxu0
    %v2526 = vadd.f32 %v2500, %v2525
    %v2527 = vpop.f32.mrf.mxu0
    %v2528 = vadd.f32 %v2500, %v2527
    %2529 = vdwg.mxu0
    %v2530 = vtanh.pop %v2526
    %v2531 = vtanh.pop %v2528
    %v2532 = vld [vmem:[#allocation6] sm:$0xf]
    %v2533 = vsel %vm104, %v2530, 0.0
    %2534 = vadd.xlane.f32.xlu0 %v2533
    %v2535 = vpop.xlane.xlu0 %2534
    %v2536 = vsel %vm104, %v2531, 0.0
    %2537 = vadd.xlane.f32.xlu0 %v2536
    %v2538 = vpop.xlane.xlu0 %2537
    %v2539 = vmul.f32 %v2535, %v117
    %v2540 = vmul.f32 %v2538, %v117
    %v2541 = vsub.f32 %v2530, %v2539
    %v2542 = vsub.f32 %v2531, %v2540
    %v2543 = vmul.f32 %v2541, %v2541
    %v2544 = vmul.f32 %v2542, %v2542
    %v2545 = vsel %vm104, %v2543, 0.0
    %2546 = vadd.xlane.f32.xlu0 %v2545
    %v2547 = vpop.xlane.xlu0 %2546
    %v2548 = vsel %vm104, %v2544, 0.0
    %2549 = vadd.xlane.f32.xlu0 %v2548
    %v2550 = vpop.xlane.xlu0 %2549
    %v2551 = vmul.f32 %v2547, %v117
    %v2552 = vmul.f32 %v2550, %v117
    %v2553 = vadd.f32 %v2551, 1e-05
    %v2554 = vadd.f32 %v2552, 1e-05
    %v2555 = vrsqrt.pop %v2553
    %v2556 = vmul.f32 %v2555, %v2553
    %v2557 = vmul.f32 %v2556, %v2555
    %v2558 = vmul.f32 0.5, %v2557
    %v2559 = vsub.f32 1.5, %v2558
    %v2560 = vmul.f32 %v2555, %v2559
    %vm2561 = vweird.f32 %v2553
    %vm2562 = vweird.f32 %v2555
    %vm2563 = vmor %vm2561, %vm2562
    %v2564 = vsel %vm2563, %v2555, %v2560
    %v2565 = vrsqrt.pop %v2554
    %v2566 = vmul.f32 %v2565, %v2554
    %v2567 = vmul.f32 %v2566, %v2565
    %v2568 = vmul.f32 0.5, %v2567
    %v2569 = vsub.f32 1.5, %v2568
    %v2570 = vmul.f32 %v2565, %v2569
    %vm2571 = vweird.f32 %v2554
    %vm2572 = vweird.f32 %v2565
    %vm2573 = vmor %vm2571, %vm2572
    %v2574 = vsel %vm2573, %v2565, %v2570
    %v2575 = vmul.f32 %v2541, %v2564
    %v2576 = vmul.f32 %v2542, %v2574
    %v2577 = vperm.slane %v2532, 0
    %v2578 = vmul.f32 %v2575, %v2577
    %v2579 = vmul.f32 %v2576, %v2577
    %v2580 = vperm.slane %v2532, 1
    %v2581 = vadd.f32 %v2578, %v2580
    %v2582 = vadd.f32 %v2579, %v2580
    %v2583 = vadd.f32 %v2581, %v160
    %v2584 = vadd.f32 %v2582, %v161
    %v2585 = vsel %vm104, %v2583, 0.0
    %2586 = vadd.xlane.f32.xlu0 %v2585
    %v2587 = vpop.xlane.xlu0 %2586
    %v2588 = vsel %vm104, %v2584, 0.0
    %2589 = vadd.xlane.f32.xlu0 %v2588
    %v2590 = vpop.xlane.xlu0 %2589
    %v2591 = vmul.f32 %v2587, %v117
    %v2592 = vmul.f32 %v2590, %v117
    %v2593 = vsub.f32 %v2583, %v2591
    %v2594 = vsub.f32 %v2584, %v2592
    %v2595 = vmul.f32 %v2593, %v2593
    %v2596 = vmul.f32 %v2594, %v2594
    %v2597 = vsel %vm104, %v2595, 0.0
    %2598 = vadd.xlane.f32.xlu0 %v2597
    %v2599 = vpop.xlane.xlu0 %2598
    %v2600 = vsel %vm104, %v2596, 0.0
    %2601 = vadd.xlane.f32.xlu0 %v2600
    %v2602 = vpop.xlane.xlu0 %2601
    %v2603 = vmul.f32 %v2599, %v117
    %v2604 = vmul.f32 %v2602, %v117
    %v2605 = vadd.f32 %v2603, 1e-05
    %v2606 = vadd.f32 %v2604, 1e-05
    %v2607 = vrsqrt.pop %v2605
    %v2608 = vmul.f32 %v2607, %v2605
    %v2609 = vmul.f32 %v2608, %v2607
    %v2610 = vmul.f32 0.5, %v2609
    %v2611 = vsub.f32 1.5, %v2610
    %v2612 = vmul.f32 %v2607, %v2611
    %vm2613 = vweird.f32 %v2605
    %vm2614 = vweird.f32 %v2607
    %vm2615 = vmor %vm2613, %vm2614
    %v2616 = vsel %vm2615, %v2607, %v2612
    %v2617 = vrsqrt.pop %v2606
    %v2618 = vmul.f32 %v2617, %v2606
    %v2619 = vmul.f32 %v2618, %v2617
    %v2620 = vmul.f32 0.5, %v2619
    %v2621 = vsub.f32 1.5, %v2620
    %v2622 = vmul.f32 %v2617, %v2621
    %vm2623 = vweird.f32 %v2606
    %vm2624 = vweird.f32 %v2617
    %vm2625 = vmor %vm2623, %vm2624
    %v2626 = vsel %vm2625, %v2617, %v2622
    %v2627 = vmul.f32 %v2593, %v2616
    %v2628 = vmul.f32 %v2594, %v2626
    %v2629 = vperm.slane %v2532, 2
    %v2630 = vmul.f32 %v2627, %v2629
    %v2631 = vmul.f32 %v2628, %v2629
    %v2632 = vperm.slane %v2532, 3
    %v2633 = vadd.f32 %v2630, %v2632
    %v2634 = vadd.f32 %v2631, %v2632
    %2635 = vst.msk [vmem:[%s12] sm:$0xff] %vm104, %v2633
    %2636 = vst.msk [vmem:[%s12 + $0x8] sm:$0xff] %vm104, %v2634
    // Predicated region
    $region62: #{audio_flamingo_forward.2} parent=1 // pred_check
      _
    $region63: #{audio_flamingo_forward.2} parent=1 // pred_check_branch
      %2638 = sbr.rel (0) target = $region65
    $region64: #{audio_flamingo_forward.2} parent=1 // pred_region
      _
    $region65: #{audio_flamingo_forward.2} parent=1 // pred_fallthru
      _
    // Predicated region
    $region66: #{audio_flamingo_forward.2} parent=1 // pred_check
      _
    $region67: #{audio_flamingo_forward.2} parent=1 // pred_check_branch
      %2640 = sbr.rel (0) target = $region69
    $region68: #{audio_flamingo_forward.2} parent=1 // pred_region
      _
    $region69: #{audio_flamingo_forward.2} parent=1 // pred_fallthru
      _
    %2641 = vsyncpa [#allocation3], 1
    %2642 = vsyncpa [#allocation5], 1

// kernel: audio_flamingo_forward.3
$region0: #{audio_flamingo_forward.3}
  #allocation0 [shape = 'u32[]', space=smem, size = 0x4, offset = 0x4, fixed_abs, tag = 'smem constant byte address 0x4 - core index']
  #allocation1 [shape = 'u32[72,128]{1,0:T(1,128)}', space=vmem, size = 0x9000, scoped, tag = 'internal scratch']
  %s0 = inlined_call_operand.vmem [shape: s32[16,2], index: 0, kind: input, shape index: {}]
  %s1 = inlined_call_operand.vmem [shape: f32[64,32], index: 1, kind: input, shape index: {}]
  %s2 = inlined_call_operand.vmem [shape: f32[32,32], index: 2, kind: input, shape index: {}]
  %s3 = inlined_call_operand.hbm [shape: f32[2,32], index: 3, kind: input, shape index: {}]
  %s4 = inlined_call_operand.vmem [shape: f32[2,8,32], index: 4, kind: input, shape index: {}]
  %s5 = inlined_call_operand.vmem [shape: f32[2,6,32], index: 5, kind: input, shape index: {}]
  %s6 = inlined_call_operand.vmem [shape: bf16[2,32,96], index: 6, kind: input, shape index: {}]
  %s7 = inlined_call_operand.vmem [shape: bf16[2,32,32], index: 7, kind: input, shape index: {}]
  %s8 = inlined_call_operand.vmem [shape: bf16[2,32,32], index: 8, kind: input, shape index: {}]
  %s9 = inlined_call_operand.vmem [shape: bf16[2,32,64], index: 9, kind: input, shape index: {}]
  %s10 = inlined_call_operand.hbm [shape: bf16[2,32,32], index: 10, kind: input, shape index: {}]
  %s11 = inlined_call_operand.hbm [shape: bf16[2,32,128], index: 11, kind: input, shape index: {}]
  %s12 = inlined_call_operand.hbm [shape: f32[2,128], index: 12, kind: input, shape index: {}]
  %s13 = inlined_call_operand.vmem [shape: bf16[2,128,32], index: 13, kind: input, shape index: {}]
  %s14 = inlined_call_operand.hbm [shape: f32[2,32], index: 14, kind: input, shape index: {}]
  %s15 = inlined_call_operand.hbm [shape: f32[2,32], index: 15, kind: input, shape index: {}]
  %s16 = inlined_call_operand.hbm [shape: bf16[32,64], index: 16, kind: input, shape index: {}]
  %s17 = inlined_call_operand.hbm [shape: f32[1,128], index: 17, kind: output, shape index: {}]
  %s18 = sld [smem:[#allocation0]]
  $region106: #{audio_flamingo_forward.3} parent=0
    _
  %s20 = ssub.s32 1, %s18
  %s21 = scalar_select 0, %s20, %s18
  $region1: #{audio_flamingo_forward.3} parent=0
    #allocation2 [shape = 'u8[1024]{0}', space=vmem, size = 0x400, scoped, tag = 'input window, operand 3, single buffered']
    #allocation3 [shape = 's32[1]{0}', space=sflag, size = 0x4, scoped, tag = 'scoped memory for audio_flamingo_forward.3']
    #allocation4 [shape = 's32[1]{0}', space=sflag, size = 0x4, scoped, tag = 'scoped memory for audio_flamingo_forward.3']
    #allocation5 [shape = 'u8[16384]{0}', space=vmem, size = 0x4000, scoped, tag = 'input window, operand 10, single buffered']
    #allocation6 [shape = 's32[1]{0}', space=sflag, size = 0x4, scoped, tag = 'scoped memory for audio_flamingo_forward.3']
    #allocation7 [shape = 'u8[16384]{0}', space=vmem, size = 0x4000, scoped, tag = 'input window, operand 11, single buffered']
    #allocation8 [shape = 'u8[1024]{0}', space=vmem, size = 0x400, scoped, tag = 'input window, operand 12, single buffered']
    #allocation9 [shape = 's32[1]{0}', space=sflag, size = 0x4, scoped, tag = 'scoped memory for audio_flamingo_forward.3']
    #allocation10 [shape = 'u8[1024]{0}', space=vmem, size = 0x400, scoped, tag = 'input window, operand 14, single buffered']
    #allocation11 [shape = 'u8[1024]{0}', space=vmem, size = 0x400, scoped, tag = 'input window, operand 15, single buffered']
    #allocation12 [shape = 's32[1]{0}', space=sflag, size = 0x4, scoped, tag = 'scoped memory for audio_flamingo_forward.3']
    #allocation13 [shape = 'u8[8192]{0}', space=vmem, size = 0x2000, scoped, tag = 'input window, operand 16, single buffered']
    #allocation14 [shape = 'u8[512]{0}', space=vmem, size = 0x400, scoped, tag = 'output window, operand 0, single buffered']
    %22 = vsyncpa [#allocation3], 0
    %23 = vsyncpa [#allocation6], 0
    %24 = vsyncpa [#allocation9], 0
    %25 = vsyncpa [#allocation12], 0
    %26 = vsyncpa [#allocation4], 0
    // Predicated region
    $region2: #{audio_flamingo_forward.3} parent=1 // pred_check
      _
    $region3: #{audio_flamingo_forward.3} parent=1 // pred_check_branch
      %28 = sbr.rel (0) target = $region5
    $region4: #{audio_flamingo_forward.3} parent=1 // pred_region
      _
    $region5: #{audio_flamingo_forward.3} parent=1 // pred_fallthru
      _
    // Predicated region
    $region6: #{audio_flamingo_forward.3} parent=1 // pred_check
      _
    $region7: #{audio_flamingo_forward.3} parent=1 // pred_check_branch
      %30 = sbr.rel (0) target = $region9
    $region8: #{audio_flamingo_forward.3} parent=1 // pred_region
      _
    $region9: #{audio_flamingo_forward.3} parent=1 // pred_fallthru
      _
    // Predicated region
    $region10: #{audio_flamingo_forward.3} parent=1 // pred_check
      _
    $region11: #{audio_flamingo_forward.3} parent=1 // pred_check_branch
      %32 = sbr.rel (0) target = $region13
    $region12: #{audio_flamingo_forward.3} parent=1 // pred_region
      _
    $region13: #{audio_flamingo_forward.3} parent=1 // pred_fallthru
      _
    // Predicated region
    $region14: #{audio_flamingo_forward.3} parent=1 // pred_check
      _
    $region15: #{audio_flamingo_forward.3} parent=1 // pred_check_branch
      %34 = sbr.rel (0) target = $region17
    $region16: #{audio_flamingo_forward.3} parent=1 // pred_region
      %36 = vsyncadd [#allocation3], 0
      %s38 = sshll.u32 %s3, 4
      %s39 = int_to_ptr.hbm [resolvable:$true] %s38
      %s40 = sshll.u32 [#allocation2], 4
      %s41 = int_to_ptr.vmem [resolvable:$true] %s40
      %43 = dma.hbm_to_vmem [thread:$0]  %s39, 32, %s41, [#allocation3]
    $region17: #{audio_flamingo_forward.3} parent=1 // pred_fallthru
      _
    // Predicated region
    $region18: #{audio_flamingo_forward.3} parent=1 // pred_check
      _
    $region19: #{audio_flamingo_forward.3} parent=1 // pred_check_branch
      %45 = sbr.rel (0) target = $region21
    $region20: #{audio_flamingo_forward.3} parent=1 // pred_region
      _
    $region21: #{audio_flamingo_forward.3} parent=1 // pred_fallthru
      _
    // Predicated region
    $region22: #{audio_flamingo_forward.3} parent=1 // pred_check
      _
    $region23: #{audio_flamingo_forward.3} parent=1 // pred_check_branch
      %47 = sbr.rel (0) target = $region25
    $region24: #{audio_flamingo_forward.3} parent=1 // pred_region
      _
    $region25: #{audio_flamingo_forward.3} parent=1 // pred_fallthru
      _
    // Predicated region
    $region26: #{audio_flamingo_forward.3} parent=1 // pred_check
      _
    $region27: #{audio_flamingo_forward.3} parent=1 // pred_check_branch
      %49 = sbr.rel (0) target = $region29
    $region28: #{audio_flamingo_forward.3} parent=1 // pred_region
      _
    $region29: #{audio_flamingo_forward.3} parent=1 // pred_fallthru
      _
    // Predicated region
    $region30: #{audio_flamingo_forward.3} parent=1 // pred_check
      _
    $region31: #{audio_flamingo_forward.3} parent=1 // pred_check_branch
      %51 = sbr.rel (0) target = $region33
    $region32: #{audio_flamingo_forward.3} parent=1 // pred_region
      _
    $region33: #{audio_flamingo_forward.3} parent=1 // pred_fallthru
      _
    // Predicated region
    $region34: #{audio_flamingo_forward.3} parent=1 // pred_check
      _
    $region35: #{audio_flamingo_forward.3} parent=1 // pred_check_branch
      %53 = sbr.rel (0) target = $region37
    $region36: #{audio_flamingo_forward.3} parent=1 // pred_region
      _
    $region37: #{audio_flamingo_forward.3} parent=1 // pred_fallthru
      _
    // Predicated region
    $region38: #{audio_flamingo_forward.3} parent=1 // pred_check
      _
    $region39: #{audio_flamingo_forward.3} parent=1 // pred_check_branch
      %55 = sbr.rel (0) target = $region41
    $region40: #{audio_flamingo_forward.3} parent=1 // pred_region
      _
    $region41: #{audio_flamingo_forward.3} parent=1 // pred_fallthru
      _
    // Predicated region
    $region42: #{audio_flamingo_forward.3} parent=1 // pred_check
      _
    $region43: #{audio_flamingo_forward.3} parent=1 // pred_check_branch
      %57 = sbr.rel (0) target = $region45
    $region44: #{audio_flamingo_forward.3} parent=1 // pred_region
      %59 = vsyncadd [#allocation6], 0
      %s60 = sshll.u32 %s10, 4
      %s61 = int_to_ptr.hbm [resolvable:$true] %s60
      %s62 = sshll.u32 [#allocation5], 4
      %s63 = int_to_ptr.vmem [resolvable:$true] %s62
      %68 = dma.hbm_to_vmem [thread:$0]  %s61, 512, %s63, [#allocation6], 64, 64, 4
    $region45: #{audio_flamingo_forward.3} parent=1 // pred_fallthru
      _
    // Predicated region
    $region46: #{audio_flamingo_forward.3} parent=1 // pred_check
      _
    $region47: #{audio_flamingo_forward.3} parent=1 // pred_check_branch
      %70 = sbr.rel (0) target = $region49
    $region48: #{audio_flamingo_forward.3} parent=1 // pred_region
      %72 = vsyncadd [#allocation6], 0
      %s73 = sshll.u32 %s11, 4
      %s74 = int_to_ptr.hbm [resolvable:$true] %s73
      %s75 = sshll.u32 [#allocation7], 4
      %s76 = int_to_ptr.vmem [resolvable:$true] %s75
      %81 = dma.hbm_to_vmem [thread:$0]  %s74, 512, %s76, [#allocation6], 64, 64, 4
    $region49: #{audio_flamingo_forward.3} parent=1 // pred_fallthru
      _
    // Predicated region
    $region50: #{audio_flamingo_forward.3} parent=1 // pred_check
      _
    $region51: #{audio_flamingo_forward.3} parent=1 // pred_check_branch
      %83 = sbr.rel (0) target = $region53
    $region52: #{audio_flamingo_forward.3} parent=1 // pred_region
      %85 = vsyncadd [#allocation9], 0
      %s87 = sshll.u32 %s12, 4
      %s88 = int_to_ptr.hbm [resolvable:$true] %s87
      %s89 = sshll.u32 [#allocation8], 4
      %s90 = int_to_ptr.vmem [resolvable:$true] %s89
      %92 = dma.hbm_to_vmem [thread:$0]  %s88, 32, %s90, [#allocation9]
    $region53: #{audio_flamingo_forward.3} parent=1 // pred_fallthru
      _
    // Predicated region
    $region54: #{audio_flamingo_forward.3} parent=1 // pred_check
      _
    $region55: #{audio_flamingo_forward.3} parent=1 // pred_check_branch
      %94 = sbr.rel (0) target = $region57
    $region56: #{audio_flamingo_forward.3} parent=1 // pred_region
      _
    $region57: #{audio_flamingo_forward.3} parent=1 // pred_fallthru
      _
    // Predicated region
    $region58: #{audio_flamingo_forward.3} parent=1 // pred_check
      _
    $region59: #{audio_flamingo_forward.3} parent=1 // pred_check_branch
      %96 = sbr.rel (0) target = $region61
    $region60: #{audio_flamingo_forward.3} parent=1 // pred_region
      %98 = vsyncadd [#allocation9], 0
      %s100 = sshll.u32 %s14, 4
      %s101 = int_to_ptr.hbm [resolvable:$true] %s100
      %s102 = sshll.u32 [#allocation10], 4
      %s103 = int_to_ptr.vmem [resolvable:$true] %s102
      %105 = dma.hbm_to_vmem [thread:$0]  %s101, 32, %s103, [#allocation9]
    $region61: #{audio_flamingo_forward.3} parent=1 // pred_fallthru
      _
    // Predicated region
    $region62: #{audio_flamingo_forward.3} parent=1 // pred_check
      _
    $region63: #{audio_flamingo_forward.3} parent=1 // pred_check_branch
      %107 = sbr.rel (0) target = $region65
    $region64: #{audio_flamingo_forward.3} parent=1 // pred_region
      %109 = vsyncadd [#allocation12], 0
      %s111 = sshll.u32 %s15, 4
      %s112 = int_to_ptr.hbm [resolvable:$true] %s111
      %s113 = sshll.u32 [#allocation11], 4
      %s114 = int_to_ptr.vmem [resolvable:$true] %s113
      %116 = dma.hbm_to_vmem [thread:$0]  %s112, 32, %s114, [#allocation12]
    $region65: #{audio_flamingo_forward.3} parent=1 // pred_fallthru
      _
    // Predicated region
    $region66: #{audio_flamingo_forward.3} parent=1 // pred_check
      _
    $region67: #{audio_flamingo_forward.3} parent=1 // pred_check_branch
      %118 = sbr.rel (0) target = $region69
    $region68: #{audio_flamingo_forward.3} parent=1 // pred_region
      %120 = vsyncadd [#allocation12], 0
      %s121 = sshll.u32 %s16, 4
      %s122 = int_to_ptr.hbm [resolvable:$true] %s121
      %s123 = sshll.u32 [#allocation13], 4
      %s124 = int_to_ptr.vmem [resolvable:$true] %s123
      %129 = dma.hbm_to_vmem [thread:$0]  %s122, 256, %s124, [#allocation12], 64, 64, 4
    $region69: #{audio_flamingo_forward.3} parent=1 // pred_fallthru
      _
    // Predicated region
    $region70: #{audio_flamingo_forward.3} parent=1 // pred_check
      _
    $region71: #{audio_flamingo_forward.3} parent=1 // pred_check_branch
      %131 = sbr.rel (0) target = $region73
    $region72: #{audio_flamingo_forward.3} parent=1 // pred_region
      %133 = dma.done [#allocation3], 32
    $region73: #{audio_flamingo_forward.3} parent=1 // pred_fallthru
      _
    // Predicated region
    $region74: #{audio_flamingo_forward.3} parent=1 // pred_check
      _
    $region75: #{audio_flamingo_forward.3} parent=1 // pred_check_branch
      %135 = sbr.rel (0) target = $region77
    $region76: #{audio_flamingo_forward.3} parent=1 // pred_region
      %137 = dma.done [#allocation6], 512
    $region77: #{audio_flamingo_forward.3} parent=1 // pred_fallthru
      _
    // Predicated region
    $region78: #{audio_flamingo_forward.3} parent=1 // pred_check
      _
    $region79: #{audio_flamingo_forward.3} parent=1 // pred_check_branch
      %139 = sbr.rel (0) target = $region81
    $region80: #{audio_flamingo_forward.3} parent=1 // pred_region
      %141 = dma.done [#allocation6], 512
    $region81: #{audio_flamingo_forward.3} parent=1 // pred_fallthru
      _
    // Predicated region
    $region82: #{audio_flamingo_forward.3} parent=1 // pred_check
      _
    $region83: #{audio_flamingo_forward.3} parent=1 // pred_check_branch
      %143 = sbr.rel (0) target = $region85
    $region84: #{audio_flamingo_forward.3} parent=1 // pred_region
      %145 = dma.done [#allocation9], 32
    $region85: #{audio_flamingo_forward.3} parent=1 // pred_fallthru
      _
    // Predicated region
    $region86: #{audio_flamingo_forward.3} parent=1 // pred_check
      _
    $region87: #{audio_flamingo_forward.3} parent=1 // pred_check_branch
      %147 = sbr.rel (0) target = $region89
    $region88: #{audio_flamingo_forward.3} parent=1 // pred_region
      %149 = dma.done [#allocation9], 32
    $region89: #{audio_flamingo_forward.3} parent=1 // pred_fallthru
      _
    // Predicated region
    $region90: #{audio_flamingo_forward.3} parent=1 // pred_check
      _
    $region91: #{audio_flamingo_forward.3} parent=1 // pred_check_branch
      %151 = sbr.rel (0) target = $region93
    $region92: #{audio_flamingo_forward.3} parent=1 // pred_region
      %153 = dma.done [#allocation12], 32
    $region93: #{audio_flamingo_forward.3} parent=1 // pred_fallthru
      _
    // Predicated region
    $region94: #{audio_flamingo_forward.3} parent=1 // pred_check
      _
    $region95: #{audio_flamingo_forward.3} parent=1 // pred_check_branch
      %155 = sbr.rel (0) target = $region97
    $region96: #{audio_flamingo_forward.3} parent=1 // pred_region
      %157 = dma.done [#allocation12], 256
    $region97: #{audio_flamingo_forward.3} parent=1 // pred_fallthru
      _
    %v159 = vld [vmem:[%s0] sm:$0xff]
    %v160 = vld [vmem:[%s0 + $0x8] sm:$0xff]
    %v161 = vlaneseq
    %v162 = vand.u32 %v161, 127
    %163 = vset.pattern.permute.xlu0 0
    %164 = vperm.xlu0 %163, %v159
    %v165 = vpop.permute.xlu0 %164
    %166 = vset.pattern.permute.xlu0 0
    %167 = vperm.xlu0 %166, %v160
    %v168 = vpop.permute.xlu0 %167
    %vm169 = vcmp.eq.s32.totalorder %v162, %v165
    %vm170 = vcmp.eq.s32.totalorder %v162, %v168
    %v171 = vsel %vm169, 1, 0
    %v172 = vsel %vm170, 1, 0
    %v173 = vcvt.s32.f32 %v171
    %v174 = vcvt.s32.f32 %v172
    %175 = vset.pattern.permute.xlu0 1
    %176 = vperm.xlu0 %175, %v159
    %v177 = vpop.permute.xlu0 %176
    %178 = vset.pattern.permute.xlu0 1
    %179 = vperm.xlu0 %178, %v160
    %v180 = vpop.permute.xlu0 %179
    %vm181 = vcmp.eq.s32.totalorder %v162, %v177
    %vm182 = vcmp.eq.s32.totalorder %v162, %v180
    %v183 = vsel %vm181, 1, 0
    %v184 = vsel %vm182, 1, 0
    %v185 = vcvt.s32.f32 %v183
    %v186 = vcvt.s32.f32 %v184
    %v187 = vld [vmem:[%s1] sm:$0xff]
    %v188 = vld [vmem:[%s1 + $0x8] sm:$0xff]
    %v189 = vld [vmem:[%s1 + $0x10] sm:$0xff]
    %v190 = vld [vmem:[%s1 + $0x18] sm:$0xff]
    %v191 = vld [vmem:[%s1 + $0x20] sm:$0xff]
    %v192 = vld [vmem:[%s1 + $0x28] sm:$0xff]
    %v193 = vld [vmem:[%s1 + $0x30] sm:$0xff]
    %v194 = vld [vmem:[%s1 + $0x38] sm:$0xff]
    %vm195 = vcmask 523264
    %v197 = vsel %vm195, %v173, 0
    %v200 = vsel %vm195, %v174, 0
    %202 = vmatpush.msra.mxu0 0.0
    %203 = vmatpush.msra.mxu0 0.0
    %204 = vmatpush.msra.mxu0 0.0
    %205 = vmatpush.msra.mxu0 0.0
    %206 = vmatpush.msra.mxu0 0.0
    %207 = vmatpush.msra.mxu0 0.0
    %208 = vmatpush.msra.mxu0 0.0
    %209 = vmatpush.msra.mxu0 0.0
    %210 = vmatpush.msra.mxu0 %v194
    %211 = vmatpush.msra.mxu0 %v193
    %212 = vmatpush.msra.mxu0 %v192
    %213 = vmatpush.msra.mxu0 %v191
    %214 = vmatpush.msra.mxu0 %v190
    %215 = vmatpush.msra.mxu0 %v189
    %216 = vmatpush.msra.mxu0 %v188
    %217 = vmatpush.msra.mxu0 %v187
    %218 = vmatmul.f32.gmra.mxu0 %v197
    %v219 = vpop.f32.mrf.mxu0
    %v220 = vadd.f32 0.0, %v219
    %221 = vmatmul.f32.gmra.mxu0 %v200
    %v222 = vpop.f32.mrf.mxu0
    %v223 = vadd.f32 0.0, %v222
    %224 = vdwg.mxu0
    %v225 = vld [vmem:[%s2] sm:$0xff]
    %v226 = vadd.f32 %v220, %v225
    %v227 = vadd.f32 %v223, %v225
    %v228 = vld [vmem:[#allocation2] sm:$0x3]
    %vm229 = vcmask 261120
    %v230 = vsel %vm229, %v226, 0.0
    %231 = vadd.xlane.f32.xlu0 %v230
    %v232 = vpop.xlane.xlu0 %231
    %v233 = vsel %vm229, %v227, 0.0
    %234 = vadd.xlane.f32.xlu0 %v233
    %v235 = vpop.xlane.xlu0 %234
    %v236 = vrcp.pop 32.0
    %v237 = vmul.f32 32.0, %v236
    %v238 = vsub.f32 1.0, %v237
    %v239 = vmul.f32 %v236, %v238
    %v240 = vadd.f32 %v236, %v239
    %vm241 = vweird.f32 %v236
    %v242 = vsel %vm241, %v236, %v240
    %v243 = vmul.f32 %v232, %v242
    %v244 = vmul.f32 %v235, %v242
    %v245 = vsub.f32 %v226, %v243
    %v246 = vsub.f32 %v227, %v244
    %v247 = vmul.f32 %v245, %v245
    %v248 = vmul.f32 %v246, %v246
    %v249 = vsel %vm229, %v247, 0.0
    %250 = vadd.xlane.f32.xlu0 %v249
    %v251 = vpop.xlane.xlu0 %250
    %v252 = vsel %vm229, %v248, 0.0
    %253 = vadd.xlane.f32.xlu0 %v252
    %v254 = vpop.xlane.xlu0 %253
    %v255 = vmul.f32 %v251, %v242
    %v256 = vmul.f32 %v254, %v242
    %v257 = vadd.f32 %v255, 1e-05
    %v258 = vadd.f32 %v256, 1e-05
    %v259 = vrsqrt.pop %v257
    %v260 = vmul.f32 %v259, %v257
    %v261 = vmul.f32 %v260, %v259
    %v262 = vmul.f32 0.5, %v261
    %v263 = vsub.f32 1.5, %v262
    %v264 = vmul.f32 %v259, %v263
    %vm265 = vweird.f32 %v257
    %vm266 = vweird.f32 %v259
    %vm267 = vmor %vm265, %vm266
    %v268 = vsel %vm267, %v259, %v264
    %v269 = vrsqrt.pop %v258
    %v270 = vmul.f32 %v269, %v258
    %v271 = vmul.f32 %v270, %v269
    %v272 = vmul.f32 0.5, %v271
    %v273 = vsub.f32 1.5, %v272
    %v274 = vmul.f32 %v269, %v273
    %vm275 = vweird.f32 %v258
    %vm276 = vweird.f32 %v269
    %vm277 = vmor %vm275, %vm276
    %v278 = vsel %vm277, %v269, %v274
    %v279 = vmul.f32 %v245, %v268
    %v280 = vmul.f32 %v246, %v278
    %v281 = vperm.slane %v228, 0
    %v282 = vmul.f32 %v279, %v281
    %v283 = vmul.f32 %v280, %v281
    %v284 = vperm.slane %v228, 1
    %v285 = vadd.f32 %v282, %v284
    %v286 = vadd.f32 %v283, %v284
    %v287 = vlaneseq
    %v288 = vshrl.u32 %v287, 7
    %vm289 = vcmp.le.s32.totalorder %v162, %v288
    %v290 = vld [vmem:[%s4] sm:$0xff]
    %v291 = vld [vmem:[%s4 + $0x8] sm:$0xff]
    %v292 = vld [vmem:[%s5] sm:$0x3f]
    %v293 = vsel %vm229, %v285, 0.0
    %294 = vadd.xlane.f32.xlu0 %v293
    %v295 = vpop.xlane.xlu0 %294
    %v296 = vsel %vm229, %v286, 0.0
    %297 = vadd.xlane.f32.xlu0 %v296
    %v298 = vpop.xlane.xlu0 %297
    %v299 = vmul.f32 %v295, %v242
    %v300 = vmul.f32 %v298, %v242
    %v301 = vsub.f32 %v285, %v299
    %v302 = vsub.f32 %v286, %v300
    %v303 = vmul.f32 %v301, %v301
    %v304 = vmul.f32 %v302, %v302
    %v305 = vsel %vm229, %v303, 0.0
    %306 = vadd.xlane.f32.xlu0 %v305
    %v307 = vpop.xlane.xlu0 %306
    %v308 = vsel %vm229, %v304, 0.0
    %309 = vadd.xlane.f32.xlu0 %v308
    %v310 = vpop.xlane.xlu0 %309
    %v311 = vmul.f32 %v307, %v242
    %v312 = vmul.f32 %v310, %v242
    %v313 = vadd.f32 %v311, 1e-05
    %v314 = vadd.f32 %v312, 1e-05
    %v315 = vrsqrt.pop %v313
    %v316 = vmul.f32 %v315, %v313
    %v317 = vmul.f32 %v316, %v315
    %v318 = vmul.f32 0.5, %v317
    %v319 = vsub.f32 1.5, %v318
    %v320 = vmul.f32 %v315, %v319
    %vm321 = vweird.f32 %v313
    %vm322 = vweird.f32 %v315
    %vm323 = vmor %vm321, %vm322
    %v324 = vsel %vm323, %v315, %v320
    %v325 = vrsqrt.pop %v314
    %v326 = vmul.f32 %v325, %v314
    %v327 = vmul.f32 %v326, %v325
    %v328 = vmul.f32 0.5, %v327
    %v329 = vsub.f32 1.5, %v328
    %v330 = vmul.f32 %v325, %v329
    %vm331 = vweird.f32 %v314
    %vm332 = vweird.f32 %v325
    %vm333 = vmor %vm331, %vm332
    %v334 = vsel %vm333, %v325, %v330
    %v335 = vmul.f32 %v301, %v324
    %v336 = vmul.f32 %v302, %v334
    %v337 = vperm.slane %v292, 0
    %v338 = vmul.f32 %v335, %v337
    %v339 = vmul.f32 %v336, %v337
    %v340 = vperm.slane %v292, 1
    %v341 = vadd.f32 %v338, %v340
    %v342 = vadd.f32 %v339, %v340
    %v343 = vld [vmem:[%s6] sm:$0xf]
    %v344 = vld [vmem:[%s6 + $0x4] sm:$0xf]
    %v345 = vld [vmem:[%s6 + $0x8] sm:$0xf]
    %v346 = vld [vmem:[%s6 + $0xc] sm:$0xf]
    %v347 = vpack.c.bf16 %v342, %v341
    %v352 = vunpack.c.l.b16 %v343
    %v353 = vunpack.c.l.b16 %v344
    %v354 = vunpack.c.l.b16 %v345
    %v355 = vunpack.c.l.b16 %v346
    %v356 = vpack.c.b16 %v353, %v352
    %v357 = vpack.c.b16 %v355, %v354
    %v361 = vsel %vm229, %v347, 0
    %363 = vmatpush.bf16.msra.mxu0 0
    %364 = vmatpush.bf16.msra.mxu0 0
    %365 = vmatpush.bf16.msra.mxu0 0
    %366 = vmatpush.bf16.msra.mxu0 0
    %367 = vmatpush.bf16.msra.mxu0 0
    %368 = vmatpush.bf16.msra.mxu0 0
    %369 = vmatpush.bf16.msra.mxu0 %v357
    %370 = vmatpush.bf16.msra.mxu0 %v356
    %371 = vmatmul.bf16.gmra.mxu0 %v361
    %v372 = vpop.f32.mrf.mxu0
    %v373 = vadd.f32 0.0, %v372
    %v374 = vpop.f32.mrf.mxu0
    %v375 = vadd.f32 0.0, %v374
    %376 = vdwg.mxu0
    %v377 = vpack.c.bf16 %v373, %v373
    %v378 = vpack.c.bf16 %v375, %v375
    %v380 = vunpack.c.l.b16 %v377
    %v381 = vpack.c.b16 %v380, %v380
    %382 = vrot.lane.b32.xlu0 %v381, 96
    %v383 = vpop.permute.xlu0 %382
    %vm384 = vcmask 130048
    %v386 = vsel %vm384, %v377, 0
    %v389 = vsel %vm384, %v383, 0
    %391 = vmatpush.bf16.xpose.msra.mxu0 0
    %392 = vmatpush.bf16.xpose.msra.mxu0 0
    %393 = vmatpush.bf16.xpose.msra.mxu0 0
    %394 = vmatpush.bf16.xpose.msra.mxu0 0
    %395 = vmatpush.bf16.xpose.msra.mxu0 0
    %396 = vmatpush.bf16.xpose.msra.mxu0 0
    %397 = vmatpush.bf16.xpose.msra.mxu0 0
    %398 = vmatpush.bf16.xpose.msra.mxu0 %v389
    %399 = vmatmul.bf16.gmra.mxu0 %v386
    %v400 = vpop.f32.mrf.mxu0
    %v401 = vadd.f32 0.0, %v400
    %v402 = vpop.f32.mrf.mxu0
    %403 = vdwg.mxu0
    %v405 = vunpack.c.l.b16 %v378
    %v406 = vpack.c.b16 %v405, %v405
    %407 = vrot.lane.b32.xlu0 %v406, 96
    %v408 = vpop.permute.xlu0 %407
    %v410 = vsel %vm384, %v378, 0
    %v413 = vsel %vm384, %v408, 0
    %415 = vmatpush.bf16.xpose.msra.mxu0 0
    %416 = vmatpush.bf16.xpose.msra.mxu0 0
    %417 = vmatpush.bf16.xpose.msra.mxu0 0
    %418 = vmatpush.bf16.xpose.msra.mxu0 0
    %419 = vmatpush.bf16.xpose.msra.mxu0 0
    %420 = vmatpush.bf16.xpose.msra.mxu0 0
    %421 = vmatpush.bf16.xpose.msra.mxu0 0
    %422 = vmatpush.bf16.xpose.msra.mxu0 %v413
    %423 = vmatmul.bf16.gmra.mxu0 %v410
    %v424 = vpop.f32.mrf.mxu0
    %v425 = vadd.f32 0.0, %v424
    %v426 = vpop.f32.mrf.mxu0
    %427 = vdwg.mxu0
    %v428 = vmul.f32 %v401, 0.25
    %v429 = vmul.f32 %v425, 0.25
    %v430 = vsel %vm289, 1, 0
    %vm431 = vcmp.eq.s32.totalorder %v430, 1
    %v432 = vsel %vm431, %v428, -1e+30
    %v433 = vsel %vm431, %v429, -1e+30
    %vm434 = vcmask 64512
    %v435 = vsel %vm434, %v432, -inf
    %436 = vmax.xlane.f32.xlu0 %v435
    %v437 = vpop.xlane.xlu0 %436
    %v438 = vsel %vm434, %v433, -inf
    %439 = vmax.xlane.f32.xlu0 %v438
    %v440 = vpop.xlane.xlu0 %439
    %v441 = vsub.f32 %v432, %v437
    %v442 = vsub.f32 %v433, %v440
    %v443 = vmul.f32 %v441, 1.442695
    %v444 = vpow.pop %v443
    %v445 = vmul.f32 %v442, 1.442695
    %v446 = vpow.pop %v445
    %v447 = vsel %vm434, %v444, 0.0
    %448 = vadd.xlane.f32.xlu0 %v447
    %v449 = vpop.xlane.xlu0 %448
    %v450 = vsel %vm434, %v446, 0.0
    %451 = vadd.xlane.f32.xlu0 %v450
    %v452 = vpop.xlane.xlu0 %451
    %v453 = vrcp.pop %v449
    %v454 = vmul.f32 %v449, %v453
    %v455 = vsub.f32 1.0, %v454
    %v456 = vmul.f32 %v453, %v455
    %v457 = vadd.f32 %v453, %v456
    %vm458 = vweird.f32 %v449
    %vm459 = vweird.f32 %v453
    %vm460 = vmor %vm458, %vm459
    %v461 = vsel %vm460, %v453, %v457
    %v462 = vand.u32 2147483647, %v449
    %vm463 = vcmp.eq.f32.partialorder %v462, 8.507059e+37
    %v464 = vand.u32 %v449, 2147483648
    %v465 = vor.u32 1.1754944e-38, %v464
    %v466 = vsel %vm463, %v465, %v461
    %v467 = vmul.f32 %v444, %v466
    %v468 = vrcp.pop %v452
    %v469 = vmul.f32 %v452, %v468
    %v470 = vsub.f32 1.0, %v469
    %v471 = vmul.f32 %v468, %v470
    %v472 = vadd.f32 %v468, %v471
    %vm473 = vweird.f32 %v452
    %vm474 = vweird.f32 %v468
    %vm475 = vmor %vm473, %vm474
    %v476 = vsel %vm475, %v468, %v472
    %v477 = vand.u32 2147483647, %v452
    %vm478 = vcmp.eq.f32.partialorder %v477, 8.507059e+37
    %v479 = vand.u32 %v452, 2147483648
    %v480 = vor.u32 1.1754944e-38, %v479
    %v481 = vsel %vm478, %v480, %v476
    %v482 = vmul.f32 %v446, %v481
    %v483 = vpack.c.bf16 %v467, %v467
    %v484 = vpack.c.bf16 %v482, %v482
    %485 = vrot.lane.b32.xlu0 %v381, 64
    %v486 = vpop.permute.xlu0 %485
    %v488 = vsel %vm434, %v483, 0
    %vm490 = vcmask 1043456
    %v492 = vsel %vm490, %v486, 0
    %494 = vmatpush.bf16.msra.mxu0 0
    %495 = vmatpush.bf16.msra.mxu0 0
    %496 = vmatpush.bf16.msra.mxu0 0
    %497 = vmatpush.bf16.msra.mxu0 0
    %498 = vmatpush.bf16.msra.mxu0 0
    %499 = vmatpush.bf16.msra.mxu0 0
    %500 = vmatpush.bf16.msra.mxu0 0
    %501 = vmatpush.bf16.msra.mxu0 %v492
    %502 = vmatmul.bf16.gmra.mxu0 %v488
    %v503 = vpop.f32.mrf.mxu0
    %v504 = vadd.f32 0.0, %v503
    %v505 = vpop.f32.mrf.mxu0
    %506 = vdwg.mxu0
    %507 = vrot.lane.b32.xlu0 %v406, 64
    %v508 = vpop.permute.xlu0 %507
    %v510 = vsel %vm434, %v484, 0
    %v513 = vsel %vm490, %v508, 0
    %515 = vmatpush.bf16.msra.mxu0 0
    %516 = vmatpush.bf16.msra.mxu0 0
    %517 = vmatpush.bf16.msra.mxu0 0
    %518 = vmatpush.bf16.msra.mxu0 0
    %519 = vmatpush.bf16.msra.mxu0 0
    %520 = vmatpush.bf16.msra.mxu0 0
    %521 = vmatpush.bf16.msra.mxu0 0
    %522 = vmatpush.bf16.msra.mxu0 %v513
    %523 = vmatmul.bf16.gmra.mxu0 %v510
    %v524 = vpop.f32.mrf.mxu0
    %v525 = vadd.f32 0.0, %v524
    %v526 = vpop.f32.mrf.mxu0
    %527 = vdwg.mxu0
    %528 = vrot.lane.b32.xlu0 %v381, 112
    %v529 = vpop.permute.xlu0 %528
    %530 = vrot.lane.b32.xlu0 %v381, 80
    %v531 = vpop.permute.xlu0 %530
    %v533 = vsel %vm384, %v529, 0
    %v536 = vsel %vm384, %v531, 0
    %538 = vmatpush.bf16.xpose.msra.mxu0 0
    %539 = vmatpush.bf16.xpose.msra.mxu0 0
    %540 = vmatpush.bf16.xpose.msra.mxu0 0
    %541 = vmatpush.bf16.xpose.msra.mxu0 0
    %542 = vmatpush.bf16.xpose.msra.mxu0 0
    %543 = vmatpush.bf16.xpose.msra.mxu0 0
    %544 = vmatpush.bf16.xpose.msra.mxu0 0
    %545 = vmatpush.bf16.xpose.msra.mxu0 %v536
    %546 = vmatmul.bf16.gmra.mxu0 %v533
    %v547 = vpop.f32.mrf.mxu0
    %v548 = vadd.f32 0.0, %v547
    %v549 = vpop.f32.mrf.mxu0
    %550 = vdwg.mxu0
    %551 = vrot.lane.b32.xlu0 %v406, 112
    %v552 = vpop.permute.xlu0 %551
    %553 = vrot.lane.b32.xlu0 %v406, 80
    %v554 = vpop.permute.xlu0 %553
    %v556 = vsel %vm384, %v552, 0
    %v559 = vsel %vm384, %v554, 0
    %561 = vmatpush.bf16.xpose.msra.mxu0 0
    %562 = vmatpush.bf16.xpose.msra.mxu0 0
    %563 = vmatpush.bf16.xpose.msra.mxu0 0
    %564 = vmatpush.bf16.xpose.msra.mxu0 0
    %565 = vmatpush.bf16.xpose.msra.mxu0 0
    %566 = vmatpush.bf16.xpose.msra.mxu0 0
    %567 = vmatpush.bf16.xpose.msra.mxu0 0
    %568 = vmatpush.bf16.xpose.msra.mxu0 %v559
    %569 = vmatmul.bf16.gmra.mxu0 %v556
    %v570 = vpop.f32.mrf.mxu0
    %v571 = vadd.f32 0.0, %v570
    %v572 = vpop.f32.mrf.mxu0
    %573 = vdwg.mxu0
    %v574 = vmul.f32 %v548, 0.25
    %v575 = vmul.f32 %v571, 0.25
    %v576 = vsel %vm431, %v574, -1e+30
    %v577 = vsel %vm431, %v575, -1e+30
    %v578 = vsel %vm434, %v576, -inf
    %579 = vmax.xlane.f32.xlu0 %v578
    %v580 = vpop.xlane.xlu0 %579
    %v581 = vsel %vm434, %v577, -inf
    %582 = vmax.xlane.f32.xlu0 %v581
    %v583 = vpop.xlane.xlu0 %582
    %v584 = vsub.f32 %v576, %v580
    %v585 = vsub.f32 %v577, %v583
    %v586 = vmul.f32 %v584, 1.442695
    %v587 = vpow.pop %v586
    %v588 = vmul.f32 %v585, 1.442695
    %v589 = vpow.pop %v588
    %v590 = vsel %vm434, %v587, 0.0
    %591 = vadd.xlane.f32.xlu0 %v590
    %v592 = vpop.xlane.xlu0 %591
    %v593 = vsel %vm434, %v589, 0.0
    %594 = vadd.xlane.f32.xlu0 %v593
    %v595 = vpop.xlane.xlu0 %594
    %v596 = vrcp.pop %v592
    %v597 = vmul.f32 %v592, %v596
    %v598 = vsub.f32 1.0, %v597
    %v599 = vmul.f32 %v596, %v598
    %v600 = vadd.f32 %v596, %v599
    %vm601 = vweird.f32 %v592
    %vm602 = vweird.f32 %v596
    %vm603 = vmor %vm601, %vm602
    %v604 = vsel %vm603, %v596, %v600
    %v605 = vand.u32 2147483647, %v592
    %vm606 = vcmp.eq.f32.partialorder %v605, 8.507059e+37
    %v607 = vand.u32 %v592, 2147483648
    %v608 = vor.u32 1.1754944e-38, %v607
    %v609 = vsel %vm606, %v608, %v604
    %v610 = vmul.f32 %v587, %v609
    %v611 = vrcp.pop %v595
    %v612 = vmul.f32 %v595, %v611
    %v613 = vsub.f32 1.0, %v612
    %v614 = vmul.f32 %v611, %v613
    %v615 = vadd.f32 %v611, %v614
    %vm616 = vweird.f32 %v595
    %vm617 = vweird.f32 %v611
    %vm618 = vmor %vm616, %vm617
    %v619 = vsel %vm618, %v611, %v615
    %v620 = vand.u32 2147483647, %v595
    %vm621 = vcmp.eq.f32.partialorder %v620, 8.507059e+37
    %v622 = vand.u32 %v595, 2147483648
    %v623 = vor.u32 1.1754944e-38, %v622
    %v624 = vsel %vm621, %v623, %v619
    %v625 = vmul.f32 %v589, %v624
    %v626 = vpack.c.bf16 %v610, %v610
    %v627 = vpack.c.bf16 %v625, %v625
    %628 = vrot.lane.b32.xlu0 %v381, 48
    %v629 = vpop.permute.xlu0 %628
    %v631 = vsel %vm434, %v626, 0
    %v634 = vsel %vm490, %v629, 0
    %636 = vmatpush.bf16.msra.mxu0 0
    %637 = vmatpush.bf16.msra.mxu0 0
    %638 = vmatpush.bf16.msra.mxu0 0
    %639 = vmatpush.bf16.msra.mxu0 0
    %640 = vmatpush.bf16.msra.mxu0 0
    %641 = vmatpush.bf16.msra.mxu0 0
    %642 = vmatpush.bf16.msra.mxu0 0
    %643 = vmatpush.bf16.msra.mxu0 %v634
    %644 = vmatmul.bf16.gmra.mxu0 %v631
    %v645 = vpop.f32.mrf.mxu0
    %v646 = vadd.f32 0.0, %v645
    %v647 = vpop.f32.mrf.mxu0
    %648 = vdwg.mxu0
    %649 = vrot.lane.b32.xlu0 %v406, 48
    %v650 = vpop.permute.xlu0 %649
    %v652 = vsel %vm434, %v627, 0
    %v655 = vsel %vm490, %v650, 0
    %657 = vmatpush.bf16.msra.mxu0 0
    %658 = vmatpush.bf16.msra.mxu0 0
    %659 = vmatpush.bf16.msra.mxu0 0
    %660 = vmatpush.bf16.msra.mxu0 0
    %661 = vmatpush.bf16.msra.mxu0 0
    %662 = vmatpush.bf16.msra.mxu0 0
    %663 = vmatpush.bf16.msra.mxu0 0
    %664 = vmatpush.bf16.msra.mxu0 %v655
    %665 = vmatmul.bf16.gmra.mxu0 %v652
    %v666 = vpop.f32.mrf.mxu0
    %v667 = vadd.f32 0.0, %v666
    %v668 = vpop.f32.mrf.mxu0
    %669 = vdwg.mxu0
    %672 = vrot.lane.b32.xlu0 %v646, 16
    %v673 = vpop.permute.xlu0 %672
    %674 = vrot.lane.b32.xlu0 %v667, 16
    %v675 = vpop.permute.xlu0 %674
    %v678 = vsel %vm384, %v504, %v673
    %v679 = vsel %vm384, %v525, %v675
    %v680 = vld [vmem:[%s7] sm:$0xf]
    %v681 = vld [vmem:[%s7 + $0x4] sm:$0xf]
    %v682 = vld [vmem:[%s7 + $0x8] sm:$0xf]
    %v683 = vld [vmem:[%s7 + $0xc] sm:$0xf]
    %v684 = vpack.c.bf16 %v679, %v678
    %v689 = vunpack.c.l.b16 %v680
    %v690 = vunpack.c.l.b16 %v681
    %v691 = vunpack.c.l.b16 %v682
    %v692 = vunpack.c.l.b16 %v683
    %v693 = vpack.c.b16 %v690, %v689
    %v694 = vpack.c.b16 %v692, %v691
    %v698 = vsel %vm229, %v684, 0
    %700 = vmatpush.bf16.msra.mxu0 0
    %701 = vmatpush.bf16.msra.mxu0 0
    %702 = vmatpush.bf16.msra.mxu0 0
    %703 = vmatpush.bf16.msra.mxu0 0
    %704 = vmatpush.bf16.msra.mxu0 0
    %705 = vmatpush.bf16.msra.mxu0 0
    %706 = vmatpush.bf16.msra.mxu0 %v694
    %707 = vmatpush.bf16.msra.mxu0 %v693
    %708 = vmatmul.bf16.gmra.mxu0 %v698
    %v709 = vpop.f32.mrf.mxu0
    %v710 = vadd.f32 0.0, %v709
    %v711 = vpop.f32.mrf.mxu0
    %v712 = vadd.f32 0.0, %v711
    %713 = vdwg.mxu0
    %v714 = vadd.f32 %v285, %v710
    %v715 = vadd.f32 %v286, %v712
    %v716 = vsel %vm229, %v714, 0.0
    %717 = vadd.xlane.f32.xlu0 %v716
    %v718 = vpop.xlane.xlu0 %717
    %v719 = vsel %vm229, %v715, 0.0
    %720 = vadd.xlane.f32.xlu0 %v719
    %v721 = vpop.xlane.xlu0 %720
    %v722 = vmul.f32 %v718, %v242
    %v723 = vmul.f32 %v721, %v242
    %v724 = vsub.f32 %v714, %v722
    %v725 = vsub.f32 %v715, %v723
    %v726 = vmul.f32 %v724, %v724
    %v727 = vmul.f32 %v725, %v725
    %v728 = vsel %vm229, %v726, 0.0
    %729 = vadd.xlane.f32.xlu0 %v728
    %v730 = vpop.xlane.xlu0 %729
    %v731 = vsel %vm229, %v727, 0.0
    %732 = vadd.xlane.f32.xlu0 %v731
    %v733 = vpop.xlane.xlu0 %732
    %v734 = vmul.f32 %v730, %v242
    %v735 = vmul.f32 %v733, %v242
    %v736 = vadd.f32 %v734, 1e-05
    %v737 = vadd.f32 %v735, 1e-05
    %v738 = vrsqrt.pop %v736
    %v739 = vmul.f32 %v738, %v736
    %v740 = vmul.f32 %v739, %v738
    %v741 = vmul.f32 0.5, %v740
    %v742 = vsub.f32 1.5, %v741
    %v743 = vmul.f32 %v738, %v742
    %vm744 = vweird.f32 %v736
    %vm745 = vweird.f32 %v738
    %vm746 = vmor %vm744, %vm745
    %v747 = vsel %vm746, %v738, %v743
    %v748 = vrsqrt.pop %v737
    %v749 = vmul.f32 %v748, %v737
    %v750 = vmul.f32 %v749, %v748
    %v751 = vmul.f32 0.5, %v750
    %v752 = vsub.f32 1.5, %v751
    %v753 = vmul.f32 %v748, %v752
    %vm754 = vweird.f32 %v737
    %vm755 = vweird.f32 %v748
    %vm756 = vmor %vm754, %vm755
    %v757 = vsel %vm756, %v748, %v753
    %v758 = vmul.f32 %v724, %v747
    %v759 = vmul.f32 %v725, %v757
    %v760 = vperm.slane %v292, 2
    %v761 = vmul.f32 %v758, %v760
    %v762 = vmul.f32 %v759, %v760
    %v763 = vperm.slane %v292, 3
    %v764 = vadd.f32 %v761, %v763
    %v765 = vadd.f32 %v762, %v763
    %v766 = vld [vmem:[%s8] sm:$0xf]
    %v767 = vld [vmem:[%s8 + $0x4] sm:$0xf]
    %v768 = vld [vmem:[%s8 + $0x8] sm:$0xf]
    %v769 = vld [vmem:[%s8 + $0xc] sm:$0xf]
    %v770 = vpack.c.bf16 %v765, %v764
    %v775 = vunpack.c.l.b16 %v766
    %v776 = vunpack.c.l.b16 %v767
    %v777 = vunpack.c.l.b16 %v768
    %v778 = vunpack.c.l.b16 %v769
    %v779 = vpack.c.b16 %v776, %v775
    %v780 = vpack.c.b16 %v778, %v777
    %v784 = vsel %vm229, %v770, 0
    %786 = vmatpush.bf16.msra.mxu0 0
    %787 = vmatpush.bf16.msra.mxu0 0
    %788 = vmatpush.bf16.msra.mxu0 0
    %789 = vmatpush.bf16.msra.mxu0 0
    %790 = vmatpush.bf16.msra.mxu0 0
    %791 = vmatpush.bf16.msra.mxu0 0
    %792 = vmatpush.bf16.msra.mxu0 %v780
    %793 = vmatpush.bf16.msra.mxu0 %v779
    %794 = vmatmul.bf16.gmra.mxu0 %v784
    %v795 = vpop.f32.mrf.mxu0
    %v796 = vadd.f32 0.0, %v795
    %v797 = vpop.f32.mrf.mxu0
    %v798 = vadd.f32 0.0, %v797
    %799 = vdwg.mxu0
    %v800 = vld [vmem:[%s9] sm:$0xf]
    %v801 = vld [vmem:[%s9 + $0x4] sm:$0xf]
    %v802 = vld [vmem:[%s9 + $0x8] sm:$0xf]
    %v803 = vld [vmem:[%s9 + $0xc] sm:$0xf]
    %v804 = vpack.c.bf16 %v291, %v290
    %v809 = vunpack.c.l.b16 %v800
    %v810 = vunpack.c.l.b16 %v801
    %v811 = vunpack.c.l.b16 %v802
    %v812 = vunpack.c.l.b16 %v803
    %v813 = vpack.c.b16 %v810, %v809
    %v814 = vpack.c.b16 %v812, %v811
    %v818 = vsel %vm229, %v804, 0
    %820 = vmatpush.bf16.msra.mxu0 0
    %821 = vmatpush.bf16.msra.mxu0 0
    %822 = vmatpush.bf16.msra.mxu0 0
    %823 = vmatpush.bf16.msra.mxu0 0
    %824 = vmatpush.bf16.msra.mxu0 0
    %825 = vmatpush.bf16.msra.mxu0 0
    %826 = vmatpush.bf16.msra.mxu0 %v814
    %827 = vmatpush.bf16.msra.mxu0 %v813
    %828 = vmatmul.bf16.gmra.mxu0 %v818
    %v829 = vpop.f32.mrf.mxu0
    %v830 = vadd.f32 0.0, %v829
    %v831 = vpop.f32.mrf.mxu0
    %v832 = vadd.f32 0.0, %v831
    %833 = vdwg.mxu0
    %v834 = vpack.c.bf16 %v796, %v796
    %v835 = vpack.c.bf16 %v798, %v798
    %v836 = vpack.c.bf16 %v830, %v830
    %v837 = vpack.c.bf16 %v832, %v832
    %v839 = vsel %vm384, %v834, 0
    %v842 = vsel %vm384, %v836, 0
    %844 = vmatpush.bf16.xpose.msra.mxu0 0
    %845 = vmatpush.bf16.xpose.msra.mxu0 0
    %846 = vmatpush.bf16.xpose.msra.mxu0 0
    %847 = vmatpush.bf16.xpose.msra.mxu0 0
    %848 = vmatpush.bf16.xpose.msra.mxu0 0
    %849 = vmatpush.bf16.xpose.msra.mxu0 0
    %850 = vmatpush.bf16.xpose.msra.mxu0 0
    %851 = vmatpush.bf16.xpose.msra.mxu0 %v842
    %852 = vmatmul.bf16.gmra.mxu0 %v839
    %v853 = vpop.f32.mrf.mxu0
    %v854 = vadd.f32 0.0, %v853
    %v855 = vpop.f32.mrf.mxu0
    %856 = vdwg.mxu0
    %v858 = vsel %vm384, %v835, 0
    %v861 = vsel %vm384, %v837, 0
    %863 = vmatpush.bf16.xpose.msra.mxu0 0
    %864 = vmatpush.bf16.xpose.msra.mxu0 0
    %865 = vmatpush.bf16.xpose.msra.mxu0 0
    %866 = vmatpush.bf16.xpose.msra.mxu0 0
    %867 = vmatpush.bf16.xpose.msra.mxu0 0
    %868 = vmatpush.bf16.xpose.msra.mxu0 0
    %869 = vmatpush.bf16.xpose.msra.mxu0 0
    %870 = vmatpush.bf16.xpose.msra.mxu0 %v861
    %871 = vmatmul.bf16.gmra.mxu0 %v858
    %v872 = vpop.f32.mrf.mxu0
    %v873 = vadd.f32 0.0, %v872
    %v874 = vpop.f32.mrf.mxu0
    %875 = vdwg.mxu0
    %v876 = vmul.f32 %v854, 0.25
    %v877 = vmul.f32 %v873, 0.25
    %v878 = vsel %vm434, %v876, -inf
    %879 = vmax.xlane.f32.xlu0 %v878
    %v880 = vpop.xlane.xlu0 %879
    %v881 = vsel %vm434, %v877, -inf
    %882 = vmax.xlane.f32.xlu0 %v881
    %v883 = vpop.xlane.xlu0 %882
    %v884 = vsub.f32 %v876, %v880
    %v885 = vsub.f32 %v877, %v883
    %v886 = vmul.f32 %v884, 1.442695
    %v887 = vpow.pop %v886
    %v888 = vmul.f32 %v885, 1.442695
    %v889 = vpow.pop %v888
    %v890 = vsel %vm434, %v887, 0.0
    %891 = vadd.xlane.f32.xlu0 %v890
    %v892 = vpop.xlane.xlu0 %891
    %v893 = vsel %vm434, %v889, 0.0
    %894 = vadd.xlane.f32.xlu0 %v893
    %v895 = vpop.xlane.xlu0 %894
    %v896 = vrcp.pop %v892
    %v897 = vmul.f32 %v892, %v896
    %v898 = vsub.f32 1.0, %v897
    %v899 = vmul.f32 %v896, %v898
    %v900 = vadd.f32 %v896, %v899
    %vm901 = vweird.f32 %v892
    %vm902 = vweird.f32 %v896
    %vm903 = vmor %vm901, %vm902
    %v904 = vsel %vm903, %v896, %v900
    %v905 = vand.u32 2147483647, %v892
    %vm906 = vcmp.eq.f32.partialorder %v905, 8.507059e+37
    %v907 = vand.u32 %v892, 2147483648
    %v908 = vor.u32 1.1754944e-38, %v907
    %v909 = vsel %vm906, %v908, %v904
    %v910 = vmul.f32 %v887, %v909
    %v911 = vrcp.pop %v895
    %v912 = vmul.f32 %v895, %v911
    %v913 = vsub.f32 1.0, %v912
    %v914 = vmul.f32 %v911, %v913
    %v915 = vadd.f32 %v911, %v914
    %vm916 = vweird.f32 %v895
    %vm917 = vweird.f32 %v911
    %vm918 = vmor %vm916, %vm917
    %v919 = vsel %vm918, %v911, %v915
    %v920 = vand.u32 2147483647, %v895
    %vm921 = vcmp.eq.f32.partialorder %v920, 8.507059e+37
    %v922 = vand.u32 %v895, 2147483648
    %v923 = vor.u32 1.1754944e-38, %v922
    %v924 = vsel %vm921, %v923, %v919
    %v925 = vmul.f32 %v889, %v924
    %v926 = vpack.c.bf16 %v910, %v910
    %v927 = vpack.c.bf16 %v925, %v925
    %v929 = vunpack.c.l.b16 %v836
    %v930 = vpack.c.b16 %v929, %v929
    %931 = vrot.lane.b32.xlu0 %v930, 96
    %v932 = vpop.permute.xlu0 %931
    %v934 = vsel %vm434, %v926, 0
    %v937 = vsel %vm490, %v932, 0
    %939 = vmatpush.bf16.msra.mxu0 0
    %940 = vmatpush.bf16.msra.mxu0 0
    %941 = vmatpush.bf16.msra.mxu0 0
    %942 = vmatpush.bf16.msra.mxu0 0
    %943 = vmatpush.bf16.msra.mxu0 0
    %944 = vmatpush.bf16.msra.mxu0 0
    %945 = vmatpush.bf16.msra.mxu0 0
    %946 = vmatpush.bf16.msra.mxu0 %v937
    %947 = vmatmul.bf16.gmra.mxu0 %v934
    %v948 = vpop.f32.mrf.mxu0
    %v949 = vadd.f32 0.0, %v948
    %v950 = vpop.f32.mrf.mxu0
    %951 = vdwg.mxu0
    %v953 = vunpack.c.l.b16 %v837
    %v954 = vpack.c.b16 %v953, %v953
    %955 = vrot.lane.b32.xlu0 %v954, 96
    %v956 = vpop.permute.xlu0 %955
    %v958 = vsel %vm434, %v927, 0
    %v961 = vsel %vm490, %v956, 0
    %963 = vmatpush.bf16.msra.mxu0 0
    %964 = vmatpush.bf16.msra.mxu0 0
    %965 = vmatpush.bf16.msra.mxu0 0
    %966 = vmatpush.bf16.msra.mxu0 0
    %967 = vmatpush.bf16.msra.mxu0 0
    %968 = vmatpush.bf16.msra.mxu0 0
    %969 = vmatpush.bf16.msra.mxu0 0
    %970 = vmatpush.bf16.msra.mxu0 %v961
    %971 = vmatmul.bf16.gmra.mxu0 %v958
    %v972 = vpop.f32.mrf.mxu0
    %v973 = vadd.f32 0.0, %v972
    %v974 = vpop.f32.mrf.mxu0
    %975 = vdwg.mxu0
    %v977 = vunpack.c.l.b16 %v834
    %v978 = vpack.c.b16 %v977, %v977
    %979 = vrot.lane.b32.xlu0 %v978, 112
    %v980 = vpop.permute.xlu0 %979
    %981 = vrot.lane.b32.xlu0 %v930, 112
    %v982 = vpop.permute.xlu0 %981
    %v984 = vsel %vm384, %v980, 0
    %v987 = vsel %vm384, %v982, 0
    %989 = vmatpush.bf16.xpose.msra.mxu0 0
    %990 = vmatpush.bf16.xpose.msra.mxu0 0
    %991 = vmatpush.bf16.xpose.msra.mxu0 0
    %992 = vmatpush.bf16.xpose.msra.mxu0 0
    %993 = vmatpush.bf16.xpose.msra.mxu0 0
    %994 = vmatpush.bf16.xpose.msra.mxu0 0
    %995 = vmatpush.bf16.xpose.msra.mxu0 0
    %996 = vmatpush.bf16.xpose.msra.mxu0 %v987
    %997 = vmatmul.bf16.gmra.mxu0 %v984
    %v998 = vpop.f32.mrf.mxu0
    %v999 = vadd.f32 0.0, %v998
    %v1000 = vpop.f32.mrf.mxu0
    %1001 = vdwg.mxu0
    %v1003 = vunpack.c.l.b16 %v835
    %v1004 = vpack.c.b16 %v1003, %v1003
    %1005 = vrot.lane.b32.xlu0 %v1004, 112
    %v1006 = vpop.permute.xlu0 %1005
    %1007 = vrot.lane.b32.xlu0 %v954, 112
    %v1008 = vpop.permute.xlu0 %1007
    %v1010 = vsel %vm384, %v1006, 0
    %v1013 = vsel %vm384, %v1008, 0
    %1015 = vmatpush.bf16.xpose.msra.mxu0 0
    %1016 = vmatpush.bf16.xpose.msra.mxu0 0
    %1017 = vmatpush.bf16.xpose.msra.mxu0 0
    %1018 = vmatpush.bf16.xpose.msra.mxu0 0
    %1019 = vmatpush.bf16.xpose.msra.mxu0 0
    %1020 = vmatpush.bf16.xpose.msra.mxu0 0
    %1021 = vmatpush.bf16.xpose.msra.mxu0 0
    %1022 = vmatpush.bf16.xpose.msra.mxu0 %v1013
    %1023 = vmatmul.bf16.gmra.mxu0 %v1010
    %v1024 = vpop.f32.mrf.mxu0
    %v1025 = vadd.f32 0.0, %v1024
    %v1026 = vpop.f32.mrf.mxu0
    %1027 = vdwg.mxu0
    %v1028 = vmul.f32 %v999, 0.25
    %v1029 = vmul.f32 %v1025, 0.25
    %v1030 = vsel %vm434, %v1028, -inf
    %1031 = vmax.xlane.f32.xlu0 %v1030
    %v1032 = vpop.xlane.xlu0 %1031
    %v1033 = vsel %vm434, %v1029, -inf
    %1034 = vmax.xlane.f32.xlu0 %v1033
    %v1035 = vpop.xlane.xlu0 %1034
    %v1036 = vsub.f32 %v1028, %v1032
    %v1037 = vsub.f32 %v1029, %v1035
    %v1038 = vmul.f32 %v1036, 1.442695
    %v1039 = vpow.pop %v1038
    %v1040 = vmul.f32 %v1037, 1.442695
    %v1041 = vpow.pop %v1040
    %v1042 = vsel %vm434, %v1039, 0.0
    %1043 = vadd.xlane.f32.xlu0 %v1042
    %v1044 = vpop.xlane.xlu0 %1043
    %v1045 = vsel %vm434, %v1041, 0.0
    %1046 = vadd.xlane.f32.xlu0 %v1045
    %v1047 = vpop.xlane.xlu0 %1046
    %v1048 = vrcp.pop %v1044
    %v1049 = vmul.f32 %v1044, %v1048
    %v1050 = vsub.f32 1.0, %v1049
    %v1051 = vmul.f32 %v1048, %v1050
    %v1052 = vadd.f32 %v1048, %v1051
    %vm1053 = vweird.f32 %v1044
    %vm1054 = vweird.f32 %v1048
    %vm1055 = vmor %vm1053, %vm1054
    %v1056 = vsel %vm1055, %v1048, %v1052
    %v1057 = vand.u32 2147483647, %v1044
    %vm1058 = vcmp.eq.f32.partialorder %v1057, 8.507059e+37
    %v1059 = vand.u32 %v1044, 2147483648
    %v1060 = vor.u32 1.1754944e-38, %v1059
    %v1061 = vsel %vm1058, %v1060, %v1056
    %v1062 = vmul.f32 %v1039, %v1061
    %v1063 = vrcp.pop %v1047
    %v1064 = vmul.f32 %v1047, %v1063
    %v1065 = vsub.f32 1.0, %v1064
    %v1066 = vmul.f32 %v1063, %v1065
    %v1067 = vadd.f32 %v1063, %v1066
    %vm1068 = vweird.f32 %v1047
    %vm1069 = vweird.f32 %v1063
    %vm1070 = vmor %vm1068, %vm1069
    %v1071 = vsel %vm1070, %v1063, %v1067
    %v1072 = vand.u32 2147483647, %v1047
    %vm1073 = vcmp.eq.f32.partialorder %v1072, 8.507059e+37
    %v1074 = vand.u32 %v1047, 2147483648
    %v1075 = vor.u32 1.1754944e-38, %v1074
    %v1076 = vsel %vm1073, %v1075, %v1071
    %v1077 = vmul.f32 %v1041, %v1076
    %v1078 = vpack.c.bf16 %v1062, %v1062
    %v1079 = vpack.c.bf16 %v1077, %v1077
    %1080 = vrot.lane.b32.xlu0 %v930, 80
    %v1081 = vpop.permute.xlu0 %1080
    %v1083 = vsel %vm434, %v1078, 0
    %v1086 = vsel %vm490, %v1081, 0
    %1088 = vmatpush.bf16.msra.mxu0 0
    %1089 = vmatpush.bf16.msra.mxu0 0
    %1090 = vmatpush.bf16.msra.mxu0 0
    %1091 = vmatpush.bf16.msra.mxu0 0
    %1092 = vmatpush.bf16.msra.mxu0 0
    %1093 = vmatpush.bf16.msra.mxu0 0
    %1094 = vmatpush.bf16.msra.mxu0 0
    %1095 = vmatpush.bf16.msra.mxu0 %v1086
    %1096 = vmatmul.bf16.gmra.mxu0 %v1083
    %v1097 = vpop.f32.mrf.mxu0
    %v1098 = vadd.f32 0.0, %v1097
    %v1099 = vpop.f32.mrf.mxu0
    %1100 = vdwg.mxu0
    %1101 = vrot.lane.b32.xlu0 %v954, 80
    %v1102 = vpop.permute.xlu0 %1101
    %v1104 = vsel %vm434, %v1079, 0
    %v1107 = vsel %vm490, %v1102, 0
    %1109 = vmatpush.bf16.msra.mxu0 0
    %1110 = vmatpush.bf16.msra.mxu0 0
    %1111 = vmatpush.bf16.msra.mxu0 0
    %1112 = vmatpush.bf16.msra.mxu0 0
    %1113 = vmatpush.bf16.msra.mxu0 0
    %1114 = vmatpush.bf16.msra.mxu0 0
    %1115 = vmatpush.bf16.msra.mxu0 0
    %1116 = vmatpush.bf16.msra.mxu0 %v1107
    %1117 = vmatmul.bf16.gmra.mxu0 %v1104
    %v1118 = vpop.f32.mrf.mxu0
    %v1119 = vadd.f32 0.0, %v1118
    %v1120 = vpop.f32.mrf.mxu0
    %1121 = vdwg.mxu0
    %1124 = vrot.lane.b32.xlu0 %v1098, 16
    %v1125 = vpop.permute.xlu0 %1124
    %1126 = vrot.lane.b32.xlu0 %v1119, 16
    %v1127 = vpop.permute.xlu0 %1126
    %v1130 = vsel %vm384, %v949, %v1125
    %v1131 = vsel %vm384, %v973, %v1127
    %v1132 = vld [vmem:[#allocation5] sm:$0xf]
    %v1133 = vld [vmem:[#allocation5 + $0x4] sm:$0xf]
    %v1134 = vld [vmem:[#allocation5 + $0x8] sm:$0xf]
    %v1135 = vld [vmem:[#allocation5 + $0xc] sm:$0xf]
    %v1136 = vpack.c.bf16 %v1131, %v1130
    %v1141 = vunpack.c.l.b16 %v1132
    %v1142 = vunpack.c.l.b16 %v1133
    %v1143 = vunpack.c.l.b16 %v1134
    %v1144 = vunpack.c.l.b16 %v1135
    %v1145 = vpack.c.b16 %v1142, %v1141
    %v1146 = vpack.c.b16 %v1144, %v1143
    %v1150 = vsel %vm229, %v1136, 0
    %1152 = vmatpush.bf16.msra.mxu0 0
    %1153 = vmatpush.bf16.msra.mxu0 0
    %1154 = vmatpush.bf16.msra.mxu0 0
    %1155 = vmatpush.bf16.msra.mxu0 0
    %1156 = vmatpush.bf16.msra.mxu0 0
    %1157 = vmatpush.bf16.msra.mxu0 0
    %1158 = vmatpush.bf16.msra.mxu0 %v1146
    %1159 = vmatpush.bf16.msra.mxu0 %v1145
    %1160 = vmatmul.bf16.gmra.mxu0 %v1150
    %v1161 = vpop.f32.mrf.mxu0
    %v1162 = vadd.f32 0.0, %v1161
    %v1163 = vpop.f32.mrf.mxu0
    %v1164 = vadd.f32 0.0, %v1163
    %1165 = vdwg.mxu0
    %v1166 = vadd.f32 %v714, %v1162
    %v1167 = vadd.f32 %v715, %v1164
    %v1168 = vsel %vm229, %v1166, 0.0
    %1169 = vadd.xlane.f32.xlu0 %v1168
    %v1170 = vpop.xlane.xlu0 %1169
    %v1171 = vsel %vm229, %v1167, 0.0
    %1172 = vadd.xlane.f32.xlu0 %v1171
    %v1173 = vpop.xlane.xlu0 %1172
    %v1174 = vmul.f32 %v1170, %v242
    %v1175 = vmul.f32 %v1173, %v242
    %v1176 = vsub.f32 %v1166, %v1174
    %v1177 = vsub.f32 %v1167, %v1175
    %v1178 = vmul.f32 %v1176, %v1176
    %v1179 = vmul.f32 %v1177, %v1177
    %v1180 = vsel %vm229, %v1178, 0.0
    %1181 = vadd.xlane.f32.xlu0 %v1180
    %v1182 = vpop.xlane.xlu0 %1181
    %v1183 = vsel %vm229, %v1179, 0.0
    %1184 = vadd.xlane.f32.xlu0 %v1183
    %v1185 = vpop.xlane.xlu0 %1184
    %v1186 = vmul.f32 %v1182, %v242
    %v1187 = vmul.f32 %v1185, %v242
    %v1188 = vadd.f32 %v1186, 1e-05
    %v1189 = vadd.f32 %v1187, 1e-05
    %v1190 = vrsqrt.pop %v1188
    %v1191 = vmul.f32 %v1190, %v1188
    %v1192 = vmul.f32 %v1191, %v1190
    %v1193 = vmul.f32 0.5, %v1192
    %v1194 = vsub.f32 1.5, %v1193
    %v1195 = vmul.f32 %v1190, %v1194
    %vm1196 = vweird.f32 %v1188
    %vm1197 = vweird.f32 %v1190
    %vm1198 = vmor %vm1196, %vm1197
    %v1199 = vsel %vm1198, %v1190, %v1195
    %v1200 = vrsqrt.pop %v1189
    %v1201 = vmul.f32 %v1200, %v1189
    %v1202 = vmul.f32 %v1201, %v1200
    %v1203 = vmul.f32 0.5, %v1202
    %v1204 = vsub.f32 1.5, %v1203
    %v1205 = vmul.f32 %v1200, %v1204
    %vm1206 = vweird.f32 %v1189
    %vm1207 = vweird.f32 %v1200
    %vm1208 = vmor %vm1206, %vm1207
    %v1209 = vsel %vm1208, %v1200, %v1205
    %v1210 = vmul.f32 %v1176, %v1199
    %v1211 = vmul.f32 %v1177, %v1209
    %v1212 = vperm.slane %v292, 4
    %v1213 = vmul.f32 %v1210, %v1212
    %v1214 = vmul.f32 %v1211, %v1212
    %v1215 = vperm.slane %v292, 5
    %v1216 = vadd.f32 %v1213, %v1215
    %v1217 = vadd.f32 %v1214, %v1215
    %v1218 = vld [vmem:[#allocation7] sm:$0xf]
    %v1219 = vld [vmem:[#allocation7 + $0x4] sm:$0xf]
    %v1220 = vld [vmem:[#allocation7 + $0x8] sm:$0xf]
    %v1221 = vld [vmem:[#allocation7 + $0xc] sm:$0xf]
    %v1222 = vpack.c.bf16 %v1217, %v1216
    %v1223 = vld [vmem:[#allocation8] sm:$0x3]
    %v1224 = vperm.slane %v1223, 0
    %v1229 = vunpack.c.l.b16 %v1218
    %v1230 = vunpack.c.l.b16 %v1219
    %v1231 = vunpack.c.l.b16 %v1220
    %v1232 = vunpack.c.l.b16 %v1221
    %v1233 = vpack.c.b16 %v1230, %v1229
    %v1234 = vpack.c.b16 %v1232, %v1231
    %v1238 = vsel %vm229, %v1222, 0
    %1240 = vmatpush.bf16.msra.mxu0 0
    %1241 = vmatpush.bf16.msra.mxu0 0
    %1242 = vmatpush.bf16.msra.mxu0 0
    %1243 = vmatpush.bf16.msra.mxu0 0
    %1244 = vmatpush.bf16.msra.mxu0 0
    %1245 = vmatpush.bf16.msra.mxu0 0
    %1246 = vmatpush.bf16.msra.mxu0 %v1234
    %1247 = vmatpush.bf16.msra.mxu0 %v1233
    %1248 = vmatmul.bf16.gmra.mxu0 %v1238
    %v1249 = vpop.f32.mrf.mxu0
    %v1250 = vadd.f32 %v1224, %v1249
    %v1251 = vpop.f32.mrf.mxu0
    %v1252 = vadd.f32 %v1224, %v1251
    %1253 = vdwg.mxu0
    %v1254 = vmul.f32 %v1250, %v1250
    %v1255 = vmul.f32 %v1252, %v1252
    %v1256 = vmul.f32 %v1250, %v1254
    %v1257 = vmul.f32 %v1252, %v1255
    %v1258 = vmul.f32 %v1256, 0.044715
    %v1259 = vmul.f32 %v1257, 0.044715
    %v1260 = vadd.f32 %v1250, %v1258
    %v1261 = vadd.f32 %v1252, %v1259
    %v1262 = vmul.f32 %v1260, 0.7978846
    %v1263 = vmul.f32 %v1261, 0.7978846
    %v1264 = vtanh.pop %v1262
    %v1265 = vtanh.pop %v1263
    %v1266 = vadd.f32 %v1264, 1.0
    %v1267 = vadd.f32 %v1265, 1.0
    %v1268 = vmul.f32 %v1266, 0.5
    %v1269 = vmul.f32 %v1267, 0.5
    %v1270 = vmul.f32 %v1250, %v1268
    %v1271 = vmul.f32 %v1252, %v1269
    %v1272 = vld [vmem:[%s13] sm:$0xf]
    %v1273 = vld [vmem:[%s13 + $0x4] sm:$0xf]
    %v1274 = vld [vmem:[%s13 + $0x8] sm:$0xf]
    %v1275 = vld [vmem:[%s13 + $0xc] sm:$0xf]
    %v1276 = vld [vmem:[%s13 + $0x10] sm:$0xf]
    %v1277 = vld [vmem:[%s13 + $0x14] sm:$0xf]
    %v1278 = vld [vmem:[%s13 + $0x18] sm:$0xf]
    %v1279 = vld [vmem:[%s13 + $0x1c] sm:$0xf]
    %v1280 = vld [vmem:[%s13 + $0x20] sm:$0xf]
    %v1281 = vld [vmem:[%s13 + $0x24] sm:$0xf]
    %v1282 = vld [vmem:[%s13 + $0x28] sm:$0xf]
    %v1283 = vld [vmem:[%s13 + $0x2c] sm:$0xf]
    %v1284 = vld [vmem:[%s13 + $0x30] sm:$0xf]
    %v1285 = vld [vmem:[%s13 + $0x34] sm:$0xf]
    %v1286 = vld [vmem:[%s13 + $0x38] sm:$0xf]
    %v1287 = vld [vmem:[%s13 + $0x3c] sm:$0xf]
    %v1288 = vpack.c.bf16 %v1271, %v1270
    %v1305 = vunpack.c.l.b16 %v1272
    %v1306 = vunpack.c.l.b16 %v1273
    %v1307 = vunpack.c.l.b16 %v1274
    %v1308 = vunpack.c.l.b16 %v1275
    %v1309 = vunpack.c.l.b16 %v1276
    %v1310 = vunpack.c.l.b16 %v1277
    %v1311 = vunpack.c.l.b16 %v1278
    %v1312 = vunpack.c.l.b16 %v1279
    %v1313 = vunpack.c.l.b16 %v1280
    %v1314 = vunpack.c.l.b16 %v1281
    %v1315 = vunpack.c.l.b16 %v1282
    %v1316 = vunpack.c.l.b16 %v1283
    %v1317 = vunpack.c.l.b16 %v1284
    %v1318 = vunpack.c.l.b16 %v1285
    %v1319 = vunpack.c.l.b16 %v1286
    %v1320 = vunpack.c.l.b16 %v1287
    %v1321 = vpack.c.b16 %v1306, %v1305
    %v1322 = vpack.c.b16 %v1308, %v1307
    %v1323 = vpack.c.b16 %v1310, %v1309
    %v1324 = vpack.c.b16 %v1312, %v1311
    %v1325 = vpack.c.b16 %v1314, %v1313
    %v1326 = vpack.c.b16 %v1316, %v1315
    %v1327 = vpack.c.b16 %v1318, %v1317
    %v1328 = vpack.c.b16 %v1320, %v1319
    %1337 = vmatpush.bf16.msra.mxu0 %v1328
    %1338 = vmatpush.bf16.msra.mxu0 %v1327
    %1339 = vmatpush.bf16.msra.mxu0 %v1326
    %1340 = vmatpush.bf16.msra.mxu0 %v1325
    %1341 = vmatpush.bf16.msra.mxu0 %v1324
    %1342 = vmatpush.bf16.msra.mxu0 %v1323
    %1343 = vmatpush.bf16.msra.mxu0 %v1322
    %1344 = vmatpush.bf16.msra.mxu0 %v1321
    %1345 = vmatmul.bf16.gmra.mxu0 %v1288
    %v1346 = vpop.f32.mrf.mxu0
    %v1347 = vadd.f32 0.0, %v1346
    %v1348 = vpop.f32.mrf.mxu0
    %v1349 = vadd.f32 0.0, %v1348
    %1350 = vdwg.mxu0
    %v1351 = vadd.f32 %v1166, %v1347
    %v1352 = vadd.f32 %v1167, %v1349
    %v1353 = vld [vmem:[#allocation10] sm:$0x3]
    %v1354 = vperm.slane %v1353, 0
    %v1355 = vadd.f32 %v1351, %v1354
    %v1356 = vadd.f32 %v1352, %v1354
    %s1357 = scalar_lea.vmem %s5, 8
    %v1358 = vld [vmem:[%s1357] sm:$0x3f]
    %v1359 = vsel %vm229, %v1355, 0.0
    %1360 = vadd.xlane.f32.xlu0 %v1359
    %v1361 = vpop.xlane.xlu0 %1360
    %v1362 = vsel %vm229, %v1356, 0.0
    %1363 = vadd.xlane.f32.xlu0 %v1362
    %v1364 = vpop.xlane.xlu0 %1363
    %v1365 = vmul.f32 %v1361, %v242
    %v1366 = vmul.f32 %v1364, %v242
    %v1367 = vsub.f32 %v1355, %v1365
    %v1368 = vsub.f32 %v1356, %v1366
    %v1369 = vmul.f32 %v1367, %v1367
    %v1370 = vmul.f32 %v1368, %v1368
    %v1371 = vsel %vm229, %v1369, 0.0
    %1372 = vadd.xlane.f32.xlu0 %v1371
    %v1373 = vpop.xlane.xlu0 %1372
    %v1374 = vsel %vm229, %v1370, 0.0
    %1375 = vadd.xlane.f32.xlu0 %v1374
    %v1376 = vpop.xlane.xlu0 %1375
    %v1377 = vmul.f32 %v1373, %v242
    %v1378 = vmul.f32 %v1376, %v242
    %v1379 = vadd.f32 %v1377, 1e-05
    %v1380 = vadd.f32 %v1378, 1e-05
    %v1381 = vrsqrt.pop %v1379
    %v1382 = vmul.f32 %v1381, %v1379
    %v1383 = vmul.f32 %v1382, %v1381
    %v1384 = vmul.f32 0.5, %v1383
    %v1385 = vsub.f32 1.5, %v1384
    %v1386 = vmul.f32 %v1381, %v1385
    %vm1387 = vweird.f32 %v1379
    %vm1388 = vweird.f32 %v1381
    %vm1389 = vmor %vm1387, %vm1388
    %v1390 = vsel %vm1389, %v1381, %v1386
    %v1391 = vrsqrt.pop %v1380
    %v1392 = vmul.f32 %v1391, %v1380
    %v1393 = vmul.f32 %v1392, %v1391
    %v1394 = vmul.f32 0.5, %v1393
    %v1395 = vsub.f32 1.5, %v1394
    %v1396 = vmul.f32 %v1391, %v1395
    %vm1397 = vweird.f32 %v1380
    %vm1398 = vweird.f32 %v1391
    %vm1399 = vmor %vm1397, %vm1398
    %v1400 = vsel %vm1399, %v1391, %v1396
    %v1401 = vmul.f32 %v1367, %v1390
    %v1402 = vmul.f32 %v1368, %v1400
    %v1403 = vperm.slane %v1358, 0
    %v1404 = vmul.f32 %v1401, %v1403
    %v1405 = vmul.f32 %v1402, %v1403
    %v1406 = vperm.slane %v1358, 1
    %v1407 = vadd.f32 %v1404, %v1406
    %v1408 = vadd.f32 %v1405, %v1406
    %s1409 = scalar_lea.vmem %s6, 16
    %v1410 = vld [vmem:[%s1409] sm:$0xf]
    %v1411 = vld [vmem:[%s1409 + $0x4] sm:$0xf]
    %v1412 = vld [vmem:[%s1409 + $0x8] sm:$0xf]
    %v1413 = vld [vmem:[%s1409 + $0xc] sm:$0xf]
    %v1414 = vpack.c.bf16 %v1408, %v1407
    %v1419 = vunpack.c.l.b16 %v1410
    %v1420 = vunpack.c.l.b16 %v1411
    %v1421 = vunpack.c.l.b16 %v1412
    %v1422 = vunpack.c.l.b16 %v1413
    %v1423 = vpack.c.b16 %v1420, %v1419
    %v1424 = vpack.c.b16 %v1422, %v1421
    %v1428 = vsel %vm229, %v1414, 0
    %1430 = vmatpush.bf16.msra.mxu0 0
    %1431 = vmatpush.bf16.msra.mxu0 0
    %1432 = vmatpush.bf16.msra.mxu0 0
    %1433 = vmatpush.bf16.msra.mxu0 0
    %1434 = vmatpush.bf16.msra.mxu0 0
    %1435 = vmatpush.bf16.msra.mxu0 0
    %1436 = vmatpush.bf16.msra.mxu0 %v1424
    %1437 = vmatpush.bf16.msra.mxu0 %v1423
    %1438 = vmatmul.bf16.gmra.mxu0 %v1428
    %v1439 = vpop.f32.mrf.mxu0
    %v1440 = vadd.f32 0.0, %v1439
    %v1441 = vpop.f32.mrf.mxu0
    %v1442 = vadd.f32 0.0, %v1441
    %1443 = vdwg.mxu0
    %v1444 = vpack.c.bf16 %v1440, %v1440
    %v1445 = vpack.c.bf16 %v1442, %v1442
    %v1447 = vunpack.c.l.b16 %v1444
    %v1448 = vpack.c.b16 %v1447, %v1447
    %1449 = vrot.lane.b32.xlu0 %v1448, 96
    %v1450 = vpop.permute.xlu0 %1449
    %v1452 = vsel %vm384, %v1444, 0
    %v1455 = vsel %vm384, %v1450, 0
    %1457 = vmatpush.bf16.xpose.msra.mxu0 0
    %1458 = vmatpush.bf16.xpose.msra.mxu0 0
    %1459 = vmatpush.bf16.xpose.msra.mxu0 0
    %1460 = vmatpush.bf16.xpose.msra.mxu0 0
    %1461 = vmatpush.bf16.xpose.msra.mxu0 0
    %1462 = vmatpush.bf16.xpose.msra.mxu0 0
    %1463 = vmatpush.bf16.xpose.msra.mxu0 0
    %1464 = vmatpush.bf16.xpose.msra.mxu0 %v1455
    %1465 = vmatmul.bf16.gmra.mxu0 %v1452
    %v1466 = vpop.f32.mrf.mxu0
    %v1467 = vadd.f32 0.0, %v1466
    %v1468 = vpop.f32.mrf.mxu0
    %1469 = vdwg.mxu0
    %v1471 = vunpack.c.l.b16 %v1445
    %v1472 = vpack.c.b16 %v1471, %v1471
    %1473 = vrot.lane.b32.xlu0 %v1472, 96
    %v1474 = vpop.permute.xlu0 %1473
    %v1476 = vsel %vm384, %v1445, 0
    %v1479 = vsel %vm384, %v1474, 0
    %1481 = vmatpush.bf16.xpose.msra.mxu0 0
    %1482 = vmatpush.bf16.xpose.msra.mxu0 0
    %1483 = vmatpush.bf16.xpose.msra.mxu0 0
    %1484 = vmatpush.bf16.xpose.msra.mxu0 0
    %1485 = vmatpush.bf16.xpose.msra.mxu0 0
    %1486 = vmatpush.bf16.xpose.msra.mxu0 0
    %1487 = vmatpush.bf16.xpose.msra.mxu0 0
    %1488 = vmatpush.bf16.xpose.msra.mxu0 %v1479
    %1489 = vmatmul.bf16.gmra.mxu0 %v1476
    %v1490 = vpop.f32.mrf.mxu0
    %v1491 = vadd.f32 0.0, %v1490
    %v1492 = vpop.f32.mrf.mxu0
    %1493 = vdwg.mxu0
    %v1494 = vmul.f32 %v1467, 0.25
    %v1495 = vmul.f32 %v1491, 0.25
    %v1496 = vsel %vm431, %v1494, -1e+30
    %v1497 = vsel %vm431, %v1495, -1e+30
    %v1498 = vsel %vm434, %v1496, -inf
    %1499 = vmax.xlane.f32.xlu0 %v1498
    %v1500 = vpop.xlane.xlu0 %1499
    %v1501 = vsel %vm434, %v1497, -inf
    %1502 = vmax.xlane.f32.xlu0 %v1501
    %v1503 = vpop.xlane.xlu0 %1502
    %v1504 = vsub.f32 %v1496, %v1500
    %v1505 = vsub.f32 %v1497, %v1503
    %v1506 = vmul.f32 %v1504, 1.442695
    %v1507 = vpow.pop %v1506
    %v1508 = vmul.f32 %v1505, 1.442695
    %v1509 = vpow.pop %v1508
    %v1510 = vsel %vm434, %v1507, 0.0
    %1511 = vadd.xlane.f32.xlu0 %v1510
    %v1512 = vpop.xlane.xlu0 %1511
    %v1513 = vsel %vm434, %v1509, 0.0
    %1514 = vadd.xlane.f32.xlu0 %v1513
    %v1515 = vpop.xlane.xlu0 %1514
    %v1516 = vrcp.pop %v1512
    %v1517 = vmul.f32 %v1512, %v1516
    %v1518 = vsub.f32 1.0, %v1517
    %v1519 = vmul.f32 %v1516, %v1518
    %v1520 = vadd.f32 %v1516, %v1519
    %vm1521 = vweird.f32 %v1512
    %vm1522 = vweird.f32 %v1516
    %vm1523 = vmor %vm1521, %vm1522
    %v1524 = vsel %vm1523, %v1516, %v1520
    %v1525 = vand.u32 2147483647, %v1512
    %vm1526 = vcmp.eq.f32.partialorder %v1525, 8.507059e+37
    %v1527 = vand.u32 %v1512, 2147483648
    %v1528 = vor.u32 1.1754944e-38, %v1527
    %v1529 = vsel %vm1526, %v1528, %v1524
    %v1530 = vmul.f32 %v1507, %v1529
    %v1531 = vrcp.pop %v1515
    %v1532 = vmul.f32 %v1515, %v1531
    %v1533 = vsub.f32 1.0, %v1532
    %v1534 = vmul.f32 %v1531, %v1533
    %v1535 = vadd.f32 %v1531, %v1534
    %vm1536 = vweird.f32 %v1515
    %vm1537 = vweird.f32 %v1531
    %vm1538 = vmor %vm1536, %vm1537
    %v1539 = vsel %vm1538, %v1531, %v1535
    %v1540 = vand.u32 2147483647, %v1515
    %vm1541 = vcmp.eq.f32.partialorder %v1540, 8.507059e+37
    %v1542 = vand.u32 %v1515, 2147483648
    %v1543 = vor.u32 1.1754944e-38, %v1542
    %v1544 = vsel %vm1541, %v1543, %v1539
    %v1545 = vmul.f32 %v1509, %v1544
    %v1546 = vpack.c.bf16 %v1530, %v1530
    %v1547 = vpack.c.bf16 %v1545, %v1545
    %1548 = vrot.lane.b32.xlu0 %v1448, 64
    %v1549 = vpop.permute.xlu0 %1548
    %v1551 = vsel %vm434, %v1546, 0
    %v1554 = vsel %vm490, %v1549, 0
    %1556 = vmatpush.bf16.msra.mxu0 0
    %1557 = vmatpush.bf16.msra.mxu0 0
    %1558 = vmatpush.bf16.msra.mxu0 0
    %1559 = vmatpush.bf16.msra.mxu0 0
    %1560 = vmatpush.bf16.msra.mxu0 0
    %1561 = vmatpush.bf16.msra.mxu0 0
    %1562 = vmatpush.bf16.msra.mxu0 0
    %1563 = vmatpush.bf16.msra.mxu0 %v1554
    %1564 = vmatmul.bf16.gmra.mxu0 %v1551
    %v1565 = vpop.f32.mrf.mxu0
    %v1566 = vadd.f32 0.0, %v1565
    %v1567 = vpop.f32.mrf.mxu0
    %1568 = vdwg.mxu0
    %1569 = vrot.lane.b32.xlu0 %v1472, 64
    %v1570 = vpop.permute.xlu0 %1569
    %v1572 = vsel %vm434, %v1547, 0
    %v1575 = vsel %vm490, %v1570, 0
    %1577 = vmatpush.bf16.msra.mxu0 0
    %1578 = vmatpush.bf16.msra.mxu0 0
    %1579 = vmatpush.bf16.msra.mxu0 0
    %1580 = vmatpush.bf16.msra.mxu0 0
    %1581 = vmatpush.bf16.msra.mxu0 0
    %1582 = vmatpush.bf16.msra.mxu0 0
    %1583 = vmatpush.bf16.msra.mxu0 0
    %1584 = vmatpush.bf16.msra.mxu0 %v1575
    %1585 = vmatmul.bf16.gmra.mxu0 %v1572
    %v1586 = vpop.f32.mrf.mxu0
    %v1587 = vadd.f32 0.0, %v1586
    %v1588 = vpop.f32.mrf.mxu0
    %1589 = vdwg.mxu0
    %1590 = vrot.lane.b32.xlu0 %v1448, 112
    %v1591 = vpop.permute.xlu0 %1590
    %1592 = vrot.lane.b32.xlu0 %v1448, 80
    %v1593 = vpop.permute.xlu0 %1592
    %v1595 = vsel %vm384, %v1591, 0
    %v1598 = vsel %vm384, %v1593, 0
    %1600 = vmatpush.bf16.xpose.msra.mxu0 0
    %1601 = vmatpush.bf16.xpose.msra.mxu0 0
    %1602 = vmatpush.bf16.xpose.msra.mxu0 0
    %1603 = vmatpush.bf16.xpose.msra.mxu0 0
    %1604 = vmatpush.bf16.xpose.msra.mxu0 0
    %1605 = vmatpush.bf16.xpose.msra.mxu0 0
    %1606 = vmatpush.bf16.xpose.msra.mxu0 0
    %1607 = vmatpush.bf16.xpose.msra.mxu0 %v1598
    %1608 = vmatmul.bf16.gmra.mxu0 %v1595
    %v1609 = vpop.f32.mrf.mxu0
    %v1610 = vadd.f32 0.0, %v1609
    %v1611 = vpop.f32.mrf.mxu0
    %1612 = vdwg.mxu0
    %1613 = vrot.lane.b32.xlu0 %v1472, 112
    %v1614 = vpop.permute.xlu0 %1613
    %1615 = vrot.lane.b32.xlu0 %v1472, 80
    %v1616 = vpop.permute.xlu0 %1615
    %v1618 = vsel %vm384, %v1614, 0
    %v1621 = vsel %vm384, %v1616, 0
    %1623 = vmatpush.bf16.xpose.msra.mxu0 0
    %1624 = vmatpush.bf16.xpose.msra.mxu0 0
    %1625 = vmatpush.bf16.xpose.msra.mxu0 0
    %1626 = vmatpush.bf16.xpose.msra.mxu0 0
    %1627 = vmatpush.bf16.xpose.msra.mxu0 0
    %1628 = vmatpush.bf16.xpose.msra.mxu0 0
    %1629 = vmatpush.bf16.xpose.msra.mxu0 0
    %1630 = vmatpush.bf16.xpose.msra.mxu0 %v1621
    %1631 = vmatmul.bf16.gmra.mxu0 %v1618
    %v1632 = vpop.f32.mrf.mxu0
    %v1633 = vadd.f32 0.0, %v1632
    %v1634 = vpop.f32.mrf.mxu0
    %1635 = vdwg.mxu0
    %v1636 = vmul.f32 %v1610, 0.25
    %v1637 = vmul.f32 %v1633, 0.25
    %v1638 = vsel %vm431, %v1636, -1e+30
    %v1639 = vsel %vm431, %v1637, -1e+30
    %v1640 = vsel %vm434, %v1638, -inf
    %1641 = vmax.xlane.f32.xlu0 %v1640
    %v1642 = vpop.xlane.xlu0 %1641
    %v1643 = vsel %vm434, %v1639, -inf
    %1644 = vmax.xlane.f32.xlu0 %v1643
    %v1645 = vpop.xlane.xlu0 %1644
    %v1646 = vsub.f32 %v1638, %v1642
    %v1647 = vsub.f32 %v1639, %v1645
    %v1648 = vmul.f32 %v1646, 1.442695
    %v1649 = vpow.pop %v1648
    %v1650 = vmul.f32 %v1647, 1.442695
    %v1651 = vpow.pop %v1650
    %v1652 = vsel %vm434, %v1649, 0.0
    %1653 = vadd.xlane.f32.xlu0 %v1652
    %v1654 = vpop.xlane.xlu0 %1653
    %v1655 = vsel %vm434, %v1651, 0.0
    %1656 = vadd.xlane.f32.xlu0 %v1655
    %v1657 = vpop.xlane.xlu0 %1656
    %v1658 = vrcp.pop %v1654
    %v1659 = vmul.f32 %v1654, %v1658
    %v1660 = vsub.f32 1.0, %v1659
    %v1661 = vmul.f32 %v1658, %v1660
    %v1662 = vadd.f32 %v1658, %v1661
    %vm1663 = vweird.f32 %v1654
    %vm1664 = vweird.f32 %v1658
    %vm1665 = vmor %vm1663, %vm1664
    %v1666 = vsel %vm1665, %v1658, %v1662
    %v1667 = vand.u32 2147483647, %v1654
    %vm1668 = vcmp.eq.f32.partialorder %v1667, 8.507059e+37
    %v1669 = vand.u32 %v1654, 2147483648
    %v1670 = vor.u32 1.1754944e-38, %v1669
    %v1671 = vsel %vm1668, %v1670, %v1666
    %v1672 = vmul.f32 %v1649, %v1671
    %v1673 = vrcp.pop %v1657
    %v1674 = vmul.f32 %v1657, %v1673
    %v1675 = vsub.f32 1.0, %v1674
    %v1676 = vmul.f32 %v1673, %v1675
    %v1677 = vadd.f32 %v1673, %v1676
    %vm1678 = vweird.f32 %v1657
    %vm1679 = vweird.f32 %v1673
    %vm1680 = vmor %vm1678, %vm1679
    %v1681 = vsel %vm1680, %v1673, %v1677
    %v1682 = vand.u32 2147483647, %v1657
    %vm1683 = vcmp.eq.f32.partialorder %v1682, 8.507059e+37
    %v1684 = vand.u32 %v1657, 2147483648
    %v1685 = vor.u32 1.1754944e-38, %v1684
    %v1686 = vsel %vm1683, %v1685, %v1681
    %v1687 = vmul.f32 %v1651, %v1686
    %v1688 = vpack.c.bf16 %v1672, %v1672
    %v1689 = vpack.c.bf16 %v1687, %v1687
    %1690 = vrot.lane.b32.xlu0 %v1448, 48
    %v1691 = vpop.permute.xlu0 %1690
    %v1693 = vsel %vm434, %v1688, 0
    %v1696 = vsel %vm490, %v1691, 0
    %1698 = vmatpush.bf16.msra.mxu0 0
    %1699 = vmatpush.bf16.msra.mxu0 0
    %1700 = vmatpush.bf16.msra.mxu0 0
    %1701 = vmatpush.bf16.msra.mxu0 0
    %1702 = vmatpush.bf16.msra.mxu0 0
    %1703 = vmatpush.bf16.msra.mxu0 0
    %1704 = vmatpush.bf16.msra.mxu0 0
    %1705 = vmatpush.bf16.msra.mxu0 %v1696
    %1706 = vmatmul.bf16.gmra.mxu0 %v1693
    %v1707 = vpop.f32.mrf.mxu0
    %v1708 = vadd.f32 0.0, %v1707
    %v1709 = vpop.f32.mrf.mxu0
    %1710 = vdwg.mxu0
    %1711 = vrot.lane.b32.xlu0 %v1472, 48
    %v1712 = vpop.permute.xlu0 %1711
    %v1714 = vsel %vm434, %v1689, 0
    %v1717 = vsel %vm490, %v1712, 0
    %1719 = vmatpush.bf16.msra.mxu0 0
    %1720 = vmatpush.bf16.msra.mxu0 0
    %1721 = vmatpush.bf16.msra.mxu0 0
    %1722 = vmatpush.bf16.msra.mxu0 0
    %1723 = vmatpush.bf16.msra.mxu0 0
    %1724 = vmatpush.bf16.msra.mxu0 0
    %1725 = vmatpush.bf16.msra.mxu0 0
    %1726 = vmatpush.bf16.msra.mxu0 %v1717
    %1727 = vmatmul.bf16.gmra.mxu0 %v1714
    %v1728 = vpop.f32.mrf.mxu0
    %v1729 = vadd.f32 0.0, %v1728
    %v1730 = vpop.f32.mrf.mxu0
    %1731 = vdwg.mxu0
    %1734 = vrot.lane.b32.xlu0 %v1708, 16
    %v1735 = vpop.permute.xlu0 %1734
    %1736 = vrot.lane.b32.xlu0 %v1729, 16
    %v1737 = vpop.permute.xlu0 %1736
    %v1740 = vsel %vm384, %v1566, %v1735
    %v1741 = vsel %vm384, %v1587, %v1737
    %s1742 = scalar_lea.vmem %s7, 16
    %v1743 = vld [vmem:[%s1742] sm:$0xf]
    %v1744 = vld [vmem:[%s1742 + $0x4] sm:$0xf]
    %v1745 = vld [vmem:[%s1742 + $0x8] sm:$0xf]
    %v1746 = vld [vmem:[%s1742 + $0xc] sm:$0xf]
    %v1747 = vpack.c.bf16 %v1741, %v1740
    %v1752 = vunpack.c.l.b16 %v1743
    %v1753 = vunpack.c.l.b16 %v1744
    %v1754 = vunpack.c.l.b16 %v1745
    %v1755 = vunpack.c.l.b16 %v1746
    %v1756 = vpack.c.b16 %v1753, %v1752
    %v1757 = vpack.c.b16 %v1755, %v1754
    %v1761 = vsel %vm229, %v1747, 0
    %1763 = vmatpush.bf16.msra.mxu0 0
    %1764 = vmatpush.bf16.msra.mxu0 0
    %1765 = vmatpush.bf16.msra.mxu0 0
    %1766 = vmatpush.bf16.msra.mxu0 0
    %1767 = vmatpush.bf16.msra.mxu0 0
    %1768 = vmatpush.bf16.msra.mxu0 0
    %1769 = vmatpush.bf16.msra.mxu0 %v1757
    %1770 = vmatpush.bf16.msra.mxu0 %v1756
    %1771 = vmatmul.bf16.gmra.mxu0 %v1761
    %v1772 = vpop.f32.mrf.mxu0
    %v1773 = vadd.f32 0.0, %v1772
    %v1774 = vpop.f32.mrf.mxu0
    %v1775 = vadd.f32 0.0, %v1774
    %1776 = vdwg.mxu0
    %v1777 = vadd.f32 %v1355, %v1773
    %v1778 = vadd.f32 %v1356, %v1775
    %v1779 = vsel %vm229, %v1777, 0.0
    %1780 = vadd.xlane.f32.xlu0 %v1779
    %v1781 = vpop.xlane.xlu0 %1780
    %v1782 = vsel %vm229, %v1778, 0.0
    %1783 = vadd.xlane.f32.xlu0 %v1782
    %v1784 = vpop.xlane.xlu0 %1783
    %v1785 = vmul.f32 %v1781, %v242
    %v1786 = vmul.f32 %v1784, %v242
    %v1787 = vsub.f32 %v1777, %v1785
    %v1788 = vsub.f32 %v1778, %v1786
    %v1789 = vmul.f32 %v1787, %v1787
    %v1790 = vmul.f32 %v1788, %v1788
    %v1791 = vsel %vm229, %v1789, 0.0
    %1792 = vadd.xlane.f32.xlu0 %v1791
    %v1793 = vpop.xlane.xlu0 %1792
    %v1794 = vsel %vm229, %v1790, 0.0
    %1795 = vadd.xlane.f32.xlu0 %v1794
    %v1796 = vpop.xlane.xlu0 %1795
    %v1797 = vmul.f32 %v1793, %v242
    %v1798 = vmul.f32 %v1796, %v242
    %v1799 = vadd.f32 %v1797, 1e-05
    %v1800 = vadd.f32 %v1798, 1e-05
    %v1801 = vrsqrt.pop %v1799
    %v1802 = vmul.f32 %v1801, %v1799
    %v1803 = vmul.f32 %v1802, %v1801
    %v1804 = vmul.f32 0.5, %v1803
    %v1805 = vsub.f32 1.5, %v1804
    %v1806 = vmul.f32 %v1801, %v1805
    %vm1807 = vweird.f32 %v1799
    %vm1808 = vweird.f32 %v1801
    %vm1809 = vmor %vm1807, %vm1808
    %v1810 = vsel %vm1809, %v1801, %v1806
    %v1811 = vrsqrt.pop %v1800
    %v1812 = vmul.f32 %v1811, %v1800
    %v1813 = vmul.f32 %v1812, %v1811
    %v1814 = vmul.f32 0.5, %v1813
    %v1815 = vsub.f32 1.5, %v1814
    %v1816 = vmul.f32 %v1811, %v1815
    %vm1817 = vweird.f32 %v1800
    %vm1818 = vweird.f32 %v1811
    %vm1819 = vmor %vm1817, %vm1818
    %v1820 = vsel %vm1819, %v1811, %v1816
    %v1821 = vmul.f32 %v1787, %v1810
    %v1822 = vmul.f32 %v1788, %v1820
    %v1823 = vperm.slane %v1358, 2
    %v1824 = vmul.f32 %v1821, %v1823
    %v1825 = vmul.f32 %v1822, %v1823
    %v1826 = vperm.slane %v1358, 3
    %v1827 = vadd.f32 %v1824, %v1826
    %v1828 = vadd.f32 %v1825, %v1826
    %s1829 = scalar_lea.vmem %s8, 16
    %v1830 = vld [vmem:[%s1829] sm:$0xf]
    %v1831 = vld [vmem:[%s1829 + $0x4] sm:$0xf]
    %v1832 = vld [vmem:[%s1829 + $0x8] sm:$0xf]
    %v1833 = vld [vmem:[%s1829 + $0xc] sm:$0xf]
    %v1834 = vpack.c.bf16 %v1828, %v1827
    %v1839 = vunpack.c.l.b16 %v1830
    %v1840 = vunpack.c.l.b16 %v1831
    %v1841 = vunpack.c.l.b16 %v1832
    %v1842 = vunpack.c.l.b16 %v1833
    %v1843 = vpack.c.b16 %v1840, %v1839
    %v1844 = vpack.c.b16 %v1842, %v1841
    %v1848 = vsel %vm229, %v1834, 0
    %1850 = vmatpush.bf16.msra.mxu0 0
    %1851 = vmatpush.bf16.msra.mxu0 0
    %1852 = vmatpush.bf16.msra.mxu0 0
    %1853 = vmatpush.bf16.msra.mxu0 0
    %1854 = vmatpush.bf16.msra.mxu0 0
    %1855 = vmatpush.bf16.msra.mxu0 0
    %1856 = vmatpush.bf16.msra.mxu0 %v1844
    %1857 = vmatpush.bf16.msra.mxu0 %v1843
    %1858 = vmatmul.bf16.gmra.mxu0 %v1848
    %v1859 = vpop.f32.mrf.mxu0
    %v1860 = vadd.f32 0.0, %v1859
    %v1861 = vpop.f32.mrf.mxu0
    %v1862 = vadd.f32 0.0, %v1861
    %1863 = vdwg.mxu0
    %s1864 = scalar_lea.vmem %s9, 16
    %v1865 = vld [vmem:[%s1864] sm:$0xf]
    %v1866 = vld [vmem:[%s1864 + $0x4] sm:$0xf]
    %v1867 = vld [vmem:[%s1864 + $0x8] sm:$0xf]
    %v1868 = vld [vmem:[%s1864 + $0xc] sm:$0xf]
    %v1873 = vunpack.c.l.b16 %v1865
    %v1874 = vunpack.c.l.b16 %v1866
    %v1875 = vunpack.c.l.b16 %v1867
    %v1876 = vunpack.c.l.b16 %v1868
    %v1877 = vpack.c.b16 %v1874, %v1873
    %v1878 = vpack.c.b16 %v1876, %v1875
    %1881 = vmatpush.bf16.msra.mxu0 0
    %1882 = vmatpush.bf16.msra.mxu0 0
    %1883 = vmatpush.bf16.msra.mxu0 0
    %1884 = vmatpush.bf16.msra.mxu0 0
    %1885 = vmatpush.bf16.msra.mxu0 0
    %1886 = vmatpush.bf16.msra.mxu0 0
    %1887 = vmatpush.bf16.msra.mxu0 %v1878
    %1888 = vmatpush.bf16.msra.mxu0 %v1877
    %1889 = vmatmul.bf16.gmra.mxu0 %v818
    %v1890 = vpop.f32.mrf.mxu0
    %v1891 = vadd.f32 0.0, %v1890
    %v1892 = vpop.f32.mrf.mxu0
    %v1893 = vadd.f32 0.0, %v1892
    %1894 = vdwg.mxu0
    %v1895 = vpack.c.bf16 %v1860, %v1860
    %v1896 = vpack.c.bf16 %v1862, %v1862
    %v1897 = vpack.c.bf16 %v1891, %v1891
    %v1898 = vpack.c.bf16 %v1893, %v1893
    %v1900 = vsel %vm384, %v1895, 0
    %v1903 = vsel %vm384, %v1897, 0
    %1905 = vmatpush.bf16.xpose.msra.mxu0 0
    %1906 = vmatpush.bf16.xpose.msra.mxu0 0
    %1907 = vmatpush.bf16.xpose.msra.mxu0 0
    %1908 = vmatpush.bf16.xpose.msra.mxu0 0
    %1909 = vmatpush.bf16.xpose.msra.mxu0 0
    %1910 = vmatpush.bf16.xpose.msra.mxu0 0
    %1911 = vmatpush.bf16.xpose.msra.mxu0 0
    %1912 = vmatpush.bf16.xpose.msra.mxu0 %v1903
    %1913 = vmatmul.bf16.gmra.mxu0 %v1900
    %v1914 = vpop.f32.mrf.mxu0
    %v1915 = vadd.f32 0.0, %v1914
    %v1916 = vpop.f32.mrf.mxu0
    %1917 = vdwg.mxu0
    %v1919 = vsel %vm384, %v1896, 0
    %v1922 = vsel %vm384, %v1898, 0
    %1924 = vmatpush.bf16.xpose.msra.mxu0 0
    %1925 = vmatpush.bf16.xpose.msra.mxu0 0
    %1926 = vmatpush.bf16.xpose.msra.mxu0 0
    %1927 = vmatpush.bf16.xpose.msra.mxu0 0
    %1928 = vmatpush.bf16.xpose.msra.mxu0 0
    %1929 = vmatpush.bf16.xpose.msra.mxu0 0
    %1930 = vmatpush.bf16.xpose.msra.mxu0 0
    %1931 = vmatpush.bf16.xpose.msra.mxu0 %v1922
    %1932 = vmatmul.bf16.gmra.mxu0 %v1919
    %v1933 = vpop.f32.mrf.mxu0
    %v1934 = vadd.f32 0.0, %v1933
    %v1935 = vpop.f32.mrf.mxu0
    %1936 = vdwg.mxu0
    %v1937 = vmul.f32 %v1915, 0.25
    %v1938 = vmul.f32 %v1934, 0.25
    %v1939 = vsel %vm434, %v1937, -inf
    %1940 = vmax.xlane.f32.xlu0 %v1939
    %v1941 = vpop.xlane.xlu0 %1940
    %v1942 = vsel %vm434, %v1938, -inf
    %1943 = vmax.xlane.f32.xlu0 %v1942
    %v1944 = vpop.xlane.xlu0 %1943
    %v1945 = vsub.f32 %v1937, %v1941
    %v1946 = vsub.f32 %v1938, %v1944
    %v1947 = vmul.f32 %v1945, 1.442695
    %v1948 = vpow.pop %v1947
    %v1949 = vmul.f32 %v1946, 1.442695
    %v1950 = vpow.pop %v1949
    %v1951 = vsel %vm434, %v1948, 0.0
    %1952 = vadd.xlane.f32.xlu0 %v1951
    %v1953 = vpop.xlane.xlu0 %1952
    %v1954 = vsel %vm434, %v1950, 0.0
    %1955 = vadd.xlane.f32.xlu0 %v1954
    %v1956 = vpop.xlane.xlu0 %1955
    %v1957 = vrcp.pop %v1953
    %v1958 = vmul.f32 %v1953, %v1957
    %v1959 = vsub.f32 1.0, %v1958
    %v1960 = vmul.f32 %v1957, %v1959
    %v1961 = vadd.f32 %v1957, %v1960
    %vm1962 = vweird.f32 %v1953
    %vm1963 = vweird.f32 %v1957
    %vm1964 = vmor %vm1962, %vm1963
    %v1965 = vsel %vm1964, %v1957, %v1961
    %v1966 = vand.u32 2147483647, %v1953
    %vm1967 = vcmp.eq.f32.partialorder %v1966, 8.507059e+37
    %v1968 = vand.u32 %v1953, 2147483648
    %v1969 = vor.u32 1.1754944e-38, %v1968
    %v1970 = vsel %vm1967, %v1969, %v1965
    %v1971 = vmul.f32 %v1948, %v1970
    %v1972 = vrcp.pop %v1956
    %v1973 = vmul.f32 %v1956, %v1972
    %v1974 = vsub.f32 1.0, %v1973
    %v1975 = vmul.f32 %v1972, %v1974
    %v1976 = vadd.f32 %v1972, %v1975
    %vm1977 = vweird.f32 %v1956
    %vm1978 = vweird.f32 %v1972
    %vm1979 = vmor %vm1977, %vm1978
    %v1980 = vsel %vm1979, %v1972, %v1976
    %v1981 = vand.u32 2147483647, %v1956
    %vm1982 = vcmp.eq.f32.partialorder %v1981, 8.507059e+37
    %v1983 = vand.u32 %v1956, 2147483648
    %v1984 = vor.u32 1.1754944e-38, %v1983
    %v1985 = vsel %vm1982, %v1984, %v1980
    %v1986 = vmul.f32 %v1950, %v1985
    %v1987 = vpack.c.bf16 %v1971, %v1971
    %v1988 = vpack.c.bf16 %v1986, %v1986
    %v1990 = vunpack.c.l.b16 %v1897
    %v1991 = vpack.c.b16 %v1990, %v1990
    %1992 = vrot.lane.b32.xlu0 %v1991, 96
    %v1993 = vpop.permute.xlu0 %1992
    %v1995 = vsel %vm434, %v1987, 0
    %v1998 = vsel %vm490, %v1993, 0
    %2000 = vmatpush.bf16.msra.mxu0 0
    %2001 = vmatpush.bf16.msra.mxu0 0
    %2002 = vmatpush.bf16.msra.mxu0 0
    %2003 = vmatpush.bf16.msra.mxu0 0
    %2004 = vmatpush.bf16.msra.mxu0 0
    %2005 = vmatpush.bf16.msra.mxu0 0
    %2006 = vmatpush.bf16.msra.mxu0 0
    %2007 = vmatpush.bf16.msra.mxu0 %v1998
    %2008 = vmatmul.bf16.gmra.mxu0 %v1995
    %v2009 = vpop.f32.mrf.mxu0
    %v2010 = vadd.f32 0.0, %v2009
    %v2011 = vpop.f32.mrf.mxu0
    %2012 = vdwg.mxu0
    %v2014 = vunpack.c.l.b16 %v1898
    %v2015 = vpack.c.b16 %v2014, %v2014
    %2016 = vrot.lane.b32.xlu0 %v2015, 96
    %v2017 = vpop.permute.xlu0 %2016
    %v2019 = vsel %vm434, %v1988, 0
    %v2022 = vsel %vm490, %v2017, 0
    %2024 = vmatpush.bf16.msra.mxu0 0
    %2025 = vmatpush.bf16.msra.mxu0 0
    %2026 = vmatpush.bf16.msra.mxu0 0
    %2027 = vmatpush.bf16.msra.mxu0 0
    %2028 = vmatpush.bf16.msra.mxu0 0
    %2029 = vmatpush.bf16.msra.mxu0 0
    %2030 = vmatpush.bf16.msra.mxu0 0
    %2031 = vmatpush.bf16.msra.mxu0 %v2022
    %2032 = vmatmul.bf16.gmra.mxu0 %v2019
    %v2033 = vpop.f32.mrf.mxu0
    %v2034 = vadd.f32 0.0, %v2033
    %v2035 = vpop.f32.mrf.mxu0
    %2036 = vdwg.mxu0
    %v2038 = vunpack.c.l.b16 %v1895
    %v2039 = vpack.c.b16 %v2038, %v2038
    %2040 = vrot.lane.b32.xlu0 %v2039, 112
    %v2041 = vpop.permute.xlu0 %2040
    %2042 = vrot.lane.b32.xlu0 %v1991, 112
    %v2043 = vpop.permute.xlu0 %2042
    %v2045 = vsel %vm384, %v2041, 0
    %v2048 = vsel %vm384, %v2043, 0
    %2050 = vmatpush.bf16.xpose.msra.mxu0 0
    %2051 = vmatpush.bf16.xpose.msra.mxu0 0
    %2052 = vmatpush.bf16.xpose.msra.mxu0 0
    %2053 = vmatpush.bf16.xpose.msra.mxu0 0
    %2054 = vmatpush.bf16.xpose.msra.mxu0 0
    %2055 = vmatpush.bf16.xpose.msra.mxu0 0
    %2056 = vmatpush.bf16.xpose.msra.mxu0 0
    %2057 = vmatpush.bf16.xpose.msra.mxu0 %v2048
    %2058 = vmatmul.bf16.gmra.mxu0 %v2045
    %v2059 = vpop.f32.mrf.mxu0
    %v2060 = vadd.f32 0.0, %v2059
    %v2061 = vpop.f32.mrf.mxu0
    %2062 = vdwg.mxu0
    %v2064 = vunpack.c.l.b16 %v1896
    %v2065 = vpack.c.b16 %v2064, %v2064
    %2066 = vrot.lane.b32.xlu0 %v2065, 112
    %v2067 = vpop.permute.xlu0 %2066
    %2068 = vrot.lane.b32.xlu0 %v2015, 112
    %v2069 = vpop.permute.xlu0 %2068
    %v2071 = vsel %vm384, %v2067, 0
    %v2074 = vsel %vm384, %v2069, 0
    %2076 = vmatpush.bf16.xpose.msra.mxu0 0
    %2077 = vmatpush.bf16.xpose.msra.mxu0 0
    %2078 = vmatpush.bf16.xpose.msra.mxu0 0
    %2079 = vmatpush.bf16.xpose.msra.mxu0 0
    %2080 = vmatpush.bf16.xpose.msra.mxu0 0
    %2081 = vmatpush.bf16.xpose.msra.mxu0 0
    %2082 = vmatpush.bf16.xpose.msra.mxu0 0
    %2083 = vmatpush.bf16.xpose.msra.mxu0 %v2074
    %2084 = vmatmul.bf16.gmra.mxu0 %v2071
    %v2085 = vpop.f32.mrf.mxu0
    %v2086 = vadd.f32 0.0, %v2085
    %v2087 = vpop.f32.mrf.mxu0
    %2088 = vdwg.mxu0
    %v2089 = vmul.f32 %v2060, 0.25
    %v2090 = vmul.f32 %v2086, 0.25
    %v2091 = vsel %vm434, %v2089, -inf
    %2092 = vmax.xlane.f32.xlu0 %v2091
    %v2093 = vpop.xlane.xlu0 %2092
    %v2094 = vsel %vm434, %v2090, -inf
    %2095 = vmax.xlane.f32.xlu0 %v2094
    %v2096 = vpop.xlane.xlu0 %2095
    %v2097 = vsub.f32 %v2089, %v2093
    %v2098 = vsub.f32 %v2090, %v2096
    %v2099 = vmul.f32 %v2097, 1.442695
    %v2100 = vpow.pop %v2099
    %v2101 = vmul.f32 %v2098, 1.442695
    %v2102 = vpow.pop %v2101
    %v2103 = vsel %vm434, %v2100, 0.0
    %2104 = vadd.xlane.f32.xlu0 %v2103
    %v2105 = vpop.xlane.xlu0 %2104
    %v2106 = vsel %vm434, %v2102, 0.0
    %2107 = vadd.xlane.f32.xlu0 %v2106
    %v2108 = vpop.xlane.xlu0 %2107
    %v2109 = vrcp.pop %v2105
    %v2110 = vmul.f32 %v2105, %v2109
    %v2111 = vsub.f32 1.0, %v2110
    %v2112 = vmul.f32 %v2109, %v2111
    %v2113 = vadd.f32 %v2109, %v2112
    %vm2114 = vweird.f32 %v2105
    %vm2115 = vweird.f32 %v2109
    %vm2116 = vmor %vm2114, %vm2115
    %v2117 = vsel %vm2116, %v2109, %v2113
    %v2118 = vand.u32 2147483647, %v2105
    %vm2119 = vcmp.eq.f32.partialorder %v2118, 8.507059e+37
    %v2120 = vand.u32 %v2105, 2147483648
    %v2121 = vor.u32 1.1754944e-38, %v2120
    %v2122 = vsel %vm2119, %v2121, %v2117
    %v2123 = vmul.f32 %v2100, %v2122
    %v2124 = vrcp.pop %v2108
    %v2125 = vmul.f32 %v2108, %v2124
    %v2126 = vsub.f32 1.0, %v2125
    %v2127 = vmul.f32 %v2124, %v2126
    %v2128 = vadd.f32 %v2124, %v2127
    %vm2129 = vweird.f32 %v2108
    %vm2130 = vweird.f32 %v2124
    %vm2131 = vmor %vm2129, %vm2130
    %v2132 = vsel %vm2131, %v2124, %v2128
    %v2133 = vand.u32 2147483647, %v2108
    %vm2134 = vcmp.eq.f32.partialorder %v2133, 8.507059e+37
    %v2135 = vand.u32 %v2108, 2147483648
    %v2136 = vor.u32 1.1754944e-38, %v2135
    %v2137 = vsel %vm2134, %v2136, %v2132
    %v2138 = vmul.f32 %v2102, %v2137
    %v2139 = vpack.c.bf16 %v2123, %v2123
    %v2140 = vpack.c.bf16 %v2138, %v2138
    %2141 = vrot.lane.b32.xlu0 %v1991, 80
    %v2142 = vpop.permute.xlu0 %2141
    %v2144 = vsel %vm434, %v2139, 0
    %v2147 = vsel %vm490, %v2142, 0
    %2149 = vmatpush.bf16.msra.mxu0 0
    %2150 = vmatpush.bf16.msra.mxu0 0
    %2151 = vmatpush.bf16.msra.mxu0 0
    %2152 = vmatpush.bf16.msra.mxu0 0
    %2153 = vmatpush.bf16.msra.mxu0 0
    %2154 = vmatpush.bf16.msra.mxu0 0
    %2155 = vmatpush.bf16.msra.mxu0 0
    %2156 = vmatpush.bf16.msra.mxu0 %v2147
    %2157 = vmatmul.bf16.gmra.mxu0 %v2144
    %v2158 = vpop.f32.mrf.mxu0
    %v2159 = vadd.f32 0.0, %v2158
    %v2160 = vpop.f32.mrf.mxu0
    %2161 = vdwg.mxu0
    %2162 = vrot.lane.b32.xlu0 %v2015, 80
    %v2163 = vpop.permute.xlu0 %2162
    %v2165 = vsel %vm434, %v2140, 0
    %v2168 = vsel %vm490, %v2163, 0
    %2170 = vmatpush.bf16.msra.mxu0 0
    %2171 = vmatpush.bf16.msra.mxu0 0
    %2172 = vmatpush.bf16.msra.mxu0 0
    %2173 = vmatpush.bf16.msra.mxu0 0
    %2174 = vmatpush.bf16.msra.mxu0 0
    %2175 = vmatpush.bf16.msra.mxu0 0
    %2176 = vmatpush.bf16.msra.mxu0 0
    %2177 = vmatpush.bf16.msra.mxu0 %v2168
    %2178 = vmatmul.bf16.gmra.mxu0 %v2165
    %v2179 = vpop.f32.mrf.mxu0
    %v2180 = vadd.f32 0.0, %v2179
    %v2181 = vpop.f32.mrf.mxu0
    %2182 = vdwg.mxu0
    %2185 = vrot.lane.b32.xlu0 %v2159, 16
    %v2186 = vpop.permute.xlu0 %2185
    %2187 = vrot.lane.b32.xlu0 %v2180, 16
    %v2188 = vpop.permute.xlu0 %2187
    %v2191 = vsel %vm384, %v2010, %v2186
    %v2192 = vsel %vm384, %v2034, %v2188
    %s2193 = scalar_lea.vmem [#allocation5], 16
    %v2194 = vld [vmem:[%s2193] sm:$0xf]
    %v2195 = vld [vmem:[%s2193 + $0x4] sm:$0xf]
    %v2196 = vld [vmem:[%s2193 + $0x8] sm:$0xf]
    %v2197 = vld [vmem:[%s2193 + $0xc] sm:$0xf]
    %v2198 = vpack.c.bf16 %v2192, %v2191
    %v2203 = vunpack.c.l.b16 %v2194
    %v2204 = vunpack.c.l.b16 %v2195
    %v2205 = vunpack.c.l.b16 %v2196
    %v2206 = vunpack.c.l.b16 %v2197
    %v2207 = vpack.c.b16 %v2204, %v2203
    %v2208 = vpack.c.b16 %v2206, %v2205
    %v2212 = vsel %vm229, %v2198, 0
    %2214 = vmatpush.bf16.msra.mxu0 0
    %2215 = vmatpush.bf16.msra.mxu0 0
    %2216 = vmatpush.bf16.msra.mxu0 0
    %2217 = vmatpush.bf16.msra.mxu0 0
    %2218 = vmatpush.bf16.msra.mxu0 0
    %2219 = vmatpush.bf16.msra.mxu0 0
    %2220 = vmatpush.bf16.msra.mxu0 %v2208
    %2221 = vmatpush.bf16.msra.mxu0 %v2207
    %2222 = vmatmul.bf16.gmra.mxu0 %v2212
    %v2223 = vpop.f32.mrf.mxu0
    %v2224 = vadd.f32 0.0, %v2223
    %v2225 = vpop.f32.mrf.mxu0
    %v2226 = vadd.f32 0.0, %v2225
    %2227 = vdwg.mxu0
    %v2228 = vadd.f32 %v1777, %v2224
    %v2229 = vadd.f32 %v1778, %v2226
    %v2230 = vsel %vm229, %v2228, 0.0
    %2231 = vadd.xlane.f32.xlu0 %v2230
    %v2232 = vpop.xlane.xlu0 %2231
    %v2233 = vsel %vm229, %v2229, 0.0
    %2234 = vadd.xlane.f32.xlu0 %v2233
    %v2235 = vpop.xlane.xlu0 %2234
    %v2236 = vmul.f32 %v2232, %v242
    %v2237 = vmul.f32 %v2235, %v242
    %v2238 = vsub.f32 %v2228, %v2236
    %v2239 = vsub.f32 %v2229, %v2237
    %v2240 = vmul.f32 %v2238, %v2238
    %v2241 = vmul.f32 %v2239, %v2239
    %v2242 = vsel %vm229, %v2240, 0.0
    %2243 = vadd.xlane.f32.xlu0 %v2242
    %v2244 = vpop.xlane.xlu0 %2243
    %v2245 = vsel %vm229, %v2241, 0.0
    %2246 = vadd.xlane.f32.xlu0 %v2245
    %v2247 = vpop.xlane.xlu0 %2246
    %v2248 = vmul.f32 %v2244, %v242
    %v2249 = vmul.f32 %v2247, %v242
    %v2250 = vadd.f32 %v2248, 1e-05
    %v2251 = vadd.f32 %v2249, 1e-05
    %v2252 = vrsqrt.pop %v2250
    %v2253 = vmul.f32 %v2252, %v2250
    %v2254 = vmul.f32 %v2253, %v2252
    %v2255 = vmul.f32 0.5, %v2254
    %v2256 = vsub.f32 1.5, %v2255
    %v2257 = vmul.f32 %v2252, %v2256
    %vm2258 = vweird.f32 %v2250
    %vm2259 = vweird.f32 %v2252
    %vm2260 = vmor %vm2258, %vm2259
    %v2261 = vsel %vm2260, %v2252, %v2257
    %v2262 = vrsqrt.pop %v2251
    %v2263 = vmul.f32 %v2262, %v2251
    %v2264 = vmul.f32 %v2263, %v2262
    %v2265 = vmul.f32 0.5, %v2264
    %v2266 = vsub.f32 1.5, %v2265
    %v2267 = vmul.f32 %v2262, %v2266
    %vm2268 = vweird.f32 %v2251
    %vm2269 = vweird.f32 %v2262
    %vm2270 = vmor %vm2268, %vm2269
    %v2271 = vsel %vm2270, %v2262, %v2267
    %v2272 = vmul.f32 %v2238, %v2261
    %v2273 = vmul.f32 %v2239, %v2271
    %v2274 = vperm.slane %v1358, 4
    %v2275 = vmul.f32 %v2272, %v2274
    %v2276 = vmul.f32 %v2273, %v2274
    %v2277 = vperm.slane %v1358, 5
    %v2278 = vadd.f32 %v2275, %v2277
    %v2279 = vadd.f32 %v2276, %v2277
    %s2280 = scalar_lea.vmem [#allocation7], 16
    %v2281 = vld [vmem:[%s2280] sm:$0xf]
    %v2282 = vld [vmem:[%s2280 + $0x4] sm:$0xf]
    %v2283 = vld [vmem:[%s2280 + $0x8] sm:$0xf]
    %v2284 = vld [vmem:[%s2280 + $0xc] sm:$0xf]
    %v2285 = vpack.c.bf16 %v2279, %v2278
    %v2286 = vld [vmem:[#allocation8] sm:$0x3]
    %v2287 = vperm.slane %v2286, 1
    %v2292 = vunpack.c.l.b16 %v2281
    %v2293 = vunpack.c.l.b16 %v2282
    %v2294 = vunpack.c.l.b16 %v2283
    %v2295 = vunpack.c.l.b16 %v2284
    %v2296 = vpack.c.b16 %v2293, %v2292
    %v2297 = vpack.c.b16 %v2295, %v2294
    %v2301 = vsel %vm229, %v2285, 0
    %2303 = vmatpush.bf16.msra.mxu0 0
    %2304 = vmatpush.bf16.msra.mxu0 0
    %2305 = vmatpush.bf16.msra.mxu0 0
    %2306 = vmatpush.bf16.msra.mxu0 0
    %2307 = vmatpush.bf16.msra.mxu0 0
    %2308 = vmatpush.bf16.msra.mxu0 0
    %2309 = vmatpush.bf16.msra.mxu0 %v2297
    %2310 = vmatpush.bf16.msra.mxu0 %v2296
    %2311 = vmatmul.bf16.gmra.mxu0 %v2301
    %v2312 = vpop.f32.mrf.mxu0
    %v2313 = vadd.f32 %v2287, %v2312
    %v2314 = vpop.f32.mrf.mxu0
    %v2315 = vadd.f32 %v2287, %v2314
    %2316 = vdwg.mxu0
    %v2317 = vmul.f32 %v2313, %v2313
    %v2318 = vmul.f32 %v2315, %v2315
    %v2319 = vmul.f32 %v2313, %v2317
    %v2320 = vmul.f32 %v2315, %v2318
    %v2321 = vmul.f32 %v2319, 0.044715
    %v2322 = vmul.f32 %v2320, 0.044715
    %v2323 = vadd.f32 %v2313, %v2321
    %v2324 = vadd.f32 %v2315, %v2322
    %v2325 = vmul.f32 %v2323, 0.7978846
    %v2326 = vmul.f32 %v2324, 0.7978846
    %v2327 = vtanh.pop %v2325
    %v2328 = vtanh.pop %v2326
    %v2329 = vadd.f32 %v2327, 1.0
    %v2330 = vadd.f32 %v2328, 1.0
    %v2331 = vmul.f32 %v2329, 0.5
    %v2332 = vmul.f32 %v2330, 0.5
    %v2333 = vmul.f32 %v2313, %v2331
    %v2334 = vmul.f32 %v2315, %v2332
    %s2335 = scalar_lea.vmem %s13, 64
    %v2336 = vld [vmem:[%s2335] sm:$0xf]
    %v2337 = vld [vmem:[%s2335 + $0x4] sm:$0xf]
    %v2338 = vld [vmem:[%s2335 + $0x8] sm:$0xf]
    %v2339 = vld [vmem:[%s2335 + $0xc] sm:$0xf]
    %v2340 = vld [vmem:[%s2335 + $0x10] sm:$0xf]
    %v2341 = vld [vmem:[%s2335 + $0x14] sm:$0xf]
    %v2342 = vld [vmem:[%s2335 + $0x18] sm:$0xf]
    %v2343 = vld [vmem:[%s2335 + $0x1c] sm:$0xf]
    %v2344 = vld [vmem:[%s2335 + $0x20] sm:$0xf]
    %v2345 = vld [vmem:[%s2335 + $0x24] sm:$0xf]
    %v2346 = vld [vmem:[%s2335 + $0x28] sm:$0xf]
    %v2347 = vld [vmem:[%s2335 + $0x2c] sm:$0xf]
    %v2348 = vld [vmem:[%s2335 + $0x30] sm:$0xf]
    %v2349 = vld [vmem:[%s2335 + $0x34] sm:$0xf]
    %v2350 = vld [vmem:[%s2335 + $0x38] sm:$0xf]
    %v2351 = vld [vmem:[%s2335 + $0x3c] sm:$0xf]
    %v2352 = vpack.c.bf16 %v2334, %v2333
    %v2369 = vunpack.c.l.b16 %v2336
    %v2370 = vunpack.c.l.b16 %v2337
    %v2371 = vunpack.c.l.b16 %v2338
    %v2372 = vunpack.c.l.b16 %v2339
    %v2373 = vunpack.c.l.b16 %v2340
    %v2374 = vunpack.c.l.b16 %v2341
    %v2375 = vunpack.c.l.b16 %v2342
    %v2376 = vunpack.c.l.b16 %v2343
    %v2377 = vunpack.c.l.b16 %v2344
    %v2378 = vunpack.c.l.b16 %v2345
    %v2379 = vunpack.c.l.b16 %v2346
    %v2380 = vunpack.c.l.b16 %v2347
    %v2381 = vunpack.c.l.b16 %v2348
    %v2382 = vunpack.c.l.b16 %v2349
    %v2383 = vunpack.c.l.b16 %v2350
    %v2384 = vunpack.c.l.b16 %v2351
    %v2385 = vpack.c.b16 %v2370, %v2369
    %v2386 = vpack.c.b16 %v2372, %v2371
    %v2387 = vpack.c.b16 %v2374, %v2373
    %v2388 = vpack.c.b16 %v2376, %v2375
    %v2389 = vpack.c.b16 %v2378, %v2377
    %v2390 = vpack.c.b16 %v2380, %v2379
    %v2391 = vpack.c.b16 %v2382, %v2381
    %v2392 = vpack.c.b16 %v2384, %v2383
    %2401 = vmatpush.bf16.msra.mxu0 %v2392
    %2402 = vmatpush.bf16.msra.mxu0 %v2391
    %2403 = vmatpush.bf16.msra.mxu0 %v2390
    %2404 = vmatpush.bf16.msra.mxu0 %v2389
    %2405 = vmatpush.bf16.msra.mxu0 %v2388
    %2406 = vmatpush.bf16.msra.mxu0 %v2387
    %2407 = vmatpush.bf16.msra.mxu0 %v2386
    %2408 = vmatpush.bf16.msra.mxu0 %v2385
    %2409 = vmatmul.bf16.gmra.mxu0 %v2352
    %v2410 = vpop.f32.mrf.mxu0
    %v2411 = vadd.f32 0.0, %v2410
    %v2412 = vpop.f32.mrf.mxu0
    %v2413 = vadd.f32 0.0, %v2412
    %2414 = vdwg.mxu0
    %v2415 = vadd.f32 %v2228, %v2411
    %v2416 = vadd.f32 %v2229, %v2413
    %v2417 = vld [vmem:[#allocation10] sm:$0x3]
    %v2418 = vperm.slane %v2417, 1
    %v2419 = vadd.f32 %v2415, %v2418
    %v2420 = vadd.f32 %v2416, %v2418
    %v2421 = vld [vmem:[#allocation11] sm:$0x3]
    %v2422 = vsel %vm229, %v2419, 0.0
    %2423 = vadd.xlane.f32.xlu0 %v2422
    %v2424 = vpop.xlane.xlu0 %2423
    %v2425 = vsel %vm229, %v2420, 0.0
    %2426 = vadd.xlane.f32.xlu0 %v2425
    %v2427 = vpop.xlane.xlu0 %2426
    %v2428 = vmul.f32 %v2424, %v242
    %v2429 = vmul.f32 %v2427, %v242
    %v2430 = vsub.f32 %v2419, %v2428
    %v2431 = vsub.f32 %v2420, %v2429
    %v2432 = vmul.f32 %v2430, %v2430
    %v2433 = vmul.f32 %v2431, %v2431
    %v2434 = vsel %vm229, %v2432, 0.0
    %2435 = vadd.xlane.f32.xlu0 %v2434
    %v2436 = vpop.xlane.xlu0 %2435
    %v2437 = vsel %vm229, %v2433, 0.0
    %2438 = vadd.xlane.f32.xlu0 %v2437
    %v2439 = vpop.xlane.xlu0 %2438
    %v2440 = vmul.f32 %v2436, %v242
    %v2441 = vmul.f32 %v2439, %v242
    %v2442 = vadd.f32 %v2440, 1e-05
    %v2443 = vadd.f32 %v2441, 1e-05
    %v2444 = vrsqrt.pop %v2442
    %v2445 = vmul.f32 %v2444, %v2442
    %v2446 = vmul.f32 %v2445, %v2444
    %v2447 = vmul.f32 0.5, %v2446
    %v2448 = vsub.f32 1.5, %v2447
    %v2449 = vmul.f32 %v2444, %v2448
    %vm2450 = vweird.f32 %v2442
    %vm2451 = vweird.f32 %v2444
    %vm2452 = vmor %vm2450, %vm2451
    %v2453 = vsel %vm2452, %v2444, %v2449
    %v2454 = vrsqrt.pop %v2443
    %v2455 = vmul.f32 %v2454, %v2443
    %v2456 = vmul.f32 %v2455, %v2454
    %v2457 = vmul.f32 0.5, %v2456
    %v2458 = vsub.f32 1.5, %v2457
    %v2459 = vmul.f32 %v2454, %v2458
    %vm2460 = vweird.f32 %v2443
    %vm2461 = vweird.f32 %v2454
    %vm2462 = vmor %vm2460, %vm2461
    %v2463 = vsel %vm2462, %v2454, %v2459
    %v2464 = vmul.f32 %v2430, %v2453
    %v2465 = vmul.f32 %v2431, %v2463
    %v2466 = vperm.slane %v2421, 0
    %v2467 = vmul.f32 %v2464, %v2466
    %v2468 = vmul.f32 %v2465, %v2466
    %v2469 = vperm.slane %v2421, 1
    %v2470 = vadd.f32 %v2467, %v2469
    %v2471 = vadd.f32 %v2468, %v2469
    %v2472 = vld [vmem:[#allocation13] sm:$0xf]
    %v2473 = vld [vmem:[#allocation13 + $0x4] sm:$0xf]
    %v2474 = vld [vmem:[#allocation13 + $0x8] sm:$0xf]
    %v2475 = vld [vmem:[#allocation13 + $0xc] sm:$0xf]
    %v2476 = vpack.c.bf16 %v2471, %v2470
    %v2481 = vunpack.c.l.b16 %v2472
    %v2482 = vunpack.c.l.b16 %v2473
    %v2483 = vunpack.c.l.b16 %v2474
    %v2484 = vunpack.c.l.b16 %v2475
    %v2485 = vpack.c.b16 %v2482, %v2481
    %v2486 = vpack.c.b16 %v2484, %v2483
    %v2490 = vsel %vm229, %v2476, 0
    %2492 = vmatpush.bf16.msra.mxu0 0
    %2493 = vmatpush.bf16.msra.mxu0 0
    %2494 = vmatpush.bf16.msra.mxu0 0
    %2495 = vmatpush.bf16.msra.mxu0 0
    %2496 = vmatpush.bf16.msra.mxu0 0
    %2497 = vmatpush.bf16.msra.mxu0 0
    %2498 = vmatpush.bf16.msra.mxu0 %v2486
    %2499 = vmatpush.bf16.msra.mxu0 %v2485
    %2500 = vmatmul.bf16.gmra.mxu0 %v2490
    %v2501 = vpop.f32.mrf.mxu0
    %v2502 = vadd.f32 0.0, %v2501
    %v2503 = vpop.f32.mrf.mxu0
    %v2504 = vadd.f32 0.0, %v2503
    %2505 = vdwg.mxu0
    %v2506 = vsel %vm195, %v2502, -inf
    %2507 = vmax.xlane.f32.xlu0 %v2506
    %v2508 = vpop.xlane.xlu0 %2507
    %v2509 = vsel %vm195, %v2504, -inf
    %2510 = vmax.xlane.f32.xlu0 %v2509
    %v2511 = vpop.xlane.xlu0 %2510
    %v2512 = vsub.f32 %v2502, %v2508
    %v2513 = vsub.f32 %v2504, %v2511
    %v2514 = vmul.f32 %v2512, 1.442695
    %v2515 = vpow.pop %v2514
    %v2516 = vmul.f32 %v2513, 1.442695
    %v2517 = vpow.pop %v2516
    %v2518 = vsel %vm195, %v2515, 0.0
    %2519 = vadd.xlane.f32.xlu0 %v2518
    %v2520 = vpop.xlane.xlu0 %2519
    %v2521 = vsel %vm195, %v2517, 0.0
    %2522 = vadd.xlane.f32.xlu0 %v2521
    %v2523 = vpop.xlane.xlu0 %2522
    %v2524 = vlog2.pop %v2520
    %v2525 = vmul.f32 %v2524, 0.6931472
    %v2526 = vlog2.pop %v2523
    %v2527 = vmul.f32 %v2526, 0.6931472
    %v2528 = vadd.f32 %v2525, %v2508
    %v2529 = vadd.f32 %v2527, %v2511
    %v2530 = vmul.f32 %v2502, %v185
    %v2531 = vmul.f32 %v2504, %v186
    %v2532 = vsel %vm195, %v2530, 0.0
    %2533 = vadd.xlane.f32.xlu0 %v2532
    %v2534 = vpop.xlane.xlu0 %2533
    %v2535 = vsel %vm195, %v2531, 0.0
    %2536 = vadd.xlane.f32.xlu0 %v2535
    %v2537 = vpop.xlane.xlu0 %2536
    %v2538 = vsub.f32 %v2528, %v2534
    %v2539 = vsub.f32 %v2529, %v2537
    %vm2540 = vcmask 7168
    %v2541 = vsel %vm2540, %v2538, 0.0
    %v2542 = vsel %vm2540, %v2539, 0.0
    %v2543 = vadd.f32 %v2541, %v2542
    %2544 = vadd.xlane.f32.xlu0 %v2543
    %v2545 = vpop.xlane.xlu0 %2544
    %v2546 = vrot.slane %v2545, 4
    %v2547 = vadd.f32 %v2545, %v2546
    %v2548 = vrot.slane %v2547, 2
    %v2549 = vadd.f32 %v2547, %v2548
    %v2550 = vrot.slane %v2549, 1
    %v2551 = vadd.f32 %v2549, %v2550
    %s2552 = vtos %v2551
    %s2553 = smul.f32 %s2552, 0.0625
    %v2554 = vstv %s2553
    %2555 = vst [vmem:[#allocation14] sm:$0x1] %v2554
    // Predicated region
    $region98: #{audio_flamingo_forward.3} parent=1 // pred_check
      _
    $region99: #{audio_flamingo_forward.3} parent=1 // pred_check_branch
      %2557 = sbr.rel (0) target = $region101
    $region100: #{audio_flamingo_forward.3} parent=1 // pred_region
      %2559 = vsyncadd [#allocation4], 0
      %s2561 = sshll.u32 [#allocation14], 4
      %s2562 = int_to_ptr.vmem [resolvable:$true] %s2561
      %s2563 = sshll.u32 %s17, 4
      %s2564 = int_to_ptr.hbm [resolvable:$true] %s2563
      %2566 = dma.vmem_to_hbm [thread:$0]  %s2562, 16, %s2564, [#allocation4]
    $region101: #{audio_flamingo_forward.3} parent=1 // pred_fallthru
      _
    // Predicated region
    $region102: #{audio_flamingo_forward.3} parent=1 // pred_check
      _
    $region103: #{audio_flamingo_forward.3} parent=1 // pred_check_branch
      %2568 = sbr.rel (0) target = $region105
    $region104: #{audio_flamingo_forward.3} parent=1 // pred_region
      %2570 = dma.done [#allocation4], 16
    $region105: #{audio_flamingo_forward.3} parent=1 // pred_fallthru
      _
    %2571 = vsyncpa [#allocation3], 1
    %2572 = vsyncpa [#allocation6], 1
    %2573 = vsyncpa [#allocation9], 1
    %2574 = vsyncpa [#allocation12], 1
    %2575 = vsyncpa [#allocation4], 1

</llo_original>
